<compile_context>
chip_gen: v6e
topology: v6e:2x2x1
jax: 0.10.0
libtpu: 0.0.40
codegen_flags: <defaults>
</compile_context>

<pallas_src>
import functools

import numpy as np
import jax
import jax.numpy as jnp
from jax import lax
from jax.experimental import pallas as pl
from jax.experimental.pallas import tpu as pltpu

# ----------------------------- model hyper-params (small, consistent) --------
COLOR_CHANNELS = 1
N_CLASSES = 3          # ('benign', 'malignant', 'normal')
LATENT_SIZE = 32       # reference uses 400; smaller but same structure
NB_FILTER = 2
BATCH = 2
BN_EPS = 1e-5
GROUP = 4              # 2x2 sub-pixel parities of a stride-2 transposed conv
TN_CAP = 8192          # lane (pixel) tile for the tiled final layer


def _round_up(x, m):
    return ((x + m - 1) // m) * m


# ----------------------------- Pallas kernels --------------------------------
def matmul_act_kernel(a_ref, b_ref, o_ref, *, act):
    """act(A @ B) on the MXU; bf16 operands, f32 accumulation."""
    y = jnp.dot(a_ref[...], b_ref[...], preferred_element_type=jnp.float32)
    if act == "relu":
        y = jnp.maximum(y, 0.0)
    elif act == "tanh":
        y = jnp.tanh(y)
    o_ref[...] = y.astype(o_ref.dtype)


def gemm_bn_relu_kernel(w_ref, a_ref, g_ref, b_ref, o_ref, *, n_pix, group, eps):
    """One full ConvT(4,2,1)+BatchNorm2d(train)+ReLU layer, transposed layout.

    w_ref: (group*cout, K) bf16   sub-pixel weight, rows ordered (parity, ch)
    a_ref: (K, n_pix)     bf16   dense 3x3 patches (taps/chans in sublanes,
                                  pixels in lanes -> lane-dense stores)
    g_ref, b_ref: (1, cout) f32   BN gamma / beta
    o_ref: (group*cout, n_pix) f32
    """
    y = jnp.dot(w_ref[...], a_ref[...], preferred_element_type=jnp.float32)
    rows = y.shape[0]
    cout = rows // group
    inv_cnt = 1.0 / float(group * n_pix)        # every parity of every pixel

    # Per-(parity, channel) sums over all base pixels (lane reduce, XLU).
    s_pc = jnp.sum(y, axis=1, keepdims=True)            # (rows, 1)
    q_pc = jnp.sum(y * y, axis=1, keepdims=True)        # (rows, 1)

    # Pool the 4 parities into per-channel stats and broadcast back with a tiny
    # one-hot mask (iota/rem/mul/reduce only -- no odd sublane slicing).
    spread = (lax.broadcasted_iota(jnp.int32, (rows, cout), 0) % cout ==
              lax.broadcasted_iota(jnp.int32, (rows, cout), 1)).astype(jnp.float32)
    s_c = jnp.sum(spread * s_pc, axis=0, keepdims=True)  # (1, cout)
    q_c = jnp.sum(spread * q_pc, axis=0, keepdims=True)  # (1, cout)

    mean = s_c * inv_cnt
    var = jnp.maximum(q_c * inv_cnt - mean * mean, 0.0)  # f32 cancellation guard
    scale_c = g_ref[...] * lax.rsqrt(var + eps)          # (1, cout)
    shift_c = b_ref[...] - mean * scale_c                # (1, cout)

    scale = jnp.sum(spread * scale_c, axis=1, keepdims=True)  # (rows, 1)
    shift = jnp.sum(spread * shift_c, axis=1, keepdims=True)  # (rows, 1)

    o_ref[...] = jnp.maximum(y * scale + shift, 0.0).astype(o_ref.dtype)


# -------------------- stride-2 ConvTranspose2d as sub-pixel GEMM -------------
# For K=4, stride=2, pad=1: output pixel (2j+py, 2j+px) only sees input pixels
# at offsets {-1,0,+1}; the weight tap used for parity p and offset index d is:
_KMAP = {0: {0: 3, 1: 1}, 1: {1: 2, 2: 0}}   # parity -> {offset index d: tap k}


def _conv_weight_t(w_t):
    """ConvTranspose2d weight (Cin, Cout, 4, 4) -> transposed GEMM weight
    (4*Cout, 9*Cin); rows ordered (py, px, Cout), cols ordered (dh, dw, Cin)."""
    sel = np.zeros((2, 3), np.int32)
    use = np.zeros((2, 3), np.float32)
    for p, m in _KMAP.items():
        for d, k in m.items():
            sel[p, d] = k
            use[p, d] = 1.0
    wh = w_t[:, :, sel, :] * use[None, None, :, :, None]           # (Ci,Co,ph,dh,kw)
    whw = wh[:, :, :, :, sel] * use[None, None, None, None, :, :]  # (Ci,Co,ph,dh,pw,dw)
    cin, cout = w_t.shape[0], w_t.shape[1]
    wt = jnp.transpose(whw, (2, 4, 1, 3, 5, 0))                    # (ph,pw,Co,dh,dw,Ci)
    return wt.reshape(4 * cout, 9 * cin)


def _planar_patches(x_pl):
    """Dense 3x3 neighbourhood patches with zero border, planar layout:
    (C, B, H, W) -> (9*C, B*H*W); rows (dh, dw, c), cols (b, h, w)."""
    C, B, H, W = x_pl.shape
    xp = jnp.pad(x_pl, ((0, 0), (0, 0), (1, 1), (1, 1)))
    cols = [xp[:, :, dh:dh + H, dw:dw + W] for dh in range(3) for dw in range(3)]
    return jnp.stack(cols, axis=0).reshape(9 * C, B * H * W)


def _interleave_planar(yt, B, H, W, cout):
    """(4*cout, B*H*W) rows (py,px,c) -> planar (cout, B, 2H, 2W)."""
    y = yt.reshape(2, 2, cout, B, H, W)
    y = jnp.transpose(y, (2, 3, 4, 0, 5, 1))          # (c, b, h, py, w, px)
    return y.reshape(cout, B, 2 * H, 2 * W)


def conv_t_s2_bn_relu(x_pl, w_t, gamma, beta):
    """relu(BatchNorm(ConvTranspose2d(4,2,1)(x))) — one fused pallas_call."""
    C, B, H, W = x_pl.shape
    cout = w_t.shape[1]
    a = _planar_patches(x_pl)                          # (9C, B*H*W)
    wt = _conv_weight_t(w_t)                           # (4*cout, 9C)
    K = a.shape[0]
    Kp = _round_up(K, 16)                              # bf16 sublane friendliness
    if Kp != K:
        a = jnp.pad(a, ((0, Kp - K), (0, 0)))
        wt = jnp.pad(wt, ((0, 0), (0, Kp - K)))
    a16 = a.astype(jnp.bfloat16)
    w16 = wt.astype(jnp.bfloat16)
    n_pix = B * H * W
    rows = 4 * cout
    gp = gamma.reshape(1, cout).astype(jnp.float32)
    bp = beta.reshape(1, cout).astype(jnp.float32)

    yt = pl.pallas_call(
        functools.partial(gemm_bn_relu_kernel, n_pix=n_pix, group=GROUP, eps=BN_EPS),
        out_shape=jax.ShapeDtypeStruct((rows, n_pix), jnp.float32),
        grid=(1,),
        in_specs=[
            pl.BlockSpec((rows, Kp), lambda i: (0, 0)),
            pl.BlockSpec((Kp, n_pix), lambda i: (0, 0)),
            pl.BlockSpec((1, cout), lambda i: (0, 0)),
            pl.BlockSpec((1, cout), lambda i: (0, 0)),
        ],
        out_specs=pl.BlockSpec((rows, n_pix), lambda i: (0, 0)),
    )(w16, a16, gp, bp)
    return _interleave_planar(yt, B, H, W, cout)


def conv_t_s2_act(x_pl, w_t, act="tanh", tn_cap=TN_CAP):
    """act(ConvTranspose2d(4,2,1)(x)) — tiled over the pixel/lane dimension."""
    C, B, H, W = x_pl.shape
    cout = w_t.shape[1]
    a = _planar_patches(x_pl)                          # (9C, B*H*W)
    wt = _conv_weight_t(w_t)                           # (4*cout, 9C)
    K = a.shape[0]
    Kp = _round_up(K, 16)
    n_pix = B * H * W
    tn = min(tn_cap, _round_up(n_pix, 128))
    np_pad = _round_up(n_pix, tn)
    if Kp != K or np_pad != n_pix:
        a = jnp.pad(a, ((0, Kp - K), (0, np_pad - n_pix)))
        wt = jnp.pad(wt, ((0, 0), (0, Kp - K)))
    a16 = a.astype(jnp.bfloat16)
    w16 = wt.astype(jnp.bfloat16)
    rows = 4 * cout

    yt = pl.pallas_call(
        functools.partial(matmul_act_kernel, act=act),
        out_shape=jax.ShapeDtypeStruct((rows, np_pad), jnp.float32),
        grid=(np_pad // tn,),
        in_specs=[
            pl.BlockSpec((rows, Kp), lambda i: (0, 0)),
            pl.BlockSpec((Kp, tn), lambda i: (0, i)),
        ],
        out_specs=pl.BlockSpec((rows, tn), lambda i: (0, i)),
        compiler_params=pltpu.CompilerParams(dimension_semantics=("parallel",)),
    )(w16, a16)
    if np_pad != n_pix:
        yt = yt[:, :n_pix]
    return _interleave_planar(yt, B, H, W, cout)


def dense_act(x, wm, act="relu"):
    """act(x @ wm) for the tiny 1x1-input first layer — single grid step."""
    M, K = x.shape
    N = wm.shape[1]
    Mp = _round_up(M, 8)
    Kp = _round_up(K, 16)
    xp = jnp.pad(x, ((0, Mp - M), (0, Kp - K))).astype(jnp.bfloat16)
    wp = jnp.pad(wm, ((0, Kp - K), (0, 0))).astype(jnp.bfloat16)
    y = pl.pallas_call(
        functools.partial(matmul_act_kernel, act=act),
        out_shape=jax.ShapeDtypeStruct((Mp, N), jnp.float32),
        grid=(1,),
        in_specs=[pl.BlockSpec((Mp, Kp), lambda i: (0, 0)),
                  pl.BlockSpec((Kp, N), lambda i: (0, 0))],
        out_specs=pl.BlockSpec((Mp, N), lambda i: (0, 0)),
    )(xp, wp)
    return y[:M]


# ----------------------------- parameter init --------------------------------
def init_params(key):
    nf = NB_FILTER
    chans = [LATENT_SIZE, nf * 32, nf * 16, nf * 8, nf * 4, nf * 2, nf,
             COLOR_CHANNELS]
    params = {}
    keys = jax.random.split(key, 16)
    params["emb_w"] = 0.02 * jax.random.normal(
        keys[0], (LATENT_SIZE, N_CLASSES), jnp.float32)     # nn.Linear weight
    params["emb_b"] = jnp.zeros((LATENT_SIZE,), jnp.float32)
    for li in range(7):
        cin, cout = chans[li], chans[li + 1]
        params[f"w{li + 1}"] = 0.02 * jax.random.normal(
            keys[1 + li], (cin, cout, 4, 4), jnp.float32)    # ConvTranspose2d weight
        if 1 <= li <= 5:  # layers 2..6 have BatchNorm2d
            params[f"g{li + 1}"] = 1.0 + 0.02 * jax.random.normal(
                keys[8 + li], (cout,), jnp.float32)
            params[f"b{li + 1}"] = jnp.zeros((cout,), jnp.float32)
    return params


# ----------------------------- forward ----------------------------------------
@jax.jit
def generator_forward(params, latent, label):
    # Embedding Linear (2x3 @ 3x32) kept in plain jnp: below one vreg of work.
    emb = label @ params["emb_w"].T + params["emb_b"]
    x = emb * latent                                    # torch.mul(label_embedding, latent)

    # layer1: ConvTranspose2d(latent, nf*32, 4, 1, 0) + ReLU
    #   1x1 input -> exactly x @ W with columns ordered (kh, kw, co)
    w1 = params["w1"]
    c1 = w1.shape[1]
    wm1 = jnp.transpose(w1, (0, 2, 3, 1)).reshape(LATENT_SIZE, 16 * c1)
    y = dense_act(x, wm1, act="relu")                   # (B, 16*c1)
    y = y.reshape(BATCH, 4, 4, c1)                      # NHWC
    y = jnp.transpose(y, (3, 0, 1, 2))                  # planar (c1, B, 4, 4)

    # layers 2..6: ConvTranspose2d(., ., 4, 2, 1) + BatchNorm2d + ReLU (fused)
    for li in range(2, 7):
        y = conv_t_s2_bn_relu(y, params[f"w{li}"], params[f"g{li}"], params[f"b{li}"])

    # layer7: ConvTranspose2d(nf, 1, 4, 2, 1) + Tanh
    y = conv_t_s2_act(y, params["w7"], act="tanh")      # planar (1, B, 256, 256)
    return jnp.transpose(y, (1, 0, 2, 3))               # NCHW (B, 1, 256, 256)


# ----------------------------- main -------------------------------------------
if __name__ == "__main__":
    key = jax.random.PRNGKey(0)
    k_params, k_latent, k_label = jax.random.split(key, 3)

    params = init_params(k_params)
    latent = jax.random.normal(k_latent, (BATCH, LATENT_SIZE), jnp.float32)
    label_idx = jax.random.randint(k_label, (BATCH,), 0, N_CLASSES)
    label = jax.nn.one_hot(label_idx, N_CLASSES, dtype=jnp.float32)

    out = generator_forward(params, latent, label)
    out = jax.block_until_ready(out)

    expected = (BATCH, COLOR_CHANNELS, 256, 256)
    assert out.shape == expected, (out.shape, expected)
    assert bool(jnp.all(jnp.isfinite(out)))
    assert bool(jnp.all(jnp.abs(out) <= 1.0 + 1e-6))   # tanh range
    print("KERNEL_OK")
</pallas_src>

<mosaic_0001>
module attributes {stable_mosaic.version = 11 : i64} {
  func.func @matmul_act_kernel(%arg0: i32, %arg1: memref<8x32xbf16, #tpu.memory_space<vmem>>, %arg2: memref<32x1024xbf16, #tpu.memory_space<vmem>>, %arg3: memref<8x1024xf32, #tpu.memory_space<vmem>>) attributes {dimension_semantics = [#tpu.dimension_semantics<arbitrary>], iteration_bounds = array<i64: 1>, scalar_prefetch = 0 : i64, scratch_operands = 0 : i64, tpu.core_type = #tpu.core_type<tc>, window_params = [{pipeline_mode = #tpu.pipeline_mode<synchronous>, transform_indices = @transform_0, window_bounds = array<i64: 8, 32>}, {pipeline_mode = #tpu.pipeline_mode<synchronous>, transform_indices = @transform_1, window_bounds = array<i64: 32, 1024>}, {pipeline_mode = #tpu.pipeline_mode<synchronous>, transform_indices = @transform_2, window_bounds = array<i64: 8, 1024>}]} {
    %c0 = arith.constant 0 : index
    %c0_0 = arith.constant 0 : index
    %0 = vector.load %arg1[%c0, %c0_0] : memref<8x32xbf16, #tpu.memory_space<vmem>>, vector<8x32xbf16>
    %c0_1 = arith.constant 0 : index
    %c0_2 = arith.constant 0 : index
    %1 = vector.load %arg2[%c0_1, %c0_2] : memref<32x1024xbf16, #tpu.memory_space<vmem>>, vector<32x1024xbf16>
    %cst = arith.constant dense<0.000000e+00> : vector<8x1024xf32>
    %2 = tpu.matmul %0, %1, %cst {dimension_numbers = #tpu.dot_dimension_numbers<[1], [0], [0], [1], [0, 0, 1, 1], [], []>} : vector<8x32xbf16>, vector<32x1024xbf16>, vector<8x1024xf32> -> vector<8x1024xf32>
    %cst_3 = arith.constant 0.000000e+00 : f32
    %3 = vector.broadcast %cst_3 : f32 to vector<8x1024xf32>
    %4 = arith.maximumf %2, %3 : vector<8x1024xf32>
    %c0_4 = arith.constant 0 : index
    %c0_5 = arith.constant 0 : index
    %5 = vector.load %arg3[%c0_4, %c0_5] : memref<8x1024xf32, #tpu.memory_space<vmem>>, vector<8x1024xf32>
    tpu.vector_store %arg3[%c0_4, %c0_5], %4 {strides = array<i32>} : memref<8x1024xf32, #tpu.memory_space<vmem>>, vector<8x1024xf32>,
    return
  }
  func.func @transform_0(%arg0: i32) -> (i32, i32) {
    %c0_i32 = arith.constant 0 : i32
    %c0_i32_0 = arith.constant 0 : i32
    %c0_i32_1 = arith.constant 0 : i32
    return %c0_i32, %c0_i32_0 : i32, i32
  }
  func.func @transform_1(%arg0: i32) -> (i32, i32) {
    %c0_i32 = arith.constant 0 : i32
    %c0_i32_0 = arith.constant 0 : i32
    %c0_i32_1 = arith.constant 0 : i32
    return %c0_i32, %c0_i32_0 : i32, i32
  }
  func.func @transform_2(%arg0: i32) -> (i32, i32) {
    %c0_i32 = arith.constant 0 : i32
    %c0_i32_0 = arith.constant 0 : i32
    %c0_i32_1 = arith.constant 0 : i32
    return %c0_i32, %c0_i32_0 : i32, i32
  }
}

module attributes {stable_mosaic.version = 11 : i64} {
  func.func @gemm_bn_relu_kernel(%arg0: i32, %arg1: memref<128x576xbf16, #tpu.memory_space<vmem>>, %arg2: memref<576x32xbf16, #tpu.memory_space<vmem>>, %arg3: memref<1x32xf32, #tpu.memory_space<vmem>>, %arg4: memref<1x32xf32, #tpu.memory_space<vmem>>, %arg5: memref<128x32xf32, #tpu.memory_space<vmem>>) attributes {dimension_semantics = [#tpu.dimension_semantics<arbitrary>], iteration_bounds = array<i64: 1>, scalar_prefetch = 0 : i64, scratch_operands = 0 : i64, tpu.core_type = #tpu.core_type<tc>, window_params = [{pipeline_mode = #tpu.pipeline_mode<synchronous>, transform_indices = @transform_0, window_bounds = array<i64: 128, 576>}, {pipeline_mode = #tpu.pipeline_mode<synchronous>, transform_indices = @transform_1, window_bounds = array<i64: 576, 32>}, {pipeline_mode = #tpu.pipeline_mode<synchronous>, transform_indices = @transform_2, window_bounds = array<i64: 1, 32>}, {pipeline_mode = #tpu.pipeline_mode<synchronous>, transform_indices = @transform_3, window_bounds = array<i64: 1, 32>}, {pipeline_mode = #tpu.pipeline_mode<synchronous>, transform_indices = @transform_4, window_bounds = array<i64: 128, 32>}]} {
    %c0 = arith.constant 0 : index
    %c0_0 = arith.constant 0 : index
    %0 = vector.load %arg1[%c0, %c0_0] : memref<128x576xbf16, #tpu.memory_space<vmem>>, vector<128x576xbf16>
    %c0_1 = arith.constant 0 : index
    %c0_2 = arith.constant 0 : index
    %1 = vector.load %arg2[%c0_1, %c0_2] : memref<576x32xbf16, #tpu.memory_space<vmem>>, vector<576x32xbf16>
    %cst = arith.constant dense<0.000000e+00> : vector<128x32xf32>
    %2 = tpu.matmul %0, %1, %cst {dimension_numbers = #tpu.dot_dimension_numbers<[1], [0], [0], [1], [0, 0, 1, 1], [], []>} : vector<128x576xbf16>, vector<576x32xbf16>, vector<128x32xf32> -> vector<128x32xf32>
    %cst_3 = arith.constant dense<0.000000e+00> : vector<128xf32>
    %3 = vector.multi_reduction <add>, %2, %cst_3 [1] : vector<128x32xf32> to vector<128xf32>
    %4 = vector.shape_cast %3 : vector<128xf32> to vector<128x1xf32>
    %5 = arith.mulf %2, %2 : vector<128x32xf32>
    %cst_4 = arith.constant dense<0.000000e+00> : vector<128xf32>
    %6 = vector.multi_reduction <add>, %5, %cst_4 [1] : vector<128x32xf32> to vector<128xf32>
    %7 = vector.shape_cast %6 : vector<128xf32> to vector<128x1xf32>
    %8 = tpu.iota {dimensions = array<i32: 0>} : vector<128x32xi32>
    %c32_i32 = arith.constant 32 : i32
    %c0_i32 = arith.constant 0 : i32
    %9 = arith.cmpi eq, %c32_i32, %c0_i32 : i32
    %c1_i32 = arith.constant 1 : i32
    %10 = arith.select %9, %c1_i32, %c32_i32 : i32
    %11 = vector.broadcast %10 : i32 to vector<128x32xi32>
    %12 = arith.remsi %8, %11 : vector<128x32xi32>
    %c0_i32_5 = arith.constant 0 : i32
    %13 = vector.broadcast %c0_i32_5 : i32 to vector<128x32xi32>
    %14 = arith.cmpi ne, %12, %13 : vector<128x32xi32>
    %c0_i32_6 = arith.constant 0 : i32
    %15 = vector.broadcast %c0_i32_6 : i32 to vector<128x32xi32>
    %16 = arith.cmpi slt, %12, %15 : vector<128x32xi32>
    %c0_i32_7 = arith.constant 0 : i32
    %17 = arith.cmpi slt, %10, %c0_i32_7 : i32
    %18 = vector.broadcast %17 : i1 to vector<128x32xi1>
    %19 = vector.broadcast %18 : vector<128x32xi1> to vector<128x32xi1>
    %20 = arith.xori %16, %19 : vector<128x32xi1>
    %21 = arith.andi %20, %14 : vector<128x32xi1>
    %22 = vector.broadcast %10 : i32 to vector<128x32xi32>
    %23 = arith.addi %12, %22 : vector<128x32xi32>
    %24 = arith.select %21, %23, %12 : vector<128x32xi1>, vector<128x32xi32>
    %25 = tpu.iota {dimensions = array<i32: 1>} : vector<128x32xi32>
    %26 = arith.cmpi eq, %24, %25 : vector<128x32xi32>
    %27 = arith.extui %26 : vector<128x32xi1> to vector<128x32xi32>
    %28 = arith.sitofp %27 : vector<128x32xi32> to vector<128x32xf32>
    %29 = vector.broadcast %4 : vector<128x1xf32> to vector<128x32xf32>
    %30 = arith.mulf %28, %29 : vector<128x32xf32>
    %cst_8 = arith.constant dense<0.000000e+00> : vector<32xf32>
    %31 = vector.multi_reduction <add>, %30, %cst_8 [0] : vector<128x32xf32> to vector<32xf32>
    %32 = vector.shape_cast %31 : vector<32xf32> to vector<1x32xf32>
    %33 = vector.broadcast %7 : vector<128x1xf32> to vector<128x32xf32>
    %34 = arith.mulf %28, %33 : vector<128x32xf32>
    %cst_9 = arith.constant dense<0.000000e+00> : vector<32xf32>
    %35 = vector.multi_reduction <add>, %34, %cst_9 [0] : vector<128x32xf32> to vector<32xf32>
    %36 = vector.shape_cast %35 : vector<32xf32> to vector<1x32xf32>
    %cst_10 = arith.constant 7.812500e-03 : f32
    %37 = vector.broadcast %cst_10 : f32 to vector<1x32xf32>
    %38 = arith.mulf %32, %37 : vector<1x32xf32>
    %cst_11 = arith.constant 7.812500e-03 : f32
    %39 = vector.broadcast %cst_11 : f32 to vector<1x32xf32>
    %40 = arith.mulf %36, %39 : vector<1x32xf32>
    %41 = arith.mulf %38, %38 : vector<1x32xf32>
    %42 = arith.subf %40, %41 : vector<1x32xf32>
    %cst_12 = arith.constant 0.000000e+00 : f32
    %43 = vector.broadcast %cst_12 : f32 to vector<1x32xf32>
    %44 = arith.maximumf %42, %43 : vector<1x32xf32>
    %c0_13 = arith.constant 0 : index
    %c0_14 = arith.constant 0 : index
    %45 = vector.load %arg3[%c0_13, %c0_14] : memref<1x32xf32, #tpu.memory_space<vmem>>, vector<1x32xf32>
    %cst_15 = arith.constant 9.99999974E-6 : f32
    %46 = vector.broadcast %cst_15 : f32 to vector<1x32xf32>
    %47 = arith.addf %44, %46 : vector<1x32xf32>
    %48 = math.rsqrt %47 : vector<1x32xf32>
    %49 = arith.mulf %45, %48 : vector<1x32xf32>
    %c0_16 = arith.constant 0 : index
    %c0_17 = arith.constant 0 : index
    %50 = vector.load %arg4[%c0_16, %c0_17] : memref<1x32xf32, #tpu.memory_space<vmem>>, vector<1x32xf32>
    %51 = arith.mulf %38, %49 : vector<1x32xf32>
    %52 = arith.subf %50, %51 : vector<1x32xf32>
    %53 = vector.broadcast %49 : vector<1x32xf32> to vector<128x32xf32>
    %54 = arith.mulf %28, %53 : vector<128x32xf32>
    %cst_18 = arith.constant dense<0.000000e+00> : vector<128xf32>
    %55 = vector.multi_reduction <add>, %54, %cst_18 [1] : vector<128x32xf32> to vector<128xf32>
    %56 = vector.shape_cast %55 : vector<128xf32> to vector<128x1xf32>
    %57 = vector.broadcast %52 : vector<1x32xf32> to vector<128x32xf32>
    %58 = arith.mulf %28, %57 : vector<128x32xf32>
    %cst_19 = arith.constant dense<0.000000e+00> : vector<128xf32>
    %59 = vector.multi_reduction <add>, %58, %cst_19 [1] : vector<128x32xf32> to vector<128xf32>
    %60 = vector.shape_cast %59 : vector<128xf32> to vector<128x1xf32>
    %61 = vector.broadcast %56 : vector<128x1xf32> to vector<128x32xf32>
    %62 = arith.mulf %2, %61 : vector<128x32xf32>
    %63 = vector.broadcast %60 : vector<128x1xf32> to vector<128x32xf32>
    %64 = arith.addf %62, %63 : vector<128x32xf32>
    %cst_20 = arith.constant 0.000000e+00 : f32
    %65 = vector.broadcast %cst_20 : f32 to vector<128x32xf32>
    %66 = arith.maximumf %64, %65 : vector<128x32xf32>
    %c0_21 = arith.constant 0 : index
    %c0_22 = arith.constant 0 : index
    %67 = vector.load %arg5[%c0_21, %c0_22] : memref<128x32xf32, #tpu.memory_space<vmem>>, vector<128x32xf32>
    tpu.vector_store %arg5[%c0_21, %c0_22], %66 {strides = array<i32>} : memref<128x32xf32, #tpu.memory_space<vmem>>, vector<128x32xf32>,
    return
  }
  func.func @transform_0(%arg0: i32) -> (i32, i32) {
    %c0_i32 = arith.constant 0 : i32
    %c0_i32_0 = arith.constant 0 : i32
    %c0_i32_1 = arith.constant 0 : i32
    return %c0_i32, %c0_i32_0 : i32, i32
  }
  func.func @transform_1(%arg0: i32) -> (i32, i32) {
    %c0_i32 = arith.constant 0 : i32
    %c0_i32_0 = arith.constant 0 : i32
    %c0_i32_1 = arith.constant 0 : i32
    return %c0_i32, %c0_i32_0 : i32, i32
  }
  func.func @transform_2(%arg0: i32) -> (i32, i32) {
    %c0_i32 = arith.constant 0 : i32
    %c0_i32_0 = arith.constant 0 : i32
    %c0_i32_1 = arith.constant 0 : i32
    return %c0_i32, %c0_i32_0 : i32, i32
  }
  func.func @transform_3(%arg0: i32) -> (i32, i32) {
    %c0_i32 = arith.constant 0 : i32
    %c0_i32_0 = arith.constant 0 : i32
    %c0_i32_1 = arith.constant 0 : i32
    return %c0_i32, %c0_i32_0 : i32, i32
  }
  func.func @transform_4(%arg0: i32) -> (i32, i32) {
    %c0_i32 = arith.constant 0 : i32
    %c0_i32_0 = arith.constant 0 : i32
    %c0_i32_1 = arith.constant 0 : i32
    return %c0_i32, %c0_i32_0 : i32, i32
  }
}

module attributes {stable_mosaic.version = 11 : i64} {
  func.func @gemm_bn_relu_kernel(%arg0: i32, %arg1: memref<64x288xbf16, #tpu.memory_space<vmem>>, %arg2: memref<288x128xbf16, #tpu.memory_space<vmem>>, %arg3: memref<1x16xf32, #tpu.memory_space<vmem>>, %arg4: memref<1x16xf32, #tpu.memory_space<vmem>>, %arg5: memref<64x128xf32, #tpu.memory_space<vmem>>) attributes {dimension_semantics = [#tpu.dimension_semantics<arbitrary>], iteration_bounds = array<i64: 1>, scalar_prefetch = 0 : i64, scratch_operands = 0 : i64, tpu.core_type = #tpu.core_type<tc>, window_params = [{pipeline_mode = #tpu.pipeline_mode<synchronous>, transform_indices = @transform_0, window_bounds = array<i64: 64, 288>}, {pipeline_mode = #tpu.pipeline_mode<synchronous>, transform_indices = @transform_1, window_bounds = array<i64: 288, 128>}, {pipeline_mode = #tpu.pipeline_mode<synchronous>, transform_indices = @transform_2, window_bounds = array<i64: 1, 16>}, {pipeline_mode = #tpu.pipeline_mode<synchronous>, transform_indices = @transform_3, window_bounds = array<i64: 1, 16>}, {pipeline_mode = #tpu.pipeline_mode<synchronous>, transform_indices = @transform_4, window_bounds = array<i64: 64, 128>}]} {
    %c0 = arith.constant 0 : index
    %c0_0 = arith.constant 0 : index
    %0 = vector.load %arg1[%c0, %c0_0] : memref<64x288xbf16, #tpu.memory_space<vmem>>, vector<64x288xbf16>
    %c0_1 = arith.constant 0 : index
    %c0_2 = arith.constant 0 : index
    %1 = vector.load %arg2[%c0_1, %c0_2] : memref<288x128xbf16, #tpu.memory_space<vmem>>, vector<288x128xbf16>
    %cst = arith.constant dense<0.000000e+00> : vector<64x128xf32>
    %2 = tpu.matmul %0, %1, %cst {dimension_numbers = #tpu.dot_dimension_numbers<[1], [0], [0], [1], [0, 0, 1, 1], [], []>} : vector<64x288xbf16>, vector<288x128xbf16>, vector<64x128xf32> -> vector<64x128xf32>
    %cst_3 = arith.constant dense<0.000000e+00> : vector<64xf32>
    %3 = vector.multi_reduction <add>, %2, %cst_3 [1] : vector<64x128xf32> to vector<64xf32>
    %4 = vector.shape_cast %3 : vector<64xf32> to vector<64x1xf32>
    %5 = arith.mulf %2, %2 : vector<64x128xf32>
    %cst_4 = arith.constant dense<0.000000e+00> : vector<64xf32>
    %6 = vector.multi_reduction <add>, %5, %cst_4 [1] : vector<64x128xf32> to vector<64xf32>
    %7 = vector.shape_cast %6 : vector<64xf32> to vector<64x1xf32>
    %8 = tpu.iota {dimensions = array<i32: 0>} : vector<64x16xi32>
    %c16_i32 = arith.constant 16 : i32
    %c0_i32 = arith.constant 0 : i32
    %9 = arith.cmpi eq, %c16_i32, %c0_i32 : i32
    %c1_i32 = arith.constant 1 : i32
    %10 = arith.select %9, %c1_i32, %c16_i32 : i32
    %11 = vector.broadcast %10 : i32 to vector<64x16xi32>
    %12 = arith.remsi %8, %11 : vector<64x16xi32>
    %c0_i32_5 = arith.constant 0 : i32
    %13 = vector.broadcast %c0_i32_5 : i32 to vector<64x16xi32>
    %14 = arith.cmpi ne, %12, %13 : vector<64x16xi32>
    %c0_i32_6 = arith.constant 0 : i32
    %15 = vector.broadcast %c0_i32_6 : i32 to vector<64x16xi32>
    %16 = arith.cmpi slt, %12, %15 : vector<64x16xi32>
    %c0_i32_7 = arith.constant 0 : i32
    %17 = arith.cmpi slt, %10, %c0_i32_7 : i32
    %18 = vector.broadcast %17 : i1 to vector<64x16xi1>
    %19 = vector.broadcast %18 : vector<64x16xi1> to vector<64x16xi1>
    %20 = arith.xori %16, %19 : vector<64x16xi1>
    %21 = arith.andi %20, %14 : vector<64x16xi1>
    %22 = vector.broadcast %10 : i32 to vector<64x16xi32>
    %23 = arith.addi %12, %22 : vector<64x16xi32>
    %24 = arith.select %21, %23, %12 : vector<64x16xi1>, vector<64x16xi32>
    %25 = tpu.iota {dimensions = array<i32: 1>} : vector<64x16xi32>
    %26 = arith.cmpi eq, %24, %25 : vector<64x16xi32>
    %27 = arith.extui %26 : vector<64x16xi1> to vector<64x16xi32>
    %28 = arith.sitofp %27 : vector<64x16xi32> to vector<64x16xf32>
    %29 = vector.broadcast %4 : vector<64x1xf32> to vector<64x16xf32>
    %30 = arith.mulf %28, %29 : vector<64x16xf32>
    %cst_8 = arith.constant dense<0.000000e+00> : vector<16xf32>
    %31 = vector.multi_reduction <add>, %30, %cst_8 [0] : vector<64x16xf32> to vector<16xf32>
    %32 = vector.shape_cast %31 : vector<16xf32> to vector<1x16xf32>
    %33 = vector.broadcast %7 : vector<64x1xf32> to vector<64x16xf32>
    %34 = arith.mulf %28, %33 : vector<64x16xf32>
    %cst_9 = arith.constant dense<0.000000e+00> : vector<16xf32>
    %35 = vector.multi_reduction <add>, %34, %cst_9 [0] : vector<64x16xf32> to vector<16xf32>
    %36 = vector.shape_cast %35 : vector<16xf32> to vector<1x16xf32>
    %cst_10 = arith.constant 0.001953125 : f32
    %37 = vector.broadcast %cst_10 : f32 to vector<1x16xf32>
    %38 = arith.mulf %32, %37 : vector<1x16xf32>
    %cst_11 = arith.constant 0.001953125 : f32
    %39 = vector.broadcast %cst_11 : f32 to vector<1x16xf32>
    %40 = arith.mulf %36, %39 : vector<1x16xf32>
    %41 = arith.mulf %38, %38 : vector<1x16xf32>
    %42 = arith.subf %40, %41 : vector<1x16xf32>
    %cst_12 = arith.constant 0.000000e+00 : f32
    %43 = vector.broadcast %cst_12 : f32 to vector<1x16xf32>
    %44 = arith.maximumf %42, %43 : vector<1x16xf32>
    %c0_13 = arith.constant 0 : index
    %c0_14 = arith.constant 0 : index
    %45 = vector.load %arg3[%c0_13, %c0_14] : memref<1x16xf32, #tpu.memory_space<vmem>>, vector<1x16xf32>
    %cst_15 = arith.constant 9.99999974E-6 : f32
    %46 = vector.broadcast %cst_15 : f32 to vector<1x16xf32>
    %47 = arith.addf %44, %46 : vector<1x16xf32>
    %48 = math.rsqrt %47 : vector<1x16xf32>
    %49 = arith.mulf %45, %48 : vector<1x16xf32>
    %c0_16 = arith.constant 0 : index
    %c0_17 = arith.constant 0 : index
    %50 = vector.load %arg4[%c0_16, %c0_17] : memref<1x16xf32, #tpu.memory_space<vmem>>, vector<1x16xf32>
    %51 = arith.mulf %38, %49 : vector<1x16xf32>
    %52 = arith.subf %50, %51 : vector<1x16xf32>
    %53 = vector.broadcast %49 : vector<1x16xf32> to vector<64x16xf32>
    %54 = arith.mulf %28, %53 : vector<64x16xf32>
    %cst_18 = arith.constant dense<0.000000e+00> : vector<64xf32>
    %55 = vector.multi_reduction <add>, %54, %cst_18 [1] : vector<64x16xf32> to vector<64xf32>
    %56 = vector.shape_cast %55 : vector<64xf32> to vector<64x1xf32>
    %57 = vector.broadcast %52 : vector<1x16xf32> to vector<64x16xf32>
    %58 = arith.mulf %28, %57 : vector<64x16xf32>
    %cst_19 = arith.constant dense<0.000000e+00> : vector<64xf32>
    %59 = vector.multi_reduction <add>, %58, %cst_19 [1] : vector<64x16xf32> to vector<64xf32>
    %60 = vector.shape_cast %59 : vector<64xf32> to vector<64x1xf32>
    %61 = vector.broadcast %56 : vector<64x1xf32> to vector<64x128xf32>
    %62 = arith.mulf %2, %61 : vector<64x128xf32>
    %63 = vector.broadcast %60 : vector<64x1xf32> to vector<64x128xf32>
    %64 = arith.addf %62, %63 : vector<64x128xf32>
    %cst_20 = arith.constant 0.000000e+00 : f32
    %65 = vector.broadcast %cst_20 : f32 to vector<64x128xf32>
    %66 = arith.maximumf %64, %65 : vector<64x128xf32>
    %c0_21 = arith.constant 0 : index
    %c0_22 = arith.constant 0 : index
    %67 = vector.load %arg5[%c0_21, %c0_22] : memref<64x128xf32, #tpu.memory_space<vmem>>, vector<64x128xf32>
    tpu.vector_store %arg5[%c0_21, %c0_22], %66 {strides = array<i32>} : memref<64x128xf32, #tpu.memory_space<vmem>>, vector<64x128xf32>,
    return
  }
  func.func @transform_0(%arg0: i32) -> (i32, i32) {
    %c0_i32 = arith.constant 0 : i32
    %c0_i32_0 = arith.constant 0 : i32
    %c0_i32_1 = arith.constant 0 : i32
    return %c0_i32, %c0_i32_0 : i32, i32
  }
  func.func @transform_1(%arg0: i32) -> (i32, i32) {
    %c0_i32 = arith.constant 0 : i32
    %c0_i32_0 = arith.constant 0 : i32
    %c0_i32_1 = arith.constant 0 : i32
    return %c0_i32, %c0_i32_0 : i32, i32
  }
  func.func @transform_2(%arg0: i32) -> (i32, i32) {
    %c0_i32 = arith.constant 0 : i32
    %c0_i32_0 = arith.constant 0 : i32
    %c0_i32_1 = arith.constant 0 : i32
    return %c0_i32, %c0_i32_0 : i32, i32
  }
  func.func @transform_3(%arg0: i32) -> (i32, i32) {
    %c0_i32 = arith.constant 0 : i32
    %c0_i32_0 = arith.constant 0 : i32
    %c0_i32_1 = arith.constant 0 : i32
    return %c0_i32, %c0_i32_0 : i32, i32
  }
  func.func @transform_4(%arg0: i32) -> (i32, i32) {
    %c0_i32 = arith.constant 0 : i32
    %c0_i32_0 = arith.constant 0 : i32
    %c0_i32_1 = arith.constant 0 : i32
    return %c0_i32, %c0_i32_0 : i32, i32
  }
}

module attributes {stable_mosaic.version = 11 : i64} {
  func.func @gemm_bn_relu_kernel(%arg0: i32, %arg1: memref<32x144xbf16, #tpu.memory_space<vmem>>, %arg2: memref<144x512xbf16, #tpu.memory_space<vmem>>, %arg3: memref<1x8xf32, #tpu.memory_space<vmem>>, %arg4: memref<1x8xf32, #tpu.memory_space<vmem>>, %arg5: memref<32x512xf32, #tpu.memory_space<vmem>>) attributes {dimension_semantics = [#tpu.dimension_semantics<arbitrary>], iteration_bounds = array<i64: 1>, scalar_prefetch = 0 : i64, scratch_operands = 0 : i64, tpu.core_type = #tpu.core_type<tc>, window_params = [{pipeline_mode = #tpu.pipeline_mode<synchronous>, transform_indices = @transform_0, window_bounds = array<i64: 32, 144>}, {pipeline_mode = #tpu.pipeline_mode<synchronous>, transform_indices = @transform_1, window_bounds = array<i64: 144, 512>}, {pipeline_mode = #tpu.pipeline_mode<synchronous>, transform_indices = @transform_2, window_bounds = array<i64: 1, 8>}, {pipeline_mode = #tpu.pipeline_mode<synchronous>, transform_indices = @transform_3, window_bounds = array<i64: 1, 8>}, {pipeline_mode = #tpu.pipeline_mode<synchronous>, transform_indices = @transform_4, window_bounds = array<i64: 32, 512>}]} {
    %c0 = arith.constant 0 : index
    %c0_0 = arith.constant 0 : index
    %0 = vector.load %arg1[%c0, %c0_0] : memref<32x144xbf16, #tpu.memory_space<vmem>>, vector<32x144xbf16>
    %c0_1 = arith.constant 0 : index
    %c0_2 = arith.constant 0 : index
    %1 = vector.load %arg2[%c0_1, %c0_2] : memref<144x512xbf16, #tpu.memory_space<vmem>>, vector<144x512xbf16>
    %cst = arith.constant dense<0.000000e+00> : vector<32x512xf32>
    %2 = tpu.matmul %0, %1, %cst {dimension_numbers = #tpu.dot_dimension_numbers<[1], [0], [0], [1], [0, 0, 1, 1], [], []>} : vector<32x144xbf16>, vector<144x512xbf16>, vector<32x512xf32> -> vector<32x512xf32>
    %cst_3 = arith.constant dense<0.000000e+00> : vector<32xf32>
    %3 = vector.multi_reduction <add>, %2, %cst_3 [1] : vector<32x512xf32> to vector<32xf32>
    %4 = vector.shape_cast %3 : vector<32xf32> to vector<32x1xf32>
    %5 = arith.mulf %2, %2 : vector<32x512xf32>
    %cst_4 = arith.constant dense<0.000000e+00> : vector<32xf32>
    %6 = vector.multi_reduction <add>, %5, %cst_4 [1] : vector<32x512xf32> to vector<32xf32>
    %7 = vector.shape_cast %6 : vector<32xf32> to vector<32x1xf32>
    %8 = tpu.iota {dimensions = array<i32: 0>} : vector<32x8xi32>
    %c8_i32 = arith.constant 8 : i32
    %c0_i32 = arith.constant 0 : i32
    %9 = arith.cmpi eq, %c8_i32, %c0_i32 : i32
    %c1_i32 = arith.constant 1 : i32
    %10 = arith.select %9, %c1_i32, %c8_i32 : i32
    %11 = vector.broadcast %10 : i32 to vector<32x8xi32>
    %12 = arith.remsi %8, %11 : vector<32x8xi32>
    %c0_i32_5 = arith.constant 0 : i32
    %13 = vector.broadcast %c0_i32_5 : i32 to vector<32x8xi32>
    %14 = arith.cmpi ne, %12, %13 : vector<32x8xi32>
    %c0_i32_6 = arith.constant 0 : i32
    %15 = vector.broadcast %c0_i32_6 : i32 to vector<32x8xi32>
    %16 = arith.cmpi slt, %12, %15 : vector<32x8xi32>
    %c0_i32_7 = arith.constant 0 : i32
    %17 = arith.cmpi slt, %10, %c0_i32_7 : i32
    %18 = vector.broadcast %17 : i1 to vector<32x8xi1>
    %19 = vector.broadcast %18 : vector<32x8xi1> to vector<32x8xi1>
    %20 = arith.xori %16, %19 : vector<32x8xi1>
    %21 = arith.andi %20, %14 : vector<32x8xi1>
    %22 = vector.broadcast %10 : i32 to vector<32x8xi32>
    %23 = arith.addi %12, %22 : vector<32x8xi32>
    %24 = arith.select %21, %23, %12 : vector<32x8xi1>, vector<32x8xi32>
    %25 = tpu.iota {dimensions = array<i32: 1>} : vector<32x8xi32>
    %26 = arith.cmpi eq, %24, %25 : vector<32x8xi32>
    %27 = arith.extui %26 : vector<32x8xi1> to vector<32x8xi32>
    %28 = arith.sitofp %27 : vector<32x8xi32> to vector<32x8xf32>
    %29 = vector.broadcast %4 : vector<32x1xf32> to vector<32x8xf32>
    %30 = arith.mulf %28, %29 : vector<32x8xf32>
    %cst_8 = arith.constant dense<0.000000e+00> : vector<8xf32>
    %31 = vector.multi_reduction <add>, %30, %cst_8 [0] : vector<32x8xf32> to vector<8xf32>
    %32 = vector.shape_cast %31 : vector<8xf32> to vector<1x8xf32>
    %33 = vector.broadcast %7 : vector<32x1xf32> to vector<32x8xf32>
    %34 = arith.mulf %28, %33 : vector<32x8xf32>
    %cst_9 = arith.constant dense<0.000000e+00> : vector<8xf32>
    %35 = vector.multi_reduction <add>, %34, %cst_9 [0] : vector<32x8xf32> to vector<8xf32>
    %36 = vector.shape_cast %35 : vector<8xf32> to vector<1x8xf32>
    %cst_10 = arith.constant 4.8828125E-4 : f32
    %37 = vector.broadcast %cst_10 : f32 to vector<1x8xf32>
    %38 = arith.mulf %32, %37 : vector<1x8xf32>
    %cst_11 = arith.constant 4.8828125E-4 : f32
    %39 = vector.broadcast %cst_11 : f32 to vector<1x8xf32>
    %40 = arith.mulf %36, %39 : vector<1x8xf32>
    %41 = arith.mulf %38, %38 : vector<1x8xf32>
    %42 = arith.subf %40, %41 : vector<1x8xf32>
    %cst_12 = arith.constant 0.000000e+00 : f32
    %43 = vector.broadcast %cst_12 : f32 to vector<1x8xf32>
    %44 = arith.maximumf %42, %43 : vector<1x8xf32>
    %c0_13 = arith.constant 0 : index
    %c0_14 = arith.constant 0 : index
    %45 = vector.load %arg3[%c0_13, %c0_14] : memref<1x8xf32, #tpu.memory_space<vmem>>, vector<1x8xf32>
    %cst_15 = arith.constant 9.99999974E-6 : f32
    %46 = vector.broadcast %cst_15 : f32 to vector<1x8xf32>
    %47 = arith.addf %44, %46 : vector<1x8xf32>
    %48 = math.rsqrt %47 : vector<1x8xf32>
    %49 = arith.mulf %45, %48 : vector<1x8xf32>
    %c0_16 = arith.constant 0 : index
    %c0_17 = arith.constant 0 : index
    %50 = vector.load %arg4[%c0_16, %c0_17] : memref<1x8xf32, #tpu.memory_space<vmem>>, vector<1x8xf32>
    %51 = arith.mulf %38, %49 : vector<1x8xf32>
    %52 = arith.subf %50, %51 : vector<1x8xf32>
    %53 = vector.broadcast %49 : vector<1x8xf32> to vector<32x8xf32>
    %54 = arith.mulf %28, %53 : vector<32x8xf32>
    %cst_18 = arith.constant dense<0.000000e+00> : vector<32xf32>
    %55 = vector.multi_reduction <add>, %54, %cst_18 [1] : vector<32x8xf32> to vector<32xf32>
    %56 = vector.shape_cast %55 : vector<32xf32> to vector<32x1xf32>
    %57 = vector.broadcast %52 : vector<1x8xf32> to vector<32x8xf32>
    %58 = arith.mulf %28, %57 : vector<32x8xf32>
    %cst_19 = arith.constant dense<0.000000e+00> : vector<32xf32>
    %59 = vector.multi_reduction <add>, %58, %cst_19 [1] : vector<32x8xf32> to vector<32xf32>
    %60 = vector.shape_cast %59 : vector<32xf32> to vector<32x1xf32>
    %61 = vector.broadcast %56 : vector<32x1xf32> to vector<32x512xf32>
    %62 = arith.mulf %2, %61 : vector<32x512xf32>
    %63 = vector.broadcast %60 : vector<32x1xf32> to vector<32x512xf32>
    %64 = arith.addf %62, %63 : vector<32x512xf32>
    %cst_20 = arith.constant 0.000000e+00 : f32
    %65 = vector.broadcast %cst_20 : f32 to vector<32x512xf32>
    %66 = arith.maximumf %64, %65 : vector<32x512xf32>
    %c0_21 = arith.constant 0 : index
    %c0_22 = arith.constant 0 : index
    %67 = vector.load %arg5[%c0_21, %c0_22] : memref<32x512xf32, #tpu.memory_space<vmem>>, vector<32x512xf32>
    tpu.vector_store %arg5[%c0_21, %c0_22], %66 {strides = array<i32>} : memref<32x512xf32, #tpu.memory_space<vmem>>, vector<32x512xf32>,
    return
  }
  func.func @transform_0(%arg0: i32) -> (i32, i32) {
    %c0_i32 = arith.constant 0 : i32
    %c0_i32_0 = arith.constant 0 : i32
    %c0_i32_1 = arith.constant 0 : i32
    return %c0_i32, %c0_i32_0 : i32, i32
  }
  func.func @transform_1(%arg0: i32) -> (i32, i32) {
    %c0_i32 = arith.constant 0 : i32
    %c0_i32_0 = arith.constant 0 : i32
    %c0_i32_1 = arith.constant 0 : i32
    return %c0_i32, %c0_i32_0 : i32, i32
  }
  func.func @transform_2(%arg0: i32) -> (i32, i32) {
    %c0_i32 = arith.constant 0 : i32
    %c0_i32_0 = arith.constant 0 : i32
    %c0_i32_1 = arith.constant 0 : i32
    return %c0_i32, %c0_i32_0 : i32, i32
  }
  func.func @transform_3(%arg0: i32) -> (i32, i32) {
    %c0_i32 = arith.constant 0 : i32
    %c0_i32_0 = arith.constant 0 : i32
    %c0_i32_1 = arith.constant 0 : i32
    return %c0_i32, %c0_i32_0 : i32, i32
  }
  func.func @transform_4(%arg0: i32) -> (i32, i32) {
    %c0_i32 = arith.constant 0 : i32
    %c0_i32_0 = arith.constant 0 : i32
    %c0_i32_1 = arith.constant 0 : i32
    return %c0_i32, %c0_i32_0 : i32, i32
  }
}

module attributes {stable_mosaic.version = 11 : i64} {
  func.func @gemm_bn_relu_kernel(%arg0: i32, %arg1: memref<16x80xbf16, #tpu.memory_space<vmem>>, %arg2: memref<80x2048xbf16, #tpu.memory_space<vmem>>, %arg3: memref<1x4xf32, #tpu.memory_space<vmem>>, %arg4: memref<1x4xf32, #tpu.memory_space<vmem>>, %arg5: memref<16x2048xf32, #tpu.memory_space<vmem>>) attributes {dimension_semantics = [#tpu.dimension_semantics<arbitrary>], iteration_bounds = array<i64: 1>, scalar_prefetch = 0 : i64, scratch_operands = 0 : i64, tpu.core_type = #tpu.core_type<tc>, window_params = [{pipeline_mode = #tpu.pipeline_mode<synchronous>, transform_indices = @transform_0, window_bounds = array<i64: 16, 80>}, {pipeline_mode = #tpu.pipeline_mode<synchronous>, transform_indices = @transform_1, window_bounds = array<i64: 80, 2048>}, {pipeline_mode = #tpu.pipeline_mode<synchronous>, transform_indices = @transform_2, window_bounds = array<i64: 1, 4>}, {pipeline_mode = #tpu.pipeline_mode<synchronous>, transform_indices = @transform_3, window_bounds = array<i64: 1, 4>}, {pipeline_mode = #tpu.pipeline_mode<synchronous>, transform_indices = @transform_4, window_bounds = array<i64: 16, 2048>}]} {
    %c0 = arith.constant 0 : index
    %c0_0 = arith.constant 0 : index
    %0 = vector.load %arg1[%c0, %c0_0] : memref<16x80xbf16, #tpu.memory_space<vmem>>, vector<16x80xbf16>
    %c0_1 = arith.constant 0 : index
    %c0_2 = arith.constant 0 : index
    %1 = vector.load %arg2[%c0_1, %c0_2] : memref<80x2048xbf16, #tpu.memory_space<vmem>>, vector<80x2048xbf16>
    %cst = arith.constant dense<0.000000e+00> : vector<16x2048xf32>
    %2 = tpu.matmul %0, %1, %cst {dimension_numbers = #tpu.dot_dimension_numbers<[1], [0], [0], [1], [0, 0, 1, 1], [], []>} : vector<16x80xbf16>, vector<80x2048xbf16>, vector<16x2048xf32> -> vector<16x2048xf32>
    %cst_3 = arith.constant dense<0.000000e+00> : vector<16xf32>
    %3 = vector.multi_reduction <add>, %2, %cst_3 [1] : vector<16x2048xf32> to vector<16xf32>
    %4 = vector.shape_cast %3 : vector<16xf32> to vector<16x1xf32>
    %5 = arith.mulf %2, %2 : vector<16x2048xf32>
    %cst_4 = arith.constant dense<0.000000e+00> : vector<16xf32>
    %6 = vector.multi_reduction <add>, %5, %cst_4 [1] : vector<16x2048xf32> to vector<16xf32>
    %7 = vector.shape_cast %6 : vector<16xf32> to vector<16x1xf32>
    %8 = tpu.iota {dimensions = array<i32: 0>} : vector<16x4xi32>
    %c4_i32 = arith.constant 4 : i32
    %c0_i32 = arith.constant 0 : i32
    %9 = arith.cmpi eq, %c4_i32, %c0_i32 : i32
    %c1_i32 = arith.constant 1 : i32
    %10 = arith.select %9, %c1_i32, %c4_i32 : i32
    %11 = vector.broadcast %10 : i32 to vector<16x4xi32>
    %12 = arith.remsi %8, %11 : vector<16x4xi32>
    %c0_i32_5 = arith.constant 0 : i32
    %13 = vector.broadcast %c0_i32_5 : i32 to vector<16x4xi32>
    %14 = arith.cmpi ne, %12, %13 : vector<16x4xi32>
    %c0_i32_6 = arith.constant 0 : i32
    %15 = vector.broadcast %c0_i32_6 : i32 to vector<16x4xi32>
    %16 = arith.cmpi slt, %12, %15 : vector<16x4xi32>
    %c0_i32_7 = arith.constant 0 : i32
    %17 = arith.cmpi slt, %10, %c0_i32_7 : i32
    %18 = vector.broadcast %17 : i1 to vector<16x4xi1>
    %19 = vector.broadcast %18 : vector<16x4xi1> to vector<16x4xi1>
    %20 = arith.xori %16, %19 : vector<16x4xi1>
    %21 = arith.andi %20, %14 : vector<16x4xi1>
    %22 = vector.broadcast %10 : i32 to vector<16x4xi32>
    %23 = arith.addi %12, %22 : vector<16x4xi32>
    %24 = arith.select %21, %23, %12 : vector<16x4xi1>, vector<16x4xi32>
    %25 = tpu.iota {dimensions = array<i32: 1>} : vector<16x4xi32>
    %26 = arith.cmpi eq, %24, %25 : vector<16x4xi32>
    %27 = arith.extui %26 : vector<16x4xi1> to vector<16x4xi32>
    %28 = arith.sitofp %27 : vector<16x4xi32> to vector<16x4xf32>
    %29 = vector.broadcast %4 : vector<16x1xf32> to vector<16x4xf32>
    %30 = arith.mulf %28, %29 : vector<16x4xf32>
    %cst_8 = arith.constant dense<0.000000e+00> : vector<4xf32>
    %31 = vector.multi_reduction <add>, %30, %cst_8 [0] : vector<16x4xf32> to vector<4xf32>
    %32 = vector.shape_cast %31 : vector<4xf32> to vector<1x4xf32>
    %33 = vector.broadcast %7 : vector<16x1xf32> to vector<16x4xf32>
    %34 = arith.mulf %28, %33 : vector<16x4xf32>
    %cst_9 = arith.constant dense<0.000000e+00> : vector<4xf32>
    %35 = vector.multi_reduction <add>, %34, %cst_9 [0] : vector<16x4xf32> to vector<4xf32>
    %36 = vector.shape_cast %35 : vector<4xf32> to vector<1x4xf32>
    %cst_10 = arith.constant 1.22070313E-4 : f32
    %37 = vector.broadcast %cst_10 : f32 to vector<1x4xf32>
    %38 = arith.mulf %32, %37 : vector<1x4xf32>
    %cst_11 = arith.constant 1.22070313E-4 : f32
    %39 = vector.broadcast %cst_11 : f32 to vector<1x4xf32>
    %40 = arith.mulf %36, %39 : vector<1x4xf32>
    %41 = arith.mulf %38, %38 : vector<1x4xf32>
    %42 = arith.subf %40, %41 : vector<1x4xf32>
    %cst_12 = arith.constant 0.000000e+00 : f32
    %43 = vector.broadcast %cst_12 : f32 to vector<1x4xf32>
    %44 = arith.maximumf %42, %43 : vector<1x4xf32>
    %c0_13 = arith.constant 0 : index
    %c0_14 = arith.constant 0 : index
    %45 = vector.load %arg3[%c0_13, %c0_14] : memref<1x4xf32, #tpu.memory_space<vmem>>, vector<1x4xf32>
    %cst_15 = arith.constant 9.99999974E-6 : f32
    %46 = vector.broadcast %cst_15 : f32 to vector<1x4xf32>
    %47 = arith.addf %44, %46 : vector<1x4xf32>
    %48 = math.rsqrt %47 : vector<1x4xf32>
    %49 = arith.mulf %45, %48 : vector<1x4xf32>
    %c0_16 = arith.constant 0 : index
    %c0_17 = arith.constant 0 : index
    %50 = vector.load %arg4[%c0_16, %c0_17] : memref<1x4xf32, #tpu.memory_space<vmem>>, vector<1x4xf32>
    %51 = arith.mulf %38, %49 : vector<1x4xf32>
    %52 = arith.subf %50, %51 : vector<1x4xf32>
    %53 = vector.broadcast %49 : vector<1x4xf32> to vector<16x4xf32>
    %54 = arith.mulf %28, %53 : vector<16x4xf32>
    %cst_18 = arith.constant dense<0.000000e+00> : vector<16xf32>
    %55 = vector.multi_reduction <add>, %54, %cst_18 [1] : vector<16x4xf32> to vector<16xf32>
    %56 = vector.shape_cast %55 : vector<16xf32> to vector<16x1xf32>
    %57 = vector.broadcast %52 : vector<1x4xf32> to vector<16x4xf32>
    %58 = arith.mulf %28, %57 : vector<16x4xf32>
    %cst_19 = arith.constant dense<0.000000e+00> : vector<16xf32>
    %59 = vector.multi_reduction <add>, %58, %cst_19 [1] : vector<16x4xf32> to vector<16xf32>
    %60 = vector.shape_cast %59 : vector<16xf32> to vector<16x1xf32>
    %61 = vector.broadcast %56 : vector<16x1xf32> to vector<16x2048xf32>
    %62 = arith.mulf %2, %61 : vector<16x2048xf32>
    %63 = vector.broadcast %60 : vector<16x1xf32> to vector<16x2048xf32>
    %64 = arith.addf %62, %63 : vector<16x2048xf32>
    %cst_20 = arith.constant 0.000000e+00 : f32
    %65 = vector.broadcast %cst_20 : f32 to vector<16x2048xf32>
    %66 = arith.maximumf %64, %65 : vector<16x2048xf32>
    %c0_21 = arith.constant 0 : index
    %c0_22 = arith.constant 0 : index
    %67 = vector.load %arg5[%c0_21, %c0_22] : memref<16x2048xf32, #tpu.memory_space<vmem>>, vector<16x2048xf32>
    tpu.vector_store %arg5[%c0_21, %c0_22], %66 {strides = array<i32>} : memref<16x2048xf32, #tpu.memory_space<vmem>>, vector<16x2048xf32>,
    return
  }
  func.func @transform_0(%arg0: i32) -> (i32, i32) {
    %c0_i32 = arith.constant 0 : i32
    %c0_i32_0 = arith.constant 0 : i32
    %c0_i32_1 = arith.constant 0 : i32
    return %c0_i32, %c0_i32_0 : i32, i32
  }
  func.func @transform_1(%arg0: i32) -> (i32, i32) {
    %c0_i32 = arith.constant 0 : i32
    %c0_i32_0 = arith.constant 0 : i32
    %c0_i32_1 = arith.constant 0 : i32
    return %c0_i32, %c0_i32_0 : i32, i32
  }
  func.func @transform_2(%arg0: i32) -> (i32, i32) {
    %c0_i32 = arith.constant 0 : i32
    %c0_i32_0 = arith.constant 0 : i32
    %c0_i32_1 = arith.constant 0 : i32
    return %c0_i32, %c0_i32_0 : i32, i32
  }
  func.func @transform_3(%arg0: i32) -> (i32, i32) {
    %c0_i32 = arith.constant 0 : i32
    %c0_i32_0 = arith.constant 0 : i32
    %c0_i32_1 = arith.constant 0 : i32
    return %c0_i32, %c0_i32_0 : i32, i32
  }
  func.func @transform_4(%arg0: i32) -> (i32, i32) {
    %c0_i32 = arith.constant 0 : i32
    %c0_i32_0 = arith.constant 0 : i32
    %c0_i32_1 = arith.constant 0 : i32
    return %c0_i32, %c0_i32_0 : i32, i32
  }
}

module attributes {stable_mosaic.version = 11 : i64} {
  func.func @gemm_bn_relu_kernel(%arg0: i32, %arg1: memref<8x48xbf16, #tpu.memory_space<vmem>>, %arg2: memref<48x8192xbf16, #tpu.memory_space<vmem>>, %arg3: memref<1x2xf32, #tpu.memory_space<vmem>>, %arg4: memref<1x2xf32, #tpu.memory_space<vmem>>, %arg5: memref<8x8192xf32, #tpu.memory_space<vmem>>) attributes {dimension_semantics = [#tpu.dimension_semantics<arbitrary>], iteration_bounds = array<i64: 1>, scalar_prefetch = 0 : i64, scratch_operands = 0 : i64, tpu.core_type = #tpu.core_type<tc>, window_params = [{pipeline_mode = #tpu.pipeline_mode<synchronous>, transform_indices = @transform_0, window_bounds = array<i64: 8, 48>}, {pipeline_mode = #tpu.pipeline_mode<synchronous>, transform_indices = @transform_1, window_bounds = array<i64: 48, 8192>}, {pipeline_mode = #tpu.pipeline_mode<synchronous>, transform_indices = @transform_2, window_bounds = array<i64: 1, 2>}, {pipeline_mode = #tpu.pipeline_mode<synchronous>, transform_indices = @transform_3, window_bounds = array<i64: 1, 2>}, {pipeline_mode = #tpu.pipeline_mode<synchronous>, transform_indices = @transform_4, window_bounds = array<i64: 8, 8192>}]} {
    %c0 = arith.constant 0 : index
    %c0_0 = arith.constant 0 : index
    %0 = vector.load %arg1[%c0, %c0_0] : memref<8x48xbf16, #tpu.memory_space<vmem>>, vector<8x48xbf16>
    %c0_1 = arith.constant 0 : index
    %c0_2 = arith.constant 0 : index
    %1 = vector.load %arg2[%c0_1, %c0_2] : memref<48x8192xbf16, #tpu.memory_space<vmem>>, vector<48x8192xbf16>
    %cst = arith.constant dense<0.000000e+00> : vector<8x8192xf32>
    %2 = tpu.matmul %0, %1, %cst {dimension_numbers = #tpu.dot_dimension_numbers<[1], [0], [0], [1], [0, 0, 1, 1], [], []>} : vector<8x48xbf16>, vector<48x8192xbf16>, vector<8x8192xf32> -> vector<8x8192xf32>
    %cst_3 = arith.constant dense<0.000000e+00> : vector<8xf32>
    %3 = vector.multi_reduction <add>, %2, %cst_3 [1] : vector<8x8192xf32> to vector<8xf32>
    %4 = vector.shape_cast %3 : vector<8xf32> to vector<8x1xf32>
    %5 = arith.mulf %2, %2 : vector<8x8192xf32>
    %cst_4 = arith.constant dense<0.000000e+00> : vector<8xf32>
    %6 = vector.multi_reduction <add>, %5, %cst_4 [1] : vector<8x8192xf32> to vector<8xf32>
    %7 = vector.shape_cast %6 : vector<8xf32> to vector<8x1xf32>
    %8 = tpu.iota {dimensions = array<i32: 0>} : vector<8x2xi32>
    %c2_i32 = arith.constant 2 : i32
    %c0_i32 = arith.constant 0 : i32
    %9 = arith.cmpi eq, %c2_i32, %c0_i32 : i32
    %c1_i32 = arith.constant 1 : i32
    %10 = arith.select %9, %c1_i32, %c2_i32 : i32
    %11 = vector.broadcast %10 : i32 to vector<8x2xi32>
    %12 = arith.remsi %8, %11 : vector<8x2xi32>
    %c0_i32_5 = arith.constant 0 : i32
    %13 = vector.broadcast %c0_i32_5 : i32 to vector<8x2xi32>
    %14 = arith.cmpi ne, %12, %13 : vector<8x2xi32>
    %c0_i32_6 = arith.constant 0 : i32
    %15 = vector.broadcast %c0_i32_6 : i32 to vector<8x2xi32>
    %16 = arith.cmpi slt, %12, %15 : vector<8x2xi32>
    %c0_i32_7 = arith.constant 0 : i32
    %17 = arith.cmpi slt, %10, %c0_i32_7 : i32
    %18 = vector.broadcast %17 : i1 to vector<8x2xi1>
    %19 = vector.broadcast %18 : vector<8x2xi1> to vector<8x2xi1>
    %20 = arith.xori %16, %19 : vector<8x2xi1>
    %21 = arith.andi %20, %14 : vector<8x2xi1>
    %22 = vector.broadcast %10 : i32 to vector<8x2xi32>
    %23 = arith.addi %12, %22 : vector<8x2xi32>
    %24 = arith.select %21, %23, %12 : vector<8x2xi1>, vector<8x2xi32>
    %25 = tpu.iota {dimensions = array<i32: 1>} : vector<8x2xi32>
    %26 = arith.cmpi eq, %24, %25 : vector<8x2xi32>
    %27 = arith.extui %26 : vector<8x2xi1> to vector<8x2xi32>
    %28 = arith.sitofp %27 : vector<8x2xi32> to vector<8x2xf32>
    %29 = vector.broadcast %4 : vector<8x1xf32> to vector<8x2xf32>
    %30 = arith.mulf %28, %29 : vector<8x2xf32>
    %cst_8 = arith.constant dense<0.000000e+00> : vector<2xf32>
    %31 = vector.multi_reduction <add>, %30, %cst_8 [0] : vector<8x2xf32> to vector<2xf32>
    %32 = vector.shape_cast %31 : vector<2xf32> to vector<1x2xf32>
    %33 = vector.broadcast %7 : vector<8x1xf32> to vector<8x2xf32>
    %34 = arith.mulf %28, %33 : vector<8x2xf32>
    %cst_9 = arith.constant dense<0.000000e+00> : vector<2xf32>
    %35 = vector.multi_reduction <add>, %34, %cst_9 [0] : vector<8x2xf32> to vector<2xf32>
    %36 = vector.shape_cast %35 : vector<2xf32> to vector<1x2xf32>
    %cst_10 = arith.constant 3.05175781E-5 : f32
    %37 = vector.broadcast %cst_10 : f32 to vector<1x2xf32>
    %38 = arith.mulf %32, %37 : vector<1x2xf32>
    %cst_11 = arith.constant 3.05175781E-5 : f32
    %39 = vector.broadcast %cst_11 : f32 to vector<1x2xf32>
    %40 = arith.mulf %36, %39 : vector<1x2xf32>
    %41 = arith.mulf %38, %38 : vector<1x2xf32>
    %42 = arith.subf %40, %41 : vector<1x2xf32>
    %cst_12 = arith.constant 0.000000e+00 : f32
    %43 = vector.broadcast %cst_12 : f32 to vector<1x2xf32>
    %44 = arith.maximumf %42, %43 : vector<1x2xf32>
    %c0_13 = arith.constant 0 : index
    %c0_14 = arith.constant 0 : index
    %45 = vector.load %arg3[%c0_13, %c0_14] : memref<1x2xf32, #tpu.memory_space<vmem>>, vector<1x2xf32>
    %cst_15 = arith.constant 9.99999974E-6 : f32
    %46 = vector.broadcast %cst_15 : f32 to vector<1x2xf32>
    %47 = arith.addf %44, %46 : vector<1x2xf32>
    %48 = math.rsqrt %47 : vector<1x2xf32>
    %49 = arith.mulf %45, %48 : vector<1x2xf32>
    %c0_16 = arith.constant 0 : index
    %c0_17 = arith.constant 0 : index
    %50 = vector.load %arg4[%c0_16, %c0_17] : memref<1x2xf32, #tpu.memory_space<vmem>>, vector<1x2xf32>
    %51 = arith.mulf %38, %49 : vector<1x2xf32>
    %52 = arith.subf %50, %51 : vector<1x2xf32>
    %53 = vector.broadcast %49 : vector<1x2xf32> to vector<8x2xf32>
    %54 = arith.mulf %28, %53 : vector<8x2xf32>
    %cst_18 = arith.constant dense<0.000000e+00> : vector<8xf32>
    %55 = vector.multi_reduction <add>, %54, %cst_18 [1] : vector<8x2xf32> to vector<8xf32>
    %56 = vector.shape_cast %55 : vector<8xf32> to vector<8x1xf32>
    %57 = vector.broadcast %52 : vector<1x2xf32> to vector<8x2xf32>
    %58 = arith.mulf %28, %57 : vector<8x2xf32>
    %cst_19 = arith.constant dense<0.000000e+00> : vector<8xf32>
    %59 = vector.multi_reduction <add>, %58, %cst_19 [1] : vector<8x2xf32> to vector<8xf32>
    %60 = vector.shape_cast %59 : vector<8xf32> to vector<8x1xf32>
    %61 = vector.broadcast %56 : vector<8x1xf32> to vector<8x8192xf32>
    %62 = arith.mulf %2, %61 : vector<8x8192xf32>
    %63 = vector.broadcast %60 : vector<8x1xf32> to vector<8x8192xf32>
    %64 = arith.addf %62, %63 : vector<8x8192xf32>
    %cst_20 = arith.constant 0.000000e+00 : f32
    %65 = vector.broadcast %cst_20 : f32 to vector<8x8192xf32>
    %66 = arith.maximumf %64, %65 : vector<8x8192xf32>
    %c0_21 = arith.constant 0 : index
    %c0_22 = arith.constant 0 : index
    %67 = vector.load %arg5[%c0_21, %c0_22] : memref<8x8192xf32, #tpu.memory_space<vmem>>, vector<8x8192xf32>
    tpu.vector_store %arg5[%c0_21, %c0_22], %66 {strides = array<i32>} : memref<8x8192xf32, #tpu.memory_space<vmem>>, vector<8x8192xf32>,
    return
  }
  func.func @transform_0(%arg0: i32) -> (i32, i32) {
    %c0_i32 = arith.constant 0 : i32
    %c0_i32_0 = arith.constant 0 : i32
    %c0_i32_1 = arith.constant 0 : i32
    return %c0_i32, %c0_i32_0 : i32, i32
  }
  func.func @transform_1(%arg0: i32) -> (i32, i32) {
    %c0_i32 = arith.constant 0 : i32
    %c0_i32_0 = arith.constant 0 : i32
    %c0_i32_1 = arith.constant 0 : i32
    return %c0_i32, %c0_i32_0 : i32, i32
  }
  func.func @transform_2(%arg0: i32) -> (i32, i32) {
    %c0_i32 = arith.constant 0 : i32
    %c0_i32_0 = arith.constant 0 : i32
    %c0_i32_1 = arith.constant 0 : i32
    return %c0_i32, %c0_i32_0 : i32, i32
  }
  func.func @transform_3(%arg0: i32) -> (i32, i32) {
    %c0_i32 = arith.constant 0 : i32
    %c0_i32_0 = arith.constant 0 : i32
    %c0_i32_1 = arith.constant 0 : i32
    return %c0_i32, %c0_i32_0 : i32, i32
  }
  func.func @transform_4(%arg0: i32) -> (i32, i32) {
    %c0_i32 = arith.constant 0 : i32
    %c0_i32_0 = arith.constant 0 : i32
    %c0_i32_1 = arith.constant 0 : i32
    return %c0_i32, %c0_i32_0 : i32, i32
  }
}

module attributes {stable_mosaic.version = 11 : i64} {
  func.func @matmul_act_kernel(%arg0: i32, %arg1: memref<4x32xbf16, #tpu.memory_space<vmem>>, %arg2: memref<32x8192xbf16, #tpu.memory_space<vmem>>, %arg3: memref<4x8192xf32, #tpu.memory_space<vmem>>) attributes {dimension_semantics = [#tpu.dimension_semantics<parallel>], iteration_bounds = array<i64: 4>, scalar_prefetch = 0 : i64, scratch_operands = 0 : i64, tpu.core_type = #tpu.core_type<tc>, window_params = [{pipeline_mode = #tpu.pipeline_mode<synchronous>, transform_indices = @transform_0, window_bounds = array<i64: 4, 32>}, {transform_indices = @transform_1, window_bounds = array<i64: 32, 8192>}, {transform_indices = @transform_2, window_bounds = array<i64: 4, 8192>}]} {
    %c0 = arith.constant 0 : index
    %c0_0 = arith.constant 0 : index
    %0 = vector.load %arg1[%c0, %c0_0] : memref<4x32xbf16, #tpu.memory_space<vmem>>, vector<4x32xbf16>
    %c0_1 = arith.constant 0 : index
    %c0_2 = arith.constant 0 : index
    %1 = vector.load %arg2[%c0_1, %c0_2] : memref<32x8192xbf16, #tpu.memory_space<vmem>>, vector<32x8192xbf16>
    %cst = arith.constant dense<0.000000e+00> : vector<4x8192xf32>
    %2 = tpu.matmul %0, %1, %cst {dimension_numbers = #tpu.dot_dimension_numbers<[1], [0], [0], [1], [0, 0, 1, 1], [], []>} : vector<4x32xbf16>, vector<32x8192xbf16>, vector<4x8192xf32> -> vector<4x8192xf32>
    %3 = math.tanh %2 : vector<4x8192xf32>
    %c0_3 = arith.constant 0 : index
    %c0_4 = arith.constant 0 : index
    %4 = vector.load %arg3[%c0_3, %c0_4] : memref<4x8192xf32, #tpu.memory_space<vmem>>, vector<4x8192xf32>
    tpu.vector_store %arg3[%c0_3, %c0_4], %3 {strides = array<i32>} : memref<4x8192xf32, #tpu.memory_space<vmem>>, vector<4x8192xf32>,
    return
  }
  func.func @transform_0(%arg0: i32) -> (i32, i32) {
    %c0_i32 = arith.constant 0 : i32
    %c0_i32_0 = arith.constant 0 : i32
    %c0_i32_1 = arith.constant 0 : i32
    return %c0_i32, %c0_i32_0 : i32, i32
  }
  func.func @transform_1(%arg0: i32) -> (i32, i32) {
    %c0_i32 = arith.constant 0 : i32
    %c0_i32_0 = arith.constant 0 : i32
    return %c0_i32, %arg0 : i32, i32
  }
  func.func @transform_2(%arg0: i32) -> (i32, i32) {
    %c0_i32 = arith.constant 0 : i32
    %c0_i32_0 = arith.constant 0 : i32
    return %c0_i32, %arg0 : i32, i32
  }
}

</mosaic_0001>

<llo_original>
// kernel: generator_forward.7
$region0: #{generator_forward.7}
  #allocation0 [shape = 'u32[]', space=smem, size = 0x4, offset = 0x4, fixed_abs, tag = 'smem constant byte address 0x4 - core index']
  #allocation1 [shape = 'u32[144,128]{1,0:T(1,128)}', space=vmem, size = 0x12000, scoped, tag = 'internal scratch']
  %s0 = inlined_call_operand.vmem [shape: bf16[8,32], index: 0, kind: input, shape index: {}]
  %s1 = inlined_call_operand.vmem [shape: bf16[32,1024], index: 1, kind: input, shape index: {}]
  %s2 = inlined_call_operand.vmem [shape: f32[8,1024], index: 2, kind: output, shape index: {}]
  %s3 = sld [smem:[#allocation0]]
  $region18: #{generator_forward.7} parent=0
    _
  %s5 = ssub.s32 1, %s3
  %s6 = scalar_select 0, %s5, %s3
  // Predicated region
  $region2: #{generator_forward.7} parent=0 // pred_check
    _
  $region3: #{generator_forward.7} parent=0 // pred_check_branch
    %8 = sbr.rel (0) target = $region5
  $region4: #{generator_forward.7} parent=0 // pred_region
    _
  $region5: #{generator_forward.7} parent=0 // pred_fallthru
    _
  // Predicated region
  $region6: #{generator_forward.7} parent=0 // pred_check
    _
  $region7: #{generator_forward.7} parent=0 // pred_check_branch
    %10 = sbr.rel (0) target = $region9
  $region8: #{generator_forward.7} parent=0 // pred_region
    _
  $region9: #{generator_forward.7} parent=0 // pred_fallthru
    _
  %v12 = vld [vmem:[%s0] sm:$0xf]
  %v13 = vld [vmem:[%s1] sm:$0xff]
  %v14 = vld [vmem:[%s1 + $0x8] sm:$0xff]
  %v15 = vld [vmem:[%s1 + $0x10] sm:$0xff]
  %v16 = vld [vmem:[%s1 + $0x18] sm:$0xff]
  %v17 = vld [vmem:[%s1 + $0x20] sm:$0xff]
  %v18 = vld [vmem:[%s1 + $0x28] sm:$0xff]
  %v19 = vld [vmem:[%s1 + $0x30] sm:$0xff]
  %v20 = vld [vmem:[%s1 + $0x38] sm:$0xff]
  %v21 = vld [vmem:[%s1 + $0x40] sm:$0xff]
  %v22 = vld [vmem:[%s1 + $0x48] sm:$0xff]
  %v23 = vld [vmem:[%s1 + $0x50] sm:$0xff]
  %v24 = vld [vmem:[%s1 + $0x58] sm:$0xff]
  %v25 = vld [vmem:[%s1 + $0x60] sm:$0xff]
  %v26 = vld [vmem:[%s1 + $0x68] sm:$0xff]
  %v27 = vld [vmem:[%s1 + $0x70] sm:$0xff]
  %v28 = vld [vmem:[%s1 + $0x78] sm:$0xff]
  %v45 = vunpack.c.l.b16 %v13
  %v46 = vunpack.c.h.b16 %v13
  %v47 = vunpack.c.l.b16 %v14
  %v48 = vunpack.c.h.b16 %v14
  %v49 = vunpack.c.l.b16 %v15
  %v50 = vunpack.c.h.b16 %v15
  %v51 = vunpack.c.l.b16 %v16
  %v52 = vunpack.c.h.b16 %v16
  %v53 = vunpack.c.l.b16 %v17
  %v54 = vunpack.c.h.b16 %v17
  %v55 = vunpack.c.l.b16 %v18
  %v56 = vunpack.c.h.b16 %v18
  %v57 = vunpack.c.l.b16 %v19
  %v58 = vunpack.c.h.b16 %v19
  %v59 = vunpack.c.l.b16 %v20
  %v60 = vunpack.c.h.b16 %v20
  %v61 = vunpack.c.l.b16 %v21
  %v62 = vunpack.c.h.b16 %v21
  %v63 = vunpack.c.l.b16 %v22
  %v64 = vunpack.c.h.b16 %v22
  %v65 = vunpack.c.l.b16 %v23
  %v66 = vunpack.c.h.b16 %v23
  %v67 = vunpack.c.l.b16 %v24
  %v68 = vunpack.c.h.b16 %v24
  %v69 = vunpack.c.l.b16 %v25
  %v70 = vunpack.c.h.b16 %v25
  %v71 = vunpack.c.l.b16 %v26
  %v72 = vunpack.c.h.b16 %v26
  %v73 = vunpack.c.l.b16 %v27
  %v74 = vunpack.c.h.b16 %v27
  %v75 = vunpack.c.l.b16 %v28
  %v76 = vunpack.c.h.b16 %v28
  %v77 = vpack.c.b16 %v53, %v45
  %v78 = vpack.c.b16 %v54, %v46
  %v79 = vpack.c.b16 %v55, %v47
  %v80 = vpack.c.b16 %v56, %v48
  %v81 = vpack.c.b16 %v57, %v49
  %v82 = vpack.c.b16 %v58, %v50
  %v83 = vpack.c.b16 %v59, %v51
  %v84 = vpack.c.b16 %v60, %v52
  %v85 = vpack.c.b16 %v69, %v61
  %v86 = vpack.c.b16 %v70, %v62
  %v87 = vpack.c.b16 %v71, %v63
  %v88 = vpack.c.b16 %v72, %v64
  %v89 = vpack.c.b16 %v73, %v65
  %v90 = vpack.c.b16 %v74, %v66
  %v91 = vpack.c.b16 %v75, %v67
  %v92 = vpack.c.b16 %v76, %v68
  %vm109 = vcmask 261120
  %v111 = vsel %vm109, %v12, 0
  %113 = vmatprep.subr.bf16.mxu0 0
  %114 = vmatpush1.bf16.msra.mxu0 0
  %115 = vmatprep.subr.bf16.mxu0 0
  %116 = vmatpush1.bf16.msra.mxu0 0
  %117 = vmatprep.subr.bf16.mxu0 0
  %118 = vmatpush1.bf16.msra.mxu0 0
  %119 = vmatprep.subr.bf16.mxu0 0
  %120 = vmatpush1.bf16.msra.mxu0 0
  %121 = vmatprep.subr.bf16.mxu0 0
  %122 = vmatpush1.bf16.msra.mxu0 0
  %123 = vmatprep.subr.bf16.mxu0 0
  %124 = vmatpush1.bf16.msra.mxu0 0
  %125 = vmatprep.subr.bf16.mxu0 %v86
  %126 = vmatpush1.bf16.msra.mxu0 %v85
  %127 = vmatprep.subr.bf16.mxu0 %v78
  %128 = vmatpush1.bf16.msra.mxu0 %v77
  %129 = vmatprep.subr.bf16.mxu0 0
  %130 = vmatpush2.bf16.msra.mxu0 0
  %131 = vmatprep.subr.bf16.mxu0 0
  %132 = vmatpush2.bf16.msra.mxu0 0
  %133 = vmatprep.subr.bf16.mxu0 0
  %134 = vmatpush2.bf16.msra.mxu0 0
  %135 = vmatprep.subr.bf16.mxu0 0
  %136 = vmatpush2.bf16.msra.mxu0 0
  %137 = vmatprep.subr.bf16.mxu0 0
  %138 = vmatpush2.bf16.msra.mxu0 0
  %139 = vmatprep.subr.bf16.mxu0 0
  %140 = vmatpush2.bf16.msra.mxu0 0
  %141 = vmatprep.subr.bf16.mxu0 0
  %142 = vmatpush2.bf16.msra.mxu0 0
  %143 = vmatprep.subr.bf16.mxu0 0
  %144 = vmatpush2.bf16.msra.mxu0 0
  %145 = vmatprep.mubr.bf16.mxu0 0
  %146 = vmatmul.mubr.bf16.gmra.mxu0 %v111
  %v147 = vpop.f32.mrf.mxu0
  %v148 = vadd.f32 0.0, %v147
  %v149 = vpop.f32.mrf.mxu0
  %v150 = vadd.f32 0.0, %v149
  %v151 = vpop.f32.mrf.mxu0
  %v152 = vpop.f32.mrf.mxu0
  %153 = vdwg.mxu0
  %154 = vmatprep.subr.bf16.mxu0 0
  %155 = vmatpush1.bf16.msra.mxu0 0
  %156 = vmatprep.subr.bf16.mxu0 0
  %157 = vmatpush1.bf16.msra.mxu0 0
  %158 = vmatprep.subr.bf16.mxu0 0
  %159 = vmatpush1.bf16.msra.mxu0 0
  %160 = vmatprep.subr.bf16.mxu0 0
  %161 = vmatpush1.bf16.msra.mxu0 0
  %162 = vmatprep.subr.bf16.mxu0 0
  %163 = vmatpush1.bf16.msra.mxu0 0
  %164 = vmatprep.subr.bf16.mxu0 0
  %165 = vmatpush1.bf16.msra.mxu0 0
  %166 = vmatprep.subr.bf16.mxu0 %v88
  %167 = vmatpush1.bf16.msra.mxu0 %v87
  %168 = vmatprep.subr.bf16.mxu0 %v80
  %169 = vmatpush1.bf16.msra.mxu0 %v79
  %170 = vmatprep.subr.bf16.mxu0 0
  %171 = vmatpush2.bf16.msra.mxu0 0
  %172 = vmatprep.subr.bf16.mxu0 0
  %173 = vmatpush2.bf16.msra.mxu0 0
  %174 = vmatprep.subr.bf16.mxu0 0
  %175 = vmatpush2.bf16.msra.mxu0 0
  %176 = vmatprep.subr.bf16.mxu0 0
  %177 = vmatpush2.bf16.msra.mxu0 0
  %178 = vmatprep.subr.bf16.mxu0 0
  %179 = vmatpush2.bf16.msra.mxu0 0
  %180 = vmatprep.subr.bf16.mxu0 0
  %181 = vmatpush2.bf16.msra.mxu0 0
  %182 = vmatprep.subr.bf16.mxu0 0
  %183 = vmatpush2.bf16.msra.mxu0 0
  %184 = vmatprep.subr.bf16.mxu0 0
  %185 = vmatpush2.bf16.msra.mxu0 0
  %186 = vmatprep.mubr.bf16.mxu0 0
  %187 = vmatmul.mubr.bf16.gmra.mxu0 %v111
  %v188 = vpop.f32.mrf.mxu0
  %v189 = vadd.f32 0.0, %v188
  %v190 = vpop.f32.mrf.mxu0
  %v191 = vadd.f32 0.0, %v190
  %v192 = vpop.f32.mrf.mxu0
  %v193 = vpop.f32.mrf.mxu0
  %194 = vdwg.mxu0
  %195 = vmatprep.subr.bf16.mxu0 0
  %196 = vmatpush1.bf16.msra.mxu0 0
  %197 = vmatprep.subr.bf16.mxu0 0
  %198 = vmatpush1.bf16.msra.mxu0 0
  %199 = vmatprep.subr.bf16.mxu0 0
  %200 = vmatpush1.bf16.msra.mxu0 0
  %201 = vmatprep.subr.bf16.mxu0 0
  %202 = vmatpush1.bf16.msra.mxu0 0
  %203 = vmatprep.subr.bf16.mxu0 0
  %204 = vmatpush1.bf16.msra.mxu0 0
  %205 = vmatprep.subr.bf16.mxu0 0
  %206 = vmatpush1.bf16.msra.mxu0 0
  %207 = vmatprep.subr.bf16.mxu0 %v90
  %208 = vmatpush1.bf16.msra.mxu0 %v89
  %209 = vmatprep.subr.bf16.mxu0 %v82
  %210 = vmatpush1.bf16.msra.mxu0 %v81
  %211 = vmatprep.subr.bf16.mxu0 0
  %212 = vmatpush2.bf16.msra.mxu0 0
  %213 = vmatprep.subr.bf16.mxu0 0
  %214 = vmatpush2.bf16.msra.mxu0 0
  %215 = vmatprep.subr.bf16.mxu0 0
  %216 = vmatpush2.bf16.msra.mxu0 0
  %217 = vmatprep.subr.bf16.mxu0 0
  %218 = vmatpush2.bf16.msra.mxu0 0
  %219 = vmatprep.subr.bf16.mxu0 0
  %220 = vmatpush2.bf16.msra.mxu0 0
  %221 = vmatprep.subr.bf16.mxu0 0
  %222 = vmatpush2.bf16.msra.mxu0 0
  %223 = vmatprep.subr.bf16.mxu0 0
  %224 = vmatpush2.bf16.msra.mxu0 0
  %225 = vmatprep.subr.bf16.mxu0 0
  %226 = vmatpush2.bf16.msra.mxu0 0
  %227 = vmatprep.mubr.bf16.mxu0 0
  %228 = vmatmul.mubr.bf16.gmra.mxu0 %v111
  %v229 = vpop.f32.mrf.mxu0
  %v230 = vadd.f32 0.0, %v229
  %v231 = vpop.f32.mrf.mxu0
  %v232 = vadd.f32 0.0, %v231
  %v233 = vpop.f32.mrf.mxu0
  %v234 = vpop.f32.mrf.mxu0
  %235 = vdwg.mxu0
  %236 = vmatprep.subr.bf16.mxu0 0
  %237 = vmatpush1.bf16.msra.mxu0 0
  %238 = vmatprep.subr.bf16.mxu0 0
  %239 = vmatpush1.bf16.msra.mxu0 0
  %240 = vmatprep.subr.bf16.mxu0 0
  %241 = vmatpush1.bf16.msra.mxu0 0
  %242 = vmatprep.subr.bf16.mxu0 0
  %243 = vmatpush1.bf16.msra.mxu0 0
  %244 = vmatprep.subr.bf16.mxu0 0
  %245 = vmatpush1.bf16.msra.mxu0 0
  %246 = vmatprep.subr.bf16.mxu0 0
  %247 = vmatpush1.bf16.msra.mxu0 0
  %248 = vmatprep.subr.bf16.mxu0 %v92
  %249 = vmatpush1.bf16.msra.mxu0 %v91
  %250 = vmatprep.subr.bf16.mxu0 %v84
  %251 = vmatpush1.bf16.msra.mxu0 %v83
  %252 = vmatprep.subr.bf16.mxu0 0
  %253 = vmatpush2.bf16.msra.mxu0 0
  %254 = vmatprep.subr.bf16.mxu0 0
  %255 = vmatpush2.bf16.msra.mxu0 0
  %256 = vmatprep.subr.bf16.mxu0 0
  %257 = vmatpush2.bf16.msra.mxu0 0
  %258 = vmatprep.subr.bf16.mxu0 0
  %259 = vmatpush2.bf16.msra.mxu0 0
  %260 = vmatprep.subr.bf16.mxu0 0
  %261 = vmatpush2.bf16.msra.mxu0 0
  %262 = vmatprep.subr.bf16.mxu0 0
  %263 = vmatpush2.bf16.msra.mxu0 0
  %264 = vmatprep.subr.bf16.mxu0 0
  %265 = vmatpush2.bf16.msra.mxu0 0
  %266 = vmatprep.subr.bf16.mxu0 0
  %267 = vmatpush2.bf16.msra.mxu0 0
  %268 = vmatprep.mubr.bf16.mxu0 0
  %269 = vmatmul.mubr.bf16.gmra.mxu0 %v111
  %v270 = vpop.f32.mrf.mxu0
  %v271 = vadd.f32 0.0, %v270
  %v272 = vpop.f32.mrf.mxu0
  %v273 = vadd.f32 0.0, %v272
  %v274 = vpop.f32.mrf.mxu0
  %v275 = vpop.f32.mrf.mxu0
  %276 = vdwg.mxu0
  %v277 = vmax.f32 %v148, 0.0
  %v278 = vmax.f32 %v150, 0.0
  %v279 = vmax.f32 %v189, 0.0
  %v280 = vmax.f32 %v191, 0.0
  %v281 = vmax.f32 %v230, 0.0
  %v282 = vmax.f32 %v232, 0.0
  %v283 = vmax.f32 %v271, 0.0
  %v284 = vmax.f32 %v273, 0.0
  %285 = vst [vmem:[%s2] sm:$0xff] %v277
  %286 = vst [vmem:[%s2 + $0x8] sm:$0xff] %v278
  %287 = vst [vmem:[%s2 + $0x10] sm:$0xff] %v279
  %288 = vst [vmem:[%s2 + $0x18] sm:$0xff] %v280
  %289 = vst [vmem:[%s2 + $0x20] sm:$0xff] %v281
  %290 = vst [vmem:[%s2 + $0x28] sm:$0xff] %v282
  %291 = vst [vmem:[%s2 + $0x30] sm:$0xff] %v283
  %292 = vst [vmem:[%s2 + $0x38] sm:$0xff] %v284
  // Predicated region
  $region10: #{generator_forward.7} parent=0 // pred_check
    _
  $region11: #{generator_forward.7} parent=0 // pred_check_branch
    %294 = sbr.rel (0) target = $region13
  $region12: #{generator_forward.7} parent=0 // pred_region
    _
  $region13: #{generator_forward.7} parent=0 // pred_fallthru
    _
  // Predicated region
  $region14: #{generator_forward.7} parent=0 // pred_check
    _
  $region15: #{generator_forward.7} parent=0 // pred_check_branch
    %296 = sbr.rel (0) target = $region17
  $region16: #{generator_forward.7} parent=0 // pred_region
    _
  $region17: #{generator_forward.7} parent=0 // pred_fallthru
    _

// kernel: generator_forward.8
$region0: #{generator_forward.8}
  #allocation0 [shape = 'u32[]', space=smem, size = 0x4, offset = 0x4, fixed_abs, tag = 'smem constant byte address 0x4 - core index']
  #allocation1 [shape = 'u32[144,128]{1,0:T(1,128)}', space=vmem, size = 0x12000, scoped, tag = 'internal scratch']
  %s0 = inlined_call_operand.vmem [shape: bf16[128,576], index: 0, kind: input, shape index: {}]
  %s1 = inlined_call_operand.vmem [shape: bf16[576,32], index: 1, kind: input, shape index: {}]
  %s2 = inlined_call_operand.vmem [shape: f32[1,32], index: 2, kind: input, shape index: {}]
  %s3 = inlined_call_operand.vmem [shape: f32[1,32], index: 3, kind: input, shape index: {}]
  %s4 = inlined_call_operand.vmem [shape: f32[128,32], index: 4, kind: output, shape index: {}]
  %s5 = sld [smem:[#allocation0]]
  $region26: #{generator_forward.8} parent=0
    _
  %s7 = ssub.s32 1, %s5
  %s8 = scalar_select 0, %s7, %s5
  // Predicated region
  $region2: #{generator_forward.8} parent=0 // pred_check
    _
  $region3: #{generator_forward.8} parent=0 // pred_check_branch
    %10 = sbr.rel (0) target = $region5
  $region4: #{generator_forward.8} parent=0 // pred_region
    _
  $region5: #{generator_forward.8} parent=0 // pred_fallthru
    _
  // Predicated region
  $region6: #{generator_forward.8} parent=0 // pred_check
    _
  $region7: #{generator_forward.8} parent=0 // pred_check_branch
    %12 = sbr.rel (0) target = $region9
  $region8: #{generator_forward.8} parent=0 // pred_region
    _
  $region9: #{generator_forward.8} parent=0 // pred_fallthru
    _
  // Predicated region
  $region10: #{generator_forward.8} parent=0 // pred_check
    _
  $region11: #{generator_forward.8} parent=0 // pred_check_branch
    %14 = sbr.rel (0) target = $region13
  $region12: #{generator_forward.8} parent=0 // pred_region
    _
  $region13: #{generator_forward.8} parent=0 // pred_fallthru
    _
  // Predicated region
  $region14: #{generator_forward.8} parent=0 // pred_check
    _
  $region15: #{generator_forward.8} parent=0 // pred_check_branch
    %16 = sbr.rel (0) target = $region17
  $region16: #{generator_forward.8} parent=0 // pred_region
    _
  $region17: #{generator_forward.8} parent=0 // pred_fallthru
    _
  %v18 = vld [vmem:[%s0] sm:$0xff]
  %v19 = vld [vmem:[%s0 + $0x8] sm:$0xff]
  %v20 = vld [vmem:[%s0 + $0x10] sm:$0xf]
  %v21 = vld [vmem:[%s0 + $0x14] sm:$0xff]
  %v22 = vld [vmem:[%s0 + $0x1c] sm:$0xff]
  %v23 = vld [vmem:[%s0 + $0x24] sm:$0xf]
  %v24 = vld [vmem:[%s0 + $0x28] sm:$0xff]
  %v25 = vld [vmem:[%s0 + $0x30] sm:$0xff]
  %v26 = vld [vmem:[%s0 + $0x38] sm:$0xf]
  %v27 = vld [vmem:[%s0 + $0x3c] sm:$0xff]
  %v28 = vld [vmem:[%s0 + $0x44] sm:$0xff]
  %v29 = vld [vmem:[%s0 + $0x4c] sm:$0xf]
  %v30 = vld [vmem:[%s0 + $0x50] sm:$0xff]
  %v31 = vld [vmem:[%s0 + $0x58] sm:$0xff]
  %v32 = vld [vmem:[%s0 + $0x60] sm:$0xf]
  %v33 = vld [vmem:[%s0 + $0x64] sm:$0xff]
  %v34 = vld [vmem:[%s0 + $0x6c] sm:$0xff]
  %v35 = vld [vmem:[%s0 + $0x74] sm:$0xf]
  %v36 = vld [vmem:[%s0 + $0x78] sm:$0xff]
  %v37 = vld [vmem:[%s0 + $0x80] sm:$0xff]
  %v38 = vld [vmem:[%s0 + $0x88] sm:$0xf]
  %v39 = vld [vmem:[%s0 + $0x8c] sm:$0xff]
  %v40 = vld [vmem:[%s0 + $0x94] sm:$0xff]
  %v41 = vld [vmem:[%s0 + $0x9c] sm:$0xf]
  %v42 = vld [vmem:[%s0 + $0xa0] sm:$0xff]
  %v43 = vld [vmem:[%s0 + $0xa8] sm:$0xff]
  %v44 = vld [vmem:[%s0 + $0xb0] sm:$0xf]
  %v45 = vld [vmem:[%s0 + $0xb4] sm:$0xff]
  %v46 = vld [vmem:[%s0 + $0xbc] sm:$0xff]
  %v47 = vld [vmem:[%s0 + $0xc4] sm:$0xf]
  %v48 = vld [vmem:[%s0 + $0xc8] sm:$0xff]
  %v49 = vld [vmem:[%s0 + $0xd0] sm:$0xff]
  %v50 = vld [vmem:[%s0 + $0xd8] sm:$0xf]
  %v51 = vld [vmem:[%s0 + $0xdc] sm:$0xff]
  %v52 = vld [vmem:[%s0 + $0xe4] sm:$0xff]
  %v53 = vld [vmem:[%s0 + $0xec] sm:$0xf]
  %v54 = vld [vmem:[%s0 + $0xf0] sm:$0xff]
  %v55 = vld [vmem:[%s0 + $0xf8] sm:$0xff]
  %v56 = vld [vmem:[%s0 + $0x100] sm:$0xf]
  %v57 = vld [vmem:[%s0 + $0x104] sm:$0xff]
  %v58 = vld [vmem:[%s0 + $0x10c] sm:$0xff]
  %v59 = vld [vmem:[%s0 + $0x114] sm:$0xf]
  %v60 = vld [vmem:[%s0 + $0x118] sm:$0xff]
  %v61 = vld [vmem:[%s0 + $0x120] sm:$0xff]
  %v62 = vld [vmem:[%s0 + $0x128] sm:$0xf]
  %v63 = vld [vmem:[%s0 + $0x12c] sm:$0xff]
  %v64 = vld [vmem:[%s0 + $0x134] sm:$0xff]
  %v65 = vld [vmem:[%s0 + $0x13c] sm:$0xf]
  %v66 = vld [vmem:[%s1] sm:$0xf]
  %v67 = vld [vmem:[%s1 + $0x4] sm:$0xf]
  %v68 = vld [vmem:[%s1 + $0x8] sm:$0xf]
  %v69 = vld [vmem:[%s1 + $0xc] sm:$0xf]
  %v70 = vld [vmem:[%s1 + $0x10] sm:$0xf]
  %v71 = vld [vmem:[%s1 + $0x14] sm:$0xf]
  %v72 = vld [vmem:[%s1 + $0x18] sm:$0xf]
  %v73 = vld [vmem:[%s1 + $0x1c] sm:$0xf]
  %v74 = vld [vmem:[%s1 + $0x20] sm:$0xf]
  %v75 = vld [vmem:[%s1 + $0x24] sm:$0xf]
  %v76 = vld [vmem:[%s1 + $0x28] sm:$0xf]
  %v77 = vld [vmem:[%s1 + $0x2c] sm:$0xf]
  %v78 = vld [vmem:[%s1 + $0x30] sm:$0xf]
  %v79 = vld [vmem:[%s1 + $0x34] sm:$0xf]
  %v80 = vld [vmem:[%s1 + $0x38] sm:$0xf]
  %v81 = vld [vmem:[%s1 + $0x3c] sm:$0xf]
  %v82 = vld [vmem:[%s1 + $0x40] sm:$0xf]
  %v83 = vld [vmem:[%s1 + $0x44] sm:$0xf]
  %v84 = vld [vmem:[%s1 + $0x48] sm:$0xf]
  %v85 = vld [vmem:[%s1 + $0x4c] sm:$0xf]
  %v86 = vld [vmem:[%s1 + $0x50] sm:$0xf]
  %v87 = vld [vmem:[%s1 + $0x54] sm:$0xf]
  %v88 = vld [vmem:[%s1 + $0x58] sm:$0xf]
  %v89 = vld [vmem:[%s1 + $0x5c] sm:$0xf]
  %v90 = vld [vmem:[%s1 + $0x60] sm:$0xf]
  %v91 = vld [vmem:[%s1 + $0x64] sm:$0xf]
  %v92 = vld [vmem:[%s1 + $0x68] sm:$0xf]
  %v93 = vld [vmem:[%s1 + $0x6c] sm:$0xf]
  %v94 = vld [vmem:[%s1 + $0x70] sm:$0xf]
  %v95 = vld [vmem:[%s1 + $0x74] sm:$0xf]
  %v96 = vld [vmem:[%s1 + $0x78] sm:$0xf]
  %v97 = vld [vmem:[%s1 + $0x7c] sm:$0xf]
  %v98 = vld [vmem:[%s1 + $0x80] sm:$0xf]
  %v99 = vld [vmem:[%s1 + $0x84] sm:$0xf]
  %v100 = vld [vmem:[%s1 + $0x88] sm:$0xf]
  %v101 = vld [vmem:[%s1 + $0x8c] sm:$0xf]
  %v102 = vld [vmem:[%s1 + $0x90] sm:$0xf]
  %v103 = vld [vmem:[%s1 + $0x94] sm:$0xf]
  %v104 = vld [vmem:[%s1 + $0x98] sm:$0xf]
  %v105 = vld [vmem:[%s1 + $0x9c] sm:$0xf]
  %v106 = vld [vmem:[%s1 + $0xa0] sm:$0xf]
  %v107 = vld [vmem:[%s1 + $0xa4] sm:$0xf]
  %v108 = vld [vmem:[%s1 + $0xa8] sm:$0xf]
  %v109 = vld [vmem:[%s1 + $0xac] sm:$0xf]
  %v110 = vld [vmem:[%s1 + $0xb0] sm:$0xf]
  %v111 = vld [vmem:[%s1 + $0xb4] sm:$0xf]
  %v112 = vld [vmem:[%s1 + $0xb8] sm:$0xf]
  %v113 = vld [vmem:[%s1 + $0xbc] sm:$0xf]
  %v114 = vld [vmem:[%s1 + $0xc0] sm:$0xf]
  %v115 = vld [vmem:[%s1 + $0xc4] sm:$0xf]
  %v116 = vld [vmem:[%s1 + $0xc8] sm:$0xf]
  %v117 = vld [vmem:[%s1 + $0xcc] sm:$0xf]
  %v118 = vld [vmem:[%s1 + $0xd0] sm:$0xf]
  %v119 = vld [vmem:[%s1 + $0xd4] sm:$0xf]
  %v120 = vld [vmem:[%s1 + $0xd8] sm:$0xf]
  %v121 = vld [vmem:[%s1 + $0xdc] sm:$0xf]
  %v122 = vld [vmem:[%s1 + $0xe0] sm:$0xf]
  %v123 = vld [vmem:[%s1 + $0xe4] sm:$0xf]
  %v124 = vld [vmem:[%s1 + $0xe8] sm:$0xf]
  %v125 = vld [vmem:[%s1 + $0xec] sm:$0xf]
  %v126 = vld [vmem:[%s1 + $0xf0] sm:$0xf]
  %v127 = vld [vmem:[%s1 + $0xf4] sm:$0xf]
  %v128 = vld [vmem:[%s1 + $0xf8] sm:$0xf]
  %v129 = vld [vmem:[%s1 + $0xfc] sm:$0xf]
  %v130 = vld [vmem:[%s1 + $0x100] sm:$0xf]
  %v131 = vld [vmem:[%s1 + $0x104] sm:$0xf]
  %v132 = vld [vmem:[%s1 + $0x108] sm:$0xf]
  %v133 = vld [vmem:[%s1 + $0x10c] sm:$0xf]
  %v134 = vld [vmem:[%s1 + $0x110] sm:$0xf]
  %v135 = vld [vmem:[%s1 + $0x114] sm:$0xf]
  %v136 = vld [vmem:[%s1 + $0x118] sm:$0xf]
  %v137 = vld [vmem:[%s1 + $0x11c] sm:$0xf]
  %v186 = vunpack.c.l.b16 %v18
  %v187 = vunpack.c.h.b16 %v18
  %v188 = vunpack.c.l.b16 %v19
  %v189 = vunpack.c.h.b16 %v19
  %v190 = vunpack.c.l.b16 %v20
  %v191 = vunpack.c.l.b16 %v21
  %v192 = vunpack.c.h.b16 %v21
  %v193 = vunpack.c.l.b16 %v22
  %v194 = vunpack.c.h.b16 %v22
  %v195 = vunpack.c.l.b16 %v23
  %v196 = vunpack.c.l.b16 %v24
  %v197 = vunpack.c.h.b16 %v24
  %v198 = vunpack.c.l.b16 %v25
  %v199 = vunpack.c.h.b16 %v25
  %v200 = vunpack.c.l.b16 %v26
  %v201 = vunpack.c.l.b16 %v27
  %v202 = vunpack.c.h.b16 %v27
  %v203 = vunpack.c.l.b16 %v28
  %v204 = vunpack.c.h.b16 %v28
  %v205 = vunpack.c.l.b16 %v29
  %v206 = vunpack.c.l.b16 %v30
  %v207 = vunpack.c.h.b16 %v30
  %v208 = vunpack.c.l.b16 %v31
  %v209 = vunpack.c.h.b16 %v31
  %v210 = vunpack.c.l.b16 %v32
  %v211 = vunpack.c.l.b16 %v33
  %v212 = vunpack.c.h.b16 %v33
  %v213 = vunpack.c.l.b16 %v34
  %v214 = vunpack.c.h.b16 %v34
  %v215 = vunpack.c.l.b16 %v35
  %v216 = vunpack.c.l.b16 %v36
  %v217 = vunpack.c.h.b16 %v36
  %v218 = vunpack.c.l.b16 %v37
  %v219 = vunpack.c.h.b16 %v37
  %v220 = vunpack.c.l.b16 %v38
  %v221 = vunpack.c.l.b16 %v39
  %v222 = vunpack.c.h.b16 %v39
  %v223 = vunpack.c.l.b16 %v40
  %v224 = vunpack.c.h.b16 %v40
  %v225 = vunpack.c.l.b16 %v41
  %v226 = vunpack.c.l.b16 %v42
  %v227 = vunpack.c.h.b16 %v42
  %v228 = vunpack.c.l.b16 %v43
  %v229 = vunpack.c.h.b16 %v43
  %v230 = vunpack.c.l.b16 %v44
  %v231 = vunpack.c.l.b16 %v45
  %v232 = vunpack.c.h.b16 %v45
  %v233 = vunpack.c.l.b16 %v46
  %v234 = vunpack.c.h.b16 %v46
  %v235 = vunpack.c.l.b16 %v47
  %v236 = vunpack.c.l.b16 %v48
  %v237 = vunpack.c.h.b16 %v48
  %v238 = vunpack.c.l.b16 %v49
  %v239 = vunpack.c.h.b16 %v49
  %v240 = vunpack.c.l.b16 %v50
  %v241 = vunpack.c.l.b16 %v51
  %v242 = vunpack.c.h.b16 %v51
  %v243 = vunpack.c.l.b16 %v52
  %v244 = vunpack.c.h.b16 %v52
  %v245 = vunpack.c.l.b16 %v53
  %v246 = vunpack.c.l.b16 %v54
  %v247 = vunpack.c.h.b16 %v54
  %v248 = vunpack.c.l.b16 %v55
  %v249 = vunpack.c.h.b16 %v55
  %v250 = vunpack.c.l.b16 %v56
  %v251 = vunpack.c.l.b16 %v57
  %v252 = vunpack.c.h.b16 %v57
  %v253 = vunpack.c.l.b16 %v58
  %v254 = vunpack.c.h.b16 %v58
  %v255 = vunpack.c.l.b16 %v59
  %v256 = vunpack.c.l.b16 %v60
  %v257 = vunpack.c.h.b16 %v60
  %v258 = vunpack.c.l.b16 %v61
  %v259 = vunpack.c.h.b16 %v61
  %v260 = vunpack.c.l.b16 %v62
  %v261 = vunpack.c.l.b16 %v63
  %v262 = vunpack.c.h.b16 %v63
  %v263 = vunpack.c.l.b16 %v64
  %v264 = vunpack.c.h.b16 %v64
  %v265 = vunpack.c.l.b16 %v65
  %v266 = vpack.c.b16 %v191, %v186
  %v267 = vpack.c.b16 %v192, %v187
  %v268 = vpack.c.b16 %v193, %v188
  %v269 = vpack.c.b16 %v194, %v189
  %v270 = vpack.c.b16 %v195, %v190
  %v271 = vpack.c.b16 %v201, %v196
  %v272 = vpack.c.b16 %v202, %v197
  %v273 = vpack.c.b16 %v203, %v198
  %v274 = vpack.c.b16 %v204, %v199
  %v275 = vpack.c.b16 %v205, %v200
  %v276 = vpack.c.b16 %v211, %v206
  %v277 = vpack.c.b16 %v212, %v207
  %v278 = vpack.c.b16 %v213, %v208
  %v279 = vpack.c.b16 %v214, %v209
  %v280 = vpack.c.b16 %v215, %v210
  %v281 = vpack.c.b16 %v221, %v216
  %v282 = vpack.c.b16 %v222, %v217
  %v283 = vpack.c.b16 %v223, %v218
  %v284 = vpack.c.b16 %v224, %v219
  %v285 = vpack.c.b16 %v225, %v220
  %v286 = vpack.c.b16 %v231, %v226
  %v287 = vpack.c.b16 %v232, %v227
  %v288 = vpack.c.b16 %v233, %v228
  %v289 = vpack.c.b16 %v234, %v229
  %v290 = vpack.c.b16 %v235, %v230
  %v291 = vpack.c.b16 %v241, %v236
  %v292 = vpack.c.b16 %v242, %v237
  %v293 = vpack.c.b16 %v243, %v238
  %v294 = vpack.c.b16 %v244, %v239
  %v295 = vpack.c.b16 %v245, %v240
  %v296 = vpack.c.b16 %v251, %v246
  %v297 = vpack.c.b16 %v252, %v247
  %v298 = vpack.c.b16 %v253, %v248
  %v299 = vpack.c.b16 %v254, %v249
  %v300 = vpack.c.b16 %v255, %v250
  %v301 = vpack.c.b16 %v261, %v256
  %v302 = vpack.c.b16 %v262, %v257
  %v303 = vpack.c.b16 %v263, %v258
  %v304 = vpack.c.b16 %v264, %v259
  %v305 = vpack.c.b16 %v265, %v260
  %v410 = vunpack.c.l.b16 %v66
  %v411 = vunpack.c.l.b16 %v67
  %v412 = vunpack.c.l.b16 %v68
  %v413 = vunpack.c.l.b16 %v69
  %v414 = vunpack.c.l.b16 %v70
  %v415 = vunpack.c.l.b16 %v71
  %v416 = vunpack.c.l.b16 %v72
  %v417 = vunpack.c.l.b16 %v73
  %v418 = vunpack.c.l.b16 %v74
  %v419 = vunpack.c.l.b16 %v75
  %v420 = vunpack.c.l.b16 %v76
  %v421 = vunpack.c.l.b16 %v77
  %v422 = vunpack.c.l.b16 %v78
  %v423 = vunpack.c.l.b16 %v79
  %v424 = vunpack.c.l.b16 %v80
  %v425 = vunpack.c.l.b16 %v81
  %v426 = vunpack.c.l.b16 %v82
  %v427 = vunpack.c.l.b16 %v83
  %v428 = vunpack.c.l.b16 %v84
  %v429 = vunpack.c.l.b16 %v85
  %v430 = vunpack.c.l.b16 %v86
  %v431 = vunpack.c.l.b16 %v87
  %v432 = vunpack.c.l.b16 %v88
  %v433 = vunpack.c.l.b16 %v89
  %v434 = vunpack.c.l.b16 %v90
  %v435 = vunpack.c.l.b16 %v91
  %v436 = vunpack.c.l.b16 %v92
  %v437 = vunpack.c.l.b16 %v93
  %v438 = vunpack.c.l.b16 %v94
  %v439 = vunpack.c.l.b16 %v95
  %v440 = vunpack.c.l.b16 %v96
  %v441 = vunpack.c.l.b16 %v97
  %v442 = vunpack.c.l.b16 %v98
  %v443 = vunpack.c.l.b16 %v99
  %v444 = vunpack.c.l.b16 %v100
  %v445 = vunpack.c.l.b16 %v101
  %v446 = vunpack.c.l.b16 %v102
  %v447 = vunpack.c.l.b16 %v103
  %v448 = vunpack.c.l.b16 %v104
  %v449 = vunpack.c.l.b16 %v105
  %v450 = vunpack.c.l.b16 %v106
  %v451 = vunpack.c.l.b16 %v107
  %v452 = vunpack.c.l.b16 %v108
  %v453 = vunpack.c.l.b16 %v109
  %v454 = vunpack.c.l.b16 %v110
  %v455 = vunpack.c.l.b16 %v111
  %v456 = vunpack.c.l.b16 %v112
  %v457 = vunpack.c.l.b16 %v113
  %v458 = vunpack.c.l.b16 %v114
  %v459 = vunpack.c.l.b16 %v115
  %v460 = vunpack.c.l.b16 %v116
  %v461 = vunpack.c.l.b16 %v117
  %v462 = vunpack.c.l.b16 %v118
  %v463 = vunpack.c.l.b16 %v119
  %v464 = vunpack.c.l.b16 %v120
  %v465 = vunpack.c.l.b16 %v121
  %v466 = vunpack.c.l.b16 %v122
  %v467 = vunpack.c.l.b16 %v123
  %v468 = vunpack.c.l.b16 %v124
  %v469 = vunpack.c.l.b16 %v125
  %v470 = vunpack.c.l.b16 %v126
  %v471 = vunpack.c.l.b16 %v127
  %v472 = vunpack.c.l.b16 %v128
  %v473 = vunpack.c.l.b16 %v129
  %v474 = vunpack.c.l.b16 %v130
  %v475 = vunpack.c.l.b16 %v131
  %v476 = vunpack.c.l.b16 %v132
  %v477 = vunpack.c.l.b16 %v133
  %v478 = vunpack.c.l.b16 %v134
  %v479 = vunpack.c.l.b16 %v135
  %v480 = vunpack.c.l.b16 %v136
  %v481 = vunpack.c.l.b16 %v137
  %v482 = vpack.c.b16 %v411, %v410
  %v483 = vpack.c.b16 %v413, %v412
  %v484 = vpack.c.b16 %v415, %v414
  %v485 = vpack.c.b16 %v417, %v416
  %v486 = vpack.c.b16 %v419, %v418
  %v487 = vpack.c.b16 %v421, %v420
  %v488 = vpack.c.b16 %v423, %v422
  %v489 = vpack.c.b16 %v425, %v424
  %v490 = vpack.c.b16 %v427, %v426
  %v491 = vpack.c.b16 %v429, %v428
  %v492 = vpack.c.b16 %v431, %v430
  %v493 = vpack.c.b16 %v433, %v432
  %v494 = vpack.c.b16 %v435, %v434
  %v495 = vpack.c.b16 %v437, %v436
  %v496 = vpack.c.b16 %v439, %v438
  %v497 = vpack.c.b16 %v441, %v440
  %v498 = vpack.c.b16 %v443, %v442
  %v499 = vpack.c.b16 %v445, %v444
  %v500 = vpack.c.b16 %v447, %v446
  %v501 = vpack.c.b16 %v449, %v448
  %v502 = vpack.c.b16 %v451, %v450
  %v503 = vpack.c.b16 %v453, %v452
  %v504 = vpack.c.b16 %v455, %v454
  %v505 = vpack.c.b16 %v457, %v456
  %v506 = vpack.c.b16 %v459, %v458
  %v507 = vpack.c.b16 %v461, %v460
  %v508 = vpack.c.b16 %v463, %v462
  %v509 = vpack.c.b16 %v465, %v464
  %v510 = vpack.c.b16 %v467, %v466
  %v511 = vpack.c.b16 %v469, %v468
  %v512 = vpack.c.b16 %v471, %v470
  %v513 = vpack.c.b16 %v473, %v472
  %v514 = vpack.c.b16 %v475, %v474
  %v515 = vpack.c.b16 %v477, %v476
  %v516 = vpack.c.b16 %v479, %v478
  %v517 = vpack.c.b16 %v481, %v480
  %vm554 = vcmask 523264
  %v556 = vsel %vm554, %v270, 0
  %v559 = vsel %vm554, %v275, 0
  %v562 = vsel %vm554, %v280, 0
  %v565 = vsel %vm554, %v285, 0
  %v568 = vsel %vm554, %v290, 0
  %v571 = vsel %vm554, %v295, 0
  %v574 = vsel %vm554, %v300, 0
  %v577 = vsel %vm554, %v305, 0
  %579 = vmatprep.subr.bf16.mxu0 0
  %580 = vmatpush1.bf16.msra.mxu0 %v489
  %581 = vmatprep.subr.bf16.mxu0 0
  %582 = vmatpush1.bf16.msra.mxu0 %v488
  %583 = vmatprep.subr.bf16.mxu0 0
  %584 = vmatpush1.bf16.msra.mxu0 %v487
  %585 = vmatprep.subr.bf16.mxu0 0
  %586 = vmatpush1.bf16.msra.mxu0 %v486
  %587 = vmatprep.subr.bf16.mxu0 0
  %588 = vmatpush1.bf16.msra.mxu0 %v485
  %589 = vmatprep.subr.bf16.mxu0 0
  %590 = vmatpush1.bf16.msra.mxu0 %v484
  %591 = vmatprep.subr.bf16.mxu0 0
  %592 = vmatpush1.bf16.msra.mxu0 %v483
  %593 = vmatprep.subr.bf16.mxu0 0
  %594 = vmatpush1.bf16.msra.mxu0 %v482
  %595 = vmatprep.subr.bf16.mxu0 0
  %596 = vmatpush2.bf16.msra.mxu0 %v497
  %597 = vmatprep.subr.bf16.mxu0 0
  %598 = vmatpush2.bf16.msra.mxu0 %v496
  %599 = vmatprep.subr.bf16.mxu0 0
  %600 = vmatpush2.bf16.msra.mxu0 %v495
  %601 = vmatprep.subr.bf16.mxu0 0
  %602 = vmatpush2.bf16.msra.mxu0 %v494
  %603 = vmatprep.subr.bf16.mxu0 0
  %604 = vmatpush2.bf16.msra.mxu0 %v493
  %605 = vmatprep.subr.bf16.mxu0 0
  %606 = vmatpush2.bf16.msra.mxu0 %v492
  %607 = vmatprep.subr.bf16.mxu0 0
  %608 = vmatpush2.bf16.msra.mxu0 %v491
  %609 = vmatprep.subr.bf16.mxu0 0
  %610 = vmatpush2.bf16.msra.mxu0 %v490
  %611 = vmatprep.mubr.bf16.mxu0 %v267
  %612 = vmatmul.mubr.bf16.gmra.mxu0 %v266
  %v613 = vpop.f32.mrf.mxu0
  %v614 = vadd.f32 0.0, %v613
  %v615 = vpop.f32.mrf.mxu0
  %v616 = vpop.f32.mrf.mxu0
  %v617 = vadd.f32 0.0, %v616
  %v618 = vpop.f32.mrf.mxu0
  %619 = vmatprep.mubr.bf16.mxu0 %v272
  %620 = vmatmul.mubr.bf16.gmra.mxu0 %v271
  %v621 = vpop.f32.mrf.mxu0
  %v622 = vadd.f32 0.0, %v621
  %v623 = vpop.f32.mrf.mxu0
  %v624 = vpop.f32.mrf.mxu0
  %v625 = vadd.f32 0.0, %v624
  %v626 = vpop.f32.mrf.mxu0
  %627 = vmatprep.mubr.bf16.mxu0 %v277
  %628 = vmatmul.mubr.bf16.gmra.mxu0 %v276
  %v629 = vpop.f32.mrf.mxu0
  %v630 = vadd.f32 0.0, %v629
  %v631 = vpop.f32.mrf.mxu0
  %v632 = vpop.f32.mrf.mxu0
  %v633 = vadd.f32 0.0, %v632
  %v634 = vpop.f32.mrf.mxu0
  %635 = vmatprep.mubr.bf16.mxu0 %v282
  %636 = vmatmul.mubr.bf16.gmra.mxu0 %v281
  %v637 = vpop.f32.mrf.mxu0
  %v638 = vadd.f32 0.0, %v637
  %v639 = vpop.f32.mrf.mxu0
  %v640 = vpop.f32.mrf.mxu0
  %v641 = vadd.f32 0.0, %v640
  %v642 = vpop.f32.mrf.mxu0
  %643 = vmatprep.mubr.bf16.mxu0 %v287
  %644 = vmatmul.mubr.bf16.gmra.mxu0 %v286
  %v645 = vpop.f32.mrf.mxu0
  %v646 = vadd.f32 0.0, %v645
  %v647 = vpop.f32.mrf.mxu0
  %v648 = vpop.f32.mrf.mxu0
  %v649 = vadd.f32 0.0, %v648
  %v650 = vpop.f32.mrf.mxu0
  %651 = vmatprep.mubr.bf16.mxu0 %v292
  %652 = vmatmul.mubr.bf16.gmra.mxu0 %v291
  %v653 = vpop.f32.mrf.mxu0
  %v654 = vadd.f32 0.0, %v653
  %v655 = vpop.f32.mrf.mxu0
  %v656 = vpop.f32.mrf.mxu0
  %v657 = vadd.f32 0.0, %v656
  %v658 = vpop.f32.mrf.mxu0
  %659 = vmatprep.mubr.bf16.mxu0 %v297
  %660 = vmatmul.mubr.bf16.gmra.mxu0 %v296
  %v661 = vpop.f32.mrf.mxu0
  %v662 = vadd.f32 0.0, %v661
  %v663 = vpop.f32.mrf.mxu0
  %v664 = vpop.f32.mrf.mxu0
  %v665 = vadd.f32 0.0, %v664
  %v666 = vpop.f32.mrf.mxu0
  %667 = vmatprep.mubr.bf16.mxu0 %v302
  %668 = vmatmul.mubr.bf16.gmra.mxu0 %v301
  %v669 = vpop.f32.mrf.mxu0
  %v670 = vadd.f32 0.0, %v669
  %v671 = vpop.f32.mrf.mxu0
  %v672 = vpop.f32.mrf.mxu0
  %v673 = vadd.f32 0.0, %v672
  %v674 = vpop.f32.mrf.mxu0
  %675 = vdwg.mxu0
  %676 = vmatprep.subr.bf16.mxu0 0
  %677 = vmatpush1.bf16.msra.mxu0 %v505
  %678 = vmatprep.subr.bf16.mxu0 0
  %679 = vmatpush1.bf16.msra.mxu0 %v504
  %680 = vmatprep.subr.bf16.mxu0 0
  %681 = vmatpush1.bf16.msra.mxu0 %v503
  %682 = vmatprep.subr.bf16.mxu0 0
  %683 = vmatpush1.bf16.msra.mxu0 %v502
  %684 = vmatprep.subr.bf16.mxu0 0
  %685 = vmatpush1.bf16.msra.mxu0 %v501
  %686 = vmatprep.subr.bf16.mxu0 0
  %687 = vmatpush1.bf16.msra.mxu0 %v500
  %688 = vmatprep.subr.bf16.mxu0 0
  %689 = vmatpush1.bf16.msra.mxu0 %v499
  %690 = vmatprep.subr.bf16.mxu0 0
  %691 = vmatpush1.bf16.msra.mxu0 %v498
  %692 = vmatprep.subr.bf16.mxu0 0
  %693 = vmatpush2.bf16.msra.mxu0 %v513
  %694 = vmatprep.subr.bf16.mxu0 0
  %695 = vmatpush2.bf16.msra.mxu0 %v512
  %696 = vmatprep.subr.bf16.mxu0 0
  %697 = vmatpush2.bf16.msra.mxu0 %v511
  %698 = vmatprep.subr.bf16.mxu0 0
  %699 = vmatpush2.bf16.msra.mxu0 %v510
  %700 = vmatprep.subr.bf16.mxu0 0
  %701 = vmatpush2.bf16.msra.mxu0 %v509
  %702 = vmatprep.subr.bf16.mxu0 0
  %703 = vmatpush2.bf16.msra.mxu0 %v508
  %704 = vmatprep.subr.bf16.mxu0 0
  %705 = vmatpush2.bf16.msra.mxu0 %v507
  %706 = vmatprep.subr.bf16.mxu0 0
  %707 = vmatpush2.bf16.msra.mxu0 %v506
  %708 = vmatprep.mubr.bf16.mxu0 %v269
  %709 = vmatmul.mubr.bf16.gmra.mxu0 %v268
  %v710 = vpop.f32.mrf.mxu0
  %v711 = vadd.f32 %v614, %v710
  %v712 = vpop.f32.mrf.mxu0
  %v713 = vpop.f32.mrf.mxu0
  %v714 = vadd.f32 %v617, %v713
  %v715 = vpop.f32.mrf.mxu0
  %716 = vmatprep.mubr.bf16.mxu0 %v274
  %717 = vmatmul.mubr.bf16.gmra.mxu0 %v273
  %v718 = vpop.f32.mrf.mxu0
  %v719 = vadd.f32 %v622, %v718
  %v720 = vpop.f32.mrf.mxu0
  %v721 = vpop.f32.mrf.mxu0
  %v722 = vadd.f32 %v625, %v721
  %v723 = vpop.f32.mrf.mxu0
  %724 = vmatprep.mubr.bf16.mxu0 %v279
  %725 = vmatmul.mubr.bf16.gmra.mxu0 %v278
  %v726 = vpop.f32.mrf.mxu0
  %v727 = vadd.f32 %v630, %v726
  %v728 = vpop.f32.mrf.mxu0
  %v729 = vpop.f32.mrf.mxu0
  %v730 = vadd.f32 %v633, %v729
  %v731 = vpop.f32.mrf.mxu0
  %732 = vmatprep.mubr.bf16.mxu0 %v284
  %733 = vmatmul.mubr.bf16.gmra.mxu0 %v283
  %v734 = vpop.f32.mrf.mxu0
  %v735 = vadd.f32 %v638, %v734
  %v736 = vpop.f32.mrf.mxu0
  %v737 = vpop.f32.mrf.mxu0
  %v738 = vadd.f32 %v641, %v737
  %v739 = vpop.f32.mrf.mxu0
  %740 = vmatprep.mubr.bf16.mxu0 %v289
  %741 = vmatmul.mubr.bf16.gmra.mxu0 %v288
  %v742 = vpop.f32.mrf.mxu0
  %v743 = vadd.f32 %v646, %v742
  %v744 = vpop.f32.mrf.mxu0
  %v745 = vpop.f32.mrf.mxu0
  %v746 = vadd.f32 %v649, %v745
  %v747 = vpop.f32.mrf.mxu0
  %748 = vmatprep.mubr.bf16.mxu0 %v294
  %749 = vmatmul.mubr.bf16.gmra.mxu0 %v293
  %v750 = vpop.f32.mrf.mxu0
  %v751 = vadd.f32 %v654, %v750
  %v752 = vpop.f32.mrf.mxu0
  %v753 = vpop.f32.mrf.mxu0
  %v754 = vadd.f32 %v657, %v753
  %v755 = vpop.f32.mrf.mxu0
  %756 = vmatprep.mubr.bf16.mxu0 %v299
  %757 = vmatmul.mubr.bf16.gmra.mxu0 %v298
  %v758 = vpop.f32.mrf.mxu0
  %v759 = vadd.f32 %v662, %v758
  %v760 = vpop.f32.mrf.mxu0
  %v761 = vpop.f32.mrf.mxu0
  %v762 = vadd.f32 %v665, %v761
  %v763 = vpop.f32.mrf.mxu0
  %764 = vmatprep.mubr.bf16.mxu0 %v304
  %765 = vmatmul.mubr.bf16.gmra.mxu0 %v303
  %v766 = vpop.f32.mrf.mxu0
  %v767 = vadd.f32 %v670, %v766
  %v768 = vpop.f32.mrf.mxu0
  %v769 = vpop.f32.mrf.mxu0
  %v770 = vadd.f32 %v673, %v769
  %v771 = vpop.f32.mrf.mxu0
  %772 = vdwg.mxu0
  %773 = vmatprep.subr.bf16.mxu0 0
  %774 = vmatpush1.bf16.msra.mxu0 0
  %775 = vmatprep.subr.bf16.mxu0 0
  %776 = vmatpush1.bf16.msra.mxu0 0
  %777 = vmatprep.subr.bf16.mxu0 0
  %778 = vmatpush1.bf16.msra.mxu0 0
  %779 = vmatprep.subr.bf16.mxu0 0
  %780 = vmatpush1.bf16.msra.mxu0 0
  %781 = vmatprep.subr.bf16.mxu0 0
  %782 = vmatpush1.bf16.msra.mxu0 %v517
  %783 = vmatprep.subr.bf16.mxu0 0
  %784 = vmatpush1.bf16.msra.mxu0 %v516
  %785 = vmatprep.subr.bf16.mxu0 0
  %786 = vmatpush1.bf16.msra.mxu0 %v515
  %787 = vmatprep.subr.bf16.mxu0 0
  %788 = vmatpush1.bf16.msra.mxu0 %v514
  %789 = vmatprep.subr.bf16.mxu0 0
  %790 = vmatpush2.bf16.msra.mxu0 0
  %791 = vmatprep.subr.bf16.mxu0 0
  %792 = vmatpush2.bf16.msra.mxu0 0
  %793 = vmatprep.subr.bf16.mxu0 0
  %794 = vmatpush2.bf16.msra.mxu0 0
  %795 = vmatprep.subr.bf16.mxu0 0
  %796 = vmatpush2.bf16.msra.mxu0 0
  %797 = vmatprep.subr.bf16.mxu0 0
  %798 = vmatpush2.bf16.msra.mxu0 0
  %799 = vmatprep.subr.bf16.mxu0 0
  %800 = vmatpush2.bf16.msra.mxu0 0
  %801 = vmatprep.subr.bf16.mxu0 0
  %802 = vmatpush2.bf16.msra.mxu0 0
  %803 = vmatprep.subr.bf16.mxu0 0
  %804 = vmatpush2.bf16.msra.mxu0 0
  %805 = vmatprep.mubr.bf16.mxu0 0
  %806 = vmatmul.mubr.bf16.gmra.mxu0 %v556
  %v807 = vpop.f32.mrf.mxu0
  %v808 = vadd.f32 %v711, %v807
  %v809 = vpop.f32.mrf.mxu0
  %v810 = vpop.f32.mrf.mxu0
  %v811 = vadd.f32 %v714, %v810
  %v812 = vpop.f32.mrf.mxu0
  %813 = vmatprep.mubr.bf16.mxu0 0
  %814 = vmatmul.mubr.bf16.gmra.mxu0 %v559
  %v815 = vpop.f32.mrf.mxu0
  %v816 = vadd.f32 %v719, %v815
  %v817 = vpop.f32.mrf.mxu0
  %v818 = vpop.f32.mrf.mxu0
  %v819 = vadd.f32 %v722, %v818
  %v820 = vpop.f32.mrf.mxu0
  %821 = vmatprep.mubr.bf16.mxu0 0
  %822 = vmatmul.mubr.bf16.gmra.mxu0 %v562
  %v823 = vpop.f32.mrf.mxu0
  %v824 = vadd.f32 %v727, %v823
  %v825 = vpop.f32.mrf.mxu0
  %v826 = vpop.f32.mrf.mxu0
  %v827 = vadd.f32 %v730, %v826
  %v828 = vpop.f32.mrf.mxu0
  %829 = vmatprep.mubr.bf16.mxu0 0
  %830 = vmatmul.mubr.bf16.gmra.mxu0 %v565
  %v831 = vpop.f32.mrf.mxu0
  %v832 = vadd.f32 %v735, %v831
  %v833 = vpop.f32.mrf.mxu0
  %v834 = vpop.f32.mrf.mxu0
  %v835 = vadd.f32 %v738, %v834
  %v836 = vpop.f32.mrf.mxu0
  %837 = vmatprep.mubr.bf16.mxu0 0
  %838 = vmatmul.mubr.bf16.gmra.mxu0 %v568
  %v839 = vpop.f32.mrf.mxu0
  %v840 = vadd.f32 %v743, %v839
  %v841 = vpop.f32.mrf.mxu0
  %v842 = vpop.f32.mrf.mxu0
  %v843 = vadd.f32 %v746, %v842
  %v844 = vpop.f32.mrf.mxu0
  %845 = vmatprep.mubr.bf16.mxu0 0
  %846 = vmatmul.mubr.bf16.gmra.mxu0 %v571
  %v847 = vpop.f32.mrf.mxu0
  %v848 = vadd.f32 %v751, %v847
  %v849 = vpop.f32.mrf.mxu0
  %v850 = vpop.f32.mrf.mxu0
  %v851 = vadd.f32 %v754, %v850
  %v852 = vpop.f32.mrf.mxu0
  %853 = vmatprep.mubr.bf16.mxu0 0
  %854 = vmatmul.mubr.bf16.gmra.mxu0 %v574
  %v855 = vpop.f32.mrf.mxu0
  %v856 = vadd.f32 %v759, %v855
  %v857 = vpop.f32.mrf.mxu0
  %v858 = vpop.f32.mrf.mxu0
  %v859 = vadd.f32 %v762, %v858
  %v860 = vpop.f32.mrf.mxu0
  %861 = vmatprep.mubr.bf16.mxu0 0
  %862 = vmatmul.mubr.bf16.gmra.mxu0 %v577
  %v863 = vpop.f32.mrf.mxu0
  %v864 = vadd.f32 %v767, %v863
  %v865 = vpop.f32.mrf.mxu0
  %v866 = vpop.f32.mrf.mxu0
  %v867 = vadd.f32 %v770, %v866
  %v868 = vpop.f32.mrf.mxu0
  %869 = vdwg.mxu0
  %vm870 = vcmask 261120
  %v871 = vsel %vm870, %v808, 0.0
  %872 = vadd.xlane.f32.xlu0 %v871
  %v873 = vpop.xlane.xlu0 %872
  %v874 = vsel %vm870, %v811, 0.0
  %875 = vadd.xlane.f32.xlu0 %v874
  %v876 = vpop.xlane.xlu0 %875
  %v877 = vsel %vm870, %v816, 0.0
  %878 = vadd.xlane.f32.xlu0 %v877
  %v879 = vpop.xlane.xlu0 %878
  %v880 = vsel %vm870, %v819, 0.0
  %881 = vadd.xlane.f32.xlu0 %v880
  %v882 = vpop.xlane.xlu0 %881
  %v883 = vsel %vm870, %v824, 0.0
  %884 = vadd.xlane.f32.xlu0 %v883
  %v885 = vpop.xlane.xlu0 %884
  %v886 = vsel %vm870, %v827, 0.0
  %887 = vadd.xlane.f32.xlu0 %v886
  %v888 = vpop.xlane.xlu0 %887
  %v889 = vsel %vm870, %v832, 0.0
  %890 = vadd.xlane.f32.xlu0 %v889
  %v891 = vpop.xlane.xlu0 %890
  %v892 = vsel %vm870, %v835, 0.0
  %893 = vadd.xlane.f32.xlu0 %v892
  %v894 = vpop.xlane.xlu0 %893
  %v895 = vsel %vm870, %v840, 0.0
  %896 = vadd.xlane.f32.xlu0 %v895
  %v897 = vpop.xlane.xlu0 %896
  %v898 = vsel %vm870, %v843, 0.0
  %899 = vadd.xlane.f32.xlu0 %v898
  %v900 = vpop.xlane.xlu0 %899
  %v901 = vsel %vm870, %v848, 0.0
  %902 = vadd.xlane.f32.xlu0 %v901
  %v903 = vpop.xlane.xlu0 %902
  %v904 = vsel %vm870, %v851, 0.0
  %905 = vadd.xlane.f32.xlu0 %v904
  %v906 = vpop.xlane.xlu0 %905
  %v907 = vsel %vm870, %v856, 0.0
  %908 = vadd.xlane.f32.xlu0 %v907
  %v909 = vpop.xlane.xlu0 %908
  %v910 = vsel %vm870, %v859, 0.0
  %911 = vadd.xlane.f32.xlu0 %v910
  %v912 = vpop.xlane.xlu0 %911
  %v913 = vsel %vm870, %v864, 0.0
  %914 = vadd.xlane.f32.xlu0 %v913
  %v915 = vpop.xlane.xlu0 %914
  %v916 = vsel %vm870, %v867, 0.0
  %917 = vadd.xlane.f32.xlu0 %v916
  %v918 = vpop.xlane.xlu0 %917
  %v919 = vmul.f32 %v808, %v808
  %v920 = vmul.f32 %v811, %v811
  %v921 = vmul.f32 %v816, %v816
  %v922 = vmul.f32 %v819, %v819
  %v923 = vmul.f32 %v824, %v824
  %v924 = vmul.f32 %v827, %v827
  %v925 = vmul.f32 %v832, %v832
  %v926 = vmul.f32 %v835, %v835
  %v927 = vmul.f32 %v840, %v840
  %v928 = vmul.f32 %v843, %v843
  %v929 = vmul.f32 %v848, %v848
  %v930 = vmul.f32 %v851, %v851
  %v931 = vmul.f32 %v856, %v856
  %v932 = vmul.f32 %v859, %v859
  %v933 = vmul.f32 %v864, %v864
  %v934 = vmul.f32 %v867, %v867
  %v935 = vsel %vm870, %v919, 0.0
  %936 = vadd.xlane.f32.xlu0 %v935
  %v937 = vpop.xlane.xlu0 %936
  %v938 = vsel %vm870, %v920, 0.0
  %939 = vadd.xlane.f32.xlu0 %v938
  %v940 = vpop.xlane.xlu0 %939
  %v941 = vsel %vm870, %v921, 0.0
  %942 = vadd.xlane.f32.xlu0 %v941
  %v943 = vpop.xlane.xlu0 %942
  %v944 = vsel %vm870, %v922, 0.0
  %945 = vadd.xlane.f32.xlu0 %v944
  %v946 = vpop.xlane.xlu0 %945
  %v947 = vsel %vm870, %v923, 0.0
  %948 = vadd.xlane.f32.xlu0 %v947
  %v949 = vpop.xlane.xlu0 %948
  %v950 = vsel %vm870, %v924, 0.0
  %951 = vadd.xlane.f32.xlu0 %v950
  %v952 = vpop.xlane.xlu0 %951
  %v953 = vsel %vm870, %v925, 0.0
  %954 = vadd.xlane.f32.xlu0 %v953
  %v955 = vpop.xlane.xlu0 %954
  %v956 = vsel %vm870, %v926, 0.0
  %957 = vadd.xlane.f32.xlu0 %v956
  %v958 = vpop.xlane.xlu0 %957
  %v959 = vsel %vm870, %v927, 0.0
  %960 = vadd.xlane.f32.xlu0 %v959
  %v961 = vpop.xlane.xlu0 %960
  %v962 = vsel %vm870, %v928, 0.0
  %963 = vadd.xlane.f32.xlu0 %v962
  %v964 = vpop.xlane.xlu0 %963
  %v965 = vsel %vm870, %v929, 0.0
  %966 = vadd.xlane.f32.xlu0 %v965
  %v967 = vpop.xlane.xlu0 %966
  %v968 = vsel %vm870, %v930, 0.0
  %969 = vadd.xlane.f32.xlu0 %v968
  %v970 = vpop.xlane.xlu0 %969
  %v971 = vsel %vm870, %v931, 0.0
  %972 = vadd.xlane.f32.xlu0 %v971
  %v973 = vpop.xlane.xlu0 %972
  %v974 = vsel %vm870, %v932, 0.0
  %975 = vadd.xlane.f32.xlu0 %v974
  %v976 = vpop.xlane.xlu0 %975
  %v977 = vsel %vm870, %v933, 0.0
  %978 = vadd.xlane.f32.xlu0 %v977
  %v979 = vpop.xlane.xlu0 %978
  %v980 = vsel %vm870, %v934, 0.0
  %981 = vadd.xlane.f32.xlu0 %v980
  %v982 = vpop.xlane.xlu0 %981
  %v983 = vlaneseq
  %v984 = vshrl.u32 %v983, 7
  %v985 = vadd.s32 %v984, 8
  %v986 = vadd.s32 %v984, 16
  %v987 = vadd.s32 %v984, 24
  %v988 = vadd.s32 %v984, 32
  %v989 = vadd.s32 %v984, 40
  %v990 = vadd.s32 %v984, 48
  %v991 = vadd.s32 %v984, 56
  %v992 = vadd.s32 %v984, 64
  %v993 = vadd.s32 %v984, 72
  %v994 = vadd.s32 %v984, 80
  %v995 = vadd.s32 %v984, 88
  %v996 = vadd.s32 %v984, 96
  %v997 = vadd.s32 %v984, 104
  %v998 = vadd.s32 %v984, 112
  %v999 = vadd.s32 %v984, 120
  %vm1000 = vcmp.lt.s32.totalorder %v984, 0
  %v1001 = vsub.s32 0, %v984
  %v1002 = vsel %vm1000, %v1001, %v984
  %v1003 = vshrl.u32 %v1002, 5
  %v1004 = vand.u32 %v1002, 31
  %v1005 = vsub.s32 0, %v1004
  %v1006 = vsel %vm1000, %v1005, %v1004
  %vm1007 = vcmp.lt.s32.totalorder %v985, 0
  %v1008 = vsub.s32 0, %v985
  %v1009 = vsel %vm1007, %v1008, %v985
  %v1010 = vshrl.u32 %v1009, 5
  %v1011 = vand.u32 %v1009, 31
  %v1012 = vsub.s32 0, %v1011
  %v1013 = vsel %vm1007, %v1012, %v1011
  %vm1014 = vcmp.lt.s32.totalorder %v986, 0
  %v1015 = vsub.s32 0, %v986
  %v1016 = vsel %vm1014, %v1015, %v986
  %v1017 = vshrl.u32 %v1016, 5
  %v1018 = vand.u32 %v1016, 31
  %v1019 = vsub.s32 0, %v1018
  %v1020 = vsel %vm1014, %v1019, %v1018
  %vm1021 = vcmp.lt.s32.totalorder %v987, 0
  %v1022 = vsub.s32 0, %v987
  %v1023 = vsel %vm1021, %v1022, %v987
  %v1024 = vshrl.u32 %v1023, 5
  %v1025 = vand.u32 %v1023, 31
  %v1026 = vsub.s32 0, %v1025
  %v1027 = vsel %vm1021, %v1026, %v1025
  %vm1028 = vcmp.lt.s32.totalorder %v988, 0
  %v1029 = vsub.s32 0, %v988
  %v1030 = vsel %vm1028, %v1029, %v988
  %v1031 = vshrl.u32 %v1030, 5
  %v1032 = vand.u32 %v1030, 31
  %v1033 = vsub.s32 0, %v1032
  %v1034 = vsel %vm1028, %v1033, %v1032
  %vm1035 = vcmp.lt.s32.totalorder %v989, 0
  %v1036 = vsub.s32 0, %v989
  %v1037 = vsel %vm1035, %v1036, %v989
  %v1038 = vshrl.u32 %v1037, 5
  %v1039 = vand.u32 %v1037, 31
  %v1040 = vsub.s32 0, %v1039
  %v1041 = vsel %vm1035, %v1040, %v1039
  %vm1042 = vcmp.lt.s32.totalorder %v990, 0
  %v1043 = vsub.s32 0, %v990
  %v1044 = vsel %vm1042, %v1043, %v990
  %v1045 = vshrl.u32 %v1044, 5
  %v1046 = vand.u32 %v1044, 31
  %v1047 = vsub.s32 0, %v1046
  %v1048 = vsel %vm1042, %v1047, %v1046
  %vm1049 = vcmp.lt.s32.totalorder %v991, 0
  %v1050 = vsub.s32 0, %v991
  %v1051 = vsel %vm1049, %v1050, %v991
  %v1052 = vshrl.u32 %v1051, 5
  %v1053 = vand.u32 %v1051, 31
  %v1054 = vsub.s32 0, %v1053
  %v1055 = vsel %vm1049, %v1054, %v1053
  %vm1056 = vcmp.lt.s32.totalorder %v992, 0
  %v1057 = vsub.s32 0, %v992
  %v1058 = vsel %vm1056, %v1057, %v992
  %v1059 = vshrl.u32 %v1058, 5
  %v1060 = vand.u32 %v1058, 31
  %v1061 = vsub.s32 0, %v1060
  %v1062 = vsel %vm1056, %v1061, %v1060
  %vm1063 = vcmp.lt.s32.totalorder %v993, 0
  %v1064 = vsub.s32 0, %v993
  %v1065 = vsel %vm1063, %v1064, %v993
  %v1066 = vshrl.u32 %v1065, 5
  %v1067 = vand.u32 %v1065, 31
  %v1068 = vsub.s32 0, %v1067
  %v1069 = vsel %vm1063, %v1068, %v1067
  %vm1070 = vcmp.lt.s32.totalorder %v994, 0
  %v1071 = vsub.s32 0, %v994
  %v1072 = vsel %vm1070, %v1071, %v994
  %v1073 = vshrl.u32 %v1072, 5
  %v1074 = vand.u32 %v1072, 31
  %v1075 = vsub.s32 0, %v1074
  %v1076 = vsel %vm1070, %v1075, %v1074
  %vm1077 = vcmp.lt.s32.totalorder %v995, 0
  %v1078 = vsub.s32 0, %v995
  %v1079 = vsel %vm1077, %v1078, %v995
  %v1080 = vshrl.u32 %v1079, 5
  %v1081 = vand.u32 %v1079, 31
  %v1082 = vsub.s32 0, %v1081
  %v1083 = vsel %vm1077, %v1082, %v1081
  %vm1084 = vcmp.lt.s32.totalorder %v996, 0
  %v1085 = vsub.s32 0, %v996
  %v1086 = vsel %vm1084, %v1085, %v996
  %v1087 = vshrl.u32 %v1086, 5
  %v1088 = vand.u32 %v1086, 31
  %v1089 = vsub.s32 0, %v1088
  %v1090 = vsel %vm1084, %v1089, %v1088
  %vm1091 = vcmp.lt.s32.totalorder %v997, 0
  %v1092 = vsub.s32 0, %v997
  %v1093 = vsel %vm1091, %v1092, %v997
  %v1094 = vshrl.u32 %v1093, 5
  %v1095 = vand.u32 %v1093, 31
  %v1096 = vsub.s32 0, %v1095
  %v1097 = vsel %vm1091, %v1096, %v1095
  %vm1098 = vcmp.lt.s32.totalorder %v998, 0
  %v1099 = vsub.s32 0, %v998
  %v1100 = vsel %vm1098, %v1099, %v998
  %v1101 = vshrl.u32 %v1100, 5
  %v1102 = vand.u32 %v1100, 31
  %v1103 = vsub.s32 0, %v1102
  %v1104 = vsel %vm1098, %v1103, %v1102
  %vm1105 = vcmp.lt.s32.totalorder %v999, 0
  %v1106 = vsub.s32 0, %v999
  %v1107 = vsel %vm1105, %v1106, %v999
  %v1108 = vshrl.u32 %v1107, 5
  %v1109 = vand.u32 %v1107, 31
  %v1110 = vsub.s32 0, %v1109
  %v1111 = vsel %vm1105, %v1110, %v1109
  %vm1112 = vcmp.ne.s32.totalorder %v1006, 0
  %vm1113 = vcmp.ne.s32.totalorder %v1013, 0
  %vm1114 = vcmp.ne.s32.totalorder %v1020, 0
  %vm1115 = vcmp.ne.s32.totalorder %v1027, 0
  %vm1116 = vcmp.ne.s32.totalorder %v1034, 0
  %vm1117 = vcmp.ne.s32.totalorder %v1041, 0
  %vm1118 = vcmp.ne.s32.totalorder %v1048, 0
  %vm1119 = vcmp.ne.s32.totalorder %v1055, 0
  %vm1120 = vcmp.ne.s32.totalorder %v1062, 0
  %vm1121 = vcmp.ne.s32.totalorder %v1069, 0
  %vm1122 = vcmp.ne.s32.totalorder %v1076, 0
  %vm1123 = vcmp.ne.s32.totalorder %v1083, 0
  %vm1124 = vcmp.ne.s32.totalorder %v1090, 0
  %vm1125 = vcmp.ne.s32.totalorder %v1097, 0
  %vm1126 = vcmp.ne.s32.totalorder %v1104, 0
  %vm1127 = vcmp.ne.s32.totalorder %v1111, 0
  %vm1128 = vcmp.lt.s32.totalorder %v1006, 0
  %vm1129 = vcmp.lt.s32.totalorder %v1013, 0
  %vm1130 = vcmp.lt.s32.totalorder %v1020, 0
  %vm1131 = vcmp.lt.s32.totalorder %v1027, 0
  %vm1132 = vcmp.lt.s32.totalorder %v1034, 0
  %vm1133 = vcmp.lt.s32.totalorder %v1041, 0
  %vm1134 = vcmp.lt.s32.totalorder %v1048, 0
  %vm1135 = vcmp.lt.s32.totalorder %v1055, 0
  %vm1136 = vcmp.lt.s32.totalorder %v1062, 0
  %vm1137 = vcmp.lt.s32.totalorder %v1069, 0
  %vm1138 = vcmp.lt.s32.totalorder %v1076, 0
  %vm1139 = vcmp.lt.s32.totalorder %v1083, 0
  %vm1140 = vcmp.lt.s32.totalorder %v1090, 0
  %vm1141 = vcmp.lt.s32.totalorder %v1097, 0
  %vm1142 = vcmp.lt.s32.totalorder %v1104, 0
  %vm1143 = vcmp.lt.s32.totalorder %v1111, 0
  %vm1144 = vmand %vm1128, %vm1112
  %vm1145 = vmand %vm1129, %vm1113
  %vm1146 = vmand %vm1130, %vm1114
  %vm1147 = vmand %vm1131, %vm1115
  %vm1148 = vmand %vm1132, %vm1116
  %vm1149 = vmand %vm1133, %vm1117
  %vm1150 = vmand %vm1134, %vm1118
  %vm1151 = vmand %vm1135, %vm1119
  %vm1152 = vmand %vm1136, %vm1120
  %vm1153 = vmand %vm1137, %vm1121
  %vm1154 = vmand %vm1138, %vm1122
  %vm1155 = vmand %vm1139, %vm1123
  %vm1156 = vmand %vm1140, %vm1124
  %vm1157 = vmand %vm1141, %vm1125
  %vm1158 = vmand %vm1142, %vm1126
  %vm1159 = vmand %vm1143, %vm1127
  %v1160 = vadd.s32 %v1006, 32
  %v1161 = vadd.s32 %v1013, 32
  %v1162 = vadd.s32 %v1020, 32
  %v1163 = vadd.s32 %v1027, 32
  %v1164 = vadd.s32 %v1034, 32
  %v1165 = vadd.s32 %v1041, 32
  %v1166 = vadd.s32 %v1048, 32
  %v1167 = vadd.s32 %v1055, 32
  %v1168 = vadd.s32 %v1062, 32
  %v1169 = vadd.s32 %v1069, 32
  %v1170 = vadd.s32 %v1076, 32
  %v1171 = vadd.s32 %v1083, 32
  %v1172 = vadd.s32 %v1090, 32
  %v1173 = vadd.s32 %v1097, 32
  %v1174 = vadd.s32 %v1104, 32
  %v1175 = vadd.s32 %v1111, 32
  %v1176 = vsel %vm1144, %v1160, %v1006
  %v1177 = vsel %vm1145, %v1161, %v1013
  %v1178 = vsel %vm1146, %v1162, %v1020
  %v1179 = vsel %vm1147, %v1163, %v1027
  %v1180 = vsel %vm1148, %v1164, %v1034
  %v1181 = vsel %vm1149, %v1165, %v1041
  %v1182 = vsel %vm1150, %v1166, %v1048
  %v1183 = vsel %vm1151, %v1167, %v1055
  %v1184 = vsel %vm1152, %v1168, %v1062
  %v1185 = vsel %vm1153, %v1169, %v1069
  %v1186 = vsel %vm1154, %v1170, %v1076
  %v1187 = vsel %vm1155, %v1171, %v1083
  %v1188 = vsel %vm1156, %v1172, %v1090
  %v1189 = vsel %vm1157, %v1173, %v1097
  %v1190 = vsel %vm1158, %v1174, %v1104
  %v1191 = vsel %vm1159, %v1175, %v1111
  %v1192 = vlaneseq
  %v1193 = vand.u32 %v1192, 127
  %vm1194 = vcmp.eq.s32.totalorder %v1176, %v1193
  %vm1195 = vcmp.eq.s32.totalorder %v1177, %v1193
  %vm1196 = vcmp.eq.s32.totalorder %v1178, %v1193
  %vm1197 = vcmp.eq.s32.totalorder %v1179, %v1193
  %vm1198 = vcmp.eq.s32.totalorder %v1180, %v1193
  %vm1199 = vcmp.eq.s32.totalorder %v1181, %v1193
  %vm1200 = vcmp.eq.s32.totalorder %v1182, %v1193
  %vm1201 = vcmp.eq.s32.totalorder %v1183, %v1193
  %vm1202 = vcmp.eq.s32.totalorder %v1184, %v1193
  %vm1203 = vcmp.eq.s32.totalorder %v1185, %v1193
  %vm1204 = vcmp.eq.s32.totalorder %v1186, %v1193
  %vm1205 = vcmp.eq.s32.totalorder %v1187, %v1193
  %vm1206 = vcmp.eq.s32.totalorder %v1188, %v1193
  %vm1207 = vcmp.eq.s32.totalorder %v1189, %v1193
  %vm1208 = vcmp.eq.s32.totalorder %v1190, %v1193
  %vm1209 = vcmp.eq.s32.totalorder %v1191, %v1193
  %v1210 = vsel %vm1194, 1, 0
  %v1211 = vsel %vm1195, 1, 0
  %v1212 = vsel %vm1196, 1, 0
  %v1213 = vsel %vm1197, 1, 0
  %v1214 = vsel %vm1198, 1, 0
  %v1215 = vsel %vm1199, 1, 0
  %v1216 = vsel %vm1200, 1, 0
  %v1217 = vsel %vm1201, 1, 0
  %v1218 = vsel %vm1202, 1, 0
  %v1219 = vsel %vm1203, 1, 0
  %v1220 = vsel %vm1204, 1, 0
  %v1221 = vsel %vm1205, 1, 0
  %v1222 = vsel %vm1206, 1, 0
  %v1223 = vsel %vm1207, 1, 0
  %v1224 = vsel %vm1208, 1, 0
  %v1225 = vsel %vm1209, 1, 0
  %v1226 = vcvt.s32.f32 %v1210
  %v1227 = vcvt.s32.f32 %v1211
  %v1228 = vcvt.s32.f32 %v1212
  %v1229 = vcvt.s32.f32 %v1213
  %v1230 = vcvt.s32.f32 %v1214
  %v1231 = vcvt.s32.f32 %v1215
  %v1232 = vcvt.s32.f32 %v1216
  %v1233 = vcvt.s32.f32 %v1217
  %v1234 = vcvt.s32.f32 %v1218
  %v1235 = vcvt.s32.f32 %v1219
  %v1236 = vcvt.s32.f32 %v1220
  %v1237 = vcvt.s32.f32 %v1221
  %v1238 = vcvt.s32.f32 %v1222
  %v1239 = vcvt.s32.f32 %v1223
  %v1240 = vcvt.s32.f32 %v1224
  %v1241 = vcvt.s32.f32 %v1225
  %v1242 = vmul.f32 %v1226, %v873
  %v1243 = vmul.f32 %v1227, %v876
  %v1244 = vmul.f32 %v1228, %v879
  %v1245 = vmul.f32 %v1229, %v882
  %v1246 = vmul.f32 %v1230, %v885
  %v1247 = vmul.f32 %v1231, %v888
  %v1248 = vmul.f32 %v1232, %v891
  %v1249 = vmul.f32 %v1233, %v894
  %v1250 = vmul.f32 %v1234, %v897
  %v1251 = vmul.f32 %v1235, %v900
  %v1252 = vmul.f32 %v1236, %v903
  %v1253 = vmul.f32 %v1237, %v906
  %v1254 = vmul.f32 %v1238, %v909
  %v1255 = vmul.f32 %v1239, %v912
  %v1256 = vmul.f32 %v1240, %v915
  %v1257 = vmul.f32 %v1241, %v918
  %v1258 = vsel %vm870, %v1242, 0.0
  %v1259 = vsel %vm870, %v1243, 0.0
  %v1260 = vadd.f32 %v1258, %v1259
  %v1261 = vsel %vm870, %v1244, 0.0
  %v1262 = vadd.f32 %v1260, %v1261
  %v1263 = vsel %vm870, %v1245, 0.0
  %v1264 = vadd.f32 %v1262, %v1263
  %v1265 = vsel %vm870, %v1246, 0.0
  %v1266 = vadd.f32 %v1264, %v1265
  %v1267 = vsel %vm870, %v1247, 0.0
  %v1268 = vadd.f32 %v1266, %v1267
  %v1269 = vsel %vm870, %v1248, 0.0
  %v1270 = vadd.f32 %v1268, %v1269
  %v1271 = vsel %vm870, %v1249, 0.0
  %v1272 = vadd.f32 %v1270, %v1271
  %v1273 = vsel %vm870, %v1250, 0.0
  %v1274 = vadd.f32 %v1272, %v1273
  %v1275 = vsel %vm870, %v1251, 0.0
  %v1276 = vadd.f32 %v1274, %v1275
  %v1277 = vsel %vm870, %v1252, 0.0
  %v1278 = vadd.f32 %v1276, %v1277
  %v1279 = vsel %vm870, %v1253, 0.0
  %v1280 = vadd.f32 %v1278, %v1279
  %v1281 = vsel %vm870, %v1254, 0.0
  %v1282 = vadd.f32 %v1280, %v1281
  %v1283 = vsel %vm870, %v1255, 0.0
  %v1284 = vadd.f32 %v1282, %v1283
  %v1285 = vsel %vm870, %v1256, 0.0
  %v1286 = vadd.f32 %v1284, %v1285
  %v1287 = vsel %vm870, %v1257, 0.0
  %v1288 = vadd.f32 %v1286, %v1287
  %v1289 = vrot.slane %v1288, 4
  %v1290 = vadd.f32 %v1288, %v1289
  %v1291 = vrot.slane %v1290, 2
  %v1292 = vadd.f32 %v1290, %v1291
  %v1293 = vrot.slane %v1292, 1
  %v1294 = vadd.f32 %v1292, %v1293
  %v1295 = vmul.f32 %v1226, %v937
  %v1296 = vmul.f32 %v1227, %v940
  %v1297 = vmul.f32 %v1228, %v943
  %v1298 = vmul.f32 %v1229, %v946
  %v1299 = vmul.f32 %v1230, %v949
  %v1300 = vmul.f32 %v1231, %v952
  %v1301 = vmul.f32 %v1232, %v955
  %v1302 = vmul.f32 %v1233, %v958
  %v1303 = vmul.f32 %v1234, %v961
  %v1304 = vmul.f32 %v1235, %v964
  %v1305 = vmul.f32 %v1236, %v967
  %v1306 = vmul.f32 %v1237, %v970
  %v1307 = vmul.f32 %v1238, %v973
  %v1308 = vmul.f32 %v1239, %v976
  %v1309 = vmul.f32 %v1240, %v979
  %v1310 = vmul.f32 %v1241, %v982
  %v1311 = vsel %vm870, %v1295, 0.0
  %v1312 = vsel %vm870, %v1296, 0.0
  %v1313 = vadd.f32 %v1311, %v1312
  %v1314 = vsel %vm870, %v1297, 0.0
  %v1315 = vadd.f32 %v1313, %v1314
  %v1316 = vsel %vm870, %v1298, 0.0
  %v1317 = vadd.f32 %v1315, %v1316
  %v1318 = vsel %vm870, %v1299, 0.0
  %v1319 = vadd.f32 %v1317, %v1318
  %v1320 = vsel %vm870, %v1300, 0.0
  %v1321 = vadd.f32 %v1319, %v1320
  %v1322 = vsel %vm870, %v1301, 0.0
  %v1323 = vadd.f32 %v1321, %v1322
  %v1324 = vsel %vm870, %v1302, 0.0
  %v1325 = vadd.f32 %v1323, %v1324
  %v1326 = vsel %vm870, %v1303, 0.0
  %v1327 = vadd.f32 %v1325, %v1326
  %v1328 = vsel %vm870, %v1304, 0.0
  %v1329 = vadd.f32 %v1327, %v1328
  %v1330 = vsel %vm870, %v1305, 0.0
  %v1331 = vadd.f32 %v1329, %v1330
  %v1332 = vsel %vm870, %v1306, 0.0
  %v1333 = vadd.f32 %v1331, %v1332
  %v1334 = vsel %vm870, %v1307, 0.0
  %v1335 = vadd.f32 %v1333, %v1334
  %v1336 = vsel %vm870, %v1308, 0.0
  %v1337 = vadd.f32 %v1335, %v1336
  %v1338 = vsel %vm870, %v1309, 0.0
  %v1339 = vadd.f32 %v1337, %v1338
  %v1340 = vsel %vm870, %v1310, 0.0
  %v1341 = vadd.f32 %v1339, %v1340
  %v1342 = vrot.slane %v1341, 4
  %v1343 = vadd.f32 %v1341, %v1342
  %v1344 = vrot.slane %v1343, 2
  %v1345 = vadd.f32 %v1343, %v1344
  %v1346 = vrot.slane %v1345, 1
  %v1347 = vadd.f32 %v1345, %v1346
  %v1348 = vmul.f32 %v1294, 0.0078125
  %v1349 = vmul.f32 %v1347, 0.0078125
  %v1350 = vmul.f32 %v1348, %v1348
  %v1351 = vsub.f32 %v1349, %v1350
  %v1352 = vmax.f32 %v1351, 0.0
  %v1353 = vld [vmem:[%s2] sm:$0x1]
  %v1354 = vadd.f32 %v1352, 1e-05
  %v1355 = vrsqrt.pop %v1354
  %v1356 = vmul.f32 %v1353, %v1355
  %v1357 = vld [vmem:[%s3] sm:$0x1]
  %v1358 = vmul.f32 %v1348, %v1356
  %v1359 = vsub.f32 %v1357, %v1358
  %v1361 = vlaneseq
  %v1362 = vshrl.u32 %v1361, 7
  %v1363 = vsub.s32 0, %v1362
  %v1364 = vrot.slane %v1356, %v1363
  %v1366 = vmul.f32 %v1226, %v1364
  %v1367 = vmul.f32 %v1227, %v1364
  %v1368 = vmul.f32 %v1228, %v1364
  %v1369 = vmul.f32 %v1229, %v1364
  %v1370 = vmul.f32 %v1230, %v1364
  %v1371 = vmul.f32 %v1231, %v1364
  %v1372 = vmul.f32 %v1232, %v1364
  %v1373 = vmul.f32 %v1233, %v1364
  %v1374 = vmul.f32 %v1234, %v1364
  %v1375 = vmul.f32 %v1235, %v1364
  %v1376 = vmul.f32 %v1236, %v1364
  %v1377 = vmul.f32 %v1237, %v1364
  %v1378 = vmul.f32 %v1238, %v1364
  %v1379 = vmul.f32 %v1239, %v1364
  %v1380 = vmul.f32 %v1240, %v1364
  %v1381 = vmul.f32 %v1241, %v1364
  %v1382 = vsel %vm870, %v1366, 0.0
  %1383 = vadd.xlane.f32.xlu0 %v1382
  %v1384 = vpop.xlane.xlu0 %1383
  %v1385 = vsel %vm870, %v1367, 0.0
  %1386 = vadd.xlane.f32.xlu0 %v1385
  %v1387 = vpop.xlane.xlu0 %1386
  %v1388 = vsel %vm870, %v1368, 0.0
  %1389 = vadd.xlane.f32.xlu0 %v1388
  %v1390 = vpop.xlane.xlu0 %1389
  %v1391 = vsel %vm870, %v1369, 0.0
  %1392 = vadd.xlane.f32.xlu0 %v1391
  %v1393 = vpop.xlane.xlu0 %1392
  %v1394 = vsel %vm870, %v1370, 0.0
  %1395 = vadd.xlane.f32.xlu0 %v1394
  %v1396 = vpop.xlane.xlu0 %1395
  %v1397 = vsel %vm870, %v1371, 0.0
  %1398 = vadd.xlane.f32.xlu0 %v1397
  %v1399 = vpop.xlane.xlu0 %1398
  %v1400 = vsel %vm870, %v1372, 0.0
  %1401 = vadd.xlane.f32.xlu0 %v1400
  %v1402 = vpop.xlane.xlu0 %1401
  %v1403 = vsel %vm870, %v1373, 0.0
  %1404 = vadd.xlane.f32.xlu0 %v1403
  %v1405 = vpop.xlane.xlu0 %1404
  %v1406 = vsel %vm870, %v1374, 0.0
  %1407 = vadd.xlane.f32.xlu0 %v1406
  %v1408 = vpop.xlane.xlu0 %1407
  %v1409 = vsel %vm870, %v1375, 0.0
  %1410 = vadd.xlane.f32.xlu0 %v1409
  %v1411 = vpop.xlane.xlu0 %1410
  %v1412 = vsel %vm870, %v1376, 0.0
  %1413 = vadd.xlane.f32.xlu0 %v1412
  %v1414 = vpop.xlane.xlu0 %1413
  %v1415 = vsel %vm870, %v1377, 0.0
  %1416 = vadd.xlane.f32.xlu0 %v1415
  %v1417 = vpop.xlane.xlu0 %1416
  %v1418 = vsel %vm870, %v1378, 0.0
  %1419 = vadd.xlane.f32.xlu0 %v1418
  %v1420 = vpop.xlane.xlu0 %1419
  %v1421 = vsel %vm870, %v1379, 0.0
  %1422 = vadd.xlane.f32.xlu0 %v1421
  %v1423 = vpop.xlane.xlu0 %1422
  %v1424 = vsel %vm870, %v1380, 0.0
  %1425 = vadd.xlane.f32.xlu0 %v1424
  %v1426 = vpop.xlane.xlu0 %1425
  %v1427 = vsel %vm870, %v1381, 0.0
  %1428 = vadd.xlane.f32.xlu0 %v1427
  %v1429 = vpop.xlane.xlu0 %1428
  %v1431 = vlaneseq
  %v1432 = vshrl.u32 %v1431, 7
  %v1433 = vsub.s32 0, %v1432
  %v1434 = vrot.slane %v1359, %v1433
  %v1436 = vmul.f32 %v1226, %v1434
  %v1437 = vmul.f32 %v1227, %v1434
  %v1438 = vmul.f32 %v1228, %v1434
  %v1439 = vmul.f32 %v1229, %v1434
  %v1440 = vmul.f32 %v1230, %v1434
  %v1441 = vmul.f32 %v1231, %v1434
  %v1442 = vmul.f32 %v1232, %v1434
  %v1443 = vmul.f32 %v1233, %v1434
  %v1444 = vmul.f32 %v1234, %v1434
  %v1445 = vmul.f32 %v1235, %v1434
  %v1446 = vmul.f32 %v1236, %v1434
  %v1447 = vmul.f32 %v1237, %v1434
  %v1448 = vmul.f32 %v1238, %v1434
  %v1449 = vmul.f32 %v1239, %v1434
  %v1450 = vmul.f32 %v1240, %v1434
  %v1451 = vmul.f32 %v1241, %v1434
  %v1452 = vsel %vm870, %v1436, 0.0
  %1453 = vadd.xlane.f32.xlu0 %v1452
  %v1454 = vpop.xlane.xlu0 %1453
  %v1455 = vsel %vm870, %v1437, 0.0
  %1456 = vadd.xlane.f32.xlu0 %v1455
  %v1457 = vpop.xlane.xlu0 %1456
  %v1458 = vsel %vm870, %v1438, 0.0
  %1459 = vadd.xlane.f32.xlu0 %v1458
  %v1460 = vpop.xlane.xlu0 %1459
  %v1461 = vsel %vm870, %v1439, 0.0
  %1462 = vadd.xlane.f32.xlu0 %v1461
  %v1463 = vpop.xlane.xlu0 %1462
  %v1464 = vsel %vm870, %v1440, 0.0
  %1465 = vadd.xlane.f32.xlu0 %v1464
  %v1466 = vpop.xlane.xlu0 %1465
  %v1467 = vsel %vm870, %v1441, 0.0
  %1468 = vadd.xlane.f32.xlu0 %v1467
  %v1469 = vpop.xlane.xlu0 %1468
  %v1470 = vsel %vm870, %v1442, 0.0
  %1471 = vadd.xlane.f32.xlu0 %v1470
  %v1472 = vpop.xlane.xlu0 %1471
  %v1473 = vsel %vm870, %v1443, 0.0
  %1474 = vadd.xlane.f32.xlu0 %v1473
  %v1475 = vpop.xlane.xlu0 %1474
  %v1476 = vsel %vm870, %v1444, 0.0
  %1477 = vadd.xlane.f32.xlu0 %v1476
  %v1478 = vpop.xlane.xlu0 %1477
  %v1479 = vsel %vm870, %v1445, 0.0
  %1480 = vadd.xlane.f32.xlu0 %v1479
  %v1481 = vpop.xlane.xlu0 %1480
  %v1482 = vsel %vm870, %v1446, 0.0
  %1483 = vadd.xlane.f32.xlu0 %v1482
  %v1484 = vpop.xlane.xlu0 %1483
  %v1485 = vsel %vm870, %v1447, 0.0
  %1486 = vadd.xlane.f32.xlu0 %v1485
  %v1487 = vpop.xlane.xlu0 %1486
  %v1488 = vsel %vm870, %v1448, 0.0
  %1489 = vadd.xlane.f32.xlu0 %v1488
  %v1490 = vpop.xlane.xlu0 %1489
  %v1491 = vsel %vm870, %v1449, 0.0
  %1492 = vadd.xlane.f32.xlu0 %v1491
  %v1493 = vpop.xlane.xlu0 %1492
  %v1494 = vsel %vm870, %v1450, 0.0
  %1495 = vadd.xlane.f32.xlu0 %v1494
  %v1496 = vpop.xlane.xlu0 %1495
  %v1497 = vsel %vm870, %v1451, 0.0
  %1498 = vadd.xlane.f32.xlu0 %v1497
  %v1499 = vpop.xlane.xlu0 %1498
  %v1500 = vmul.f32 %v808, %v1384
  %v1501 = vmul.f32 %v811, %v1387
  %v1502 = vmul.f32 %v816, %v1390
  %v1503 = vmul.f32 %v819, %v1393
  %v1504 = vmul.f32 %v824, %v1396
  %v1505 = vmul.f32 %v827, %v1399
  %v1506 = vmul.f32 %v832, %v1402
  %v1507 = vmul.f32 %v835, %v1405
  %v1508 = vmul.f32 %v840, %v1408
  %v1509 = vmul.f32 %v843, %v1411
  %v1510 = vmul.f32 %v848, %v1414
  %v1511 = vmul.f32 %v851, %v1417
  %v1512 = vmul.f32 %v856, %v1420
  %v1513 = vmul.f32 %v859, %v1423
  %v1514 = vmul.f32 %v864, %v1426
  %v1515 = vmul.f32 %v867, %v1429
  %v1516 = vadd.f32 %v1500, %v1454
  %v1517 = vadd.f32 %v1501, %v1457
  %v1518 = vadd.f32 %v1502, %v1460
  %v1519 = vadd.f32 %v1503, %v1463
  %v1520 = vadd.f32 %v1504, %v1466
  %v1521 = vadd.f32 %v1505, %v1469
  %v1522 = vadd.f32 %v1506, %v1472
  %v1523 = vadd.f32 %v1507, %v1475
  %v1524 = vadd.f32 %v1508, %v1478
  %v1525 = vadd.f32 %v1509, %v1481
  %v1526 = vadd.f32 %v1510, %v1484
  %v1527 = vadd.f32 %v1511, %v1487
  %v1528 = vadd.f32 %v1512, %v1490
  %v1529 = vadd.f32 %v1513, %v1493
  %v1530 = vadd.f32 %v1514, %v1496
  %v1531 = vadd.f32 %v1515, %v1499
  %v1532 = vmax.f32 %v1516, 0.0
  %v1533 = vmax.f32 %v1517, 0.0
  %v1534 = vmax.f32 %v1518, 0.0
  %v1535 = vmax.f32 %v1519, 0.0
  %v1536 = vmax.f32 %v1520, 0.0
  %v1537 = vmax.f32 %v1521, 0.0
  %v1538 = vmax.f32 %v1522, 0.0
  %v1539 = vmax.f32 %v1523, 0.0
  %v1540 = vmax.f32 %v1524, 0.0
  %v1541 = vmax.f32 %v1525, 0.0
  %v1542 = vmax.f32 %v1526, 0.0
  %v1543 = vmax.f32 %v1527, 0.0
  %v1544 = vmax.f32 %v1528, 0.0
  %v1545 = vmax.f32 %v1529, 0.0
  %v1546 = vmax.f32 %v1530, 0.0
  %v1547 = vmax.f32 %v1531, 0.0
  %1548 = vst.msk [vmem:[%s4] sm:$0xff] %vm870, %v1532
  %1549 = vst.msk [vmem:[%s4 + $0x8] sm:$0xff] %vm870, %v1533
  %1550 = vst.msk [vmem:[%s4 + $0x10] sm:$0xff] %vm870, %v1534
  %1551 = vst.msk [vmem:[%s4 + $0x18] sm:$0xff] %vm870, %v1535
  %1552 = vst.msk [vmem:[%s4 + $0x20] sm:$0xff] %vm870, %v1536
  %1553 = vst.msk [vmem:[%s4 + $0x28] sm:$0xff] %vm870, %v1537
  %1554 = vst.msk [vmem:[%s4 + $0x30] sm:$0xff] %vm870, %v1538
  %1555 = vst.msk [vmem:[%s4 + $0x38] sm:$0xff] %vm870, %v1539
  %1556 = vst.msk [vmem:[%s4 + $0x40] sm:$0xff] %vm870, %v1540
  %1557 = vst.msk [vmem:[%s4 + $0x48] sm:$0xff] %vm870, %v1541
  %1558 = vst.msk [vmem:[%s4 + $0x50] sm:$0xff] %vm870, %v1542
  %1559 = vst.msk [vmem:[%s4 + $0x58] sm:$0xff] %vm870, %v1543
  %1560 = vst.msk [vmem:[%s4 + $0x60] sm:$0xff] %vm870, %v1544
  %1561 = vst.msk [vmem:[%s4 + $0x68] sm:$0xff] %vm870, %v1545
  %1562 = vst.msk [vmem:[%s4 + $0x70] sm:$0xff] %vm870, %v1546
  %1563 = vst.msk [vmem:[%s4 + $0x78] sm:$0xff] %vm870, %v1547
  // Predicated region
  $region18: #{generator_forward.8} parent=0 // pred_check
    _
  $region19: #{generator_forward.8} parent=0 // pred_check_branch
    %1565 = sbr.rel (0) target = $region21
  $region20: #{generator_forward.8} parent=0 // pred_region
    _
  $region21: #{generator_forward.8} parent=0 // pred_fallthru
    _
  // Predicated region
  $region22: #{generator_forward.8} parent=0 // pred_check
    _
  $region23: #{generator_forward.8} parent=0 // pred_check_branch
    %1567 = sbr.rel (0) target = $region25
  $region24: #{generator_forward.8} parent=0 // pred_region
    _
  $region25: #{generator_forward.8} parent=0 // pred_fallthru
    _

// kernel: generator_forward.9
$region0: #{generator_forward.9}
  #allocation0 [shape = 'u32[]', space=smem, size = 0x4, offset = 0x4, fixed_abs, tag = 'smem constant byte address 0x4 - core index']
  #allocation1 [shape = 'u32[144,128]{1,0:T(1,128)}', space=vmem, size = 0x12000, scoped, tag = 'internal scratch']
  %s0 = inlined_call_operand.vmem [shape: bf16[64,288], index: 0, kind: input, shape index: {}]
  %s1 = inlined_call_operand.vmem [shape: bf16[288,128], index: 1, kind: input, shape index: {}]
  %s2 = inlined_call_operand.vmem [shape: f32[1,16], index: 2, kind: input, shape index: {}]
  %s3 = inlined_call_operand.vmem [shape: f32[1,16], index: 3, kind: input, shape index: {}]
  %s4 = inlined_call_operand.vmem [shape: f32[64,128], index: 4, kind: output, shape index: {}]
  %s5 = sld [smem:[#allocation0]]
  $region26: #{generator_forward.9} parent=0
    _
  %s7 = ssub.s32 1, %s5
  %s8 = scalar_select 0, %s7, %s5
  // Predicated region
  $region2: #{generator_forward.9} parent=0 // pred_check
    _
  $region3: #{generator_forward.9} parent=0 // pred_check_branch
    %10 = sbr.rel (0) target = $region5
  $region4: #{generator_forward.9} parent=0 // pred_region
    _
  $region5: #{generator_forward.9} parent=0 // pred_fallthru
    _
  // Predicated region
  $region6: #{generator_forward.9} parent=0 // pred_check
    _
  $region7: #{generator_forward.9} parent=0 // pred_check_branch
    %12 = sbr.rel (0) target = $region9
  $region8: #{generator_forward.9} parent=0 // pred_region
    _
  $region9: #{generator_forward.9} parent=0 // pred_fallthru
    _
  // Predicated region
  $region10: #{generator_forward.9} parent=0 // pred_check
    _
  $region11: #{generator_forward.9} parent=0 // pred_check_branch
    %14 = sbr.rel (0) target = $region13
  $region12: #{generator_forward.9} parent=0 // pred_region
    _
  $region13: #{generator_forward.9} parent=0 // pred_fallthru
    _
  // Predicated region
  $region14: #{generator_forward.9} parent=0 // pred_check
    _
  $region15: #{generator_forward.9} parent=0 // pred_check_branch
    %16 = sbr.rel (0) target = $region17
  $region16: #{generator_forward.9} parent=0 // pred_region
    _
  $region17: #{generator_forward.9} parent=0 // pred_fallthru
    _
  %v18 = vld [vmem:[%s0] sm:$0xff]
  %v19 = vld [vmem:[%s0 + $0x8] sm:$0xf]
  %v20 = vld [vmem:[%s0 + $0xc] sm:$0xff]
  %v21 = vld [vmem:[%s0 + $0x14] sm:$0xf]
  %v22 = vld [vmem:[%s0 + $0x18] sm:$0xff]
  %v23 = vld [vmem:[%s0 + $0x20] sm:$0xf]
  %v24 = vld [vmem:[%s0 + $0x24] sm:$0xff]
  %v25 = vld [vmem:[%s0 + $0x2c] sm:$0xf]
  %v26 = vld [vmem:[%s0 + $0x30] sm:$0xff]
  %v27 = vld [vmem:[%s0 + $0x38] sm:$0xf]
  %v28 = vld [vmem:[%s0 + $0x3c] sm:$0xff]
  %v29 = vld [vmem:[%s0 + $0x44] sm:$0xf]
  %v30 = vld [vmem:[%s0 + $0x48] sm:$0xff]
  %v31 = vld [vmem:[%s0 + $0x50] sm:$0xf]
  %v32 = vld [vmem:[%s0 + $0x54] sm:$0xff]
  %v33 = vld [vmem:[%s0 + $0x5c] sm:$0xf]
  %v34 = vld [vmem:[%s1] sm:$0xf]
  %v35 = vld [vmem:[%s1 + $0x4] sm:$0xf]
  %v36 = vld [vmem:[%s1 + $0x8] sm:$0xf]
  %v37 = vld [vmem:[%s1 + $0xc] sm:$0xf]
  %v38 = vld [vmem:[%s1 + $0x10] sm:$0xf]
  %v39 = vld [vmem:[%s1 + $0x14] sm:$0xf]
  %v40 = vld [vmem:[%s1 + $0x18] sm:$0xf]
  %v41 = vld [vmem:[%s1 + $0x1c] sm:$0xf]
  %v42 = vld [vmem:[%s1 + $0x20] sm:$0xf]
  %v43 = vld [vmem:[%s1 + $0x24] sm:$0xf]
  %v44 = vld [vmem:[%s1 + $0x28] sm:$0xf]
  %v45 = vld [vmem:[%s1 + $0x2c] sm:$0xf]
  %v46 = vld [vmem:[%s1 + $0x30] sm:$0xf]
  %v47 = vld [vmem:[%s1 + $0x34] sm:$0xf]
  %v48 = vld [vmem:[%s1 + $0x38] sm:$0xf]
  %v49 = vld [vmem:[%s1 + $0x3c] sm:$0xf]
  %v50 = vld [vmem:[%s1 + $0x40] sm:$0xf]
  %v51 = vld [vmem:[%s1 + $0x44] sm:$0xf]
  %v52 = vld [vmem:[%s1 + $0x48] sm:$0xf]
  %v53 = vld [vmem:[%s1 + $0x4c] sm:$0xf]
  %v54 = vld [vmem:[%s1 + $0x50] sm:$0xf]
  %v55 = vld [vmem:[%s1 + $0x54] sm:$0xf]
  %v56 = vld [vmem:[%s1 + $0x58] sm:$0xf]
  %v57 = vld [vmem:[%s1 + $0x5c] sm:$0xf]
  %v58 = vld [vmem:[%s1 + $0x60] sm:$0xf]
  %v59 = vld [vmem:[%s1 + $0x64] sm:$0xf]
  %v60 = vld [vmem:[%s1 + $0x68] sm:$0xf]
  %v61 = vld [vmem:[%s1 + $0x6c] sm:$0xf]
  %v62 = vld [vmem:[%s1 + $0x70] sm:$0xf]
  %v63 = vld [vmem:[%s1 + $0x74] sm:$0xf]
  %v64 = vld [vmem:[%s1 + $0x78] sm:$0xf]
  %v65 = vld [vmem:[%s1 + $0x7c] sm:$0xf]
  %v66 = vld [vmem:[%s1 + $0x80] sm:$0xf]
  %v67 = vld [vmem:[%s1 + $0x84] sm:$0xf]
  %v68 = vld [vmem:[%s1 + $0x88] sm:$0xf]
  %v69 = vld [vmem:[%s1 + $0x8c] sm:$0xf]
  %v86 = vunpack.c.l.b16 %v18
  %v87 = vunpack.c.h.b16 %v18
  %v88 = vunpack.c.l.b16 %v19
  %v89 = vunpack.c.l.b16 %v20
  %v90 = vunpack.c.h.b16 %v20
  %v91 = vunpack.c.l.b16 %v21
  %v92 = vunpack.c.l.b16 %v22
  %v93 = vunpack.c.h.b16 %v22
  %v94 = vunpack.c.l.b16 %v23
  %v95 = vunpack.c.l.b16 %v24
  %v96 = vunpack.c.h.b16 %v24
  %v97 = vunpack.c.l.b16 %v25
  %v98 = vunpack.c.l.b16 %v26
  %v99 = vunpack.c.h.b16 %v26
  %v100 = vunpack.c.l.b16 %v27
  %v101 = vunpack.c.l.b16 %v28
  %v102 = vunpack.c.h.b16 %v28
  %v103 = vunpack.c.l.b16 %v29
  %v104 = vunpack.c.l.b16 %v30
  %v105 = vunpack.c.h.b16 %v30
  %v106 = vunpack.c.l.b16 %v31
  %v107 = vunpack.c.l.b16 %v32
  %v108 = vunpack.c.h.b16 %v32
  %v109 = vunpack.c.l.b16 %v33
  %v110 = vpack.c.b16 %v89, %v86
  %v111 = vpack.c.b16 %v90, %v87
  %v112 = vpack.c.b16 %v91, %v88
  %v113 = vpack.c.b16 %v95, %v92
  %v114 = vpack.c.b16 %v96, %v93
  %v115 = vpack.c.b16 %v97, %v94
  %v116 = vpack.c.b16 %v101, %v98
  %v117 = vpack.c.b16 %v102, %v99
  %v118 = vpack.c.b16 %v103, %v100
  %v119 = vpack.c.b16 %v107, %v104
  %v120 = vpack.c.b16 %v108, %v105
  %v121 = vpack.c.b16 %v109, %v106
  %v166 = vunpack.c.l.b16 %v34
  %v167 = vunpack.c.l.b16 %v35
  %v168 = vunpack.c.l.b16 %v36
  %v169 = vunpack.c.l.b16 %v37
  %v170 = vunpack.c.l.b16 %v38
  %v171 = vunpack.c.l.b16 %v39
  %v172 = vunpack.c.l.b16 %v40
  %v173 = vunpack.c.l.b16 %v41
  %v174 = vunpack.c.l.b16 %v42
  %v175 = vunpack.c.l.b16 %v43
  %v176 = vunpack.c.l.b16 %v44
  %v177 = vunpack.c.l.b16 %v45
  %v178 = vunpack.c.l.b16 %v46
  %v179 = vunpack.c.l.b16 %v47
  %v180 = vunpack.c.l.b16 %v48
  %v181 = vunpack.c.l.b16 %v49
  %v182 = vunpack.c.l.b16 %v50
  %v183 = vunpack.c.l.b16 %v51
  %v184 = vunpack.c.l.b16 %v52
  %v185 = vunpack.c.l.b16 %v53
  %v186 = vunpack.c.l.b16 %v54
  %v187 = vunpack.c.l.b16 %v55
  %v188 = vunpack.c.l.b16 %v56
  %v189 = vunpack.c.l.b16 %v57
  %v190 = vunpack.c.l.b16 %v58
  %v191 = vunpack.c.l.b16 %v59
  %v192 = vunpack.c.l.b16 %v60
  %v193 = vunpack.c.l.b16 %v61
  %v194 = vunpack.c.l.b16 %v62
  %v195 = vunpack.c.l.b16 %v63
  %v196 = vunpack.c.l.b16 %v64
  %v197 = vunpack.c.l.b16 %v65
  %v198 = vunpack.c.l.b16 %v66
  %v199 = vunpack.c.l.b16 %v67
  %v200 = vunpack.c.l.b16 %v68
  %v201 = vunpack.c.l.b16 %v69
  %v202 = vpack.c.b16 %v167, %v166
  %v203 = vpack.c.b16 %v169, %v168
  %v204 = vpack.c.b16 %v171, %v170
  %v205 = vpack.c.b16 %v173, %v172
  %v206 = vpack.c.b16 %v175, %v174
  %v207 = vpack.c.b16 %v177, %v176
  %v208 = vpack.c.b16 %v179, %v178
  %v209 = vpack.c.b16 %v181, %v180
  %v210 = vpack.c.b16 %v183, %v182
  %v211 = vpack.c.b16 %v185, %v184
  %v212 = vpack.c.b16 %v187, %v186
  %v213 = vpack.c.b16 %v189, %v188
  %v214 = vpack.c.b16 %v191, %v190
  %v215 = vpack.c.b16 %v193, %v192
  %v216 = vpack.c.b16 %v195, %v194
  %v217 = vpack.c.b16 %v197, %v196
  %v218 = vpack.c.b16 %v199, %v198
  %v219 = vpack.c.b16 %v201, %v200
  %vm238 = vcmask 261120
  %v240 = vsel %vm238, %v112, 0
  %v243 = vsel %vm238, %v115, 0
  %v246 = vsel %vm238, %v118, 0
  %v249 = vsel %vm238, %v121, 0
  %251 = vmatprep.subr.bf16.mxu0 0
  %252 = vmatpush1.bf16.msra.mxu0 %v209
  %253 = vmatprep.subr.bf16.mxu0 0
  %254 = vmatpush1.bf16.msra.mxu0 %v208
  %255 = vmatprep.subr.bf16.mxu0 0
  %256 = vmatpush1.bf16.msra.mxu0 %v207
  %257 = vmatprep.subr.bf16.mxu0 0
  %258 = vmatpush1.bf16.msra.mxu0 %v206
  %259 = vmatprep.subr.bf16.mxu0 0
  %260 = vmatpush1.bf16.msra.mxu0 %v205
  %261 = vmatprep.subr.bf16.mxu0 0
  %262 = vmatpush1.bf16.msra.mxu0 %v204
  %263 = vmatprep.subr.bf16.mxu0 0
  %264 = vmatpush1.bf16.msra.mxu0 %v203
  %265 = vmatprep.subr.bf16.mxu0 0
  %266 = vmatpush1.bf16.msra.mxu0 %v202
  %267 = vmatprep.subr.bf16.mxu0 0
  %268 = vmatpush2.bf16.msra.mxu0 %v217
  %269 = vmatprep.subr.bf16.mxu0 0
  %270 = vmatpush2.bf16.msra.mxu0 %v216
  %271 = vmatprep.subr.bf16.mxu0 0
  %272 = vmatpush2.bf16.msra.mxu0 %v215
  %273 = vmatprep.subr.bf16.mxu0 0
  %274 = vmatpush2.bf16.msra.mxu0 %v214
  %275 = vmatprep.subr.bf16.mxu0 0
  %276 = vmatpush2.bf16.msra.mxu0 %v213
  %277 = vmatprep.subr.bf16.mxu0 0
  %278 = vmatpush2.bf16.msra.mxu0 %v212
  %279 = vmatprep.subr.bf16.mxu0 0
  %280 = vmatpush2.bf16.msra.mxu0 %v211
  %281 = vmatprep.subr.bf16.mxu0 0
  %282 = vmatpush2.bf16.msra.mxu0 %v210
  %283 = vmatprep.mubr.bf16.mxu0 %v111
  %284 = vmatmul.mubr.bf16.gmra.mxu0 %v110
  %v285 = vpop.f32.mrf.mxu0
  %v286 = vadd.f32 0.0, %v285
  %v287 = vpop.f32.mrf.mxu0
  %v288 = vpop.f32.mrf.mxu0
  %v289 = vadd.f32 0.0, %v288
  %v290 = vpop.f32.mrf.mxu0
  %291 = vmatprep.mubr.bf16.mxu0 %v114
  %292 = vmatmul.mubr.bf16.gmra.mxu0 %v113
  %v293 = vpop.f32.mrf.mxu0
  %v294 = vadd.f32 0.0, %v293
  %v295 = vpop.f32.mrf.mxu0
  %v296 = vpop.f32.mrf.mxu0
  %v297 = vadd.f32 0.0, %v296
  %v298 = vpop.f32.mrf.mxu0
  %299 = vmatprep.mubr.bf16.mxu0 %v117
  %300 = vmatmul.mubr.bf16.gmra.mxu0 %v116
  %v301 = vpop.f32.mrf.mxu0
  %v302 = vadd.f32 0.0, %v301
  %v303 = vpop.f32.mrf.mxu0
  %v304 = vpop.f32.mrf.mxu0
  %v305 = vadd.f32 0.0, %v304
  %v306 = vpop.f32.mrf.mxu0
  %307 = vmatprep.mubr.bf16.mxu0 %v120
  %308 = vmatmul.mubr.bf16.gmra.mxu0 %v119
  %v309 = vpop.f32.mrf.mxu0
  %v310 = vadd.f32 0.0, %v309
  %v311 = vpop.f32.mrf.mxu0
  %v312 = vpop.f32.mrf.mxu0
  %v313 = vadd.f32 0.0, %v312
  %v314 = vpop.f32.mrf.mxu0
  %315 = vdwg.mxu0
  %316 = vmatprep.subr.bf16.mxu0 0
  %317 = vmatpush1.bf16.msra.mxu0 0
  %318 = vmatprep.subr.bf16.mxu0 0
  %319 = vmatpush1.bf16.msra.mxu0 0
  %320 = vmatprep.subr.bf16.mxu0 0
  %321 = vmatpush1.bf16.msra.mxu0 0
  %322 = vmatprep.subr.bf16.mxu0 0
  %323 = vmatpush1.bf16.msra.mxu0 0
  %324 = vmatprep.subr.bf16.mxu0 0
  %325 = vmatpush1.bf16.msra.mxu0 0
  %326 = vmatprep.subr.bf16.mxu0 0
  %327 = vmatpush1.bf16.msra.mxu0 0
  %328 = vmatprep.subr.bf16.mxu0 0
  %329 = vmatpush1.bf16.msra.mxu0 %v219
  %330 = vmatprep.subr.bf16.mxu0 0
  %331 = vmatpush1.bf16.msra.mxu0 %v218
  %332 = vmatprep.subr.bf16.mxu0 0
  %333 = vmatpush2.bf16.msra.mxu0 0
  %334 = vmatprep.subr.bf16.mxu0 0
  %335 = vmatpush2.bf16.msra.mxu0 0
  %336 = vmatprep.subr.bf16.mxu0 0
  %337 = vmatpush2.bf16.msra.mxu0 0
  %338 = vmatprep.subr.bf16.mxu0 0
  %339 = vmatpush2.bf16.msra.mxu0 0
  %340 = vmatprep.subr.bf16.mxu0 0
  %341 = vmatpush2.bf16.msra.mxu0 0
  %342 = vmatprep.subr.bf16.mxu0 0
  %343 = vmatpush2.bf16.msra.mxu0 0
  %344 = vmatprep.subr.bf16.mxu0 0
  %345 = vmatpush2.bf16.msra.mxu0 0
  %346 = vmatprep.subr.bf16.mxu0 0
  %347 = vmatpush2.bf16.msra.mxu0 0
  %348 = vmatprep.mubr.bf16.mxu0 0
  %349 = vmatmul.mubr.bf16.gmra.mxu0 %v240
  %v350 = vpop.f32.mrf.mxu0
  %v351 = vadd.f32 %v286, %v350
  %v352 = vpop.f32.mrf.mxu0
  %v353 = vpop.f32.mrf.mxu0
  %v354 = vadd.f32 %v289, %v353
  %v355 = vpop.f32.mrf.mxu0
  %356 = vmatprep.mubr.bf16.mxu0 0
  %357 = vmatmul.mubr.bf16.gmra.mxu0 %v243
  %v358 = vpop.f32.mrf.mxu0
  %v359 = vadd.f32 %v294, %v358
  %v360 = vpop.f32.mrf.mxu0
  %v361 = vpop.f32.mrf.mxu0
  %v362 = vadd.f32 %v297, %v361
  %v363 = vpop.f32.mrf.mxu0
  %364 = vmatprep.mubr.bf16.mxu0 0
  %365 = vmatmul.mubr.bf16.gmra.mxu0 %v246
  %v366 = vpop.f32.mrf.mxu0
  %v367 = vadd.f32 %v302, %v366
  %v368 = vpop.f32.mrf.mxu0
  %v369 = vpop.f32.mrf.mxu0
  %v370 = vadd.f32 %v305, %v369
  %v371 = vpop.f32.mrf.mxu0
  %372 = vmatprep.mubr.bf16.mxu0 0
  %373 = vmatmul.mubr.bf16.gmra.mxu0 %v249
  %v374 = vpop.f32.mrf.mxu0
  %v375 = vadd.f32 %v310, %v374
  %v376 = vpop.f32.mrf.mxu0
  %v377 = vpop.f32.mrf.mxu0
  %v378 = vadd.f32 %v313, %v377
  %v379 = vpop.f32.mrf.mxu0
  %380 = vdwg.mxu0
  %381 = vadd.xlane.f32.xlu0 %v351
  %v382 = vpop.xlane.xlu0 %381
  %383 = vadd.xlane.f32.xlu0 %v354
  %v384 = vpop.xlane.xlu0 %383
  %385 = vadd.xlane.f32.xlu0 %v359
  %v386 = vpop.xlane.xlu0 %385
  %387 = vadd.xlane.f32.xlu0 %v362
  %v388 = vpop.xlane.xlu0 %387
  %389 = vadd.xlane.f32.xlu0 %v367
  %v390 = vpop.xlane.xlu0 %389
  %391 = vadd.xlane.f32.xlu0 %v370
  %v392 = vpop.xlane.xlu0 %391
  %393 = vadd.xlane.f32.xlu0 %v375
  %v394 = vpop.xlane.xlu0 %393
  %395 = vadd.xlane.f32.xlu0 %v378
  %v396 = vpop.xlane.xlu0 %395
  %v397 = vmul.f32 %v351, %v351
  %v398 = vmul.f32 %v354, %v354
  %v399 = vmul.f32 %v359, %v359
  %v400 = vmul.f32 %v362, %v362
  %v401 = vmul.f32 %v367, %v367
  %v402 = vmul.f32 %v370, %v370
  %v403 = vmul.f32 %v375, %v375
  %v404 = vmul.f32 %v378, %v378
  %405 = vadd.xlane.f32.xlu0 %v397
  %v406 = vpop.xlane.xlu0 %405
  %407 = vadd.xlane.f32.xlu0 %v398
  %v408 = vpop.xlane.xlu0 %407
  %409 = vadd.xlane.f32.xlu0 %v399
  %v410 = vpop.xlane.xlu0 %409
  %411 = vadd.xlane.f32.xlu0 %v400
  %v412 = vpop.xlane.xlu0 %411
  %413 = vadd.xlane.f32.xlu0 %v401
  %v414 = vpop.xlane.xlu0 %413
  %415 = vadd.xlane.f32.xlu0 %v402
  %v416 = vpop.xlane.xlu0 %415
  %417 = vadd.xlane.f32.xlu0 %v403
  %v418 = vpop.xlane.xlu0 %417
  %419 = vadd.xlane.f32.xlu0 %v404
  %v420 = vpop.xlane.xlu0 %419
  %v421 = vlaneseq
  %v422 = vshrl.u32 %v421, 7
  %v423 = vadd.s32 %v422, 8
  %v424 = vadd.s32 %v422, 16
  %v425 = vadd.s32 %v422, 24
  %v426 = vadd.s32 %v422, 32
  %v427 = vadd.s32 %v422, 40
  %v428 = vadd.s32 %v422, 48
  %v429 = vadd.s32 %v422, 56
  %vm430 = vcmp.lt.s32.totalorder %v422, 0
  %v431 = vsub.s32 0, %v422
  %v432 = vsel %vm430, %v431, %v422
  %v433 = vshrl.u32 %v432, 4
  %v434 = vand.u32 %v432, 15
  %v435 = vsub.s32 0, %v434
  %v436 = vsel %vm430, %v435, %v434
  %vm437 = vcmp.lt.s32.totalorder %v423, 0
  %v438 = vsub.s32 0, %v423
  %v439 = vsel %vm437, %v438, %v423
  %v440 = vshrl.u32 %v439, 4
  %v441 = vand.u32 %v439, 15
  %v442 = vsub.s32 0, %v441
  %v443 = vsel %vm437, %v442, %v441
  %vm444 = vcmp.lt.s32.totalorder %v424, 0
  %v445 = vsub.s32 0, %v424
  %v446 = vsel %vm444, %v445, %v424
  %v447 = vshrl.u32 %v446, 4
  %v448 = vand.u32 %v446, 15
  %v449 = vsub.s32 0, %v448
  %v450 = vsel %vm444, %v449, %v448
  %vm451 = vcmp.lt.s32.totalorder %v425, 0
  %v452 = vsub.s32 0, %v425
  %v453 = vsel %vm451, %v452, %v425
  %v454 = vshrl.u32 %v453, 4
  %v455 = vand.u32 %v453, 15
  %v456 = vsub.s32 0, %v455
  %v457 = vsel %vm451, %v456, %v455
  %vm458 = vcmp.lt.s32.totalorder %v426, 0
  %v459 = vsub.s32 0, %v426
  %v460 = vsel %vm458, %v459, %v426
  %v461 = vshrl.u32 %v460, 4
  %v462 = vand.u32 %v460, 15
  %v463 = vsub.s32 0, %v462
  %v464 = vsel %vm458, %v463, %v462
  %vm465 = vcmp.lt.s32.totalorder %v427, 0
  %v466 = vsub.s32 0, %v427
  %v467 = vsel %vm465, %v466, %v427
  %v468 = vshrl.u32 %v467, 4
  %v469 = vand.u32 %v467, 15
  %v470 = vsub.s32 0, %v469
  %v471 = vsel %vm465, %v470, %v469
  %vm472 = vcmp.lt.s32.totalorder %v428, 0
  %v473 = vsub.s32 0, %v428
  %v474 = vsel %vm472, %v473, %v428
  %v475 = vshrl.u32 %v474, 4
  %v476 = vand.u32 %v474, 15
  %v477 = vsub.s32 0, %v476
  %v478 = vsel %vm472, %v477, %v476
  %vm479 = vcmp.lt.s32.totalorder %v429, 0
  %v480 = vsub.s32 0, %v429
  %v481 = vsel %vm479, %v480, %v429
  %v482 = vshrl.u32 %v481, 4
  %v483 = vand.u32 %v481, 15
  %v484 = vsub.s32 0, %v483
  %v485 = vsel %vm479, %v484, %v483
  %vm486 = vcmp.ne.s32.totalorder %v436, 0
  %vm487 = vcmp.ne.s32.totalorder %v443, 0
  %vm488 = vcmp.ne.s32.totalorder %v450, 0
  %vm489 = vcmp.ne.s32.totalorder %v457, 0
  %vm490 = vcmp.ne.s32.totalorder %v464, 0
  %vm491 = vcmp.ne.s32.totalorder %v471, 0
  %vm492 = vcmp.ne.s32.totalorder %v478, 0
  %vm493 = vcmp.ne.s32.totalorder %v485, 0
  %vm494 = vcmp.lt.s32.totalorder %v436, 0
  %vm495 = vcmp.lt.s32.totalorder %v443, 0
  %vm496 = vcmp.lt.s32.totalorder %v450, 0
  %vm497 = vcmp.lt.s32.totalorder %v457, 0
  %vm498 = vcmp.lt.s32.totalorder %v464, 0
  %vm499 = vcmp.lt.s32.totalorder %v471, 0
  %vm500 = vcmp.lt.s32.totalorder %v478, 0
  %vm501 = vcmp.lt.s32.totalorder %v485, 0
  %vm502 = vmand %vm494, %vm486
  %vm503 = vmand %vm495, %vm487
  %vm504 = vmand %vm496, %vm488
  %vm505 = vmand %vm497, %vm489
  %vm506 = vmand %vm498, %vm490
  %vm507 = vmand %vm499, %vm491
  %vm508 = vmand %vm500, %vm492
  %vm509 = vmand %vm501, %vm493
  %v510 = vadd.s32 %v436, 16
  %v511 = vadd.s32 %v443, 16
  %v512 = vadd.s32 %v450, 16
  %v513 = vadd.s32 %v457, 16
  %v514 = vadd.s32 %v464, 16
  %v515 = vadd.s32 %v471, 16
  %v516 = vadd.s32 %v478, 16
  %v517 = vadd.s32 %v485, 16
  %v518 = vsel %vm502, %v510, %v436
  %v519 = vsel %vm503, %v511, %v443
  %v520 = vsel %vm504, %v512, %v450
  %v521 = vsel %vm505, %v513, %v457
  %v522 = vsel %vm506, %v514, %v464
  %v523 = vsel %vm507, %v515, %v471
  %v524 = vsel %vm508, %v516, %v478
  %v525 = vsel %vm509, %v517, %v485
  %v526 = vlaneseq
  %v527 = vand.u32 %v526, 127
  %vm528 = vcmp.eq.s32.totalorder %v518, %v527
  %vm529 = vcmp.eq.s32.totalorder %v519, %v527
  %vm530 = vcmp.eq.s32.totalorder %v520, %v527
  %vm531 = vcmp.eq.s32.totalorder %v521, %v527
  %vm532 = vcmp.eq.s32.totalorder %v522, %v527
  %vm533 = vcmp.eq.s32.totalorder %v523, %v527
  %vm534 = vcmp.eq.s32.totalorder %v524, %v527
  %vm535 = vcmp.eq.s32.totalorder %v525, %v527
  %v536 = vsel %vm528, 1, 0
  %v537 = vsel %vm529, 1, 0
  %v538 = vsel %vm530, 1, 0
  %v539 = vsel %vm531, 1, 0
  %v540 = vsel %vm532, 1, 0
  %v541 = vsel %vm533, 1, 0
  %v542 = vsel %vm534, 1, 0
  %v543 = vsel %vm535, 1, 0
  %v544 = vcvt.s32.f32 %v536
  %v545 = vcvt.s32.f32 %v537
  %v546 = vcvt.s32.f32 %v538
  %v547 = vcvt.s32.f32 %v539
  %v548 = vcvt.s32.f32 %v540
  %v549 = vcvt.s32.f32 %v541
  %v550 = vcvt.s32.f32 %v542
  %v551 = vcvt.s32.f32 %v543
  %v552 = vmul.f32 %v544, %v382
  %v553 = vmul.f32 %v545, %v384
  %v554 = vmul.f32 %v546, %v386
  %v555 = vmul.f32 %v547, %v388
  %v556 = vmul.f32 %v548, %v390
  %v557 = vmul.f32 %v549, %v392
  %v558 = vmul.f32 %v550, %v394
  %v559 = vmul.f32 %v551, %v396
  %vm560 = vcmask 130048
  %v561 = vsel %vm560, %v552, 0.0
  %v562 = vsel %vm560, %v553, 0.0
  %v563 = vadd.f32 %v561, %v562
  %v564 = vsel %vm560, %v554, 0.0
  %v565 = vadd.f32 %v563, %v564
  %v566 = vsel %vm560, %v555, 0.0
  %v567 = vadd.f32 %v565, %v566
  %v568 = vsel %vm560, %v556, 0.0
  %v569 = vadd.f32 %v567, %v568
  %v570 = vsel %vm560, %v557, 0.0
  %v571 = vadd.f32 %v569, %v570
  %v572 = vsel %vm560, %v558, 0.0
  %v573 = vadd.f32 %v571, %v572
  %v574 = vsel %vm560, %v559, 0.0
  %v575 = vadd.f32 %v573, %v574
  %v576 = vrot.slane %v575, 4
  %v577 = vadd.f32 %v575, %v576
  %v578 = vrot.slane %v577, 2
  %v579 = vadd.f32 %v577, %v578
  %v580 = vrot.slane %v579, 1
  %v581 = vadd.f32 %v579, %v580
  %v582 = vmul.f32 %v544, %v406
  %v583 = vmul.f32 %v545, %v408
  %v584 = vmul.f32 %v546, %v410
  %v585 = vmul.f32 %v547, %v412
  %v586 = vmul.f32 %v548, %v414
  %v587 = vmul.f32 %v549, %v416
  %v588 = vmul.f32 %v550, %v418
  %v589 = vmul.f32 %v551, %v420
  %v590 = vsel %vm560, %v582, 0.0
  %v591 = vsel %vm560, %v583, 0.0
  %v592 = vadd.f32 %v590, %v591
  %v593 = vsel %vm560, %v584, 0.0
  %v594 = vadd.f32 %v592, %v593
  %v595 = vsel %vm560, %v585, 0.0
  %v596 = vadd.f32 %v594, %v595
  %v597 = vsel %vm560, %v586, 0.0
  %v598 = vadd.f32 %v596, %v597
  %v599 = vsel %vm560, %v587, 0.0
  %v600 = vadd.f32 %v598, %v599
  %v601 = vsel %vm560, %v588, 0.0
  %v602 = vadd.f32 %v600, %v601
  %v603 = vsel %vm560, %v589, 0.0
  %v604 = vadd.f32 %v602, %v603
  %v605 = vrot.slane %v604, 4
  %v606 = vadd.f32 %v604, %v605
  %v607 = vrot.slane %v606, 2
  %v608 = vadd.f32 %v606, %v607
  %v609 = vrot.slane %v608, 1
  %v610 = vadd.f32 %v608, %v609
  %v611 = vmul.f32 %v581, 0.001953125
  %v612 = vmul.f32 %v610, 0.001953125
  %v613 = vmul.f32 %v611, %v611
  %v614 = vsub.f32 %v612, %v613
  %v615 = vmax.f32 %v614, 0.0
  %v616 = vld [vmem:[%s2] sm:$0x1]
  %v617 = vadd.f32 %v615, 1e-05
  %v618 = vrsqrt.pop %v617
  %v619 = vmul.f32 %v616, %v618
  %v620 = vld [vmem:[%s3] sm:$0x1]
  %v621 = vmul.f32 %v611, %v619
  %v622 = vsub.f32 %v620, %v621
  %v624 = vlaneseq
  %v625 = vshrl.u32 %v624, 7
  %v626 = vsub.s32 0, %v625
  %v627 = vrot.slane %v619, %v626
  %v629 = vmul.f32 %v544, %v627
  %v630 = vmul.f32 %v545, %v627
  %v631 = vmul.f32 %v546, %v627
  %v632 = vmul.f32 %v547, %v627
  %v633 = vmul.f32 %v548, %v627
  %v634 = vmul.f32 %v549, %v627
  %v635 = vmul.f32 %v550, %v627
  %v636 = vmul.f32 %v551, %v627
  %v637 = vsel %vm560, %v629, 0.0
  %638 = vadd.xlane.f32.xlu0 %v637
  %v639 = vpop.xlane.xlu0 %638
  %v640 = vsel %vm560, %v630, 0.0
  %641 = vadd.xlane.f32.xlu0 %v640
  %v642 = vpop.xlane.xlu0 %641
  %v643 = vsel %vm560, %v631, 0.0
  %644 = vadd.xlane.f32.xlu0 %v643
  %v645 = vpop.xlane.xlu0 %644
  %v646 = vsel %vm560, %v632, 0.0
  %647 = vadd.xlane.f32.xlu0 %v646
  %v648 = vpop.xlane.xlu0 %647
  %v649 = vsel %vm560, %v633, 0.0
  %650 = vadd.xlane.f32.xlu0 %v649
  %v651 = vpop.xlane.xlu0 %650
  %v652 = vsel %vm560, %v634, 0.0
  %653 = vadd.xlane.f32.xlu0 %v652
  %v654 = vpop.xlane.xlu0 %653
  %v655 = vsel %vm560, %v635, 0.0
  %656 = vadd.xlane.f32.xlu0 %v655
  %v657 = vpop.xlane.xlu0 %656
  %v658 = vsel %vm560, %v636, 0.0
  %659 = vadd.xlane.f32.xlu0 %v658
  %v660 = vpop.xlane.xlu0 %659
  %v662 = vlaneseq
  %v663 = vshrl.u32 %v662, 7
  %v664 = vsub.s32 0, %v663
  %v665 = vrot.slane %v622, %v664
  %v667 = vmul.f32 %v544, %v665
  %v668 = vmul.f32 %v545, %v665
  %v669 = vmul.f32 %v546, %v665
  %v670 = vmul.f32 %v547, %v665
  %v671 = vmul.f32 %v548, %v665
  %v672 = vmul.f32 %v549, %v665
  %v673 = vmul.f32 %v550, %v665
  %v674 = vmul.f32 %v551, %v665
  %v675 = vsel %vm560, %v667, 0.0
  %676 = vadd.xlane.f32.xlu0 %v675
  %v677 = vpop.xlane.xlu0 %676
  %v678 = vsel %vm560, %v668, 0.0
  %679 = vadd.xlane.f32.xlu0 %v678
  %v680 = vpop.xlane.xlu0 %679
  %v681 = vsel %vm560, %v669, 0.0
  %682 = vadd.xlane.f32.xlu0 %v681
  %v683 = vpop.xlane.xlu0 %682
  %v684 = vsel %vm560, %v670, 0.0
  %685 = vadd.xlane.f32.xlu0 %v684
  %v686 = vpop.xlane.xlu0 %685
  %v687 = vsel %vm560, %v671, 0.0
  %688 = vadd.xlane.f32.xlu0 %v687
  %v689 = vpop.xlane.xlu0 %688
  %v690 = vsel %vm560, %v672, 0.0
  %691 = vadd.xlane.f32.xlu0 %v690
  %v692 = vpop.xlane.xlu0 %691
  %v693 = vsel %vm560, %v673, 0.0
  %694 = vadd.xlane.f32.xlu0 %v693
  %v695 = vpop.xlane.xlu0 %694
  %v696 = vsel %vm560, %v674, 0.0
  %697 = vadd.xlane.f32.xlu0 %v696
  %v698 = vpop.xlane.xlu0 %697
  %v699 = vmul.f32 %v351, %v639
  %v700 = vmul.f32 %v354, %v642
  %v701 = vmul.f32 %v359, %v645
  %v702 = vmul.f32 %v362, %v648
  %v703 = vmul.f32 %v367, %v651
  %v704 = vmul.f32 %v370, %v654
  %v705 = vmul.f32 %v375, %v657
  %v706 = vmul.f32 %v378, %v660
  %v707 = vadd.f32 %v699, %v677
  %v708 = vadd.f32 %v700, %v680
  %v709 = vadd.f32 %v701, %v683
  %v710 = vadd.f32 %v702, %v686
  %v711 = vadd.f32 %v703, %v689
  %v712 = vadd.f32 %v704, %v692
  %v713 = vadd.f32 %v705, %v695
  %v714 = vadd.f32 %v706, %v698
  %v715 = vmax.f32 %v707, 0.0
  %v716 = vmax.f32 %v708, 0.0
  %v717 = vmax.f32 %v709, 0.0
  %v718 = vmax.f32 %v710, 0.0
  %v719 = vmax.f32 %v711, 0.0
  %v720 = vmax.f32 %v712, 0.0
  %v721 = vmax.f32 %v713, 0.0
  %v722 = vmax.f32 %v714, 0.0
  %723 = vst [vmem:[%s4] sm:$0xff] %v715
  %724 = vst [vmem:[%s4 + $0x8] sm:$0xff] %v716
  %725 = vst [vmem:[%s4 + $0x10] sm:$0xff] %v717
  %726 = vst [vmem:[%s4 + $0x18] sm:$0xff] %v718
  %727 = vst [vmem:[%s4 + $0x20] sm:$0xff] %v719
  %728 = vst [vmem:[%s4 + $0x28] sm:$0xff] %v720
  %729 = vst [vmem:[%s4 + $0x30] sm:$0xff] %v721
  %730 = vst [vmem:[%s4 + $0x38] sm:$0xff] %v722
  // Predicated region
  $region18: #{generator_forward.9} parent=0 // pred_check
    _
  $region19: #{generator_forward.9} parent=0 // pred_check_branch
    %732 = sbr.rel (0) target = $region21
  $region20: #{generator_forward.9} parent=0 // pred_region
    _
  $region21: #{generator_forward.9} parent=0 // pred_fallthru
    _
  // Predicated region
  $region22: #{generator_forward.9} parent=0 // pred_check
    _
  $region23: #{generator_forward.9} parent=0 // pred_check_branch
    %734 = sbr.rel (0) target = $region25
  $region24: #{generator_forward.9} parent=0 // pred_region
    _
  $region25: #{generator_forward.9} parent=0 // pred_fallthru
    _

// kernel: generator_forward.10
$region0: #{generator_forward.10}
  #allocation0 [shape = 'u32[]', space=smem, size = 0x4, offset = 0x4, fixed_abs, tag = 'smem constant byte address 0x4 - core index']
  #allocation1 [shape = 'u32[144,128]{1,0:T(1,128)}', space=vmem, size = 0x12000, scoped, tag = 'internal scratch']
  %s0 = inlined_call_operand.vmem [shape: bf16[32,144], index: 0, kind: input, shape index: {}]
  %s1 = inlined_call_operand.vmem [shape: bf16[144,512], index: 1, kind: input, shape index: {}]
  %s2 = inlined_call_operand.vmem [shape: f32[1,8], index: 2, kind: input, shape index: {}]
  %s3 = inlined_call_operand.vmem [shape: f32[1,8], index: 3, kind: input, shape index: {}]
  %s4 = inlined_call_operand.vmem [shape: f32[32,512], index: 4, kind: output, shape index: {}]
  %s5 = sld [smem:[#allocation0]]
  $region26: #{generator_forward.10} parent=0
    _
  %s7 = ssub.s32 1, %s5
  %s8 = scalar_select 0, %s7, %s5
  // Predicated region
  $region2: #{generator_forward.10} parent=0 // pred_check
    _
  $region3: #{generator_forward.10} parent=0 // pred_check_branch
    %10 = sbr.rel (0) target = $region5
  $region4: #{generator_forward.10} parent=0 // pred_region
    _
  $region5: #{generator_forward.10} parent=0 // pred_fallthru
    _
  // Predicated region
  $region6: #{generator_forward.10} parent=0 // pred_check
    _
  $region7: #{generator_forward.10} parent=0 // pred_check_branch
    %12 = sbr.rel (0) target = $region9
  $region8: #{generator_forward.10} parent=0 // pred_region
    _
  $region9: #{generator_forward.10} parent=0 // pred_fallthru
    _
  // Predicated region
  $region10: #{generator_forward.10} parent=0 // pred_check
    _
  $region11: #{generator_forward.10} parent=0 // pred_check_branch
    %14 = sbr.rel (0) target = $region13
  $region12: #{generator_forward.10} parent=0 // pred_region
    _
  $region13: #{generator_forward.10} parent=0 // pred_fallthru
    _
  // Predicated region
  $region14: #{generator_forward.10} parent=0 // pred_check
    _
  $region15: #{generator_forward.10} parent=0 // pred_check_branch
    %16 = sbr.rel (0) target = $region17
  $region16: #{generator_forward.10} parent=0 // pred_region
    _
  $region17: #{generator_forward.10} parent=0 // pred_fallthru
    _
  %v18 = vld [vmem:[%s0] sm:$0xff]
  %v19 = vld [vmem:[%s0 + $0x8] sm:$0xff]
  %v20 = vld [vmem:[%s0 + $0x10] sm:$0xff]
  %v21 = vld [vmem:[%s0 + $0x18] sm:$0xff]
  %v22 = vld [vmem:[%s1] sm:$0xff]
  %v23 = vld [vmem:[%s1 + $0x8] sm:$0xff]
  %v24 = vld [vmem:[%s1 + $0x10] sm:$0xff]
  %v25 = vld [vmem:[%s1 + $0x18] sm:$0xff]
  %v26 = vld [vmem:[%s1 + $0x20] sm:$0xff]
  %v27 = vld [vmem:[%s1 + $0x28] sm:$0xff]
  %v28 = vld [vmem:[%s1 + $0x30] sm:$0xff]
  %v29 = vld [vmem:[%s1 + $0x38] sm:$0xff]
  %v30 = vld [vmem:[%s1 + $0x40] sm:$0xff]
  %v31 = vld [vmem:[%s1 + $0x48] sm:$0xff]
  %v32 = vld [vmem:[%s1 + $0x50] sm:$0xff]
  %v33 = vld [vmem:[%s1 + $0x58] sm:$0xff]
  %v34 = vld [vmem:[%s1 + $0x60] sm:$0xff]
  %v35 = vld [vmem:[%s1 + $0x68] sm:$0xff]
  %v36 = vld [vmem:[%s1 + $0x70] sm:$0xff]
  %v37 = vld [vmem:[%s1 + $0x78] sm:$0xff]
  %v38 = vld [vmem:[%s1 + $0x80] sm:$0xff]
  %v39 = vld [vmem:[%s1 + $0x88] sm:$0xff]
  %v40 = vld [vmem:[%s1 + $0x90] sm:$0xff]
  %v41 = vld [vmem:[%s1 + $0x98] sm:$0xff]
  %v42 = vld [vmem:[%s1 + $0xa0] sm:$0xff]
  %v43 = vld [vmem:[%s1 + $0xa8] sm:$0xff]
  %v44 = vld [vmem:[%s1 + $0xb0] sm:$0xff]
  %v45 = vld [vmem:[%s1 + $0xb8] sm:$0xff]
  %v46 = vld [vmem:[%s1 + $0xc0] sm:$0xff]
  %v47 = vld [vmem:[%s1 + $0xc8] sm:$0xff]
  %v48 = vld [vmem:[%s1 + $0xd0] sm:$0xff]
  %v49 = vld [vmem:[%s1 + $0xd8] sm:$0xff]
  %v50 = vld [vmem:[%s1 + $0xe0] sm:$0xff]
  %v51 = vld [vmem:[%s1 + $0xe8] sm:$0xff]
  %v52 = vld [vmem:[%s1 + $0xf0] sm:$0xff]
  %v53 = vld [vmem:[%s1 + $0xf8] sm:$0xff]
  %v54 = vld [vmem:[%s1 + $0x100] sm:$0xff]
  %v55 = vld [vmem:[%s1 + $0x108] sm:$0xff]
  %v56 = vld [vmem:[%s1 + $0x110] sm:$0xff]
  %v57 = vld [vmem:[%s1 + $0x118] sm:$0xff]
  %v62 = vunpack.c.l.b16 %v18
  %v63 = vunpack.c.h.b16 %v18
  %v64 = vunpack.c.l.b16 %v19
  %v65 = vunpack.c.h.b16 %v19
  %v66 = vunpack.c.l.b16 %v20
  %v67 = vunpack.c.h.b16 %v20
  %v68 = vunpack.c.l.b16 %v21
  %v69 = vunpack.c.h.b16 %v21
  %v70 = vpack.c.b16 %v64, %v62
  %v71 = vpack.c.b16 %v65, %v63
  %v72 = vpack.c.b16 %v68, %v66
  %v73 = vpack.c.b16 %v69, %v67
  %v112 = vunpack.c.l.b16 %v22
  %v113 = vunpack.c.h.b16 %v22
  %v114 = vunpack.c.l.b16 %v23
  %v115 = vunpack.c.h.b16 %v23
  %v116 = vunpack.c.l.b16 %v24
  %v117 = vunpack.c.h.b16 %v24
  %v118 = vunpack.c.l.b16 %v25
  %v119 = vunpack.c.h.b16 %v25
  %v120 = vunpack.c.l.b16 %v26
  %v121 = vunpack.c.h.b16 %v26
  %v122 = vunpack.c.l.b16 %v27
  %v123 = vunpack.c.h.b16 %v27
  %v124 = vunpack.c.l.b16 %v28
  %v125 = vunpack.c.h.b16 %v28
  %v126 = vunpack.c.l.b16 %v29
  %v127 = vunpack.c.h.b16 %v29
  %v128 = vunpack.c.l.b16 %v30
  %v129 = vunpack.c.h.b16 %v30
  %v130 = vunpack.c.l.b16 %v31
  %v131 = vunpack.c.h.b16 %v31
  %v132 = vunpack.c.l.b16 %v32
  %v133 = vunpack.c.h.b16 %v32
  %v134 = vunpack.c.l.b16 %v33
  %v135 = vunpack.c.h.b16 %v33
  %v136 = vunpack.c.l.b16 %v34
  %v137 = vunpack.c.h.b16 %v34
  %v138 = vunpack.c.l.b16 %v35
  %v139 = vunpack.c.h.b16 %v35
  %v140 = vunpack.c.l.b16 %v36
  %v141 = vunpack.c.h.b16 %v36
  %v142 = vunpack.c.l.b16 %v37
  %v143 = vunpack.c.h.b16 %v37
  %v144 = vunpack.c.l.b16 %v38
  %v145 = vunpack.c.h.b16 %v38
  %v146 = vunpack.c.l.b16 %v39
  %v147 = vunpack.c.h.b16 %v39
  %v148 = vunpack.c.l.b16 %v40
  %v149 = vunpack.c.h.b16 %v40
  %v150 = vunpack.c.l.b16 %v41
  %v151 = vunpack.c.h.b16 %v41
  %v152 = vunpack.c.l.b16 %v42
  %v153 = vunpack.c.h.b16 %v42
  %v154 = vunpack.c.l.b16 %v43
  %v155 = vunpack.c.h.b16 %v43
  %v156 = vunpack.c.l.b16 %v44
  %v157 = vunpack.c.h.b16 %v44
  %v158 = vunpack.c.l.b16 %v45
  %v159 = vunpack.c.h.b16 %v45
  %v160 = vunpack.c.l.b16 %v46
  %v161 = vunpack.c.h.b16 %v46
  %v162 = vunpack.c.l.b16 %v47
  %v163 = vunpack.c.h.b16 %v47
  %v164 = vunpack.c.l.b16 %v48
  %v165 = vunpack.c.h.b16 %v48
  %v166 = vunpack.c.l.b16 %v49
  %v167 = vunpack.c.h.b16 %v49
  %v168 = vunpack.c.l.b16 %v50
  %v169 = vunpack.c.h.b16 %v50
  %v170 = vunpack.c.l.b16 %v51
  %v171 = vunpack.c.h.b16 %v51
  %v172 = vunpack.c.l.b16 %v52
  %v173 = vunpack.c.h.b16 %v52
  %v174 = vunpack.c.l.b16 %v53
  %v175 = vunpack.c.h.b16 %v53
  %v176 = vunpack.c.l.b16 %v54
  %v177 = vunpack.c.h.b16 %v54
  %v178 = vunpack.c.l.b16 %v55
  %v179 = vunpack.c.h.b16 %v55
  %v180 = vunpack.c.l.b16 %v56
  %v181 = vunpack.c.h.b16 %v56
  %v182 = vunpack.c.l.b16 %v57
  %v183 = vunpack.c.h.b16 %v57
  %v184 = vpack.c.b16 %v116, %v112
  %v185 = vpack.c.b16 %v117, %v113
  %v186 = vpack.c.b16 %v118, %v114
  %v187 = vpack.c.b16 %v119, %v115
  %v188 = vpack.c.b16 %v124, %v120
  %v189 = vpack.c.b16 %v125, %v121
  %v190 = vpack.c.b16 %v126, %v122
  %v191 = vpack.c.b16 %v127, %v123
  %v192 = vpack.c.b16 %v132, %v128
  %v193 = vpack.c.b16 %v133, %v129
  %v194 = vpack.c.b16 %v134, %v130
  %v195 = vpack.c.b16 %v135, %v131
  %v196 = vpack.c.b16 %v140, %v136
  %v197 = vpack.c.b16 %v141, %v137
  %v198 = vpack.c.b16 %v142, %v138
  %v199 = vpack.c.b16 %v143, %v139
  %v200 = vpack.c.b16 %v148, %v144
  %v201 = vpack.c.b16 %v149, %v145
  %v202 = vpack.c.b16 %v150, %v146
  %v203 = vpack.c.b16 %v151, %v147
  %v204 = vpack.c.b16 %v156, %v152
  %v205 = vpack.c.b16 %v157, %v153
  %v206 = vpack.c.b16 %v158, %v154
  %v207 = vpack.c.b16 %v159, %v155
  %v208 = vpack.c.b16 %v164, %v160
  %v209 = vpack.c.b16 %v165, %v161
  %v210 = vpack.c.b16 %v166, %v162
  %v211 = vpack.c.b16 %v167, %v163
  %v212 = vpack.c.b16 %v172, %v168
  %v213 = vpack.c.b16 %v173, %v169
  %v214 = vpack.c.b16 %v174, %v170
  %v215 = vpack.c.b16 %v175, %v171
  %v216 = vpack.c.b16 %v180, %v176
  %v217 = vpack.c.b16 %v181, %v177
  %v218 = vpack.c.b16 %v182, %v178
  %v219 = vpack.c.b16 %v183, %v179
  %vm256 = vcmask 130048
  %v258 = vsel %vm256, %v71, 0
  %v261 = vsel %vm256, %v73, 0
  %263 = vmatprep.subr.bf16.mxu0 %v213
  %264 = vmatpush1.bf16.msra.mxu0 %v212
  %265 = vmatprep.subr.bf16.mxu0 %v209
  %266 = vmatpush1.bf16.msra.mxu0 %v208
  %267 = vmatprep.subr.bf16.mxu0 %v205
  %268 = vmatpush1.bf16.msra.mxu0 %v204
  %269 = vmatprep.subr.bf16.mxu0 %v201
  %270 = vmatpush1.bf16.msra.mxu0 %v200
  %271 = vmatprep.subr.bf16.mxu0 %v197
  %272 = vmatpush1.bf16.msra.mxu0 %v196
  %273 = vmatprep.subr.bf16.mxu0 %v193
  %274 = vmatpush1.bf16.msra.mxu0 %v192
  %275 = vmatprep.subr.bf16.mxu0 %v189
  %276 = vmatpush1.bf16.msra.mxu0 %v188
  %277 = vmatprep.subr.bf16.mxu0 %v185
  %278 = vmatpush1.bf16.msra.mxu0 %v184
  %279 = vmatprep.subr.bf16.mxu0 0
  %280 = vmatpush2.bf16.msra.mxu0 0
  %281 = vmatprep.subr.bf16.mxu0 0
  %282 = vmatpush2.bf16.msra.mxu0 0
  %283 = vmatprep.subr.bf16.mxu0 0
  %284 = vmatpush2.bf16.msra.mxu0 0
  %285 = vmatprep.subr.bf16.mxu0 0
  %286 = vmatpush2.bf16.msra.mxu0 0
  %287 = vmatprep.subr.bf16.mxu0 0
  %288 = vmatpush2.bf16.msra.mxu0 0
  %289 = vmatprep.subr.bf16.mxu0 0
  %290 = vmatpush2.bf16.msra.mxu0 0
  %291 = vmatprep.subr.bf16.mxu0 0
  %292 = vmatpush2.bf16.msra.mxu0 0
  %293 = vmatprep.subr.bf16.mxu0 %v217
  %294 = vmatpush2.bf16.msra.mxu0 %v216
  %295 = vmatprep.mubr.bf16.mxu0 %v258
  %296 = vmatmul.mubr.bf16.gmra.mxu0 %v70
  %v297 = vpop.f32.mrf.mxu0
  %v298 = vadd.f32 0.0, %v297
  %v299 = vpop.f32.mrf.mxu0
  %v300 = vadd.f32 0.0, %v299
  %v301 = vpop.f32.mrf.mxu0
  %v302 = vadd.f32 0.0, %v301
  %v303 = vpop.f32.mrf.mxu0
  %v304 = vadd.f32 0.0, %v303
  %305 = vmatprep.mubr.bf16.mxu0 %v261
  %306 = vmatmul.mubr.bf16.gmra.mxu0 %v72
  %v307 = vpop.f32.mrf.mxu0
  %v308 = vadd.f32 0.0, %v307
  %v309 = vpop.f32.mrf.mxu0
  %v310 = vadd.f32 0.0, %v309
  %v311 = vpop.f32.mrf.mxu0
  %v312 = vadd.f32 0.0, %v311
  %v313 = vpop.f32.mrf.mxu0
  %v314 = vadd.f32 0.0, %v313
  %315 = vdwg.mxu0
  %316 = vmatprep.subr.bf16.mxu0 %v215
  %317 = vmatpush1.bf16.msra.mxu0 %v214
  %318 = vmatprep.subr.bf16.mxu0 %v211
  %319 = vmatpush1.bf16.msra.mxu0 %v210
  %320 = vmatprep.subr.bf16.mxu0 %v207
  %321 = vmatpush1.bf16.msra.mxu0 %v206
  %322 = vmatprep.subr.bf16.mxu0 %v203
  %323 = vmatpush1.bf16.msra.mxu0 %v202
  %324 = vmatprep.subr.bf16.mxu0 %v199
  %325 = vmatpush1.bf16.msra.mxu0 %v198
  %326 = vmatprep.subr.bf16.mxu0 %v195
  %327 = vmatpush1.bf16.msra.mxu0 %v194
  %328 = vmatprep.subr.bf16.mxu0 %v191
  %329 = vmatpush1.bf16.msra.mxu0 %v190
  %330 = vmatprep.subr.bf16.mxu0 %v187
  %331 = vmatpush1.bf16.msra.mxu0 %v186
  %332 = vmatprep.subr.bf16.mxu0 0
  %333 = vmatpush2.bf16.msra.mxu0 0
  %334 = vmatprep.subr.bf16.mxu0 0
  %335 = vmatpush2.bf16.msra.mxu0 0
  %336 = vmatprep.subr.bf16.mxu0 0
  %337 = vmatpush2.bf16.msra.mxu0 0
  %338 = vmatprep.subr.bf16.mxu0 0
  %339 = vmatpush2.bf16.msra.mxu0 0
  %340 = vmatprep.subr.bf16.mxu0 0
  %341 = vmatpush2.bf16.msra.mxu0 0
  %342 = vmatprep.subr.bf16.mxu0 0
  %343 = vmatpush2.bf16.msra.mxu0 0
  %344 = vmatprep.subr.bf16.mxu0 0
  %345 = vmatpush2.bf16.msra.mxu0 0
  %346 = vmatprep.subr.bf16.mxu0 %v219
  %347 = vmatpush2.bf16.msra.mxu0 %v218
  %348 = vmatprep.mubr.bf16.mxu0 %v258
  %349 = vmatmul.mubr.bf16.gmra.mxu0 %v70
  %v350 = vpop.f32.mrf.mxu0
  %v351 = vadd.f32 0.0, %v350
  %v352 = vpop.f32.mrf.mxu0
  %v353 = vadd.f32 0.0, %v352
  %v354 = vpop.f32.mrf.mxu0
  %v355 = vadd.f32 0.0, %v354
  %v356 = vpop.f32.mrf.mxu0
  %v357 = vadd.f32 0.0, %v356
  %358 = vmatprep.mubr.bf16.mxu0 %v261
  %359 = vmatmul.mubr.bf16.gmra.mxu0 %v72
  %v360 = vpop.f32.mrf.mxu0
  %v361 = vadd.f32 0.0, %v360
  %v362 = vpop.f32.mrf.mxu0
  %v363 = vadd.f32 0.0, %v362
  %v364 = vpop.f32.mrf.mxu0
  %v365 = vadd.f32 0.0, %v364
  %v366 = vpop.f32.mrf.mxu0
  %v367 = vadd.f32 0.0, %v366
  %368 = vdwg.mxu0
  %v369 = vadd.f32 %v298, %v300
  %v370 = vadd.f32 %v369, %v351
  %v371 = vadd.f32 %v370, %v353
  %372 = vadd.xlane.f32.xlu0 %v371
  %v373 = vpop.xlane.xlu0 %372
  %v374 = vadd.f32 %v302, %v304
  %v375 = vadd.f32 %v374, %v355
  %v376 = vadd.f32 %v375, %v357
  %377 = vadd.xlane.f32.xlu0 %v376
  %v378 = vpop.xlane.xlu0 %377
  %v379 = vadd.f32 %v308, %v310
  %v380 = vadd.f32 %v379, %v361
  %v381 = vadd.f32 %v380, %v363
  %382 = vadd.xlane.f32.xlu0 %v381
  %v383 = vpop.xlane.xlu0 %382
  %v384 = vadd.f32 %v312, %v314
  %v385 = vadd.f32 %v384, %v365
  %v386 = vadd.f32 %v385, %v367
  %387 = vadd.xlane.f32.xlu0 %v386
  %v388 = vpop.xlane.xlu0 %387
  %v389 = vmul.f32 %v298, %v298
  %v390 = vmul.f32 %v300, %v300
  %v391 = vmul.f32 %v351, %v351
  %v392 = vmul.f32 %v353, %v353
  %v393 = vmul.f32 %v302, %v302
  %v394 = vmul.f32 %v304, %v304
  %v395 = vmul.f32 %v355, %v355
  %v396 = vmul.f32 %v357, %v357
  %v397 = vmul.f32 %v308, %v308
  %v398 = vmul.f32 %v310, %v310
  %v399 = vmul.f32 %v361, %v361
  %v400 = vmul.f32 %v363, %v363
  %v401 = vmul.f32 %v312, %v312
  %v402 = vmul.f32 %v314, %v314
  %v403 = vmul.f32 %v365, %v365
  %v404 = vmul.f32 %v367, %v367
  %v405 = vadd.f32 %v389, %v390
  %v406 = vadd.f32 %v405, %v391
  %v407 = vadd.f32 %v406, %v392
  %408 = vadd.xlane.f32.xlu0 %v407
  %v409 = vpop.xlane.xlu0 %408
  %v410 = vadd.f32 %v393, %v394
  %v411 = vadd.f32 %v410, %v395
  %v412 = vadd.f32 %v411, %v396
  %413 = vadd.xlane.f32.xlu0 %v412
  %v414 = vpop.xlane.xlu0 %413
  %v415 = vadd.f32 %v397, %v398
  %v416 = vadd.f32 %v415, %v399
  %v417 = vadd.f32 %v416, %v400
  %418 = vadd.xlane.f32.xlu0 %v417
  %v419 = vpop.xlane.xlu0 %418
  %v420 = vadd.f32 %v401, %v402
  %v421 = vadd.f32 %v420, %v403
  %v422 = vadd.f32 %v421, %v404
  %423 = vadd.xlane.f32.xlu0 %v422
  %v424 = vpop.xlane.xlu0 %423
  %v425 = vlaneseq
  %v426 = vshrl.u32 %v425, 7
  %v427 = vadd.s32 %v426, 8
  %v428 = vadd.s32 %v426, 16
  %v429 = vadd.s32 %v426, 24
  %vm430 = vcmp.lt.s32.totalorder %v426, 0
  %v431 = vsub.s32 0, %v426
  %v432 = vsel %vm430, %v431, %v426
  %v433 = vshrl.u32 %v432, 3
  %v434 = vand.u32 %v432, 7
  %v435 = vsub.s32 0, %v434
  %v436 = vsel %vm430, %v435, %v434
  %vm437 = vcmp.lt.s32.totalorder %v427, 0
  %v438 = vsub.s32 0, %v427
  %v439 = vsel %vm437, %v438, %v427
  %v440 = vshrl.u32 %v439, 3
  %v441 = vand.u32 %v439, 7
  %v442 = vsub.s32 0, %v441
  %v443 = vsel %vm437, %v442, %v441
  %vm444 = vcmp.lt.s32.totalorder %v428, 0
  %v445 = vsub.s32 0, %v428
  %v446 = vsel %vm444, %v445, %v428
  %v447 = vshrl.u32 %v446, 3
  %v448 = vand.u32 %v446, 7
  %v449 = vsub.s32 0, %v448
  %v450 = vsel %vm444, %v449, %v448
  %vm451 = vcmp.lt.s32.totalorder %v429, 0
  %v452 = vsub.s32 0, %v429
  %v453 = vsel %vm451, %v452, %v429
  %v454 = vshrl.u32 %v453, 3
  %v455 = vand.u32 %v453, 7
  %v456 = vsub.s32 0, %v455
  %v457 = vsel %vm451, %v456, %v455
  %vm458 = vcmp.ne.s32.totalorder %v436, 0
  %vm459 = vcmp.ne.s32.totalorder %v443, 0
  %vm460 = vcmp.ne.s32.totalorder %v450, 0
  %vm461 = vcmp.ne.s32.totalorder %v457, 0
  %vm462 = vcmp.lt.s32.totalorder %v436, 0
  %vm463 = vcmp.lt.s32.totalorder %v443, 0
  %vm464 = vcmp.lt.s32.totalorder %v450, 0
  %vm465 = vcmp.lt.s32.totalorder %v457, 0
  %vm466 = vmand %vm462, %vm458
  %vm467 = vmand %vm463, %vm459
  %vm468 = vmand %vm464, %vm460
  %vm469 = vmand %vm465, %vm461
  %v470 = vadd.s32 %v436, 8
  %v471 = vadd.s32 %v443, 8
  %v472 = vadd.s32 %v450, 8
  %v473 = vadd.s32 %v457, 8
  %v474 = vsel %vm466, %v470, %v436
  %v475 = vsel %vm467, %v471, %v443
  %v476 = vsel %vm468, %v472, %v450
  %v477 = vsel %vm469, %v473, %v457
  %v478 = vlaneseq
  %v479 = vand.u32 %v478, 127
  %vm480 = vcmp.eq.s32.totalorder %v474, %v479
  %vm481 = vcmp.eq.s32.totalorder %v475, %v479
  %vm482 = vcmp.eq.s32.totalorder %v476, %v479
  %vm483 = vcmp.eq.s32.totalorder %v477, %v479
  %v484 = vsel %vm480, 1, 0
  %v485 = vsel %vm481, 1, 0
  %v486 = vsel %vm482, 1, 0
  %v487 = vsel %vm483, 1, 0
  %v488 = vcvt.s32.f32 %v484
  %v489 = vcvt.s32.f32 %v485
  %v490 = vcvt.s32.f32 %v486
  %v491 = vcvt.s32.f32 %v487
  %v492 = vmul.f32 %v488, %v373
  %v493 = vmul.f32 %v489, %v378
  %v494 = vmul.f32 %v490, %v383
  %v495 = vmul.f32 %v491, %v388
  %vm496 = vcmask 64512
  %v497 = vsel %vm496, %v492, 0.0
  %v498 = vsel %vm496, %v493, 0.0
  %v499 = vadd.f32 %v497, %v498
  %v500 = vsel %vm496, %v494, 0.0
  %v501 = vadd.f32 %v499, %v500
  %v502 = vsel %vm496, %v495, 0.0
  %v503 = vadd.f32 %v501, %v502
  %v504 = vrot.slane %v503, 4
  %v505 = vadd.f32 %v503, %v504
  %v506 = vrot.slane %v505, 2
  %v507 = vadd.f32 %v505, %v506
  %v508 = vrot.slane %v507, 1
  %v509 = vadd.f32 %v507, %v508
  %v510 = vmul.f32 %v488, %v409
  %v511 = vmul.f32 %v489, %v414
  %v512 = vmul.f32 %v490, %v419
  %v513 = vmul.f32 %v491, %v424
  %v514 = vsel %vm496, %v510, 0.0
  %v515 = vsel %vm496, %v511, 0.0
  %v516 = vadd.f32 %v514, %v515
  %v517 = vsel %vm496, %v512, 0.0
  %v518 = vadd.f32 %v516, %v517
  %v519 = vsel %vm496, %v513, 0.0
  %v520 = vadd.f32 %v518, %v519
  %v521 = vrot.slane %v520, 4
  %v522 = vadd.f32 %v520, %v521
  %v523 = vrot.slane %v522, 2
  %v524 = vadd.f32 %v522, %v523
  %v525 = vrot.slane %v524, 1
  %v526 = vadd.f32 %v524, %v525
  %v527 = vmul.f32 %v509, 0.00048828125
  %v528 = vmul.f32 %v526, 0.00048828125
  %v529 = vmul.f32 %v527, %v527
  %v530 = vsub.f32 %v528, %v529
  %v531 = vmax.f32 %v530, 0.0
  %v532 = vld [vmem:[%s2] sm:$0x1]
  %v533 = vadd.f32 %v531, 1e-05
  %v534 = vrsqrt.pop %v533
  %v535 = vmul.f32 %v532, %v534
  %v536 = vld [vmem:[%s3] sm:$0x1]
  %v537 = vmul.f32 %v527, %v535
  %v538 = vsub.f32 %v536, %v537
  %v540 = vlaneseq
  %v541 = vshrl.u32 %v540, 7
  %v542 = vsub.s32 0, %v541
  %v543 = vrot.slane %v535, %v542
  %v545 = vmul.f32 %v488, %v543
  %v546 = vmul.f32 %v489, %v543
  %v547 = vmul.f32 %v490, %v543
  %v548 = vmul.f32 %v491, %v543
  %v549 = vsel %vm496, %v545, 0.0
  %550 = vadd.xlane.f32.xlu0 %v549
  %v551 = vpop.xlane.xlu0 %550
  %v552 = vsel %vm496, %v546, 0.0
  %553 = vadd.xlane.f32.xlu0 %v552
  %v554 = vpop.xlane.xlu0 %553
  %v555 = vsel %vm496, %v547, 0.0
  %556 = vadd.xlane.f32.xlu0 %v555
  %v557 = vpop.xlane.xlu0 %556
  %v558 = vsel %vm496, %v548, 0.0
  %559 = vadd.xlane.f32.xlu0 %v558
  %v560 = vpop.xlane.xlu0 %559
  %v562 = vlaneseq
  %v563 = vshrl.u32 %v562, 7
  %v564 = vsub.s32 0, %v563
  %v565 = vrot.slane %v538, %v564
  %v567 = vmul.f32 %v488, %v565
  %v568 = vmul.f32 %v489, %v565
  %v569 = vmul.f32 %v490, %v565
  %v570 = vmul.f32 %v491, %v565
  %v571 = vsel %vm496, %v567, 0.0
  %572 = vadd.xlane.f32.xlu0 %v571
  %v573 = vpop.xlane.xlu0 %572
  %v574 = vsel %vm496, %v568, 0.0
  %575 = vadd.xlane.f32.xlu0 %v574
  %v576 = vpop.xlane.xlu0 %575
  %v577 = vsel %vm496, %v569, 0.0
  %578 = vadd.xlane.f32.xlu0 %v577
  %v579 = vpop.xlane.xlu0 %578
  %v580 = vsel %vm496, %v570, 0.0
  %581 = vadd.xlane.f32.xlu0 %v580
  %v582 = vpop.xlane.xlu0 %581
  %v583 = vmul.f32 %v298, %v551
  %v584 = vmul.f32 %v300, %v551
  %v585 = vmul.f32 %v351, %v551
  %v586 = vmul.f32 %v353, %v551
  %v587 = vmul.f32 %v302, %v554
  %v588 = vmul.f32 %v304, %v554
  %v589 = vmul.f32 %v355, %v554
  %v590 = vmul.f32 %v357, %v554
  %v591 = vmul.f32 %v308, %v557
  %v592 = vmul.f32 %v310, %v557
  %v593 = vmul.f32 %v361, %v557
  %v594 = vmul.f32 %v363, %v557
  %v595 = vmul.f32 %v312, %v560
  %v596 = vmul.f32 %v314, %v560
  %v597 = vmul.f32 %v365, %v560
  %v598 = vmul.f32 %v367, %v560
  %v599 = vadd.f32 %v583, %v573
  %v600 = vadd.f32 %v584, %v573
  %v601 = vadd.f32 %v585, %v573
  %v602 = vadd.f32 %v586, %v573
  %v603 = vadd.f32 %v587, %v576
  %v604 = vadd.f32 %v588, %v576
  %v605 = vadd.f32 %v589, %v576
  %v606 = vadd.f32 %v590, %v576
  %v607 = vadd.f32 %v591, %v579
  %v608 = vadd.f32 %v592, %v579
  %v609 = vadd.f32 %v593, %v579
  %v610 = vadd.f32 %v594, %v579
  %v611 = vadd.f32 %v595, %v582
  %v612 = vadd.f32 %v596, %v582
  %v613 = vadd.f32 %v597, %v582
  %v614 = vadd.f32 %v598, %v582
  %v615 = vmax.f32 %v599, 0.0
  %v616 = vmax.f32 %v600, 0.0
  %v617 = vmax.f32 %v601, 0.0
  %v618 = vmax.f32 %v602, 0.0
  %v619 = vmax.f32 %v603, 0.0
  %v620 = vmax.f32 %v604, 0.0
  %v621 = vmax.f32 %v605, 0.0
  %v622 = vmax.f32 %v606, 0.0
  %v623 = vmax.f32 %v607, 0.0
  %v624 = vmax.f32 %v608, 0.0
  %v625 = vmax.f32 %v609, 0.0
  %v626 = vmax.f32 %v610, 0.0
  %v627 = vmax.f32 %v611, 0.0
  %v628 = vmax.f32 %v612, 0.0
  %v629 = vmax.f32 %v613, 0.0
  %v630 = vmax.f32 %v614, 0.0
  %631 = vst [vmem:[%s4] sm:$0xff] %v615
  %632 = vst [vmem:[%s4 + $0x8] sm:$0xff] %v616
  %633 = vst [vmem:[%s4 + $0x10] sm:$0xff] %v617
  %634 = vst [vmem:[%s4 + $0x18] sm:$0xff] %v618
  %635 = vst [vmem:[%s4 + $0x20] sm:$0xff] %v619
  %636 = vst [vmem:[%s4 + $0x28] sm:$0xff] %v620
  %637 = vst [vmem:[%s4 + $0x30] sm:$0xff] %v621
  %638 = vst [vmem:[%s4 + $0x38] sm:$0xff] %v622
  %639 = vst [vmem:[%s4 + $0x40] sm:$0xff] %v623
  %640 = vst [vmem:[%s4 + $0x48] sm:$0xff] %v624
  %641 = vst [vmem:[%s4 + $0x50] sm:$0xff] %v625
  %642 = vst [vmem:[%s4 + $0x58] sm:$0xff] %v626
  %643 = vst [vmem:[%s4 + $0x60] sm:$0xff] %v627
  %644 = vst [vmem:[%s4 + $0x68] sm:$0xff] %v628
  %645 = vst [vmem:[%s4 + $0x70] sm:$0xff] %v629
  %646 = vst [vmem:[%s4 + $0x78] sm:$0xff] %v630
  // Predicated region
  $region18: #{generator_forward.10} parent=0 // pred_check
    _
  $region19: #{generator_forward.10} parent=0 // pred_check_branch
    %648 = sbr.rel (0) target = $region21
  $region20: #{generator_forward.10} parent=0 // pred_region
    _
  $region21: #{generator_forward.10} parent=0 // pred_fallthru
    _
  // Predicated region
  $region22: #{generator_forward.10} parent=0 // pred_check
    _
  $region23: #{generator_forward.10} parent=0 // pred_check_branch
    %650 = sbr.rel (0) target = $region25
  $region24: #{generator_forward.10} parent=0 // pred_region
    _
  $region25: #{generator_forward.10} parent=0 // pred_fallthru
    _

// kernel: generator_forward.11
$region0: #{generator_forward.11}
  #allocation0 [shape = 'u32[]', space=smem, size = 0x4, offset = 0x4, fixed_abs, tag = 'smem constant byte address 0x4 - core index']
  #allocation1 [shape = 'u32[144,128]{1,0:T(1,128)}', space=vmem, size = 0x12000, scoped, tag = 'internal scratch']
  %s0 = inlined_call_operand.vmem [shape: bf16[16,80], index: 0, kind: input, shape index: {}]
  %s1 = inlined_call_operand.vmem [shape: bf16[80,2048], index: 1, kind: input, shape index: {}]
  %s2 = inlined_call_operand.vmem [shape: f32[1,4], index: 2, kind: input, shape index: {}]
  %s3 = inlined_call_operand.vmem [shape: f32[1,4], index: 3, kind: input, shape index: {}]
  %s4 = inlined_call_operand.vmem [shape: f32[16,2048], index: 4, kind: output, shape index: {}]
  %s5 = sld [smem:[#allocation0]]
  $region26: #{generator_forward.11} parent=0
    _
  %s7 = ssub.s32 1, %s5
  %s8 = scalar_select 0, %s7, %s5
  // Predicated region
  $region2: #{generator_forward.11} parent=0 // pred_check
    _
  $region3: #{generator_forward.11} parent=0 // pred_check_branch
    %10 = sbr.rel (0) target = $region5
  $region4: #{generator_forward.11} parent=0 // pred_region
    _
  $region5: #{generator_forward.11} parent=0 // pred_fallthru
    _
  // Predicated region
  $region6: #{generator_forward.11} parent=0 // pred_check
    _
  $region7: #{generator_forward.11} parent=0 // pred_check_branch
    %12 = sbr.rel (0) target = $region9
  $region8: #{generator_forward.11} parent=0 // pred_region
    _
  $region9: #{generator_forward.11} parent=0 // pred_fallthru
    _
  // Predicated region
  $region10: #{generator_forward.11} parent=0 // pred_check
    _
  $region11: #{generator_forward.11} parent=0 // pred_check_branch
    %14 = sbr.rel (0) target = $region13
  $region12: #{generator_forward.11} parent=0 // pred_region
    _
  $region13: #{generator_forward.11} parent=0 // pred_fallthru
    _
  // Predicated region
  $region14: #{generator_forward.11} parent=0 // pred_check
    _
  $region15: #{generator_forward.11} parent=0 // pred_check_branch
    %16 = sbr.rel (0) target = $region17
  $region16: #{generator_forward.11} parent=0 // pred_region
    _
  $region17: #{generator_forward.11} parent=0 // pred_fallthru
    _
  %v18 = vld [vmem:[%s0] sm:$0xf]
  %v19 = vld [vmem:[%s0 + $0x4] sm:$0xf]
  %v20 = vld [vmem:[%s1] sm:$0xff]
  %v21 = vld [vmem:[%s1 + $0x8] sm:$0xff]
  %v22 = vld [vmem:[%s1 + $0x10] sm:$0xff]
  %v23 = vld [vmem:[%s1 + $0x18] sm:$0xff]
  %v24 = vld [vmem:[%s1 + $0x20] sm:$0xff]
  %v25 = vld [vmem:[%s1 + $0x28] sm:$0xff]
  %v26 = vld [vmem:[%s1 + $0x30] sm:$0xff]
  %v27 = vld [vmem:[%s1 + $0x38] sm:$0xff]
  %v28 = vld [vmem:[%s1 + $0x40] sm:$0xff]
  %v29 = vld [vmem:[%s1 + $0x48] sm:$0xff]
  %v30 = vld [vmem:[%s1 + $0x50] sm:$0xff]
  %v31 = vld [vmem:[%s1 + $0x58] sm:$0xff]
  %v32 = vld [vmem:[%s1 + $0x60] sm:$0xff]
  %v33 = vld [vmem:[%s1 + $0x68] sm:$0xff]
  %v34 = vld [vmem:[%s1 + $0x70] sm:$0xff]
  %v35 = vld [vmem:[%s1 + $0x78] sm:$0xff]
  %v36 = vld [vmem:[%s1 + $0x80] sm:$0xff]
  %v37 = vld [vmem:[%s1 + $0x88] sm:$0xff]
  %v38 = vld [vmem:[%s1 + $0x90] sm:$0xff]
  %v39 = vld [vmem:[%s1 + $0x98] sm:$0xff]
  %v40 = vld [vmem:[%s1 + $0xa0] sm:$0xff]
  %v41 = vld [vmem:[%s1 + $0xa8] sm:$0xff]
  %v42 = vld [vmem:[%s1 + $0xb0] sm:$0xff]
  %v43 = vld [vmem:[%s1 + $0xb8] sm:$0xff]
  %v44 = vld [vmem:[%s1 + $0xc0] sm:$0xff]
  %v45 = vld [vmem:[%s1 + $0xc8] sm:$0xff]
  %v46 = vld [vmem:[%s1 + $0xd0] sm:$0xff]
  %v47 = vld [vmem:[%s1 + $0xd8] sm:$0xff]
  %v48 = vld [vmem:[%s1 + $0xe0] sm:$0xff]
  %v49 = vld [vmem:[%s1 + $0xe8] sm:$0xff]
  %v50 = vld [vmem:[%s1 + $0xf0] sm:$0xff]
  %v51 = vld [vmem:[%s1 + $0xf8] sm:$0xff]
  %v52 = vld [vmem:[%s1 + $0x100] sm:$0xff]
  %v53 = vld [vmem:[%s1 + $0x108] sm:$0xff]
  %v54 = vld [vmem:[%s1 + $0x110] sm:$0xff]
  %v55 = vld [vmem:[%s1 + $0x118] sm:$0xff]
  %v56 = vld [vmem:[%s1 + $0x120] sm:$0xff]
  %v57 = vld [vmem:[%s1 + $0x128] sm:$0xff]
  %v58 = vld [vmem:[%s1 + $0x130] sm:$0xff]
  %v59 = vld [vmem:[%s1 + $0x138] sm:$0xff]
  %v60 = vld [vmem:[%s1 + $0x140] sm:$0xff]
  %v61 = vld [vmem:[%s1 + $0x148] sm:$0xff]
  %v62 = vld [vmem:[%s1 + $0x150] sm:$0xff]
  %v63 = vld [vmem:[%s1 + $0x158] sm:$0xff]
  %v64 = vld [vmem:[%s1 + $0x160] sm:$0xff]
  %v65 = vld [vmem:[%s1 + $0x168] sm:$0xff]
  %v66 = vld [vmem:[%s1 + $0x170] sm:$0xff]
  %v67 = vld [vmem:[%s1 + $0x178] sm:$0xff]
  %v68 = vld [vmem:[%s1 + $0x180] sm:$0xff]
  %v69 = vld [vmem:[%s1 + $0x188] sm:$0xff]
  %v70 = vld [vmem:[%s1 + $0x190] sm:$0xff]
  %v71 = vld [vmem:[%s1 + $0x198] sm:$0xff]
  %v72 = vld [vmem:[%s1 + $0x1a0] sm:$0xff]
  %v73 = vld [vmem:[%s1 + $0x1a8] sm:$0xff]
  %v74 = vld [vmem:[%s1 + $0x1b0] sm:$0xff]
  %v75 = vld [vmem:[%s1 + $0x1b8] sm:$0xff]
  %v76 = vld [vmem:[%s1 + $0x1c0] sm:$0xff]
  %v77 = vld [vmem:[%s1 + $0x1c8] sm:$0xff]
  %v78 = vld [vmem:[%s1 + $0x1d0] sm:$0xff]
  %v79 = vld [vmem:[%s1 + $0x1d8] sm:$0xff]
  %v80 = vld [vmem:[%s1 + $0x1e0] sm:$0xff]
  %v81 = vld [vmem:[%s1 + $0x1e8] sm:$0xff]
  %v82 = vld [vmem:[%s1 + $0x1f0] sm:$0xff]
  %v83 = vld [vmem:[%s1 + $0x1f8] sm:$0xff]
  %v84 = vld [vmem:[%s1 + $0x200] sm:$0xff]
  %v85 = vld [vmem:[%s1 + $0x208] sm:$0xff]
  %v86 = vld [vmem:[%s1 + $0x210] sm:$0xff]
  %v87 = vld [vmem:[%s1 + $0x218] sm:$0xff]
  %v88 = vld [vmem:[%s1 + $0x220] sm:$0xff]
  %v89 = vld [vmem:[%s1 + $0x228] sm:$0xff]
  %v90 = vld [vmem:[%s1 + $0x230] sm:$0xff]
  %v91 = vld [vmem:[%s1 + $0x238] sm:$0xff]
  %v92 = vld [vmem:[%s1 + $0x240] sm:$0xff]
  %v93 = vld [vmem:[%s1 + $0x248] sm:$0xff]
  %v94 = vld [vmem:[%s1 + $0x250] sm:$0xff]
  %v95 = vld [vmem:[%s1 + $0x258] sm:$0xff]
  %v96 = vld [vmem:[%s1 + $0x260] sm:$0xff]
  %v97 = vld [vmem:[%s1 + $0x268] sm:$0xff]
  %v98 = vld [vmem:[%s1 + $0x270] sm:$0xff]
  %v99 = vld [vmem:[%s1 + $0x278] sm:$0xff]
  %v102 = vunpack.c.l.b16 %v18
  %v103 = vunpack.c.l.b16 %v19
  %v104 = vpack.c.b16 %v103, %v102
  %v185 = vunpack.c.l.b16 %v20
  %v186 = vunpack.c.h.b16 %v20
  %v187 = vunpack.c.l.b16 %v21
  %v188 = vunpack.c.h.b16 %v21
  %v189 = vunpack.c.l.b16 %v22
  %v190 = vunpack.c.h.b16 %v22
  %v191 = vunpack.c.l.b16 %v23
  %v192 = vunpack.c.h.b16 %v23
  %v193 = vunpack.c.l.b16 %v24
  %v194 = vunpack.c.h.b16 %v24
  %v195 = vunpack.c.l.b16 %v25
  %v196 = vunpack.c.h.b16 %v25
  %v197 = vunpack.c.l.b16 %v26
  %v198 = vunpack.c.h.b16 %v26
  %v199 = vunpack.c.l.b16 %v27
  %v200 = vunpack.c.h.b16 %v27
  %v201 = vunpack.c.l.b16 %v28
  %v202 = vunpack.c.h.b16 %v28
  %v203 = vunpack.c.l.b16 %v29
  %v204 = vunpack.c.h.b16 %v29
  %v205 = vunpack.c.l.b16 %v30
  %v206 = vunpack.c.h.b16 %v30
  %v207 = vunpack.c.l.b16 %v31
  %v208 = vunpack.c.h.b16 %v31
  %v209 = vunpack.c.l.b16 %v32
  %v210 = vunpack.c.h.b16 %v32
  %v211 = vunpack.c.l.b16 %v33
  %v212 = vunpack.c.h.b16 %v33
  %v213 = vunpack.c.l.b16 %v34
  %v214 = vunpack.c.h.b16 %v34
  %v215 = vunpack.c.l.b16 %v35
  %v216 = vunpack.c.h.b16 %v35
  %v217 = vunpack.c.l.b16 %v36
  %v218 = vunpack.c.h.b16 %v36
  %v219 = vunpack.c.l.b16 %v37
  %v220 = vunpack.c.h.b16 %v37
  %v221 = vunpack.c.l.b16 %v38
  %v222 = vunpack.c.h.b16 %v38
  %v223 = vunpack.c.l.b16 %v39
  %v224 = vunpack.c.h.b16 %v39
  %v225 = vunpack.c.l.b16 %v40
  %v226 = vunpack.c.h.b16 %v40
  %v227 = vunpack.c.l.b16 %v41
  %v228 = vunpack.c.h.b16 %v41
  %v229 = vunpack.c.l.b16 %v42
  %v230 = vunpack.c.h.b16 %v42
  %v231 = vunpack.c.l.b16 %v43
  %v232 = vunpack.c.h.b16 %v43
  %v233 = vunpack.c.l.b16 %v44
  %v234 = vunpack.c.h.b16 %v44
  %v235 = vunpack.c.l.b16 %v45
  %v236 = vunpack.c.h.b16 %v45
  %v237 = vunpack.c.l.b16 %v46
  %v238 = vunpack.c.h.b16 %v46
  %v239 = vunpack.c.l.b16 %v47
  %v240 = vunpack.c.h.b16 %v47
  %v241 = vunpack.c.l.b16 %v48
  %v242 = vunpack.c.h.b16 %v48
  %v243 = vunpack.c.l.b16 %v49
  %v244 = vunpack.c.h.b16 %v49
  %v245 = vunpack.c.l.b16 %v50
  %v246 = vunpack.c.h.b16 %v50
  %v247 = vunpack.c.l.b16 %v51
  %v248 = vunpack.c.h.b16 %v51
  %v249 = vunpack.c.l.b16 %v52
  %v250 = vunpack.c.h.b16 %v52
  %v251 = vunpack.c.l.b16 %v53
  %v252 = vunpack.c.h.b16 %v53
  %v253 = vunpack.c.l.b16 %v54
  %v254 = vunpack.c.h.b16 %v54
  %v255 = vunpack.c.l.b16 %v55
  %v256 = vunpack.c.h.b16 %v55
  %v257 = vunpack.c.l.b16 %v56
  %v258 = vunpack.c.h.b16 %v56
  %v259 = vunpack.c.l.b16 %v57
  %v260 = vunpack.c.h.b16 %v57
  %v261 = vunpack.c.l.b16 %v58
  %v262 = vunpack.c.h.b16 %v58
  %v263 = vunpack.c.l.b16 %v59
  %v264 = vunpack.c.h.b16 %v59
  %v265 = vunpack.c.l.b16 %v60
  %v266 = vunpack.c.h.b16 %v60
  %v267 = vunpack.c.l.b16 %v61
  %v268 = vunpack.c.h.b16 %v61
  %v269 = vunpack.c.l.b16 %v62
  %v270 = vunpack.c.h.b16 %v62
  %v271 = vunpack.c.l.b16 %v63
  %v272 = vunpack.c.h.b16 %v63
  %v273 = vunpack.c.l.b16 %v64
  %v274 = vunpack.c.h.b16 %v64
  %v275 = vunpack.c.l.b16 %v65
  %v276 = vunpack.c.h.b16 %v65
  %v277 = vunpack.c.l.b16 %v66
  %v278 = vunpack.c.h.b16 %v66
  %v279 = vunpack.c.l.b16 %v67
  %v280 = vunpack.c.h.b16 %v67
  %v281 = vunpack.c.l.b16 %v68
  %v282 = vunpack.c.h.b16 %v68
  %v283 = vunpack.c.l.b16 %v69
  %v284 = vunpack.c.h.b16 %v69
  %v285 = vunpack.c.l.b16 %v70
  %v286 = vunpack.c.h.b16 %v70
  %v287 = vunpack.c.l.b16 %v71
  %v288 = vunpack.c.h.b16 %v71
  %v289 = vunpack.c.l.b16 %v72
  %v290 = vunpack.c.h.b16 %v72
  %v291 = vunpack.c.l.b16 %v73
  %v292 = vunpack.c.h.b16 %v73
  %v293 = vunpack.c.l.b16 %v74
  %v294 = vunpack.c.h.b16 %v74
  %v295 = vunpack.c.l.b16 %v75
  %v296 = vunpack.c.h.b16 %v75
  %v297 = vunpack.c.l.b16 %v76
  %v298 = vunpack.c.h.b16 %v76
  %v299 = vunpack.c.l.b16 %v77
  %v300 = vunpack.c.h.b16 %v77
  %v301 = vunpack.c.l.b16 %v78
  %v302 = vunpack.c.h.b16 %v78
  %v303 = vunpack.c.l.b16 %v79
  %v304 = vunpack.c.h.b16 %v79
  %v305 = vunpack.c.l.b16 %v80
  %v306 = vunpack.c.h.b16 %v80
  %v307 = vunpack.c.l.b16 %v81
  %v308 = vunpack.c.h.b16 %v81
  %v309 = vunpack.c.l.b16 %v82
  %v310 = vunpack.c.h.b16 %v82
  %v311 = vunpack.c.l.b16 %v83
  %v312 = vunpack.c.h.b16 %v83
  %v313 = vunpack.c.l.b16 %v84
  %v314 = vunpack.c.h.b16 %v84
  %v315 = vunpack.c.l.b16 %v85
  %v316 = vunpack.c.h.b16 %v85
  %v317 = vunpack.c.l.b16 %v86
  %v318 = vunpack.c.h.b16 %v86
  %v319 = vunpack.c.l.b16 %v87
  %v320 = vunpack.c.h.b16 %v87
  %v321 = vunpack.c.l.b16 %v88
  %v322 = vunpack.c.h.b16 %v88
  %v323 = vunpack.c.l.b16 %v89
  %v324 = vunpack.c.h.b16 %v89
  %v325 = vunpack.c.l.b16 %v90
  %v326 = vunpack.c.h.b16 %v90
  %v327 = vunpack.c.l.b16 %v91
  %v328 = vunpack.c.h.b16 %v91
  %v329 = vunpack.c.l.b16 %v92
  %v330 = vunpack.c.h.b16 %v92
  %v331 = vunpack.c.l.b16 %v93
  %v332 = vunpack.c.h.b16 %v93
  %v333 = vunpack.c.l.b16 %v94
  %v334 = vunpack.c.h.b16 %v94
  %v335 = vunpack.c.l.b16 %v95
  %v336 = vunpack.c.h.b16 %v95
  %v337 = vunpack.c.l.b16 %v96
  %v338 = vunpack.c.h.b16 %v96
  %v339 = vunpack.c.l.b16 %v97
  %v340 = vunpack.c.h.b16 %v97
  %v341 = vunpack.c.l.b16 %v98
  %v342 = vunpack.c.h.b16 %v98
  %v343 = vunpack.c.l.b16 %v99
  %v344 = vunpack.c.h.b16 %v99
  %v345 = vpack.c.b16 %v201, %v185
  %v346 = vpack.c.b16 %v202, %v186
  %v347 = vpack.c.b16 %v203, %v187
  %v348 = vpack.c.b16 %v204, %v188
  %v349 = vpack.c.b16 %v205, %v189
  %v350 = vpack.c.b16 %v206, %v190
  %v351 = vpack.c.b16 %v207, %v191
  %v352 = vpack.c.b16 %v208, %v192
  %v353 = vpack.c.b16 %v209, %v193
  %v354 = vpack.c.b16 %v210, %v194
  %v355 = vpack.c.b16 %v211, %v195
  %v356 = vpack.c.b16 %v212, %v196
  %v357 = vpack.c.b16 %v213, %v197
  %v358 = vpack.c.b16 %v214, %v198
  %v359 = vpack.c.b16 %v215, %v199
  %v360 = vpack.c.b16 %v216, %v200
  %v361 = vpack.c.b16 %v233, %v217
  %v362 = vpack.c.b16 %v234, %v218
  %v363 = vpack.c.b16 %v235, %v219
  %v364 = vpack.c.b16 %v236, %v220
  %v365 = vpack.c.b16 %v237, %v221
  %v366 = vpack.c.b16 %v238, %v222
  %v367 = vpack.c.b16 %v239, %v223
  %v368 = vpack.c.b16 %v240, %v224
  %v369 = vpack.c.b16 %v241, %v225
  %v370 = vpack.c.b16 %v242, %v226
  %v371 = vpack.c.b16 %v243, %v227
  %v372 = vpack.c.b16 %v244, %v228
  %v373 = vpack.c.b16 %v245, %v229
  %v374 = vpack.c.b16 %v246, %v230
  %v375 = vpack.c.b16 %v247, %v231
  %v376 = vpack.c.b16 %v248, %v232
  %v377 = vpack.c.b16 %v265, %v249
  %v378 = vpack.c.b16 %v266, %v250
  %v379 = vpack.c.b16 %v267, %v251
  %v380 = vpack.c.b16 %v268, %v252
  %v381 = vpack.c.b16 %v269, %v253
  %v382 = vpack.c.b16 %v270, %v254
  %v383 = vpack.c.b16 %v271, %v255
  %v384 = vpack.c.b16 %v272, %v256
  %v385 = vpack.c.b16 %v273, %v257
  %v386 = vpack.c.b16 %v274, %v258
  %v387 = vpack.c.b16 %v275, %v259
  %v388 = vpack.c.b16 %v276, %v260
  %v389 = vpack.c.b16 %v277, %v261
  %v390 = vpack.c.b16 %v278, %v262
  %v391 = vpack.c.b16 %v279, %v263
  %v392 = vpack.c.b16 %v280, %v264
  %v393 = vpack.c.b16 %v297, %v281
  %v394 = vpack.c.b16 %v298, %v282
  %v395 = vpack.c.b16 %v299, %v283
  %v396 = vpack.c.b16 %v300, %v284
  %v397 = vpack.c.b16 %v301, %v285
  %v398 = vpack.c.b16 %v302, %v286
  %v399 = vpack.c.b16 %v303, %v287
  %v400 = vpack.c.b16 %v304, %v288
  %v401 = vpack.c.b16 %v305, %v289
  %v402 = vpack.c.b16 %v306, %v290
  %v403 = vpack.c.b16 %v307, %v291
  %v404 = vpack.c.b16 %v308, %v292
  %v405 = vpack.c.b16 %v309, %v293
  %v406 = vpack.c.b16 %v310, %v294
  %v407 = vpack.c.b16 %v311, %v295
  %v408 = vpack.c.b16 %v312, %v296
  %v409 = vpack.c.b16 %v329, %v313
  %v410 = vpack.c.b16 %v330, %v314
  %v411 = vpack.c.b16 %v331, %v315
  %v412 = vpack.c.b16 %v332, %v316
  %v413 = vpack.c.b16 %v333, %v317
  %v414 = vpack.c.b16 %v334, %v318
  %v415 = vpack.c.b16 %v335, %v319
  %v416 = vpack.c.b16 %v336, %v320
  %v417 = vpack.c.b16 %v337, %v321
  %v418 = vpack.c.b16 %v338, %v322
  %v419 = vpack.c.b16 %v339, %v323
  %v420 = vpack.c.b16 %v340, %v324
  %v421 = vpack.c.b16 %v341, %v325
  %v422 = vpack.c.b16 %v342, %v326
  %v423 = vpack.c.b16 %v343, %v327
  %v424 = vpack.c.b16 %v344, %v328
  %vm505 = vcmask 654336
  %v507 = vsel %vm505, %v104, 0
  %509 = vmatprep.subr.bf16.mxu0 0
  %510 = vmatpush1.bf16.msra.mxu0 0
  %511 = vmatprep.subr.bf16.mxu0 0
  %512 = vmatpush1.bf16.msra.mxu0 0
  %513 = vmatprep.subr.bf16.mxu0 0
  %514 = vmatpush1.bf16.msra.mxu0 0
  %515 = vmatprep.subr.bf16.mxu0 %v410
  %516 = vmatpush1.bf16.msra.mxu0 %v409
  %517 = vmatprep.subr.bf16.mxu0 %v394
  %518 = vmatpush1.bf16.msra.mxu0 %v393
  %519 = vmatprep.subr.bf16.mxu0 %v378
  %520 = vmatpush1.bf16.msra.mxu0 %v377
  %521 = vmatprep.subr.bf16.mxu0 %v362
  %522 = vmatpush1.bf16.msra.mxu0 %v361
  %523 = vmatprep.subr.bf16.mxu0 %v346
  %524 = vmatpush1.bf16.msra.mxu0 %v345
  %525 = vmatprep.subr.bf16.mxu0 0
  %526 = vmatpush2.bf16.msra.mxu0 0
  %527 = vmatprep.subr.bf16.mxu0 0
  %528 = vmatpush2.bf16.msra.mxu0 0
  %529 = vmatprep.subr.bf16.mxu0 0
  %530 = vmatpush2.bf16.msra.mxu0 0
  %531 = vmatprep.subr.bf16.mxu0 0
  %532 = vmatpush2.bf16.msra.mxu0 0
  %533 = vmatprep.subr.bf16.mxu0 0
  %534 = vmatpush2.bf16.msra.mxu0 0
  %535 = vmatprep.subr.bf16.mxu0 0
  %536 = vmatpush2.bf16.msra.mxu0 0
  %537 = vmatprep.subr.bf16.mxu0 0
  %538 = vmatpush2.bf16.msra.mxu0 0
  %539 = vmatprep.subr.bf16.mxu0 0
  %540 = vmatpush2.bf16.msra.mxu0 0
  %541 = vmatprep.mubr.bf16.mxu0 0
  %542 = vmatmul.mubr.bf16.gmra.mxu0 %v507
  %v543 = vpop.f32.mrf.mxu0
  %v544 = vadd.f32 0.0, %v543
  %v545 = vpop.f32.mrf.mxu0
  %v546 = vadd.f32 0.0, %v545
  %v547 = vpop.f32.mrf.mxu0
  %v548 = vadd.f32 0.0, %v547
  %v549 = vpop.f32.mrf.mxu0
  %v550 = vadd.f32 0.0, %v549
  %551 = vdwg.mxu0
  %552 = vmatprep.subr.bf16.mxu0 0
  %553 = vmatpush1.bf16.msra.mxu0 0
  %554 = vmatprep.subr.bf16.mxu0 0
  %555 = vmatpush1.bf16.msra.mxu0 0
  %556 = vmatprep.subr.bf16.mxu0 0
  %557 = vmatpush1.bf16.msra.mxu0 0
  %558 = vmatprep.subr.bf16.mxu0 %v412
  %559 = vmatpush1.bf16.msra.mxu0 %v411
  %560 = vmatprep.subr.bf16.mxu0 %v396
  %561 = vmatpush1.bf16.msra.mxu0 %v395
  %562 = vmatprep.subr.bf16.mxu0 %v380
  %563 = vmatpush1.bf16.msra.mxu0 %v379
  %564 = vmatprep.subr.bf16.mxu0 %v364
  %565 = vmatpush1.bf16.msra.mxu0 %v363
  %566 = vmatprep.subr.bf16.mxu0 %v348
  %567 = vmatpush1.bf16.msra.mxu0 %v347
  %568 = vmatprep.subr.bf16.mxu0 0
  %569 = vmatpush2.bf16.msra.mxu0 0
  %570 = vmatprep.subr.bf16.mxu0 0
  %571 = vmatpush2.bf16.msra.mxu0 0
  %572 = vmatprep.subr.bf16.mxu0 0
  %573 = vmatpush2.bf16.msra.mxu0 0
  %574 = vmatprep.subr.bf16.mxu0 0
  %575 = vmatpush2.bf16.msra.mxu0 0
  %576 = vmatprep.subr.bf16.mxu0 0
  %577 = vmatpush2.bf16.msra.mxu0 0
  %578 = vmatprep.subr.bf16.mxu0 0
  %579 = vmatpush2.bf16.msra.mxu0 0
  %580 = vmatprep.subr.bf16.mxu0 0
  %581 = vmatpush2.bf16.msra.mxu0 0
  %582 = vmatprep.subr.bf16.mxu0 0
  %583 = vmatpush2.bf16.msra.mxu0 0
  %584 = vmatprep.mubr.bf16.mxu0 0
  %585 = vmatmul.mubr.bf16.gmra.mxu0 %v507
  %v586 = vpop.f32.mrf.mxu0
  %v587 = vadd.f32 0.0, %v586
  %v588 = vpop.f32.mrf.mxu0
  %v589 = vadd.f32 0.0, %v588
  %v590 = vpop.f32.mrf.mxu0
  %v591 = vadd.f32 0.0, %v590
  %v592 = vpop.f32.mrf.mxu0
  %v593 = vadd.f32 0.0, %v592
  %594 = vdwg.mxu0
  %595 = vmatprep.subr.bf16.mxu0 0
  %596 = vmatpush1.bf16.msra.mxu0 0
  %597 = vmatprep.subr.bf16.mxu0 0
  %598 = vmatpush1.bf16.msra.mxu0 0
  %599 = vmatprep.subr.bf16.mxu0 0
  %600 = vmatpush1.bf16.msra.mxu0 0
  %601 = vmatprep.subr.bf16.mxu0 %v414
  %602 = vmatpush1.bf16.msra.mxu0 %v413
  %603 = vmatprep.subr.bf16.mxu0 %v398
  %604 = vmatpush1.bf16.msra.mxu0 %v397
  %605 = vmatprep.subr.bf16.mxu0 %v382
  %606 = vmatpush1.bf16.msra.mxu0 %v381
  %607 = vmatprep.subr.bf16.mxu0 %v366
  %608 = vmatpush1.bf16.msra.mxu0 %v365
  %609 = vmatprep.subr.bf16.mxu0 %v350
  %610 = vmatpush1.bf16.msra.mxu0 %v349
  %611 = vmatprep.subr.bf16.mxu0 0
  %612 = vmatpush2.bf16.msra.mxu0 0
  %613 = vmatprep.subr.bf16.mxu0 0
  %614 = vmatpush2.bf16.msra.mxu0 0
  %615 = vmatprep.subr.bf16.mxu0 0
  %616 = vmatpush2.bf16.msra.mxu0 0
  %617 = vmatprep.subr.bf16.mxu0 0
  %618 = vmatpush2.bf16.msra.mxu0 0
  %619 = vmatprep.subr.bf16.mxu0 0
  %620 = vmatpush2.bf16.msra.mxu0 0
  %621 = vmatprep.subr.bf16.mxu0 0
  %622 = vmatpush2.bf16.msra.mxu0 0
  %623 = vmatprep.subr.bf16.mxu0 0
  %624 = vmatpush2.bf16.msra.mxu0 0
  %625 = vmatprep.subr.bf16.mxu0 0
  %626 = vmatpush2.bf16.msra.mxu0 0
  %627 = vmatprep.mubr.bf16.mxu0 0
  %628 = vmatmul.mubr.bf16.gmra.mxu0 %v507
  %v629 = vpop.f32.mrf.mxu0
  %v630 = vadd.f32 0.0, %v629
  %v631 = vpop.f32.mrf.mxu0
  %v632 = vadd.f32 0.0, %v631
  %v633 = vpop.f32.mrf.mxu0
  %v634 = vadd.f32 0.0, %v633
  %v635 = vpop.f32.mrf.mxu0
  %v636 = vadd.f32 0.0, %v635
  %637 = vdwg.mxu0
  %638 = vmatprep.subr.bf16.mxu0 0
  %639 = vmatpush1.bf16.msra.mxu0 0
  %640 = vmatprep.subr.bf16.mxu0 0
  %641 = vmatpush1.bf16.msra.mxu0 0
  %642 = vmatprep.subr.bf16.mxu0 0
  %643 = vmatpush1.bf16.msra.mxu0 0
  %644 = vmatprep.subr.bf16.mxu0 %v416
  %645 = vmatpush1.bf16.msra.mxu0 %v415
  %646 = vmatprep.subr.bf16.mxu0 %v400
  %647 = vmatpush1.bf16.msra.mxu0 %v399
  %648 = vmatprep.subr.bf16.mxu0 %v384
  %649 = vmatpush1.bf16.msra.mxu0 %v383
  %650 = vmatprep.subr.bf16.mxu0 %v368
  %651 = vmatpush1.bf16.msra.mxu0 %v367
  %652 = vmatprep.subr.bf16.mxu0 %v352
  %653 = vmatpush1.bf16.msra.mxu0 %v351
  %654 = vmatprep.subr.bf16.mxu0 0
  %655 = vmatpush2.bf16.msra.mxu0 0
  %656 = vmatprep.subr.bf16.mxu0 0
  %657 = vmatpush2.bf16.msra.mxu0 0
  %658 = vmatprep.subr.bf16.mxu0 0
  %659 = vmatpush2.bf16.msra.mxu0 0
  %660 = vmatprep.subr.bf16.mxu0 0
  %661 = vmatpush2.bf16.msra.mxu0 0
  %662 = vmatprep.subr.bf16.mxu0 0
  %663 = vmatpush2.bf16.msra.mxu0 0
  %664 = vmatprep.subr.bf16.mxu0 0
  %665 = vmatpush2.bf16.msra.mxu0 0
  %666 = vmatprep.subr.bf16.mxu0 0
  %667 = vmatpush2.bf16.msra.mxu0 0
  %668 = vmatprep.subr.bf16.mxu0 0
  %669 = vmatpush2.bf16.msra.mxu0 0
  %670 = vmatprep.mubr.bf16.mxu0 0
  %671 = vmatmul.mubr.bf16.gmra.mxu0 %v507
  %v672 = vpop.f32.mrf.mxu0
  %v673 = vadd.f32 0.0, %v672
  %v674 = vpop.f32.mrf.mxu0
  %v675 = vadd.f32 0.0, %v674
  %v676 = vpop.f32.mrf.mxu0
  %v677 = vadd.f32 0.0, %v676
  %v678 = vpop.f32.mrf.mxu0
  %v679 = vadd.f32 0.0, %v678
  %680 = vdwg.mxu0
  %681 = vmatprep.subr.bf16.mxu0 0
  %682 = vmatpush1.bf16.msra.mxu0 0
  %683 = vmatprep.subr.bf16.mxu0 0
  %684 = vmatpush1.bf16.msra.mxu0 0
  %685 = vmatprep.subr.bf16.mxu0 0
  %686 = vmatpush1.bf16.msra.mxu0 0
  %687 = vmatprep.subr.bf16.mxu0 %v418
  %688 = vmatpush1.bf16.msra.mxu0 %v417
  %689 = vmatprep.subr.bf16.mxu0 %v402
  %690 = vmatpush1.bf16.msra.mxu0 %v401
  %691 = vmatprep.subr.bf16.mxu0 %v386
  %692 = vmatpush1.bf16.msra.mxu0 %v385
  %693 = vmatprep.subr.bf16.mxu0 %v370
  %694 = vmatpush1.bf16.msra.mxu0 %v369
  %695 = vmatprep.subr.bf16.mxu0 %v354
  %696 = vmatpush1.bf16.msra.mxu0 %v353
  %697 = vmatprep.subr.bf16.mxu0 0
  %698 = vmatpush2.bf16.msra.mxu0 0
  %699 = vmatprep.subr.bf16.mxu0 0
  %700 = vmatpush2.bf16.msra.mxu0 0
  %701 = vmatprep.subr.bf16.mxu0 0
  %702 = vmatpush2.bf16.msra.mxu0 0
  %703 = vmatprep.subr.bf16.mxu0 0
  %704 = vmatpush2.bf16.msra.mxu0 0
  %705 = vmatprep.subr.bf16.mxu0 0
  %706 = vmatpush2.bf16.msra.mxu0 0
  %707 = vmatprep.subr.bf16.mxu0 0
  %708 = vmatpush2.bf16.msra.mxu0 0
  %709 = vmatprep.subr.bf16.mxu0 0
  %710 = vmatpush2.bf16.msra.mxu0 0
  %711 = vmatprep.subr.bf16.mxu0 0
  %712 = vmatpush2.bf16.msra.mxu0 0
  %713 = vmatprep.mubr.bf16.mxu0 0
  %714 = vmatmul.mubr.bf16.gmra.mxu0 %v507
  %v715 = vpop.f32.mrf.mxu0
  %v716 = vadd.f32 0.0, %v715
  %v717 = vpop.f32.mrf.mxu0
  %v718 = vadd.f32 0.0, %v717
  %v719 = vpop.f32.mrf.mxu0
  %v720 = vadd.f32 0.0, %v719
  %v721 = vpop.f32.mrf.mxu0
  %v722 = vadd.f32 0.0, %v721
  %723 = vdwg.mxu0
  %724 = vmatprep.subr.bf16.mxu0 0
  %725 = vmatpush1.bf16.msra.mxu0 0
  %726 = vmatprep.subr.bf16.mxu0 0
  %727 = vmatpush1.bf16.msra.mxu0 0
  %728 = vmatprep.subr.bf16.mxu0 0
  %729 = vmatpush1.bf16.msra.mxu0 0
  %730 = vmatprep.subr.bf16.mxu0 %v420
  %731 = vmatpush1.bf16.msra.mxu0 %v419
  %732 = vmatprep.subr.bf16.mxu0 %v404
  %733 = vmatpush1.bf16.msra.mxu0 %v403
  %734 = vmatprep.subr.bf16.mxu0 %v388
  %735 = vmatpush1.bf16.msra.mxu0 %v387
  %736 = vmatprep.subr.bf16.mxu0 %v372
  %737 = vmatpush1.bf16.msra.mxu0 %v371
  %738 = vmatprep.subr.bf16.mxu0 %v356
  %739 = vmatpush1.bf16.msra.mxu0 %v355
  %740 = vmatprep.subr.bf16.mxu0 0
  %741 = vmatpush2.bf16.msra.mxu0 0
  %742 = vmatprep.subr.bf16.mxu0 0
  %743 = vmatpush2.bf16.msra.mxu0 0
  %744 = vmatprep.subr.bf16.mxu0 0
  %745 = vmatpush2.bf16.msra.mxu0 0
  %746 = vmatprep.subr.bf16.mxu0 0
  %747 = vmatpush2.bf16.msra.mxu0 0
  %748 = vmatprep.subr.bf16.mxu0 0
  %749 = vmatpush2.bf16.msra.mxu0 0
  %750 = vmatprep.subr.bf16.mxu0 0
  %751 = vmatpush2.bf16.msra.mxu0 0
  %752 = vmatprep.subr.bf16.mxu0 0
  %753 = vmatpush2.bf16.msra.mxu0 0
  %754 = vmatprep.subr.bf16.mxu0 0
  %755 = vmatpush2.bf16.msra.mxu0 0
  %756 = vmatprep.mubr.bf16.mxu0 0
  %757 = vmatmul.mubr.bf16.gmra.mxu0 %v507
  %v758 = vpop.f32.mrf.mxu0
  %v759 = vadd.f32 0.0, %v758
  %v760 = vpop.f32.mrf.mxu0
  %v761 = vadd.f32 0.0, %v760
  %v762 = vpop.f32.mrf.mxu0
  %v763 = vadd.f32 0.0, %v762
  %v764 = vpop.f32.mrf.mxu0
  %v765 = vadd.f32 0.0, %v764
  %766 = vdwg.mxu0
  %767 = vmatprep.subr.bf16.mxu0 0
  %768 = vmatpush1.bf16.msra.mxu0 0
  %769 = vmatprep.subr.bf16.mxu0 0
  %770 = vmatpush1.bf16.msra.mxu0 0
  %771 = vmatprep.subr.bf16.mxu0 0
  %772 = vmatpush1.bf16.msra.mxu0 0
  %773 = vmatprep.subr.bf16.mxu0 %v422
  %774 = vmatpush1.bf16.msra.mxu0 %v421
  %775 = vmatprep.subr.bf16.mxu0 %v406
  %776 = vmatpush1.bf16.msra.mxu0 %v405
  %777 = vmatprep.subr.bf16.mxu0 %v390
  %778 = vmatpush1.bf16.msra.mxu0 %v389
  %779 = vmatprep.subr.bf16.mxu0 %v374
  %780 = vmatpush1.bf16.msra.mxu0 %v373
  %781 = vmatprep.subr.bf16.mxu0 %v358
  %782 = vmatpush1.bf16.msra.mxu0 %v357
  %783 = vmatprep.subr.bf16.mxu0 0
  %784 = vmatpush2.bf16.msra.mxu0 0
  %785 = vmatprep.subr.bf16.mxu0 0
  %786 = vmatpush2.bf16.msra.mxu0 0
  %787 = vmatprep.subr.bf16.mxu0 0
  %788 = vmatpush2.bf16.msra.mxu0 0
  %789 = vmatprep.subr.bf16.mxu0 0
  %790 = vmatpush2.bf16.msra.mxu0 0
  %791 = vmatprep.subr.bf16.mxu0 0
  %792 = vmatpush2.bf16.msra.mxu0 0
  %793 = vmatprep.subr.bf16.mxu0 0
  %794 = vmatpush2.bf16.msra.mxu0 0
  %795 = vmatprep.subr.bf16.mxu0 0
  %796 = vmatpush2.bf16.msra.mxu0 0
  %797 = vmatprep.subr.bf16.mxu0 0
  %798 = vmatpush2.bf16.msra.mxu0 0
  %799 = vmatprep.mubr.bf16.mxu0 0
  %800 = vmatmul.mubr.bf16.gmra.mxu0 %v507
  %v801 = vpop.f32.mrf.mxu0
  %v802 = vadd.f32 0.0, %v801
  %v803 = vpop.f32.mrf.mxu0
  %v804 = vadd.f32 0.0, %v803
  %v805 = vpop.f32.mrf.mxu0
  %v806 = vadd.f32 0.0, %v805
  %v807 = vpop.f32.mrf.mxu0
  %v808 = vadd.f32 0.0, %v807
  %809 = vdwg.mxu0
  %810 = vmatprep.subr.bf16.mxu0 0
  %811 = vmatpush1.bf16.msra.mxu0 0
  %812 = vmatprep.subr.bf16.mxu0 0
  %813 = vmatpush1.bf16.msra.mxu0 0
  %814 = vmatprep.subr.bf16.mxu0 0
  %815 = vmatpush1.bf16.msra.mxu0 0
  %816 = vmatprep.subr.bf16.mxu0 %v424
  %817 = vmatpush1.bf16.msra.mxu0 %v423
  %818 = vmatprep.subr.bf16.mxu0 %v408
  %819 = vmatpush1.bf16.msra.mxu0 %v407
  %820 = vmatprep.subr.bf16.mxu0 %v392
  %821 = vmatpush1.bf16.msra.mxu0 %v391
  %822 = vmatprep.subr.bf16.mxu0 %v376
  %823 = vmatpush1.bf16.msra.mxu0 %v375
  %824 = vmatprep.subr.bf16.mxu0 %v360
  %825 = vmatpush1.bf16.msra.mxu0 %v359
  %826 = vmatprep.subr.bf16.mxu0 0
  %827 = vmatpush2.bf16.msra.mxu0 0
  %828 = vmatprep.subr.bf16.mxu0 0
  %829 = vmatpush2.bf16.msra.mxu0 0
  %830 = vmatprep.subr.bf16.mxu0 0
  %831 = vmatpush2.bf16.msra.mxu0 0
  %832 = vmatprep.subr.bf16.mxu0 0
  %833 = vmatpush2.bf16.msra.mxu0 0
  %834 = vmatprep.subr.bf16.mxu0 0
  %835 = vmatpush2.bf16.msra.mxu0 0
  %836 = vmatprep.subr.bf16.mxu0 0
  %837 = vmatpush2.bf16.msra.mxu0 0
  %838 = vmatprep.subr.bf16.mxu0 0
  %839 = vmatpush2.bf16.msra.mxu0 0
  %840 = vmatprep.subr.bf16.mxu0 0
  %841 = vmatpush2.bf16.msra.mxu0 0
  %842 = vmatprep.mubr.bf16.mxu0 0
  %843 = vmatmul.mubr.bf16.gmra.mxu0 %v507
  %v844 = vpop.f32.mrf.mxu0
  %v845 = vadd.f32 0.0, %v844
  %v846 = vpop.f32.mrf.mxu0
  %v847 = vadd.f32 0.0, %v846
  %v848 = vpop.f32.mrf.mxu0
  %v849 = vadd.f32 0.0, %v848
  %v850 = vpop.f32.mrf.mxu0
  %v851 = vadd.f32 0.0, %v850
  %852 = vdwg.mxu0
  %v853 = vadd.f32 %v544, %v546
  %v854 = vadd.f32 %v853, %v587
  %v855 = vadd.f32 %v854, %v589
  %v856 = vadd.f32 %v855, %v630
  %v857 = vadd.f32 %v856, %v632
  %v858 = vadd.f32 %v857, %v673
  %v859 = vadd.f32 %v858, %v675
  %v860 = vadd.f32 %v859, %v716
  %v861 = vadd.f32 %v860, %v718
  %v862 = vadd.f32 %v861, %v759
  %v863 = vadd.f32 %v862, %v761
  %v864 = vadd.f32 %v863, %v802
  %v865 = vadd.f32 %v864, %v804
  %v866 = vadd.f32 %v865, %v845
  %v867 = vadd.f32 %v866, %v847
  %868 = vadd.xlane.f32.xlu0 %v867
  %v869 = vpop.xlane.xlu0 %868
  %v870 = vadd.f32 %v548, %v550
  %v871 = vadd.f32 %v870, %v591
  %v872 = vadd.f32 %v871, %v593
  %v873 = vadd.f32 %v872, %v634
  %v874 = vadd.f32 %v873, %v636
  %v875 = vadd.f32 %v874, %v677
  %v876 = vadd.f32 %v875, %v679
  %v877 = vadd.f32 %v876, %v720
  %v878 = vadd.f32 %v877, %v722
  %v879 = vadd.f32 %v878, %v763
  %v880 = vadd.f32 %v879, %v765
  %v881 = vadd.f32 %v880, %v806
  %v882 = vadd.f32 %v881, %v808
  %v883 = vadd.f32 %v882, %v849
  %v884 = vadd.f32 %v883, %v851
  %885 = vadd.xlane.f32.xlu0 %v884
  %v886 = vpop.xlane.xlu0 %885
  %v887 = vmul.f32 %v544, %v544
  %v888 = vmul.f32 %v546, %v546
  %v889 = vmul.f32 %v587, %v587
  %v890 = vmul.f32 %v589, %v589
  %v891 = vmul.f32 %v630, %v630
  %v892 = vmul.f32 %v632, %v632
  %v893 = vmul.f32 %v673, %v673
  %v894 = vmul.f32 %v675, %v675
  %v895 = vmul.f32 %v716, %v716
  %v896 = vmul.f32 %v718, %v718
  %v897 = vmul.f32 %v759, %v759
  %v898 = vmul.f32 %v761, %v761
  %v899 = vmul.f32 %v802, %v802
  %v900 = vmul.f32 %v804, %v804
  %v901 = vmul.f32 %v845, %v845
  %v902 = vmul.f32 %v847, %v847
  %v903 = vmul.f32 %v548, %v548
  %v904 = vmul.f32 %v550, %v550
  %v905 = vmul.f32 %v591, %v591
  %v906 = vmul.f32 %v593, %v593
  %v907 = vmul.f32 %v634, %v634
  %v908 = vmul.f32 %v636, %v636
  %v909 = vmul.f32 %v677, %v677
  %v910 = vmul.f32 %v679, %v679
  %v911 = vmul.f32 %v720, %v720
  %v912 = vmul.f32 %v722, %v722
  %v913 = vmul.f32 %v763, %v763
  %v914 = vmul.f32 %v765, %v765
  %v915 = vmul.f32 %v806, %v806
  %v916 = vmul.f32 %v808, %v808
  %v917 = vmul.f32 %v849, %v849
  %v918 = vmul.f32 %v851, %v851
  %v919 = vadd.f32 %v887, %v888
  %v920 = vadd.f32 %v919, %v889
  %v921 = vadd.f32 %v920, %v890
  %v922 = vadd.f32 %v921, %v891
  %v923 = vadd.f32 %v922, %v892
  %v924 = vadd.f32 %v923, %v893
  %v925 = vadd.f32 %v924, %v894
  %v926 = vadd.f32 %v925, %v895
  %v927 = vadd.f32 %v926, %v896
  %v928 = vadd.f32 %v927, %v897
  %v929 = vadd.f32 %v928, %v898
  %v930 = vadd.f32 %v929, %v899
  %v931 = vadd.f32 %v930, %v900
  %v932 = vadd.f32 %v931, %v901
  %v933 = vadd.f32 %v932, %v902
  %934 = vadd.xlane.f32.xlu0 %v933
  %v935 = vpop.xlane.xlu0 %934
  %v936 = vadd.f32 %v903, %v904
  %v937 = vadd.f32 %v936, %v905
  %v938 = vadd.f32 %v937, %v906
  %v939 = vadd.f32 %v938, %v907
  %v940 = vadd.f32 %v939, %v908
  %v941 = vadd.f32 %v940, %v909
  %v942 = vadd.f32 %v941, %v910
  %v943 = vadd.f32 %v942, %v911
  %v944 = vadd.f32 %v943, %v912
  %v945 = vadd.f32 %v944, %v913
  %v946 = vadd.f32 %v945, %v914
  %v947 = vadd.f32 %v946, %v915
  %v948 = vadd.f32 %v947, %v916
  %v949 = vadd.f32 %v948, %v917
  %v950 = vadd.f32 %v949, %v918
  %951 = vadd.xlane.f32.xlu0 %v950
  %v952 = vpop.xlane.xlu0 %951
  %v953 = vlaneseq
  %v954 = vshrl.u32 %v953, 7
  %v955 = vadd.s32 %v954, 8
  %vm956 = vcmp.lt.s32.totalorder %v954, 0
  %v957 = vsub.s32 0, %v954
  %v958 = vsel %vm956, %v957, %v954
  %v959 = vshrl.u32 %v958, 2
  %v960 = vand.u32 %v958, 3
  %v961 = vsub.s32 0, %v960
  %v962 = vsel %vm956, %v961, %v960
  %vm963 = vcmp.lt.s32.totalorder %v955, 0
  %v964 = vsub.s32 0, %v955
  %v965 = vsel %vm963, %v964, %v955
  %v966 = vshrl.u32 %v965, 2
  %v967 = vand.u32 %v965, 3
  %v968 = vsub.s32 0, %v967
  %v969 = vsel %vm963, %v968, %v967
  %vm970 = vcmp.ne.s32.totalorder %v962, 0
  %vm971 = vcmp.ne.s32.totalorder %v969, 0
  %vm972 = vcmp.lt.s32.totalorder %v962, 0
  %vm973 = vcmp.lt.s32.totalorder %v969, 0
  %vm974 = vmand %vm972, %vm970
  %vm975 = vmand %vm973, %vm971
  %v976 = vadd.s32 %v962, 4
  %v977 = vadd.s32 %v969, 4
  %v978 = vsel %vm974, %v976, %v962
  %v979 = vsel %vm975, %v977, %v969
  %v980 = vlaneseq
  %v981 = vand.u32 %v980, 127
  %vm982 = vcmp.eq.s32.totalorder %v978, %v981
  %vm983 = vcmp.eq.s32.totalorder %v979, %v981
  %v984 = vsel %vm982, 1, 0
  %v985 = vsel %vm983, 1, 0
  %v986 = vcvt.s32.f32 %v984
  %v987 = vcvt.s32.f32 %v985
  %v988 = vmul.f32 %v986, %v869
  %v989 = vmul.f32 %v987, %v886
  %vm990 = vcmask 31744
  %v991 = vsel %vm990, %v988, 0.0
  %v992 = vsel %vm990, %v989, 0.0
  %v993 = vadd.f32 %v991, %v992
  %v994 = vrot.slane %v993, 4
  %v995 = vadd.f32 %v993, %v994
  %v996 = vrot.slane %v995, 2
  %v997 = vadd.f32 %v995, %v996
  %v998 = vrot.slane %v997, 1
  %v999 = vadd.f32 %v997, %v998
  %v1000 = vmul.f32 %v986, %v935
  %v1001 = vmul.f32 %v987, %v952
  %v1002 = vsel %vm990, %v1000, 0.0
  %v1003 = vsel %vm990, %v1001, 0.0
  %v1004 = vadd.f32 %v1002, %v1003
  %v1005 = vrot.slane %v1004, 4
  %v1006 = vadd.f32 %v1004, %v1005
  %v1007 = vrot.slane %v1006, 2
  %v1008 = vadd.f32 %v1006, %v1007
  %v1009 = vrot.slane %v1008, 1
  %v1010 = vadd.f32 %v1008, %v1009
  %v1011 = vmul.f32 %v999, 0.00012207031
  %v1012 = vmul.f32 %v1010, 0.00012207031
  %v1013 = vmul.f32 %v1011, %v1011
  %v1014 = vsub.f32 %v1012, %v1013
  %v1015 = vmax.f32 %v1014, 0.0
  %v1016 = vld [vmem:[%s2] sm:$0x1]
  %v1017 = vadd.f32 %v1015, 1e-05
  %v1018 = vrsqrt.pop %v1017
  %v1019 = vmul.f32 %v1016, %v1018
  %v1020 = vld [vmem:[%s3] sm:$0x1]
  %v1021 = vmul.f32 %v1011, %v1019
  %v1022 = vsub.f32 %v1020, %v1021
  %v1024 = vlaneseq
  %v1025 = vshrl.u32 %v1024, 7
  %v1026 = vsub.s32 0, %v1025
  %v1027 = vrot.slane %v1019, %v1026
  %v1029 = vmul.f32 %v986, %v1027
  %v1030 = vmul.f32 %v987, %v1027
  %v1031 = vsel %vm990, %v1029, 0.0
  %1032 = vadd.xlane.f32.xlu0 %v1031
  %v1033 = vpop.xlane.xlu0 %1032
  %v1034 = vsel %vm990, %v1030, 0.0
  %1035 = vadd.xlane.f32.xlu0 %v1034
  %v1036 = vpop.xlane.xlu0 %1035
  %v1038 = vlaneseq
  %v1039 = vshrl.u32 %v1038, 7
  %v1040 = vsub.s32 0, %v1039
  %v1041 = vrot.slane %v1022, %v1040
  %v1043 = vmul.f32 %v986, %v1041
  %v1044 = vmul.f32 %v987, %v1041
  %v1045 = vsel %vm990, %v1043, 0.0
  %1046 = vadd.xlane.f32.xlu0 %v1045
  %v1047 = vpop.xlane.xlu0 %1046
  %v1048 = vsel %vm990, %v1044, 0.0
  %1049 = vadd.xlane.f32.xlu0 %v1048
  %v1050 = vpop.xlane.xlu0 %1049
  %v1051 = vmul.f32 %v544, %v1033
  %v1052 = vmul.f32 %v546, %v1033
  %v1053 = vmul.f32 %v587, %v1033
  %v1054 = vmul.f32 %v589, %v1033
  %v1055 = vmul.f32 %v630, %v1033
  %v1056 = vmul.f32 %v632, %v1033
  %v1057 = vmul.f32 %v673, %v1033
  %v1058 = vmul.f32 %v675, %v1033
  %v1059 = vmul.f32 %v716, %v1033
  %v1060 = vmul.f32 %v718, %v1033
  %v1061 = vmul.f32 %v759, %v1033
  %v1062 = vmul.f32 %v761, %v1033
  %v1063 = vmul.f32 %v802, %v1033
  %v1064 = vmul.f32 %v804, %v1033
  %v1065 = vmul.f32 %v845, %v1033
  %v1066 = vmul.f32 %v847, %v1033
  %v1067 = vmul.f32 %v548, %v1036
  %v1068 = vmul.f32 %v550, %v1036
  %v1069 = vmul.f32 %v591, %v1036
  %v1070 = vmul.f32 %v593, %v1036
  %v1071 = vmul.f32 %v634, %v1036
  %v1072 = vmul.f32 %v636, %v1036
  %v1073 = vmul.f32 %v677, %v1036
  %v1074 = vmul.f32 %v679, %v1036
  %v1075 = vmul.f32 %v720, %v1036
  %v1076 = vmul.f32 %v722, %v1036
  %v1077 = vmul.f32 %v763, %v1036
  %v1078 = vmul.f32 %v765, %v1036
  %v1079 = vmul.f32 %v806, %v1036
  %v1080 = vmul.f32 %v808, %v1036
  %v1081 = vmul.f32 %v849, %v1036
  %v1082 = vmul.f32 %v851, %v1036
  %v1083 = vadd.f32 %v1051, %v1047
  %v1084 = vadd.f32 %v1052, %v1047
  %v1085 = vadd.f32 %v1053, %v1047
  %v1086 = vadd.f32 %v1054, %v1047
  %v1087 = vadd.f32 %v1055, %v1047
  %v1088 = vadd.f32 %v1056, %v1047
  %v1089 = vadd.f32 %v1057, %v1047
  %v1090 = vadd.f32 %v1058, %v1047
  %v1091 = vadd.f32 %v1059, %v1047
  %v1092 = vadd.f32 %v1060, %v1047
  %v1093 = vadd.f32 %v1061, %v1047
  %v1094 = vadd.f32 %v1062, %v1047
  %v1095 = vadd.f32 %v1063, %v1047
  %v1096 = vadd.f32 %v1064, %v1047
  %v1097 = vadd.f32 %v1065, %v1047
  %v1098 = vadd.f32 %v1066, %v1047
  %v1099 = vadd.f32 %v1067, %v1050
  %v1100 = vadd.f32 %v1068, %v1050
  %v1101 = vadd.f32 %v1069, %v1050
  %v1102 = vadd.f32 %v1070, %v1050
  %v1103 = vadd.f32 %v1071, %v1050
  %v1104 = vadd.f32 %v1072, %v1050
  %v1105 = vadd.f32 %v1073, %v1050
  %v1106 = vadd.f32 %v1074, %v1050
  %v1107 = vadd.f32 %v1075, %v1050
  %v1108 = vadd.f32 %v1076, %v1050
  %v1109 = vadd.f32 %v1077, %v1050
  %v1110 = vadd.f32 %v1078, %v1050
  %v1111 = vadd.f32 %v1079, %v1050
  %v1112 = vadd.f32 %v1080, %v1050
  %v1113 = vadd.f32 %v1081, %v1050
  %v1114 = vadd.f32 %v1082, %v1050
  %v1115 = vmax.f32 %v1083, 0.0
  %v1116 = vmax.f32 %v1084, 0.0
  %v1117 = vmax.f32 %v1085, 0.0
  %v1118 = vmax.f32 %v1086, 0.0
  %v1119 = vmax.f32 %v1087, 0.0
  %v1120 = vmax.f32 %v1088, 0.0
  %v1121 = vmax.f32 %v1089, 0.0
  %v1122 = vmax.f32 %v1090, 0.0
  %v1123 = vmax.f32 %v1091, 0.0
  %v1124 = vmax.f32 %v1092, 0.0
  %v1125 = vmax.f32 %v1093, 0.0
  %v1126 = vmax.f32 %v1094, 0.0
  %v1127 = vmax.f32 %v1095, 0.0
  %v1128 = vmax.f32 %v1096, 0.0
  %v1129 = vmax.f32 %v1097, 0.0
  %v1130 = vmax.f32 %v1098, 0.0
  %v1131 = vmax.f32 %v1099, 0.0
  %v1132 = vmax.f32 %v1100, 0.0
  %v1133 = vmax.f32 %v1101, 0.0
  %v1134 = vmax.f32 %v1102, 0.0
  %v1135 = vmax.f32 %v1103, 0.0
  %v1136 = vmax.f32 %v1104, 0.0
  %v1137 = vmax.f32 %v1105, 0.0
  %v1138 = vmax.f32 %v1106, 0.0
  %v1139 = vmax.f32 %v1107, 0.0
  %v1140 = vmax.f32 %v1108, 0.0
  %v1141 = vmax.f32 %v1109, 0.0
  %v1142 = vmax.f32 %v1110, 0.0
  %v1143 = vmax.f32 %v1111, 0.0
  %v1144 = vmax.f32 %v1112, 0.0
  %v1145 = vmax.f32 %v1113, 0.0
  %v1146 = vmax.f32 %v1114, 0.0
  %1147 = vst [vmem:[%s4] sm:$0xff] %v1115
  %1148 = vst [vmem:[%s4 + $0x8] sm:$0xff] %v1116
  %1149 = vst [vmem:[%s4 + $0x10] sm:$0xff] %v1117
  %1150 = vst [vmem:[%s4 + $0x18] sm:$0xff] %v1118
  %1151 = vst [vmem:[%s4 + $0x20] sm:$0xff] %v1119
  %1152 = vst [vmem:[%s4 + $0x28] sm:$0xff] %v1120
  %1153 = vst [vmem:[%s4 + $0x30] sm:$0xff] %v1121
  %1154 = vst [vmem:[%s4 + $0x38] sm:$0xff] %v1122
  %1155 = vst [vmem:[%s4 + $0x40] sm:$0xff] %v1123
  %1156 = vst [vmem:[%s4 + $0x48] sm:$0xff] %v1124
  %1157 = vst [vmem:[%s4 + $0x50] sm:$0xff] %v1125
  %1158 = vst [vmem:[%s4 + $0x58] sm:$0xff] %v1126
  %1159 = vst [vmem:[%s4 + $0x60] sm:$0xff] %v1127
  %1160 = vst [vmem:[%s4 + $0x68] sm:$0xff] %v1128
  %1161 = vst [vmem:[%s4 + $0x70] sm:$0xff] %v1129
  %1162 = vst [vmem:[%s4 + $0x78] sm:$0xff] %v1130
  %1163 = vst [vmem:[%s4 + $0x80] sm:$0xff] %v1131
  %1164 = vst [vmem:[%s4 + $0x88] sm:$0xff] %v1132
  %1165 = vst [vmem:[%s4 + $0x90] sm:$0xff] %v1133
  %1166 = vst [vmem:[%s4 + $0x98] sm:$0xff] %v1134
  %1167 = vst [vmem:[%s4 + $0xa0] sm:$0xff] %v1135
  %1168 = vst [vmem:[%s4 + $0xa8] sm:$0xff] %v1136
  %1169 = vst [vmem:[%s4 + $0xb0] sm:$0xff] %v1137
  %1170 = vst [vmem:[%s4 + $0xb8] sm:$0xff] %v1138
  %1171 = vst [vmem:[%s4 + $0xc0] sm:$0xff] %v1139
  %1172 = vst [vmem:[%s4 + $0xc8] sm:$0xff] %v1140
  %1173 = vst [vmem:[%s4 + $0xd0] sm:$0xff] %v1141
  %1174 = vst [vmem:[%s4 + $0xd8] sm:$0xff] %v1142
  %1175 = vst [vmem:[%s4 + $0xe0] sm:$0xff] %v1143
  %1176 = vst [vmem:[%s4 + $0xe8] sm:$0xff] %v1144
  %1177 = vst [vmem:[%s4 + $0xf0] sm:$0xff] %v1145
  %1178 = vst [vmem:[%s4 + $0xf8] sm:$0xff] %v1146
  // Predicated region
  $region18: #{generator_forward.11} parent=0 // pred_check
    _
  $region19: #{generator_forward.11} parent=0 // pred_check_branch
    %1180 = sbr.rel (0) target = $region21
  $region20: #{generator_forward.11} parent=0 // pred_region
    _
  $region21: #{generator_forward.11} parent=0 // pred_fallthru
    _
  // Predicated region
  $region22: #{generator_forward.11} parent=0 // pred_check
    _
  $region23: #{generator_forward.11} parent=0 // pred_check_branch
    %1182 = sbr.rel (0) target = $region25
  $region24: #{generator_forward.11} parent=0 // pred_region
    _
  $region25: #{generator_forward.11} parent=0 // pred_fallthru
    _

// kernel: generator_forward.12
$region0: #{generator_forward.12}
  #allocation0 [shape = 'u32[]', space=smem, size = 0x4, offset = 0x4, fixed_abs, tag = 'smem constant byte address 0x4 - core index']
  #allocation1 [shape = 'u32[144,128]{1,0:T(1,128)}', space=vmem, size = 0x12000, scoped, tag = 'internal scratch']
  %s0 = inlined_call_operand.vmem [shape: bf16[8,48], index: 0, kind: input, shape index: {}]
  %s1 = inlined_call_operand.vmem [shape: bf16[48,8192], index: 1, kind: input, shape index: {}]
  %s2 = inlined_call_operand.vmem [shape: f32[1,2], index: 2, kind: input, shape index: {}]
  %s3 = inlined_call_operand.vmem [shape: f32[1,2], index: 3, kind: input, shape index: {}]
  %s4 = inlined_call_operand.vmem [shape: f32[8,8192], index: 4, kind: output, shape index: {}]
  %s5 = sld [smem:[#allocation0]]
  $region26: #{generator_forward.12} parent=0
    _
  %s7 = ssub.s32 1, %s5
  %s8 = scalar_select 0, %s7, %s5
  // Predicated region
  $region2: #{generator_forward.12} parent=0 // pred_check
    _
  $region3: #{generator_forward.12} parent=0 // pred_check_branch
    %10 = sbr.rel (0) target = $region5
  $region4: #{generator_forward.12} parent=0 // pred_region
    _
  $region5: #{generator_forward.12} parent=0 // pred_fallthru
    _
  // Predicated region
  $region6: #{generator_forward.12} parent=0 // pred_check
    _
  $region7: #{generator_forward.12} parent=0 // pred_check_branch
    %12 = sbr.rel (0) target = $region9
  $region8: #{generator_forward.12} parent=0 // pred_region
    _
  $region9: #{generator_forward.12} parent=0 // pred_fallthru
    _
  // Predicated region
  $region10: #{generator_forward.12} parent=0 // pred_check
    _
  $region11: #{generator_forward.12} parent=0 // pred_check_branch
    %14 = sbr.rel (0) target = $region13
  $region12: #{generator_forward.12} parent=0 // pred_region
    _
  $region13: #{generator_forward.12} parent=0 // pred_fallthru
    _
  // Predicated region
  $region14: #{generator_forward.12} parent=0 // pred_check
    _
  $region15: #{generator_forward.12} parent=0 // pred_check_branch
    %16 = sbr.rel (0) target = $region17
  $region16: #{generator_forward.12} parent=0 // pred_region
    _
  $region17: #{generator_forward.12} parent=0 // pred_fallthru
    _
  %v18 = vld [vmem:[%s0] sm:$0xf]
  %v19 = vld [vmem:[%s1] sm:$0xff]
  %v20 = vld [vmem:[%s1 + $0x8] sm:$0xff]
  %v21 = vld [vmem:[%s1 + $0x10] sm:$0xff]
  %v22 = vld [vmem:[%s1 + $0x18] sm:$0xff]
  %v23 = vld [vmem:[%s1 + $0x20] sm:$0xff]
  %v24 = vld [vmem:[%s1 + $0x28] sm:$0xff]
  %v25 = vld [vmem:[%s1 + $0x30] sm:$0xff]
  %v26 = vld [vmem:[%s1 + $0x38] sm:$0xff]
  %v27 = vld [vmem:[%s1 + $0x40] sm:$0xff]
  %v28 = vld [vmem:[%s1 + $0x48] sm:$0xff]
  %v29 = vld [vmem:[%s1 + $0x50] sm:$0xff]
  %v30 = vld [vmem:[%s1 + $0x58] sm:$0xff]
  %v31 = vld [vmem:[%s1 + $0x60] sm:$0xff]
  %v32 = vld [vmem:[%s1 + $0x68] sm:$0xff]
  %v33 = vld [vmem:[%s1 + $0x70] sm:$0xff]
  %v34 = vld [vmem:[%s1 + $0x78] sm:$0xff]
  %v35 = vld [vmem:[%s1 + $0x80] sm:$0xff]
  %v36 = vld [vmem:[%s1 + $0x88] sm:$0xff]
  %v37 = vld [vmem:[%s1 + $0x90] sm:$0xff]
  %v38 = vld [vmem:[%s1 + $0x98] sm:$0xff]
  %v39 = vld [vmem:[%s1 + $0xa0] sm:$0xff]
  %v40 = vld [vmem:[%s1 + $0xa8] sm:$0xff]
  %v41 = vld [vmem:[%s1 + $0xb0] sm:$0xff]
  %v42 = vld [vmem:[%s1 + $0xb8] sm:$0xff]
  %v43 = vld [vmem:[%s1 + $0xc0] sm:$0xff]
  %v44 = vld [vmem:[%s1 + $0xc8] sm:$0xff]
  %v45 = vld [vmem:[%s1 + $0xd0] sm:$0xff]
  %v46 = vld [vmem:[%s1 + $0xd8] sm:$0xff]
  %v47 = vld [vmem:[%s1 + $0xe0] sm:$0xff]
  %v48 = vld [vmem:[%s1 + $0xe8] sm:$0xff]
  %v49 = vld [vmem:[%s1 + $0xf0] sm:$0xff]
  %v50 = vld [vmem:[%s1 + $0xf8] sm:$0xff]
  %v51 = vld [vmem:[%s1 + $0x100] sm:$0xff]
  %v52 = vld [vmem:[%s1 + $0x108] sm:$0xff]
  %v53 = vld [vmem:[%s1 + $0x110] sm:$0xff]
  %v54 = vld [vmem:[%s1 + $0x118] sm:$0xff]
  %v55 = vld [vmem:[%s1 + $0x120] sm:$0xff]
  %v56 = vld [vmem:[%s1 + $0x128] sm:$0xff]
  %v57 = vld [vmem:[%s1 + $0x130] sm:$0xff]
  %v58 = vld [vmem:[%s1 + $0x138] sm:$0xff]
  %v59 = vld [vmem:[%s1 + $0x140] sm:$0xff]
  %v60 = vld [vmem:[%s1 + $0x148] sm:$0xff]
  %v61 = vld [vmem:[%s1 + $0x150] sm:$0xff]
  %v62 = vld [vmem:[%s1 + $0x158] sm:$0xff]
  %v63 = vld [vmem:[%s1 + $0x160] sm:$0xff]
  %v64 = vld [vmem:[%s1 + $0x168] sm:$0xff]
  %v65 = vld [vmem:[%s1 + $0x170] sm:$0xff]
  %v66 = vld [vmem:[%s1 + $0x178] sm:$0xff]
  %v67 = vld [vmem:[%s1 + $0x180] sm:$0xff]
  %v68 = vld [vmem:[%s1 + $0x188] sm:$0xff]
  %v69 = vld [vmem:[%s1 + $0x190] sm:$0xff]
  %v70 = vld [vmem:[%s1 + $0x198] sm:$0xff]
  %v71 = vld [vmem:[%s1 + $0x1a0] sm:$0xff]
  %v72 = vld [vmem:[%s1 + $0x1a8] sm:$0xff]
  %v73 = vld [vmem:[%s1 + $0x1b0] sm:$0xff]
  %v74 = vld [vmem:[%s1 + $0x1b8] sm:$0xff]
  %v75 = vld [vmem:[%s1 + $0x1c0] sm:$0xff]
  %v76 = vld [vmem:[%s1 + $0x1c8] sm:$0xff]
  %v77 = vld [vmem:[%s1 + $0x1d0] sm:$0xff]
  %v78 = vld [vmem:[%s1 + $0x1d8] sm:$0xff]
  %v79 = vld [vmem:[%s1 + $0x1e0] sm:$0xff]
  %v80 = vld [vmem:[%s1 + $0x1e8] sm:$0xff]
  %v81 = vld [vmem:[%s1 + $0x1f0] sm:$0xff]
  %v82 = vld [vmem:[%s1 + $0x1f8] sm:$0xff]
  %v83 = vld [vmem:[%s1 + $0x200] sm:$0xff]
  %v84 = vld [vmem:[%s1 + $0x208] sm:$0xff]
  %v85 = vld [vmem:[%s1 + $0x210] sm:$0xff]
  %v86 = vld [vmem:[%s1 + $0x218] sm:$0xff]
  %v87 = vld [vmem:[%s1 + $0x220] sm:$0xff]
  %v88 = vld [vmem:[%s1 + $0x228] sm:$0xff]
  %v89 = vld [vmem:[%s1 + $0x230] sm:$0xff]
  %v90 = vld [vmem:[%s1 + $0x238] sm:$0xff]
  %v91 = vld [vmem:[%s1 + $0x240] sm:$0xff]
  %v92 = vld [vmem:[%s1 + $0x248] sm:$0xff]
  %v93 = vld [vmem:[%s1 + $0x250] sm:$0xff]
  %v94 = vld [vmem:[%s1 + $0x258] sm:$0xff]
  %v95 = vld [vmem:[%s1 + $0x260] sm:$0xff]
  %v96 = vld [vmem:[%s1 + $0x268] sm:$0xff]
  %v97 = vld [vmem:[%s1 + $0x270] sm:$0xff]
  %v98 = vld [vmem:[%s1 + $0x278] sm:$0xff]
  %v99 = vld [vmem:[%s1 + $0x280] sm:$0xff]
  %v100 = vld [vmem:[%s1 + $0x288] sm:$0xff]
  %v101 = vld [vmem:[%s1 + $0x290] sm:$0xff]
  %v102 = vld [vmem:[%s1 + $0x298] sm:$0xff]
  %v103 = vld [vmem:[%s1 + $0x2a0] sm:$0xff]
  %v104 = vld [vmem:[%s1 + $0x2a8] sm:$0xff]
  %v105 = vld [vmem:[%s1 + $0x2b0] sm:$0xff]
  %v106 = vld [vmem:[%s1 + $0x2b8] sm:$0xff]
  %v107 = vld [vmem:[%s1 + $0x2c0] sm:$0xff]
  %v108 = vld [vmem:[%s1 + $0x2c8] sm:$0xff]
  %v109 = vld [vmem:[%s1 + $0x2d0] sm:$0xff]
  %v110 = vld [vmem:[%s1 + $0x2d8] sm:$0xff]
  %v111 = vld [vmem:[%s1 + $0x2e0] sm:$0xff]
  %v112 = vld [vmem:[%s1 + $0x2e8] sm:$0xff]
  %v113 = vld [vmem:[%s1 + $0x2f0] sm:$0xff]
  %v114 = vld [vmem:[%s1 + $0x2f8] sm:$0xff]
  %v115 = vld [vmem:[%s1 + $0x300] sm:$0xff]
  %v116 = vld [vmem:[%s1 + $0x308] sm:$0xff]
  %v117 = vld [vmem:[%s1 + $0x310] sm:$0xff]
  %v118 = vld [vmem:[%s1 + $0x318] sm:$0xff]
  %v119 = vld [vmem:[%s1 + $0x320] sm:$0xff]
  %v120 = vld [vmem:[%s1 + $0x328] sm:$0xff]
  %v121 = vld [vmem:[%s1 + $0x330] sm:$0xff]
  %v122 = vld [vmem:[%s1 + $0x338] sm:$0xff]
  %v123 = vld [vmem:[%s1 + $0x340] sm:$0xff]
  %v124 = vld [vmem:[%s1 + $0x348] sm:$0xff]
  %v125 = vld [vmem:[%s1 + $0x350] sm:$0xff]
  %v126 = vld [vmem:[%s1 + $0x358] sm:$0xff]
  %v127 = vld [vmem:[%s1 + $0x360] sm:$0xff]
  %v128 = vld [vmem:[%s1 + $0x368] sm:$0xff]
  %v129 = vld [vmem:[%s1 + $0x370] sm:$0xff]
  %v130 = vld [vmem:[%s1 + $0x378] sm:$0xff]
  %v131 = vld [vmem:[%s1 + $0x380] sm:$0xff]
  %v132 = vld [vmem:[%s1 + $0x388] sm:$0xff]
  %v133 = vld [vmem:[%s1 + $0x390] sm:$0xff]
  %v134 = vld [vmem:[%s1 + $0x398] sm:$0xff]
  %v135 = vld [vmem:[%s1 + $0x3a0] sm:$0xff]
  %v136 = vld [vmem:[%s1 + $0x3a8] sm:$0xff]
  %v137 = vld [vmem:[%s1 + $0x3b0] sm:$0xff]
  %v138 = vld [vmem:[%s1 + $0x3b8] sm:$0xff]
  %v139 = vld [vmem:[%s1 + $0x3c0] sm:$0xff]
  %v140 = vld [vmem:[%s1 + $0x3c8] sm:$0xff]
  %v141 = vld [vmem:[%s1 + $0x3d0] sm:$0xff]
  %v142 = vld [vmem:[%s1 + $0x3d8] sm:$0xff]
  %v143 = vld [vmem:[%s1 + $0x3e0] sm:$0xff]
  %v144 = vld [vmem:[%s1 + $0x3e8] sm:$0xff]
  %v145 = vld [vmem:[%s1 + $0x3f0] sm:$0xff]
  %v146 = vld [vmem:[%s1 + $0x3f8] sm:$0xff]
  %v147 = vld [vmem:[%s1 + $0x400] sm:$0xff]
  %v148 = vld [vmem:[%s1 + $0x408] sm:$0xff]
  %v149 = vld [vmem:[%s1 + $0x410] sm:$0xff]
  %v150 = vld [vmem:[%s1 + $0x418] sm:$0xff]
  %v151 = vld [vmem:[%s1 + $0x420] sm:$0xff]
  %v152 = vld [vmem:[%s1 + $0x428] sm:$0xff]
  %v153 = vld [vmem:[%s1 + $0x430] sm:$0xff]
  %v154 = vld [vmem:[%s1 + $0x438] sm:$0xff]
  %v155 = vld [vmem:[%s1 + $0x440] sm:$0xff]
  %v156 = vld [vmem:[%s1 + $0x448] sm:$0xff]
  %v157 = vld [vmem:[%s1 + $0x450] sm:$0xff]
  %v158 = vld [vmem:[%s1 + $0x458] sm:$0xff]
  %v159 = vld [vmem:[%s1 + $0x460] sm:$0xff]
  %v160 = vld [vmem:[%s1 + $0x468] sm:$0xff]
  %v161 = vld [vmem:[%s1 + $0x470] sm:$0xff]
  %v162 = vld [vmem:[%s1 + $0x478] sm:$0xff]
  %v163 = vld [vmem:[%s1 + $0x480] sm:$0xff]
  %v164 = vld [vmem:[%s1 + $0x488] sm:$0xff]
  %v165 = vld [vmem:[%s1 + $0x490] sm:$0xff]
  %v166 = vld [vmem:[%s1 + $0x498] sm:$0xff]
  %v167 = vld [vmem:[%s1 + $0x4a0] sm:$0xff]
  %v168 = vld [vmem:[%s1 + $0x4a8] sm:$0xff]
  %v169 = vld [vmem:[%s1 + $0x4b0] sm:$0xff]
  %v170 = vld [vmem:[%s1 + $0x4b8] sm:$0xff]
  %v171 = vld [vmem:[%s1 + $0x4c0] sm:$0xff]
  %v172 = vld [vmem:[%s1 + $0x4c8] sm:$0xff]
  %v173 = vld [vmem:[%s1 + $0x4d0] sm:$0xff]
  %v174 = vld [vmem:[%s1 + $0x4d8] sm:$0xff]
  %v175 = vld [vmem:[%s1 + $0x4e0] sm:$0xff]
  %v176 = vld [vmem:[%s1 + $0x4e8] sm:$0xff]
  %v177 = vld [vmem:[%s1 + $0x4f0] sm:$0xff]
  %v178 = vld [vmem:[%s1 + $0x4f8] sm:$0xff]
  %v179 = vld [vmem:[%s1 + $0x500] sm:$0xff]
  %v180 = vld [vmem:[%s1 + $0x508] sm:$0xff]
  %v181 = vld [vmem:[%s1 + $0x510] sm:$0xff]
  %v182 = vld [vmem:[%s1 + $0x518] sm:$0xff]
  %v183 = vld [vmem:[%s1 + $0x520] sm:$0xff]
  %v184 = vld [vmem:[%s1 + $0x528] sm:$0xff]
  %v185 = vld [vmem:[%s1 + $0x530] sm:$0xff]
  %v186 = vld [vmem:[%s1 + $0x538] sm:$0xff]
  %v187 = vld [vmem:[%s1 + $0x540] sm:$0xff]
  %v188 = vld [vmem:[%s1 + $0x548] sm:$0xff]
  %v189 = vld [vmem:[%s1 + $0x550] sm:$0xff]
  %v190 = vld [vmem:[%s1 + $0x558] sm:$0xff]
  %v191 = vld [vmem:[%s1 + $0x560] sm:$0xff]
  %v192 = vld [vmem:[%s1 + $0x568] sm:$0xff]
  %v193 = vld [vmem:[%s1 + $0x570] sm:$0xff]
  %v194 = vld [vmem:[%s1 + $0x578] sm:$0xff]
  %v195 = vld [vmem:[%s1 + $0x580] sm:$0xff]
  %v196 = vld [vmem:[%s1 + $0x588] sm:$0xff]
  %v197 = vld [vmem:[%s1 + $0x590] sm:$0xff]
  %v198 = vld [vmem:[%s1 + $0x598] sm:$0xff]
  %v199 = vld [vmem:[%s1 + $0x5a0] sm:$0xff]
  %v200 = vld [vmem:[%s1 + $0x5a8] sm:$0xff]
  %v201 = vld [vmem:[%s1 + $0x5b0] sm:$0xff]
  %v202 = vld [vmem:[%s1 + $0x5b8] sm:$0xff]
  %v203 = vld [vmem:[%s1 + $0x5c0] sm:$0xff]
  %v204 = vld [vmem:[%s1 + $0x5c8] sm:$0xff]
  %v205 = vld [vmem:[%s1 + $0x5d0] sm:$0xff]
  %v206 = vld [vmem:[%s1 + $0x5d8] sm:$0xff]
  %v207 = vld [vmem:[%s1 + $0x5e0] sm:$0xff]
  %v208 = vld [vmem:[%s1 + $0x5e8] sm:$0xff]
  %v209 = vld [vmem:[%s1 + $0x5f0] sm:$0xff]
  %v210 = vld [vmem:[%s1 + $0x5f8] sm:$0xff]
  %v403 = vunpack.c.l.b16 %v19
  %v404 = vunpack.c.h.b16 %v19
  %v405 = vunpack.c.l.b16 %v20
  %v406 = vunpack.c.h.b16 %v20
  %v407 = vunpack.c.l.b16 %v21
  %v408 = vunpack.c.h.b16 %v21
  %v409 = vunpack.c.l.b16 %v22
  %v410 = vunpack.c.h.b16 %v22
  %v411 = vunpack.c.l.b16 %v23
  %v412 = vunpack.c.h.b16 %v23
  %v413 = vunpack.c.l.b16 %v24
  %v414 = vunpack.c.h.b16 %v24
  %v415 = vunpack.c.l.b16 %v25
  %v416 = vunpack.c.h.b16 %v25
  %v417 = vunpack.c.l.b16 %v26
  %v418 = vunpack.c.h.b16 %v26
  %v419 = vunpack.c.l.b16 %v27
  %v420 = vunpack.c.h.b16 %v27
  %v421 = vunpack.c.l.b16 %v28
  %v422 = vunpack.c.h.b16 %v28
  %v423 = vunpack.c.l.b16 %v29
  %v424 = vunpack.c.h.b16 %v29
  %v425 = vunpack.c.l.b16 %v30
  %v426 = vunpack.c.h.b16 %v30
  %v427 = vunpack.c.l.b16 %v31
  %v428 = vunpack.c.h.b16 %v31
  %v429 = vunpack.c.l.b16 %v32
  %v430 = vunpack.c.h.b16 %v32
  %v431 = vunpack.c.l.b16 %v33
  %v432 = vunpack.c.h.b16 %v33
  %v433 = vunpack.c.l.b16 %v34
  %v434 = vunpack.c.h.b16 %v34
  %v435 = vunpack.c.l.b16 %v35
  %v436 = vunpack.c.h.b16 %v35
  %v437 = vunpack.c.l.b16 %v36
  %v438 = vunpack.c.h.b16 %v36
  %v439 = vunpack.c.l.b16 %v37
  %v440 = vunpack.c.h.b16 %v37
  %v441 = vunpack.c.l.b16 %v38
  %v442 = vunpack.c.h.b16 %v38
  %v443 = vunpack.c.l.b16 %v39
  %v444 = vunpack.c.h.b16 %v39
  %v445 = vunpack.c.l.b16 %v40
  %v446 = vunpack.c.h.b16 %v40
  %v447 = vunpack.c.l.b16 %v41
  %v448 = vunpack.c.h.b16 %v41
  %v449 = vunpack.c.l.b16 %v42
  %v450 = vunpack.c.h.b16 %v42
  %v451 = vunpack.c.l.b16 %v43
  %v452 = vunpack.c.h.b16 %v43
  %v453 = vunpack.c.l.b16 %v44
  %v454 = vunpack.c.h.b16 %v44
  %v455 = vunpack.c.l.b16 %v45
  %v456 = vunpack.c.h.b16 %v45
  %v457 = vunpack.c.l.b16 %v46
  %v458 = vunpack.c.h.b16 %v46
  %v459 = vunpack.c.l.b16 %v47
  %v460 = vunpack.c.h.b16 %v47
  %v461 = vunpack.c.l.b16 %v48
  %v462 = vunpack.c.h.b16 %v48
  %v463 = vunpack.c.l.b16 %v49
  %v464 = vunpack.c.h.b16 %v49
  %v465 = vunpack.c.l.b16 %v50
  %v466 = vunpack.c.h.b16 %v50
  %v467 = vunpack.c.l.b16 %v51
  %v468 = vunpack.c.h.b16 %v51
  %v469 = vunpack.c.l.b16 %v52
  %v470 = vunpack.c.h.b16 %v52
  %v471 = vunpack.c.l.b16 %v53
  %v472 = vunpack.c.h.b16 %v53
  %v473 = vunpack.c.l.b16 %v54
  %v474 = vunpack.c.h.b16 %v54
  %v475 = vunpack.c.l.b16 %v55
  %v476 = vunpack.c.h.b16 %v55
  %v477 = vunpack.c.l.b16 %v56
  %v478 = vunpack.c.h.b16 %v56
  %v479 = vunpack.c.l.b16 %v57
  %v480 = vunpack.c.h.b16 %v57
  %v481 = vunpack.c.l.b16 %v58
  %v482 = vunpack.c.h.b16 %v58
  %v483 = vunpack.c.l.b16 %v59
  %v484 = vunpack.c.h.b16 %v59
  %v485 = vunpack.c.l.b16 %v60
  %v486 = vunpack.c.h.b16 %v60
  %v487 = vunpack.c.l.b16 %v61
  %v488 = vunpack.c.h.b16 %v61
  %v489 = vunpack.c.l.b16 %v62
  %v490 = vunpack.c.h.b16 %v62
  %v491 = vunpack.c.l.b16 %v63
  %v492 = vunpack.c.h.b16 %v63
  %v493 = vunpack.c.l.b16 %v64
  %v494 = vunpack.c.h.b16 %v64
  %v495 = vunpack.c.l.b16 %v65
  %v496 = vunpack.c.h.b16 %v65
  %v497 = vunpack.c.l.b16 %v66
  %v498 = vunpack.c.h.b16 %v66
  %v499 = vunpack.c.l.b16 %v67
  %v500 = vunpack.c.h.b16 %v67
  %v501 = vunpack.c.l.b16 %v68
  %v502 = vunpack.c.h.b16 %v68
  %v503 = vunpack.c.l.b16 %v69
  %v504 = vunpack.c.h.b16 %v69
  %v505 = vunpack.c.l.b16 %v70
  %v506 = vunpack.c.h.b16 %v70
  %v507 = vunpack.c.l.b16 %v71
  %v508 = vunpack.c.h.b16 %v71
  %v509 = vunpack.c.l.b16 %v72
  %v510 = vunpack.c.h.b16 %v72
  %v511 = vunpack.c.l.b16 %v73
  %v512 = vunpack.c.h.b16 %v73
  %v513 = vunpack.c.l.b16 %v74
  %v514 = vunpack.c.h.b16 %v74
  %v515 = vunpack.c.l.b16 %v75
  %v516 = vunpack.c.h.b16 %v75
  %v517 = vunpack.c.l.b16 %v76
  %v518 = vunpack.c.h.b16 %v76
  %v519 = vunpack.c.l.b16 %v77
  %v520 = vunpack.c.h.b16 %v77
  %v521 = vunpack.c.l.b16 %v78
  %v522 = vunpack.c.h.b16 %v78
  %v523 = vunpack.c.l.b16 %v79
  %v524 = vunpack.c.h.b16 %v79
  %v525 = vunpack.c.l.b16 %v80
  %v526 = vunpack.c.h.b16 %v80
  %v527 = vunpack.c.l.b16 %v81
  %v528 = vunpack.c.h.b16 %v81
  %v529 = vunpack.c.l.b16 %v82
  %v530 = vunpack.c.h.b16 %v82
  %v531 = vunpack.c.l.b16 %v83
  %v532 = vunpack.c.h.b16 %v83
  %v533 = vunpack.c.l.b16 %v84
  %v534 = vunpack.c.h.b16 %v84
  %v535 = vunpack.c.l.b16 %v85
  %v536 = vunpack.c.h.b16 %v85
  %v537 = vunpack.c.l.b16 %v86
  %v538 = vunpack.c.h.b16 %v86
  %v539 = vunpack.c.l.b16 %v87
  %v540 = vunpack.c.h.b16 %v87
  %v541 = vunpack.c.l.b16 %v88
  %v542 = vunpack.c.h.b16 %v88
  %v543 = vunpack.c.l.b16 %v89
  %v544 = vunpack.c.h.b16 %v89
  %v545 = vunpack.c.l.b16 %v90
  %v546 = vunpack.c.h.b16 %v90
  %v547 = vunpack.c.l.b16 %v91
  %v548 = vunpack.c.h.b16 %v91
  %v549 = vunpack.c.l.b16 %v92
  %v550 = vunpack.c.h.b16 %v92
  %v551 = vunpack.c.l.b16 %v93
  %v552 = vunpack.c.h.b16 %v93
  %v553 = vunpack.c.l.b16 %v94
  %v554 = vunpack.c.h.b16 %v94
  %v555 = vunpack.c.l.b16 %v95
  %v556 = vunpack.c.h.b16 %v95
  %v557 = vunpack.c.l.b16 %v96
  %v558 = vunpack.c.h.b16 %v96
  %v559 = vunpack.c.l.b16 %v97
  %v560 = vunpack.c.h.b16 %v97
  %v561 = vunpack.c.l.b16 %v98
  %v562 = vunpack.c.h.b16 %v98
  %v563 = vunpack.c.l.b16 %v99
  %v564 = vunpack.c.h.b16 %v99
  %v565 = vunpack.c.l.b16 %v100
  %v566 = vunpack.c.h.b16 %v100
  %v567 = vunpack.c.l.b16 %v101
  %v568 = vunpack.c.h.b16 %v101
  %v569 = vunpack.c.l.b16 %v102
  %v570 = vunpack.c.h.b16 %v102
  %v571 = vunpack.c.l.b16 %v103
  %v572 = vunpack.c.h.b16 %v103
  %v573 = vunpack.c.l.b16 %v104
  %v574 = vunpack.c.h.b16 %v104
  %v575 = vunpack.c.l.b16 %v105
  %v576 = vunpack.c.h.b16 %v105
  %v577 = vunpack.c.l.b16 %v106
  %v578 = vunpack.c.h.b16 %v106
  %v579 = vunpack.c.l.b16 %v107
  %v580 = vunpack.c.h.b16 %v107
  %v581 = vunpack.c.l.b16 %v108
  %v582 = vunpack.c.h.b16 %v108
  %v583 = vunpack.c.l.b16 %v109
  %v584 = vunpack.c.h.b16 %v109
  %v585 = vunpack.c.l.b16 %v110
  %v586 = vunpack.c.h.b16 %v110
  %v587 = vunpack.c.l.b16 %v111
  %v588 = vunpack.c.h.b16 %v111
  %v589 = vunpack.c.l.b16 %v112
  %v590 = vunpack.c.h.b16 %v112
  %v591 = vunpack.c.l.b16 %v113
  %v592 = vunpack.c.h.b16 %v113
  %v593 = vunpack.c.l.b16 %v114
  %v594 = vunpack.c.h.b16 %v114
  %v595 = vunpack.c.l.b16 %v115
  %v596 = vunpack.c.h.b16 %v115
  %v597 = vunpack.c.l.b16 %v116
  %v598 = vunpack.c.h.b16 %v116
  %v599 = vunpack.c.l.b16 %v117
  %v600 = vunpack.c.h.b16 %v117
  %v601 = vunpack.c.l.b16 %v118
  %v602 = vunpack.c.h.b16 %v118
  %v603 = vunpack.c.l.b16 %v119
  %v604 = vunpack.c.h.b16 %v119
  %v605 = vunpack.c.l.b16 %v120
  %v606 = vunpack.c.h.b16 %v120
  %v607 = vunpack.c.l.b16 %v121
  %v608 = vunpack.c.h.b16 %v121
  %v609 = vunpack.c.l.b16 %v122
  %v610 = vunpack.c.h.b16 %v122
  %v611 = vunpack.c.l.b16 %v123
  %v612 = vunpack.c.h.b16 %v123
  %v613 = vunpack.c.l.b16 %v124
  %v614 = vunpack.c.h.b16 %v124
  %v615 = vunpack.c.l.b16 %v125
  %v616 = vunpack.c.h.b16 %v125
  %v617 = vunpack.c.l.b16 %v126
  %v618 = vunpack.c.h.b16 %v126
  %v619 = vunpack.c.l.b16 %v127
  %v620 = vunpack.c.h.b16 %v127
  %v621 = vunpack.c.l.b16 %v128
  %v622 = vunpack.c.h.b16 %v128
  %v623 = vunpack.c.l.b16 %v129
  %v624 = vunpack.c.h.b16 %v129
  %v625 = vunpack.c.l.b16 %v130
  %v626 = vunpack.c.h.b16 %v130
  %v627 = vunpack.c.l.b16 %v131
  %v628 = vunpack.c.h.b16 %v131
  %v629 = vunpack.c.l.b16 %v132
  %v630 = vunpack.c.h.b16 %v132
  %v631 = vunpack.c.l.b16 %v133
  %v632 = vunpack.c.h.b16 %v133
  %v633 = vunpack.c.l.b16 %v134
  %v634 = vunpack.c.h.b16 %v134
  %v635 = vunpack.c.l.b16 %v135
  %v636 = vunpack.c.h.b16 %v135
  %v637 = vunpack.c.l.b16 %v136
  %v638 = vunpack.c.h.b16 %v136
  %v639 = vunpack.c.l.b16 %v137
  %v640 = vunpack.c.h.b16 %v137
  %v641 = vunpack.c.l.b16 %v138
  %v642 = vunpack.c.h.b16 %v138
  %v643 = vunpack.c.l.b16 %v139
  %v644 = vunpack.c.h.b16 %v139
  %v645 = vunpack.c.l.b16 %v140
  %v646 = vunpack.c.h.b16 %v140
  %v647 = vunpack.c.l.b16 %v141
  %v648 = vunpack.c.h.b16 %v141
  %v649 = vunpack.c.l.b16 %v142
  %v650 = vunpack.c.h.b16 %v142
  %v651 = vunpack.c.l.b16 %v143
  %v652 = vunpack.c.h.b16 %v143
  %v653 = vunpack.c.l.b16 %v144
  %v654 = vunpack.c.h.b16 %v144
  %v655 = vunpack.c.l.b16 %v145
  %v656 = vunpack.c.h.b16 %v145
  %v657 = vunpack.c.l.b16 %v146
  %v658 = vunpack.c.h.b16 %v146
  %v659 = vunpack.c.l.b16 %v147
  %v660 = vunpack.c.h.b16 %v147
  %v661 = vunpack.c.l.b16 %v148
  %v662 = vunpack.c.h.b16 %v148
  %v663 = vunpack.c.l.b16 %v149
  %v664 = vunpack.c.h.b16 %v149
  %v665 = vunpack.c.l.b16 %v150
  %v666 = vunpack.c.h.b16 %v150
  %v667 = vunpack.c.l.b16 %v151
  %v668 = vunpack.c.h.b16 %v151
  %v669 = vunpack.c.l.b16 %v152
  %v670 = vunpack.c.h.b16 %v152
  %v671 = vunpack.c.l.b16 %v153
  %v672 = vunpack.c.h.b16 %v153
  %v673 = vunpack.c.l.b16 %v154
  %v674 = vunpack.c.h.b16 %v154
  %v675 = vunpack.c.l.b16 %v155
  %v676 = vunpack.c.h.b16 %v155
  %v677 = vunpack.c.l.b16 %v156
  %v678 = vunpack.c.h.b16 %v156
  %v679 = vunpack.c.l.b16 %v157
  %v680 = vunpack.c.h.b16 %v157
  %v681 = vunpack.c.l.b16 %v158
  %v682 = vunpack.c.h.b16 %v158
  %v683 = vunpack.c.l.b16 %v159
  %v684 = vunpack.c.h.b16 %v159
  %v685 = vunpack.c.l.b16 %v160
  %v686 = vunpack.c.h.b16 %v160
  %v687 = vunpack.c.l.b16 %v161
  %v688 = vunpack.c.h.b16 %v161
  %v689 = vunpack.c.l.b16 %v162
  %v690 = vunpack.c.h.b16 %v162
  %v691 = vunpack.c.l.b16 %v163
  %v692 = vunpack.c.h.b16 %v163
  %v693 = vunpack.c.l.b16 %v164
  %v694 = vunpack.c.h.b16 %v164
  %v695 = vunpack.c.l.b16 %v165
  %v696 = vunpack.c.h.b16 %v165
  %v697 = vunpack.c.l.b16 %v166
  %v698 = vunpack.c.h.b16 %v166
  %v699 = vunpack.c.l.b16 %v167
  %v700 = vunpack.c.h.b16 %v167
  %v701 = vunpack.c.l.b16 %v168
  %v702 = vunpack.c.h.b16 %v168
  %v703 = vunpack.c.l.b16 %v169
  %v704 = vunpack.c.h.b16 %v169
  %v705 = vunpack.c.l.b16 %v170
  %v706 = vunpack.c.h.b16 %v170
  %v707 = vunpack.c.l.b16 %v171
  %v708 = vunpack.c.h.b16 %v171
  %v709 = vunpack.c.l.b16 %v172
  %v710 = vunpack.c.h.b16 %v172
  %v711 = vunpack.c.l.b16 %v173
  %v712 = vunpack.c.h.b16 %v173
  %v713 = vunpack.c.l.b16 %v174
  %v714 = vunpack.c.h.b16 %v174
  %v715 = vunpack.c.l.b16 %v175
  %v716 = vunpack.c.h.b16 %v175
  %v717 = vunpack.c.l.b16 %v176
  %v718 = vunpack.c.h.b16 %v176
  %v719 = vunpack.c.l.b16 %v177
  %v720 = vunpack.c.h.b16 %v177
  %v721 = vunpack.c.l.b16 %v178
  %v722 = vunpack.c.h.b16 %v178
  %v723 = vunpack.c.l.b16 %v179
  %v724 = vunpack.c.h.b16 %v179
  %v725 = vunpack.c.l.b16 %v180
  %v726 = vunpack.c.h.b16 %v180
  %v727 = vunpack.c.l.b16 %v181
  %v728 = vunpack.c.h.b16 %v181
  %v729 = vunpack.c.l.b16 %v182
  %v730 = vunpack.c.h.b16 %v182
  %v731 = vunpack.c.l.b16 %v183
  %v732 = vunpack.c.h.b16 %v183
  %v733 = vunpack.c.l.b16 %v184
  %v734 = vunpack.c.h.b16 %v184
  %v735 = vunpack.c.l.b16 %v185
  %v736 = vunpack.c.h.b16 %v185
  %v737 = vunpack.c.l.b16 %v186
  %v738 = vunpack.c.h.b16 %v186
  %v739 = vunpack.c.l.b16 %v187
  %v740 = vunpack.c.h.b16 %v187
  %v741 = vunpack.c.l.b16 %v188
  %v742 = vunpack.c.h.b16 %v188
  %v743 = vunpack.c.l.b16 %v189
  %v744 = vunpack.c.h.b16 %v189
  %v745 = vunpack.c.l.b16 %v190
  %v746 = vunpack.c.h.b16 %v190
  %v747 = vunpack.c.l.b16 %v191
  %v748 = vunpack.c.h.b16 %v191
  %v749 = vunpack.c.l.b16 %v192
  %v750 = vunpack.c.h.b16 %v192
  %v751 = vunpack.c.l.b16 %v193
  %v752 = vunpack.c.h.b16 %v193
  %v753 = vunpack.c.l.b16 %v194
  %v754 = vunpack.c.h.b16 %v194
  %v755 = vunpack.c.l.b16 %v195
  %v756 = vunpack.c.h.b16 %v195
  %v757 = vunpack.c.l.b16 %v196
  %v758 = vunpack.c.h.b16 %v196
  %v759 = vunpack.c.l.b16 %v197
  %v760 = vunpack.c.h.b16 %v197
  %v761 = vunpack.c.l.b16 %v198
  %v762 = vunpack.c.h.b16 %v198
  %v763 = vunpack.c.l.b16 %v199
  %v764 = vunpack.c.h.b16 %v199
  %v765 = vunpack.c.l.b16 %v200
  %v766 = vunpack.c.h.b16 %v200
  %v767 = vunpack.c.l.b16 %v201
  %v768 = vunpack.c.h.b16 %v201
  %v769 = vunpack.c.l.b16 %v202
  %v770 = vunpack.c.h.b16 %v202
  %v771 = vunpack.c.l.b16 %v203
  %v772 = vunpack.c.h.b16 %v203
  %v773 = vunpack.c.l.b16 %v204
  %v774 = vunpack.c.h.b16 %v204
  %v775 = vunpack.c.l.b16 %v205
  %v776 = vunpack.c.h.b16 %v205
  %v777 = vunpack.c.l.b16 %v206
  %v778 = vunpack.c.h.b16 %v206
  %v779 = vunpack.c.l.b16 %v207
  %v780 = vunpack.c.h.b16 %v207
  %v781 = vunpack.c.l.b16 %v208
  %v782 = vunpack.c.h.b16 %v208
  %v783 = vunpack.c.l.b16 %v209
  %v784 = vunpack.c.h.b16 %v209
  %v785 = vunpack.c.l.b16 %v210
  %v786 = vunpack.c.h.b16 %v210
  %v787 = vpack.c.b16 %v467, %v403
  %v788 = vpack.c.b16 %v468, %v404
  %v789 = vpack.c.b16 %v469, %v405
  %v790 = vpack.c.b16 %v470, %v406
  %v791 = vpack.c.b16 %v471, %v407
  %v792 = vpack.c.b16 %v472, %v408
  %v793 = vpack.c.b16 %v473, %v409
  %v794 = vpack.c.b16 %v474, %v410
  %v795 = vpack.c.b16 %v475, %v411
  %v796 = vpack.c.b16 %v476, %v412
  %v797 = vpack.c.b16 %v477, %v413
  %v798 = vpack.c.b16 %v478, %v414
  %v799 = vpack.c.b16 %v479, %v415
  %v800 = vpack.c.b16 %v480, %v416
  %v801 = vpack.c.b16 %v481, %v417
  %v802 = vpack.c.b16 %v482, %v418
  %v803 = vpack.c.b16 %v483, %v419
  %v804 = vpack.c.b16 %v484, %v420
  %v805 = vpack.c.b16 %v485, %v421
  %v806 = vpack.c.b16 %v486, %v422
  %v807 = vpack.c.b16 %v487, %v423
  %v808 = vpack.c.b16 %v488, %v424
  %v809 = vpack.c.b16 %v489, %v425
  %v810 = vpack.c.b16 %v490, %v426
  %v811 = vpack.c.b16 %v491, %v427
  %v812 = vpack.c.b16 %v492, %v428
  %v813 = vpack.c.b16 %v493, %v429
  %v814 = vpack.c.b16 %v494, %v430
  %v815 = vpack.c.b16 %v495, %v431
  %v816 = vpack.c.b16 %v496, %v432
  %v817 = vpack.c.b16 %v497, %v433
  %v818 = vpack.c.b16 %v498, %v434
  %v819 = vpack.c.b16 %v499, %v435
  %v820 = vpack.c.b16 %v500, %v436
  %v821 = vpack.c.b16 %v501, %v437
  %v822 = vpack.c.b16 %v502, %v438
  %v823 = vpack.c.b16 %v503, %v439
  %v824 = vpack.c.b16 %v504, %v440
  %v825 = vpack.c.b16 %v505, %v441
  %v826 = vpack.c.b16 %v506, %v442
  %v827 = vpack.c.b16 %v507, %v443
  %v828 = vpack.c.b16 %v508, %v444
  %v829 = vpack.c.b16 %v509, %v445
  %v830 = vpack.c.b16 %v510, %v446
  %v831 = vpack.c.b16 %v511, %v447
  %v832 = vpack.c.b16 %v512, %v448
  %v833 = vpack.c.b16 %v513, %v449
  %v834 = vpack.c.b16 %v514, %v450
  %v835 = vpack.c.b16 %v515, %v451
  %v836 = vpack.c.b16 %v516, %v452
  %v837 = vpack.c.b16 %v517, %v453
  %v838 = vpack.c.b16 %v518, %v454
  %v839 = vpack.c.b16 %v519, %v455
  %v840 = vpack.c.b16 %v520, %v456
  %v841 = vpack.c.b16 %v521, %v457
  %v842 = vpack.c.b16 %v522, %v458
  %v843 = vpack.c.b16 %v523, %v459
  %v844 = vpack.c.b16 %v524, %v460
  %v845 = vpack.c.b16 %v525, %v461
  %v846 = vpack.c.b16 %v526, %v462
  %v847 = vpack.c.b16 %v527, %v463
  %v848 = vpack.c.b16 %v528, %v464
  %v849 = vpack.c.b16 %v529, %v465
  %v850 = vpack.c.b16 %v530, %v466
  %v851 = vpack.c.b16 %v595, %v531
  %v852 = vpack.c.b16 %v596, %v532
  %v853 = vpack.c.b16 %v597, %v533
  %v854 = vpack.c.b16 %v598, %v534
  %v855 = vpack.c.b16 %v599, %v535
  %v856 = vpack.c.b16 %v600, %v536
  %v857 = vpack.c.b16 %v601, %v537
  %v858 = vpack.c.b16 %v602, %v538
  %v859 = vpack.c.b16 %v603, %v539
  %v860 = vpack.c.b16 %v604, %v540
  %v861 = vpack.c.b16 %v605, %v541
  %v862 = vpack.c.b16 %v606, %v542
  %v863 = vpack.c.b16 %v607, %v543
  %v864 = vpack.c.b16 %v608, %v544
  %v865 = vpack.c.b16 %v609, %v545
  %v866 = vpack.c.b16 %v610, %v546
  %v867 = vpack.c.b16 %v611, %v547
  %v868 = vpack.c.b16 %v612, %v548
  %v869 = vpack.c.b16 %v613, %v549
  %v870 = vpack.c.b16 %v614, %v550
  %v871 = vpack.c.b16 %v615, %v551
  %v872 = vpack.c.b16 %v616, %v552
  %v873 = vpack.c.b16 %v617, %v553
  %v874 = vpack.c.b16 %v618, %v554
  %v875 = vpack.c.b16 %v619, %v555
  %v876 = vpack.c.b16 %v620, %v556
  %v877 = vpack.c.b16 %v621, %v557
  %v878 = vpack.c.b16 %v622, %v558
  %v879 = vpack.c.b16 %v623, %v559
  %v880 = vpack.c.b16 %v624, %v560
  %v881 = vpack.c.b16 %v625, %v561
  %v882 = vpack.c.b16 %v626, %v562
  %v883 = vpack.c.b16 %v627, %v563
  %v884 = vpack.c.b16 %v628, %v564
  %v885 = vpack.c.b16 %v629, %v565
  %v886 = vpack.c.b16 %v630, %v566
  %v887 = vpack.c.b16 %v631, %v567
  %v888 = vpack.c.b16 %v632, %v568
  %v889 = vpack.c.b16 %v633, %v569
  %v890 = vpack.c.b16 %v634, %v570
  %v891 = vpack.c.b16 %v635, %v571
  %v892 = vpack.c.b16 %v636, %v572
  %v893 = vpack.c.b16 %v637, %v573
  %v894 = vpack.c.b16 %v638, %v574
  %v895 = vpack.c.b16 %v639, %v575
  %v896 = vpack.c.b16 %v640, %v576
  %v897 = vpack.c.b16 %v641, %v577
  %v898 = vpack.c.b16 %v642, %v578
  %v899 = vpack.c.b16 %v643, %v579
  %v900 = vpack.c.b16 %v644, %v580
  %v901 = vpack.c.b16 %v645, %v581
  %v902 = vpack.c.b16 %v646, %v582
  %v903 = vpack.c.b16 %v647, %v583
  %v904 = vpack.c.b16 %v648, %v584
  %v905 = vpack.c.b16 %v649, %v585
  %v906 = vpack.c.b16 %v650, %v586
  %v907 = vpack.c.b16 %v651, %v587
  %v908 = vpack.c.b16 %v652, %v588
  %v909 = vpack.c.b16 %v653, %v589
  %v910 = vpack.c.b16 %v654, %v590
  %v911 = vpack.c.b16 %v655, %v591
  %v912 = vpack.c.b16 %v656, %v592
  %v913 = vpack.c.b16 %v657, %v593
  %v914 = vpack.c.b16 %v658, %v594
  %v915 = vpack.c.b16 %v723, %v659
  %v916 = vpack.c.b16 %v724, %v660
  %v917 = vpack.c.b16 %v725, %v661
  %v918 = vpack.c.b16 %v726, %v662
  %v919 = vpack.c.b16 %v727, %v663
  %v920 = vpack.c.b16 %v728, %v664
  %v921 = vpack.c.b16 %v729, %v665
  %v922 = vpack.c.b16 %v730, %v666
  %v923 = vpack.c.b16 %v731, %v667
  %v924 = vpack.c.b16 %v732, %v668
  %v925 = vpack.c.b16 %v733, %v669
  %v926 = vpack.c.b16 %v734, %v670
  %v927 = vpack.c.b16 %v735, %v671
  %v928 = vpack.c.b16 %v736, %v672
  %v929 = vpack.c.b16 %v737, %v673
  %v930 = vpack.c.b16 %v738, %v674
  %v931 = vpack.c.b16 %v739, %v675
  %v932 = vpack.c.b16 %v740, %v676
  %v933 = vpack.c.b16 %v741, %v677
  %v934 = vpack.c.b16 %v742, %v678
  %v935 = vpack.c.b16 %v743, %v679
  %v936 = vpack.c.b16 %v744, %v680
  %v937 = vpack.c.b16 %v745, %v681
  %v938 = vpack.c.b16 %v746, %v682
  %v939 = vpack.c.b16 %v747, %v683
  %v940 = vpack.c.b16 %v748, %v684
  %v941 = vpack.c.b16 %v749, %v685
  %v942 = vpack.c.b16 %v750, %v686
  %v943 = vpack.c.b16 %v751, %v687
  %v944 = vpack.c.b16 %v752, %v688
  %v945 = vpack.c.b16 %v753, %v689
  %v946 = vpack.c.b16 %v754, %v690
  %v947 = vpack.c.b16 %v755, %v691
  %v948 = vpack.c.b16 %v756, %v692
  %v949 = vpack.c.b16 %v757, %v693
  %v950 = vpack.c.b16 %v758, %v694
  %v951 = vpack.c.b16 %v759, %v695
  %v952 = vpack.c.b16 %v760, %v696
  %v953 = vpack.c.b16 %v761, %v697
  %v954 = vpack.c.b16 %v762, %v698
  %v955 = vpack.c.b16 %v763, %v699
  %v956 = vpack.c.b16 %v764, %v700
  %v957 = vpack.c.b16 %v765, %v701
  %v958 = vpack.c.b16 %v766, %v702
  %v959 = vpack.c.b16 %v767, %v703
  %v960 = vpack.c.b16 %v768, %v704
  %v961 = vpack.c.b16 %v769, %v705
  %v962 = vpack.c.b16 %v770, %v706
  %v963 = vpack.c.b16 %v771, %v707
  %v964 = vpack.c.b16 %v772, %v708
  %v965 = vpack.c.b16 %v773, %v709
  %v966 = vpack.c.b16 %v774, %v710
  %v967 = vpack.c.b16 %v775, %v711
  %v968 = vpack.c.b16 %v776, %v712
  %v969 = vpack.c.b16 %v777, %v713
  %v970 = vpack.c.b16 %v778, %v714
  %v971 = vpack.c.b16 %v779, %v715
  %v972 = vpack.c.b16 %v780, %v716
  %v973 = vpack.c.b16 %v781, %v717
  %v974 = vpack.c.b16 %v782, %v718
  %v975 = vpack.c.b16 %v783, %v719
  %v976 = vpack.c.b16 %v784, %v720
  %v977 = vpack.c.b16 %v785, %v721
  %v978 = vpack.c.b16 %v786, %v722
  %vm1171 = vcmask 392192
  %v1173 = vsel %vm1171, %v18, 0
  %1175 = vmatprep.subr.bf16.mxu0 0
  %1176 = vmatpush1.bf16.msra.mxu0 0
  %1177 = vmatprep.subr.bf16.mxu0 0
  %1178 = vmatpush1.bf16.msra.mxu0 0
  %1179 = vmatprep.subr.bf16.mxu0 0
  %1180 = vmatpush1.bf16.msra.mxu0 0
  %1181 = vmatprep.subr.bf16.mxu0 0
  %1182 = vmatpush1.bf16.msra.mxu0 0
  %1183 = vmatprep.subr.bf16.mxu0 0
  %1184 = vmatpush1.bf16.msra.mxu0 0
  %1185 = vmatprep.subr.bf16.mxu0 %v916
  %1186 = vmatpush1.bf16.msra.mxu0 %v915
  %1187 = vmatprep.subr.bf16.mxu0 %v852
  %1188 = vmatpush1.bf16.msra.mxu0 %v851
  %1189 = vmatprep.subr.bf16.mxu0 %v788
  %1190 = vmatpush1.bf16.msra.mxu0 %v787
  %1191 = vmatprep.subr.bf16.mxu0 0
  %1192 = vmatpush2.bf16.msra.mxu0 0
  %1193 = vmatprep.subr.bf16.mxu0 0
  %1194 = vmatpush2.bf16.msra.mxu0 0
  %1195 = vmatprep.subr.bf16.mxu0 0
  %1196 = vmatpush2.bf16.msra.mxu0 0
  %1197 = vmatprep.subr.bf16.mxu0 0
  %1198 = vmatpush2.bf16.msra.mxu0 0
  %1199 = vmatprep.subr.bf16.mxu0 0
  %1200 = vmatpush2.bf16.msra.mxu0 0
  %1201 = vmatprep.subr.bf16.mxu0 0
  %1202 = vmatpush2.bf16.msra.mxu0 0
  %1203 = vmatprep.subr.bf16.mxu0 0
  %1204 = vmatpush2.bf16.msra.mxu0 0
  %1205 = vmatprep.subr.bf16.mxu0 0
  %1206 = vmatpush2.bf16.msra.mxu0 0
  %1207 = vmatprep.mubr.bf16.mxu0 0
  %1208 = vmatmul.mubr.bf16.gmra.mxu0 %v1173
  %v1209 = vpop.f32.mrf.mxu0
  %v1210 = vadd.f32 0.0, %v1209
  %v1211 = vpop.f32.mrf.mxu0
  %v1212 = vadd.f32 0.0, %v1211
  %v1213 = vpop.f32.mrf.mxu0
  %v1214 = vpop.f32.mrf.mxu0
  %1215 = vdwg.mxu0
  %1216 = vmatprep.subr.bf16.mxu0 0
  %1217 = vmatpush1.bf16.msra.mxu0 0
  %1218 = vmatprep.subr.bf16.mxu0 0
  %1219 = vmatpush1.bf16.msra.mxu0 0
  %1220 = vmatprep.subr.bf16.mxu0 0
  %1221 = vmatpush1.bf16.msra.mxu0 0
  %1222 = vmatprep.subr.bf16.mxu0 0
  %1223 = vmatpush1.bf16.msra.mxu0 0
  %1224 = vmatprep.subr.bf16.mxu0 0
  %1225 = vmatpush1.bf16.msra.mxu0 0
  %1226 = vmatprep.subr.bf16.mxu0 %v918
  %1227 = vmatpush1.bf16.msra.mxu0 %v917
  %1228 = vmatprep.subr.bf16.mxu0 %v854
  %1229 = vmatpush1.bf16.msra.mxu0 %v853
  %1230 = vmatprep.subr.bf16.mxu0 %v790
  %1231 = vmatpush1.bf16.msra.mxu0 %v789
  %1232 = vmatprep.subr.bf16.mxu0 0
  %1233 = vmatpush2.bf16.msra.mxu0 0
  %1234 = vmatprep.subr.bf16.mxu0 0
  %1235 = vmatpush2.bf16.msra.mxu0 0
  %1236 = vmatprep.subr.bf16.mxu0 0
  %1237 = vmatpush2.bf16.msra.mxu0 0
  %1238 = vmatprep.subr.bf16.mxu0 0
  %1239 = vmatpush2.bf16.msra.mxu0 0
  %1240 = vmatprep.subr.bf16.mxu0 0
  %1241 = vmatpush2.bf16.msra.mxu0 0
  %1242 = vmatprep.subr.bf16.mxu0 0
  %1243 = vmatpush2.bf16.msra.mxu0 0
  %1244 = vmatprep.subr.bf16.mxu0 0
  %1245 = vmatpush2.bf16.msra.mxu0 0
  %1246 = vmatprep.subr.bf16.mxu0 0
  %1247 = vmatpush2.bf16.msra.mxu0 0
  %1248 = vmatprep.mubr.bf16.mxu0 0
  %1249 = vmatmul.mubr.bf16.gmra.mxu0 %v1173
  %v1250 = vpop.f32.mrf.mxu0
  %v1251 = vadd.f32 0.0, %v1250
  %v1252 = vpop.f32.mrf.mxu0
  %v1253 = vadd.f32 0.0, %v1252
  %v1254 = vpop.f32.mrf.mxu0
  %v1255 = vpop.f32.mrf.mxu0
  %1256 = vdwg.mxu0
  %1257 = vmatprep.subr.bf16.mxu0 0
  %1258 = vmatpush1.bf16.msra.mxu0 0
  %1259 = vmatprep.subr.bf16.mxu0 0
  %1260 = vmatpush1.bf16.msra.mxu0 0
  %1261 = vmatprep.subr.bf16.mxu0 0
  %1262 = vmatpush1.bf16.msra.mxu0 0
  %1263 = vmatprep.subr.bf16.mxu0 0
  %1264 = vmatpush1.bf16.msra.mxu0 0
  %1265 = vmatprep.subr.bf16.mxu0 0
  %1266 = vmatpush1.bf16.msra.mxu0 0
  %1267 = vmatprep.subr.bf16.mxu0 %v920
  %1268 = vmatpush1.bf16.msra.mxu0 %v919
  %1269 = vmatprep.subr.bf16.mxu0 %v856
  %1270 = vmatpush1.bf16.msra.mxu0 %v855
  %1271 = vmatprep.subr.bf16.mxu0 %v792
  %1272 = vmatpush1.bf16.msra.mxu0 %v791
  %1273 = vmatprep.subr.bf16.mxu0 0
  %1274 = vmatpush2.bf16.msra.mxu0 0
  %1275 = vmatprep.subr.bf16.mxu0 0
  %1276 = vmatpush2.bf16.msra.mxu0 0
  %1277 = vmatprep.subr.bf16.mxu0 0
  %1278 = vmatpush2.bf16.msra.mxu0 0
  %1279 = vmatprep.subr.bf16.mxu0 0
  %1280 = vmatpush2.bf16.msra.mxu0 0
  %1281 = vmatprep.subr.bf16.mxu0 0
  %1282 = vmatpush2.bf16.msra.mxu0 0
  %1283 = vmatprep.subr.bf16.mxu0 0
  %1284 = vmatpush2.bf16.msra.mxu0 0
  %1285 = vmatprep.subr.bf16.mxu0 0
  %1286 = vmatpush2.bf16.msra.mxu0 0
  %1287 = vmatprep.subr.bf16.mxu0 0
  %1288 = vmatpush2.bf16.msra.mxu0 0
  %1289 = vmatprep.mubr.bf16.mxu0 0
  %1290 = vmatmul.mubr.bf16.gmra.mxu0 %v1173
  %v1291 = vpop.f32.mrf.mxu0
  %v1292 = vadd.f32 0.0, %v1291
  %v1293 = vpop.f32.mrf.mxu0
  %v1294 = vadd.f32 0.0, %v1293
  %v1295 = vpop.f32.mrf.mxu0
  %v1296 = vpop.f32.mrf.mxu0
  %1297 = vdwg.mxu0
  %1298 = vmatprep.subr.bf16.mxu0 0
  %1299 = vmatpush1.bf16.msra.mxu0 0
  %1300 = vmatprep.subr.bf16.mxu0 0
  %1301 = vmatpush1.bf16.msra.mxu0 0
  %1302 = vmatprep.subr.bf16.mxu0 0
  %1303 = vmatpush1.bf16.msra.mxu0 0
  %1304 = vmatprep.subr.bf16.mxu0 0
  %1305 = vmatpush1.bf16.msra.mxu0 0
  %1306 = vmatprep.subr.bf16.mxu0 0
  %1307 = vmatpush1.bf16.msra.mxu0 0
  %1308 = vmatprep.subr.bf16.mxu0 %v922
  %1309 = vmatpush1.bf16.msra.mxu0 %v921
  %1310 = vmatprep.subr.bf16.mxu0 %v858
  %1311 = vmatpush1.bf16.msra.mxu0 %v857
  %1312 = vmatprep.subr.bf16.mxu0 %v794
  %1313 = vmatpush1.bf16.msra.mxu0 %v793
  %1314 = vmatprep.subr.bf16.mxu0 0
  %1315 = vmatpush2.bf16.msra.mxu0 0
  %1316 = vmatprep.subr.bf16.mxu0 0
  %1317 = vmatpush2.bf16.msra.mxu0 0
  %1318 = vmatprep.subr.bf16.mxu0 0
  %1319 = vmatpush2.bf16.msra.mxu0 0
  %1320 = vmatprep.subr.bf16.mxu0 0
  %1321 = vmatpush2.bf16.msra.mxu0 0
  %1322 = vmatprep.subr.bf16.mxu0 0
  %1323 = vmatpush2.bf16.msra.mxu0 0
  %1324 = vmatprep.subr.bf16.mxu0 0
  %1325 = vmatpush2.bf16.msra.mxu0 0
  %1326 = vmatprep.subr.bf16.mxu0 0
  %1327 = vmatpush2.bf16.msra.mxu0 0
  %1328 = vmatprep.subr.bf16.mxu0 0
  %1329 = vmatpush2.bf16.msra.mxu0 0
  %1330 = vmatprep.mubr.bf16.mxu0 0
  %1331 = vmatmul.mubr.bf16.gmra.mxu0 %v1173
  %v1332 = vpop.f32.mrf.mxu0
  %v1333 = vadd.f32 0.0, %v1332
  %v1334 = vpop.f32.mrf.mxu0
  %v1335 = vadd.f32 0.0, %v1334
  %v1336 = vpop.f32.mrf.mxu0
  %v1337 = vpop.f32.mrf.mxu0
  %1338 = vdwg.mxu0
  %1339 = vmatprep.subr.bf16.mxu0 0
  %1340 = vmatpush1.bf16.msra.mxu0 0
  %1341 = vmatprep.subr.bf16.mxu0 0
  %1342 = vmatpush1.bf16.msra.mxu0 0
  %1343 = vmatprep.subr.bf16.mxu0 0
  %1344 = vmatpush1.bf16.msra.mxu0 0
  %1345 = vmatprep.subr.bf16.mxu0 0
  %1346 = vmatpush1.bf16.msra.mxu0 0
  %1347 = vmatprep.subr.bf16.mxu0 0
  %1348 = vmatpush1.bf16.msra.mxu0 0
  %1349 = vmatprep.subr.bf16.mxu0 %v924
  %1350 = vmatpush1.bf16.msra.mxu0 %v923
  %1351 = vmatprep.subr.bf16.mxu0 %v860
  %1352 = vmatpush1.bf16.msra.mxu0 %v859
  %1353 = vmatprep.subr.bf16.mxu0 %v796
  %1354 = vmatpush1.bf16.msra.mxu0 %v795
  %1355 = vmatprep.subr.bf16.mxu0 0
  %1356 = vmatpush2.bf16.msra.mxu0 0
  %1357 = vmatprep.subr.bf16.mxu0 0
  %1358 = vmatpush2.bf16.msra.mxu0 0
  %1359 = vmatprep.subr.bf16.mxu0 0
  %1360 = vmatpush2.bf16.msra.mxu0 0
  %1361 = vmatprep.subr.bf16.mxu0 0
  %1362 = vmatpush2.bf16.msra.mxu0 0
  %1363 = vmatprep.subr.bf16.mxu0 0
  %1364 = vmatpush2.bf16.msra.mxu0 0
  %1365 = vmatprep.subr.bf16.mxu0 0
  %1366 = vmatpush2.bf16.msra.mxu0 0
  %1367 = vmatprep.subr.bf16.mxu0 0
  %1368 = vmatpush2.bf16.msra.mxu0 0
  %1369 = vmatprep.subr.bf16.mxu0 0
  %1370 = vmatpush2.bf16.msra.mxu0 0
  %1371 = vmatprep.mubr.bf16.mxu0 0
  %1372 = vmatmul.mubr.bf16.gmra.mxu0 %v1173
  %v1373 = vpop.f32.mrf.mxu0
  %v1374 = vadd.f32 0.0, %v1373
  %v1375 = vpop.f32.mrf.mxu0
  %v1376 = vadd.f32 0.0, %v1375
  %v1377 = vpop.f32.mrf.mxu0
  %v1378 = vpop.f32.mrf.mxu0
  %1379 = vdwg.mxu0
  %1380 = vmatprep.subr.bf16.mxu0 0
  %1381 = vmatpush1.bf16.msra.mxu0 0
  %1382 = vmatprep.subr.bf16.mxu0 0
  %1383 = vmatpush1.bf16.msra.mxu0 0
  %1384 = vmatprep.subr.bf16.mxu0 0
  %1385 = vmatpush1.bf16.msra.mxu0 0
  %1386 = vmatprep.subr.bf16.mxu0 0
  %1387 = vmatpush1.bf16.msra.mxu0 0
  %1388 = vmatprep.subr.bf16.mxu0 0
  %1389 = vmatpush1.bf16.msra.mxu0 0
  %1390 = vmatprep.subr.bf16.mxu0 %v926
  %1391 = vmatpush1.bf16.msra.mxu0 %v925
  %1392 = vmatprep.subr.bf16.mxu0 %v862
  %1393 = vmatpush1.bf16.msra.mxu0 %v861
  %1394 = vmatprep.subr.bf16.mxu0 %v798
  %1395 = vmatpush1.bf16.msra.mxu0 %v797
  %1396 = vmatprep.subr.bf16.mxu0 0
  %1397 = vmatpush2.bf16.msra.mxu0 0
  %1398 = vmatprep.subr.bf16.mxu0 0
  %1399 = vmatpush2.bf16.msra.mxu0 0
  %1400 = vmatprep.subr.bf16.mxu0 0
  %1401 = vmatpush2.bf16.msra.mxu0 0
  %1402 = vmatprep.subr.bf16.mxu0 0
  %1403 = vmatpush2.bf16.msra.mxu0 0
  %1404 = vmatprep.subr.bf16.mxu0 0
  %1405 = vmatpush2.bf16.msra.mxu0 0
  %1406 = vmatprep.subr.bf16.mxu0 0
  %1407 = vmatpush2.bf16.msra.mxu0 0
  %1408 = vmatprep.subr.bf16.mxu0 0
  %1409 = vmatpush2.bf16.msra.mxu0 0
  %1410 = vmatprep.subr.bf16.mxu0 0
  %1411 = vmatpush2.bf16.msra.mxu0 0
  %1412 = vmatprep.mubr.bf16.mxu0 0
  %1413 = vmatmul.mubr.bf16.gmra.mxu0 %v1173
  %v1414 = vpop.f32.mrf.mxu0
  %v1415 = vadd.f32 0.0, %v1414
  %v1416 = vpop.f32.mrf.mxu0
  %v1417 = vadd.f32 0.0, %v1416
  %v1418 = vpop.f32.mrf.mxu0
  %v1419 = vpop.f32.mrf.mxu0
  %1420 = vdwg.mxu0
  %1421 = vmatprep.subr.bf16.mxu0 0
  %1422 = vmatpush1.bf16.msra.mxu0 0
  %1423 = vmatprep.subr.bf16.mxu0 0
  %1424 = vmatpush1.bf16.msra.mxu0 0
  %1425 = vmatprep.subr.bf16.mxu0 0
  %1426 = vmatpush1.bf16.msra.mxu0 0
  %1427 = vmatprep.subr.bf16.mxu0 0
  %1428 = vmatpush1.bf16.msra.mxu0 0
  %1429 = vmatprep.subr.bf16.mxu0 0
  %1430 = vmatpush1.bf16.msra.mxu0 0
  %1431 = vmatprep.subr.bf16.mxu0 %v928
  %1432 = vmatpush1.bf16.msra.mxu0 %v927
  %1433 = vmatprep.subr.bf16.mxu0 %v864
  %1434 = vmatpush1.bf16.msra.mxu0 %v863
  %1435 = vmatprep.subr.bf16.mxu0 %v800
  %1436 = vmatpush1.bf16.msra.mxu0 %v799
  %1437 = vmatprep.subr.bf16.mxu0 0
  %1438 = vmatpush2.bf16.msra.mxu0 0
  %1439 = vmatprep.subr.bf16.mxu0 0
  %1440 = vmatpush2.bf16.msra.mxu0 0
  %1441 = vmatprep.subr.bf16.mxu0 0
  %1442 = vmatpush2.bf16.msra.mxu0 0
  %1443 = vmatprep.subr.bf16.mxu0 0
  %1444 = vmatpush2.bf16.msra.mxu0 0
  %1445 = vmatprep.subr.bf16.mxu0 0
  %1446 = vmatpush2.bf16.msra.mxu0 0
  %1447 = vmatprep.subr.bf16.mxu0 0
  %1448 = vmatpush2.bf16.msra.mxu0 0
  %1449 = vmatprep.subr.bf16.mxu0 0
  %1450 = vmatpush2.bf16.msra.mxu0 0
  %1451 = vmatprep.subr.bf16.mxu0 0
  %1452 = vmatpush2.bf16.msra.mxu0 0
  %1453 = vmatprep.mubr.bf16.mxu0 0
  %1454 = vmatmul.mubr.bf16.gmra.mxu0 %v1173
  %v1455 = vpop.f32.mrf.mxu0
  %v1456 = vadd.f32 0.0, %v1455
  %v1457 = vpop.f32.mrf.mxu0
  %v1458 = vadd.f32 0.0, %v1457
  %v1459 = vpop.f32.mrf.mxu0
  %v1460 = vpop.f32.mrf.mxu0
  %1461 = vdwg.mxu0
  %1462 = vmatprep.subr.bf16.mxu0 0
  %1463 = vmatpush1.bf16.msra.mxu0 0
  %1464 = vmatprep.subr.bf16.mxu0 0
  %1465 = vmatpush1.bf16.msra.mxu0 0
  %1466 = vmatprep.subr.bf16.mxu0 0
  %1467 = vmatpush1.bf16.msra.mxu0 0
  %1468 = vmatprep.subr.bf16.mxu0 0
  %1469 = vmatpush1.bf16.msra.mxu0 0
  %1470 = vmatprep.subr.bf16.mxu0 0
  %1471 = vmatpush1.bf16.msra.mxu0 0
  %1472 = vmatprep.subr.bf16.mxu0 %v930
  %1473 = vmatpush1.bf16.msra.mxu0 %v929
  %1474 = vmatprep.subr.bf16.mxu0 %v866
  %1475 = vmatpush1.bf16.msra.mxu0 %v865
  %1476 = vmatprep.subr.bf16.mxu0 %v802
  %1477 = vmatpush1.bf16.msra.mxu0 %v801
  %1478 = vmatprep.subr.bf16.mxu0 0
  %1479 = vmatpush2.bf16.msra.mxu0 0
  %1480 = vmatprep.subr.bf16.mxu0 0
  %1481 = vmatpush2.bf16.msra.mxu0 0
  %1482 = vmatprep.subr.bf16.mxu0 0
  %1483 = vmatpush2.bf16.msra.mxu0 0
  %1484 = vmatprep.subr.bf16.mxu0 0
  %1485 = vmatpush2.bf16.msra.mxu0 0
  %1486 = vmatprep.subr.bf16.mxu0 0
  %1487 = vmatpush2.bf16.msra.mxu0 0
  %1488 = vmatprep.subr.bf16.mxu0 0
  %1489 = vmatpush2.bf16.msra.mxu0 0
  %1490 = vmatprep.subr.bf16.mxu0 0
  %1491 = vmatpush2.bf16.msra.mxu0 0
  %1492 = vmatprep.subr.bf16.mxu0 0
  %1493 = vmatpush2.bf16.msra.mxu0 0
  %1494 = vmatprep.mubr.bf16.mxu0 0
  %1495 = vmatmul.mubr.bf16.gmra.mxu0 %v1173
  %v1496 = vpop.f32.mrf.mxu0
  %v1497 = vadd.f32 0.0, %v1496
  %v1498 = vpop.f32.mrf.mxu0
  %v1499 = vadd.f32 0.0, %v1498
  %v1500 = vpop.f32.mrf.mxu0
  %v1501 = vpop.f32.mrf.mxu0
  %1502 = vdwg.mxu0
  %1503 = vmatprep.subr.bf16.mxu0 0
  %1504 = vmatpush1.bf16.msra.mxu0 0
  %1505 = vmatprep.subr.bf16.mxu0 0
  %1506 = vmatpush1.bf16.msra.mxu0 0
  %1507 = vmatprep.subr.bf16.mxu0 0
  %1508 = vmatpush1.bf16.msra.mxu0 0
  %1509 = vmatprep.subr.bf16.mxu0 0
  %1510 = vmatpush1.bf16.msra.mxu0 0
  %1511 = vmatprep.subr.bf16.mxu0 0
  %1512 = vmatpush1.bf16.msra.mxu0 0
  %1513 = vmatprep.subr.bf16.mxu0 %v932
  %1514 = vmatpush1.bf16.msra.mxu0 %v931
  %1515 = vmatprep.subr.bf16.mxu0 %v868
  %1516 = vmatpush1.bf16.msra.mxu0 %v867
  %1517 = vmatprep.subr.bf16.mxu0 %v804
  %1518 = vmatpush1.bf16.msra.mxu0 %v803
  %1519 = vmatprep.subr.bf16.mxu0 0
  %1520 = vmatpush2.bf16.msra.mxu0 0
  %1521 = vmatprep.subr.bf16.mxu0 0
  %1522 = vmatpush2.bf16.msra.mxu0 0
  %1523 = vmatprep.subr.bf16.mxu0 0
  %1524 = vmatpush2.bf16.msra.mxu0 0
  %1525 = vmatprep.subr.bf16.mxu0 0
  %1526 = vmatpush2.bf16.msra.mxu0 0
  %1527 = vmatprep.subr.bf16.mxu0 0
  %1528 = vmatpush2.bf16.msra.mxu0 0
  %1529 = vmatprep.subr.bf16.mxu0 0
  %1530 = vmatpush2.bf16.msra.mxu0 0
  %1531 = vmatprep.subr.bf16.mxu0 0
  %1532 = vmatpush2.bf16.msra.mxu0 0
  %1533 = vmatprep.subr.bf16.mxu0 0
  %1534 = vmatpush2.bf16.msra.mxu0 0
  %1535 = vmatprep.mubr.bf16.mxu0 0
  %1536 = vmatmul.mubr.bf16.gmra.mxu0 %v1173
  %v1537 = vpop.f32.mrf.mxu0
  %v1538 = vadd.f32 0.0, %v1537
  %v1539 = vpop.f32.mrf.mxu0
  %v1540 = vadd.f32 0.0, %v1539
  %v1541 = vpop.f32.mrf.mxu0
  %v1542 = vpop.f32.mrf.mxu0
  %1543 = vdwg.mxu0
  %1544 = vmatprep.subr.bf16.mxu0 0
  %1545 = vmatpush1.bf16.msra.mxu0 0
  %1546 = vmatprep.subr.bf16.mxu0 0
  %1547 = vmatpush1.bf16.msra.mxu0 0
  %1548 = vmatprep.subr.bf16.mxu0 0
  %1549 = vmatpush1.bf16.msra.mxu0 0
  %1550 = vmatprep.subr.bf16.mxu0 0
  %1551 = vmatpush1.bf16.msra.mxu0 0
  %1552 = vmatprep.subr.bf16.mxu0 0
  %1553 = vmatpush1.bf16.msra.mxu0 0
  %1554 = vmatprep.subr.bf16.mxu0 %v934
  %1555 = vmatpush1.bf16.msra.mxu0 %v933
  %1556 = vmatprep.subr.bf16.mxu0 %v870
  %1557 = vmatpush1.bf16.msra.mxu0 %v869
  %1558 = vmatprep.subr.bf16.mxu0 %v806
  %1559 = vmatpush1.bf16.msra.mxu0 %v805
  %1560 = vmatprep.subr.bf16.mxu0 0
  %1561 = vmatpush2.bf16.msra.mxu0 0
  %1562 = vmatprep.subr.bf16.mxu0 0
  %1563 = vmatpush2.bf16.msra.mxu0 0
  %1564 = vmatprep.subr.bf16.mxu0 0
  %1565 = vmatpush2.bf16.msra.mxu0 0
  %1566 = vmatprep.subr.bf16.mxu0 0
  %1567 = vmatpush2.bf16.msra.mxu0 0
  %1568 = vmatprep.subr.bf16.mxu0 0
  %1569 = vmatpush2.bf16.msra.mxu0 0
  %1570 = vmatprep.subr.bf16.mxu0 0
  %1571 = vmatpush2.bf16.msra.mxu0 0
  %1572 = vmatprep.subr.bf16.mxu0 0
  %1573 = vmatpush2.bf16.msra.mxu0 0
  %1574 = vmatprep.subr.bf16.mxu0 0
  %1575 = vmatpush2.bf16.msra.mxu0 0
  %1576 = vmatprep.mubr.bf16.mxu0 0
  %1577 = vmatmul.mubr.bf16.gmra.mxu0 %v1173
  %v1578 = vpop.f32.mrf.mxu0
  %v1579 = vadd.f32 0.0, %v1578
  %v1580 = vpop.f32.mrf.mxu0
  %v1581 = vadd.f32 0.0, %v1580
  %v1582 = vpop.f32.mrf.mxu0
  %v1583 = vpop.f32.mrf.mxu0
  %1584 = vdwg.mxu0
  %1585 = vmatprep.subr.bf16.mxu0 0
  %1586 = vmatpush1.bf16.msra.mxu0 0
  %1587 = vmatprep.subr.bf16.mxu0 0
  %1588 = vmatpush1.bf16.msra.mxu0 0
  %1589 = vmatprep.subr.bf16.mxu0 0
  %1590 = vmatpush1.bf16.msra.mxu0 0
  %1591 = vmatprep.subr.bf16.mxu0 0
  %1592 = vmatpush1.bf16.msra.mxu0 0
  %1593 = vmatprep.subr.bf16.mxu0 0
  %1594 = vmatpush1.bf16.msra.mxu0 0
  %1595 = vmatprep.subr.bf16.mxu0 %v936
  %1596 = vmatpush1.bf16.msra.mxu0 %v935
  %1597 = vmatprep.subr.bf16.mxu0 %v872
  %1598 = vmatpush1.bf16.msra.mxu0 %v871
  %1599 = vmatprep.subr.bf16.mxu0 %v808
  %1600 = vmatpush1.bf16.msra.mxu0 %v807
  %1601 = vmatprep.subr.bf16.mxu0 0
  %1602 = vmatpush2.bf16.msra.mxu0 0
  %1603 = vmatprep.subr.bf16.mxu0 0
  %1604 = vmatpush2.bf16.msra.mxu0 0
  %1605 = vmatprep.subr.bf16.mxu0 0
  %1606 = vmatpush2.bf16.msra.mxu0 0
  %1607 = vmatprep.subr.bf16.mxu0 0
  %1608 = vmatpush2.bf16.msra.mxu0 0
  %1609 = vmatprep.subr.bf16.mxu0 0
  %1610 = vmatpush2.bf16.msra.mxu0 0
  %1611 = vmatprep.subr.bf16.mxu0 0
  %1612 = vmatpush2.bf16.msra.mxu0 0
  %1613 = vmatprep.subr.bf16.mxu0 0
  %1614 = vmatpush2.bf16.msra.mxu0 0
  %1615 = vmatprep.subr.bf16.mxu0 0
  %1616 = vmatpush2.bf16.msra.mxu0 0
  %1617 = vmatprep.mubr.bf16.mxu0 0
  %1618 = vmatmul.mubr.bf16.gmra.mxu0 %v1173
  %v1619 = vpop.f32.mrf.mxu0
  %v1620 = vadd.f32 0.0, %v1619
  %v1621 = vpop.f32.mrf.mxu0
  %v1622 = vadd.f32 0.0, %v1621
  %v1623 = vpop.f32.mrf.mxu0
  %v1624 = vpop.f32.mrf.mxu0
  %1625 = vdwg.mxu0
  %1626 = vmatprep.subr.bf16.mxu0 0
  %1627 = vmatpush1.bf16.msra.mxu0 0
  %1628 = vmatprep.subr.bf16.mxu0 0
  %1629 = vmatpush1.bf16.msra.mxu0 0
  %1630 = vmatprep.subr.bf16.mxu0 0
  %1631 = vmatpush1.bf16.msra.mxu0 0
  %1632 = vmatprep.subr.bf16.mxu0 0
  %1633 = vmatpush1.bf16.msra.mxu0 0
  %1634 = vmatprep.subr.bf16.mxu0 0
  %1635 = vmatpush1.bf16.msra.mxu0 0
  %1636 = vmatprep.subr.bf16.mxu0 %v938
  %1637 = vmatpush1.bf16.msra.mxu0 %v937
  %1638 = vmatprep.subr.bf16.mxu0 %v874
  %1639 = vmatpush1.bf16.msra.mxu0 %v873
  %1640 = vmatprep.subr.bf16.mxu0 %v810
  %1641 = vmatpush1.bf16.msra.mxu0 %v809
  %1642 = vmatprep.subr.bf16.mxu0 0
  %1643 = vmatpush2.bf16.msra.mxu0 0
  %1644 = vmatprep.subr.bf16.mxu0 0
  %1645 = vmatpush2.bf16.msra.mxu0 0
  %1646 = vmatprep.subr.bf16.mxu0 0
  %1647 = vmatpush2.bf16.msra.mxu0 0
  %1648 = vmatprep.subr.bf16.mxu0 0
  %1649 = vmatpush2.bf16.msra.mxu0 0
  %1650 = vmatprep.subr.bf16.mxu0 0
  %1651 = vmatpush2.bf16.msra.mxu0 0
  %1652 = vmatprep.subr.bf16.mxu0 0
  %1653 = vmatpush2.bf16.msra.mxu0 0
  %1654 = vmatprep.subr.bf16.mxu0 0
  %1655 = vmatpush2.bf16.msra.mxu0 0
  %1656 = vmatprep.subr.bf16.mxu0 0
  %1657 = vmatpush2.bf16.msra.mxu0 0
  %1658 = vmatprep.mubr.bf16.mxu0 0
  %1659 = vmatmul.mubr.bf16.gmra.mxu0 %v1173
  %v1660 = vpop.f32.mrf.mxu0
  %v1661 = vadd.f32 0.0, %v1660
  %v1662 = vpop.f32.mrf.mxu0
  %v1663 = vadd.f32 0.0, %v1662
  %v1664 = vpop.f32.mrf.mxu0
  %v1665 = vpop.f32.mrf.mxu0
  %1666 = vdwg.mxu0
  %1667 = vmatprep.subr.bf16.mxu0 0
  %1668 = vmatpush1.bf16.msra.mxu0 0
  %1669 = vmatprep.subr.bf16.mxu0 0
  %1670 = vmatpush1.bf16.msra.mxu0 0
  %1671 = vmatprep.subr.bf16.mxu0 0
  %1672 = vmatpush1.bf16.msra.mxu0 0
  %1673 = vmatprep.subr.bf16.mxu0 0
  %1674 = vmatpush1.bf16.msra.mxu0 0
  %1675 = vmatprep.subr.bf16.mxu0 0
  %1676 = vmatpush1.bf16.msra.mxu0 0
  %1677 = vmatprep.subr.bf16.mxu0 %v940
  %1678 = vmatpush1.bf16.msra.mxu0 %v939
  %1679 = vmatprep.subr.bf16.mxu0 %v876
  %1680 = vmatpush1.bf16.msra.mxu0 %v875
  %1681 = vmatprep.subr.bf16.mxu0 %v812
  %1682 = vmatpush1.bf16.msra.mxu0 %v811
  %1683 = vmatprep.subr.bf16.mxu0 0
  %1684 = vmatpush2.bf16.msra.mxu0 0
  %1685 = vmatprep.subr.bf16.mxu0 0
  %1686 = vmatpush2.bf16.msra.mxu0 0
  %1687 = vmatprep.subr.bf16.mxu0 0
  %1688 = vmatpush2.bf16.msra.mxu0 0
  %1689 = vmatprep.subr.bf16.mxu0 0
  %1690 = vmatpush2.bf16.msra.mxu0 0
  %1691 = vmatprep.subr.bf16.mxu0 0
  %1692 = vmatpush2.bf16.msra.mxu0 0
  %1693 = vmatprep.subr.bf16.mxu0 0
  %1694 = vmatpush2.bf16.msra.mxu0 0
  %1695 = vmatprep.subr.bf16.mxu0 0
  %1696 = vmatpush2.bf16.msra.mxu0 0
  %1697 = vmatprep.subr.bf16.mxu0 0
  %1698 = vmatpush2.bf16.msra.mxu0 0
  %1699 = vmatprep.mubr.bf16.mxu0 0
  %1700 = vmatmul.mubr.bf16.gmra.mxu0 %v1173
  %v1701 = vpop.f32.mrf.mxu0
  %v1702 = vadd.f32 0.0, %v1701
  %v1703 = vpop.f32.mrf.mxu0
  %v1704 = vadd.f32 0.0, %v1703
  %v1705 = vpop.f32.mrf.mxu0
  %v1706 = vpop.f32.mrf.mxu0
  %1707 = vdwg.mxu0
  %1708 = vmatprep.subr.bf16.mxu0 0
  %1709 = vmatpush1.bf16.msra.mxu0 0
  %1710 = vmatprep.subr.bf16.mxu0 0
  %1711 = vmatpush1.bf16.msra.mxu0 0
  %1712 = vmatprep.subr.bf16.mxu0 0
  %1713 = vmatpush1.bf16.msra.mxu0 0
  %1714 = vmatprep.subr.bf16.mxu0 0
  %1715 = vmatpush1.bf16.msra.mxu0 0
  %1716 = vmatprep.subr.bf16.mxu0 0
  %1717 = vmatpush1.bf16.msra.mxu0 0
  %1718 = vmatprep.subr.bf16.mxu0 %v942
  %1719 = vmatpush1.bf16.msra.mxu0 %v941
  %1720 = vmatprep.subr.bf16.mxu0 %v878
  %1721 = vmatpush1.bf16.msra.mxu0 %v877
  %1722 = vmatprep.subr.bf16.mxu0 %v814
  %1723 = vmatpush1.bf16.msra.mxu0 %v813
  %1724 = vmatprep.subr.bf16.mxu0 0
  %1725 = vmatpush2.bf16.msra.mxu0 0
  %1726 = vmatprep.subr.bf16.mxu0 0
  %1727 = vmatpush2.bf16.msra.mxu0 0
  %1728 = vmatprep.subr.bf16.mxu0 0
  %1729 = vmatpush2.bf16.msra.mxu0 0
  %1730 = vmatprep.subr.bf16.mxu0 0
  %1731 = vmatpush2.bf16.msra.mxu0 0
  %1732 = vmatprep.subr.bf16.mxu0 0
  %1733 = vmatpush2.bf16.msra.mxu0 0
  %1734 = vmatprep.subr.bf16.mxu0 0
  %1735 = vmatpush2.bf16.msra.mxu0 0
  %1736 = vmatprep.subr.bf16.mxu0 0
  %1737 = vmatpush2.bf16.msra.mxu0 0
  %1738 = vmatprep.subr.bf16.mxu0 0
  %1739 = vmatpush2.bf16.msra.mxu0 0
  %1740 = vmatprep.mubr.bf16.mxu0 0
  %1741 = vmatmul.mubr.bf16.gmra.mxu0 %v1173
  %v1742 = vpop.f32.mrf.mxu0
  %v1743 = vadd.f32 0.0, %v1742
  %v1744 = vpop.f32.mrf.mxu0
  %v1745 = vadd.f32 0.0, %v1744
  %v1746 = vpop.f32.mrf.mxu0
  %v1747 = vpop.f32.mrf.mxu0
  %1748 = vdwg.mxu0
  %1749 = vmatprep.subr.bf16.mxu0 0
  %1750 = vmatpush1.bf16.msra.mxu0 0
  %1751 = vmatprep.subr.bf16.mxu0 0
  %1752 = vmatpush1.bf16.msra.mxu0 0
  %1753 = vmatprep.subr.bf16.mxu0 0
  %1754 = vmatpush1.bf16.msra.mxu0 0
  %1755 = vmatprep.subr.bf16.mxu0 0
  %1756 = vmatpush1.bf16.msra.mxu0 0
  %1757 = vmatprep.subr.bf16.mxu0 0
  %1758 = vmatpush1.bf16.msra.mxu0 0
  %1759 = vmatprep.subr.bf16.mxu0 %v944
  %1760 = vmatpush1.bf16.msra.mxu0 %v943
  %1761 = vmatprep.subr.bf16.mxu0 %v880
  %1762 = vmatpush1.bf16.msra.mxu0 %v879
  %1763 = vmatprep.subr.bf16.mxu0 %v816
  %1764 = vmatpush1.bf16.msra.mxu0 %v815
  %1765 = vmatprep.subr.bf16.mxu0 0
  %1766 = vmatpush2.bf16.msra.mxu0 0
  %1767 = vmatprep.subr.bf16.mxu0 0
  %1768 = vmatpush2.bf16.msra.mxu0 0
  %1769 = vmatprep.subr.bf16.mxu0 0
  %1770 = vmatpush2.bf16.msra.mxu0 0
  %1771 = vmatprep.subr.bf16.mxu0 0
  %1772 = vmatpush2.bf16.msra.mxu0 0
  %1773 = vmatprep.subr.bf16.mxu0 0
  %1774 = vmatpush2.bf16.msra.mxu0 0
  %1775 = vmatprep.subr.bf16.mxu0 0
  %1776 = vmatpush2.bf16.msra.mxu0 0
  %1777 = vmatprep.subr.bf16.mxu0 0
  %1778 = vmatpush2.bf16.msra.mxu0 0
  %1779 = vmatprep.subr.bf16.mxu0 0
  %1780 = vmatpush2.bf16.msra.mxu0 0
  %1781 = vmatprep.mubr.bf16.mxu0 0
  %1782 = vmatmul.mubr.bf16.gmra.mxu0 %v1173
  %v1783 = vpop.f32.mrf.mxu0
  %v1784 = vadd.f32 0.0, %v1783
  %v1785 = vpop.f32.mrf.mxu0
  %v1786 = vadd.f32 0.0, %v1785
  %v1787 = vpop.f32.mrf.mxu0
  %v1788 = vpop.f32.mrf.mxu0
  %1789 = vdwg.mxu0
  %1790 = vmatprep.subr.bf16.mxu0 0
  %1791 = vmatpush1.bf16.msra.mxu0 0
  %1792 = vmatprep.subr.bf16.mxu0 0
  %1793 = vmatpush1.bf16.msra.mxu0 0
  %1794 = vmatprep.subr.bf16.mxu0 0
  %1795 = vmatpush1.bf16.msra.mxu0 0
  %1796 = vmatprep.subr.bf16.mxu0 0
  %1797 = vmatpush1.bf16.msra.mxu0 0
  %1798 = vmatprep.subr.bf16.mxu0 0
  %1799 = vmatpush1.bf16.msra.mxu0 0
  %1800 = vmatprep.subr.bf16.mxu0 %v946
  %1801 = vmatpush1.bf16.msra.mxu0 %v945
  %1802 = vmatprep.subr.bf16.mxu0 %v882
  %1803 = vmatpush1.bf16.msra.mxu0 %v881
  %1804 = vmatprep.subr.bf16.mxu0 %v818
  %1805 = vmatpush1.bf16.msra.mxu0 %v817
  %1806 = vmatprep.subr.bf16.mxu0 0
  %1807 = vmatpush2.bf16.msra.mxu0 0
  %1808 = vmatprep.subr.bf16.mxu0 0
  %1809 = vmatpush2.bf16.msra.mxu0 0
  %1810 = vmatprep.subr.bf16.mxu0 0
  %1811 = vmatpush2.bf16.msra.mxu0 0
  %1812 = vmatprep.subr.bf16.mxu0 0
  %1813 = vmatpush2.bf16.msra.mxu0 0
  %1814 = vmatprep.subr.bf16.mxu0 0
  %1815 = vmatpush2.bf16.msra.mxu0 0
  %1816 = vmatprep.subr.bf16.mxu0 0
  %1817 = vmatpush2.bf16.msra.mxu0 0
  %1818 = vmatprep.subr.bf16.mxu0 0
  %1819 = vmatpush2.bf16.msra.mxu0 0
  %1820 = vmatprep.subr.bf16.mxu0 0
  %1821 = vmatpush2.bf16.msra.mxu0 0
  %1822 = vmatprep.mubr.bf16.mxu0 0
  %1823 = vmatmul.mubr.bf16.gmra.mxu0 %v1173
  %v1824 = vpop.f32.mrf.mxu0
  %v1825 = vadd.f32 0.0, %v1824
  %v1826 = vpop.f32.mrf.mxu0
  %v1827 = vadd.f32 0.0, %v1826
  %v1828 = vpop.f32.mrf.mxu0
  %v1829 = vpop.f32.mrf.mxu0
  %1830 = vdwg.mxu0
  %1831 = vmatprep.subr.bf16.mxu0 0
  %1832 = vmatpush1.bf16.msra.mxu0 0
  %1833 = vmatprep.subr.bf16.mxu0 0
  %1834 = vmatpush1.bf16.msra.mxu0 0
  %1835 = vmatprep.subr.bf16.mxu0 0
  %1836 = vmatpush1.bf16.msra.mxu0 0
  %1837 = vmatprep.subr.bf16.mxu0 0
  %1838 = vmatpush1.bf16.msra.mxu0 0
  %1839 = vmatprep.subr.bf16.mxu0 0
  %1840 = vmatpush1.bf16.msra.mxu0 0
  %1841 = vmatprep.subr.bf16.mxu0 %v948
  %1842 = vmatpush1.bf16.msra.mxu0 %v947
  %1843 = vmatprep.subr.bf16.mxu0 %v884
  %1844 = vmatpush1.bf16.msra.mxu0 %v883
  %1845 = vmatprep.subr.bf16.mxu0 %v820
  %1846 = vmatpush1.bf16.msra.mxu0 %v819
  %1847 = vmatprep.subr.bf16.mxu0 0
  %1848 = vmatpush2.bf16.msra.mxu0 0
  %1849 = vmatprep.subr.bf16.mxu0 0
  %1850 = vmatpush2.bf16.msra.mxu0 0
  %1851 = vmatprep.subr.bf16.mxu0 0
  %1852 = vmatpush2.bf16.msra.mxu0 0
  %1853 = vmatprep.subr.bf16.mxu0 0
  %1854 = vmatpush2.bf16.msra.mxu0 0
  %1855 = vmatprep.subr.bf16.mxu0 0
  %1856 = vmatpush2.bf16.msra.mxu0 0
  %1857 = vmatprep.subr.bf16.mxu0 0
  %1858 = vmatpush2.bf16.msra.mxu0 0
  %1859 = vmatprep.subr.bf16.mxu0 0
  %1860 = vmatpush2.bf16.msra.mxu0 0
  %1861 = vmatprep.subr.bf16.mxu0 0
  %1862 = vmatpush2.bf16.msra.mxu0 0
  %1863 = vmatprep.mubr.bf16.mxu0 0
  %1864 = vmatmul.mubr.bf16.gmra.mxu0 %v1173
  %v1865 = vpop.f32.mrf.mxu0
  %v1866 = vadd.f32 0.0, %v1865
  %v1867 = vpop.f32.mrf.mxu0
  %v1868 = vadd.f32 0.0, %v1867
  %v1869 = vpop.f32.mrf.mxu0
  %v1870 = vpop.f32.mrf.mxu0
  %1871 = vdwg.mxu0
  %1872 = vmatprep.subr.bf16.mxu0 0
  %1873 = vmatpush1.bf16.msra.mxu0 0
  %1874 = vmatprep.subr.bf16.mxu0 0
  %1875 = vmatpush1.bf16.msra.mxu0 0
  %1876 = vmatprep.subr.bf16.mxu0 0
  %1877 = vmatpush1.bf16.msra.mxu0 0
  %1878 = vmatprep.subr.bf16.mxu0 0
  %1879 = vmatpush1.bf16.msra.mxu0 0
  %1880 = vmatprep.subr.bf16.mxu0 0
  %1881 = vmatpush1.bf16.msra.mxu0 0
  %1882 = vmatprep.subr.bf16.mxu0 %v950
  %1883 = vmatpush1.bf16.msra.mxu0 %v949
  %1884 = vmatprep.subr.bf16.mxu0 %v886
  %1885 = vmatpush1.bf16.msra.mxu0 %v885
  %1886 = vmatprep.subr.bf16.mxu0 %v822
  %1887 = vmatpush1.bf16.msra.mxu0 %v821
  %1888 = vmatprep.subr.bf16.mxu0 0
  %1889 = vmatpush2.bf16.msra.mxu0 0
  %1890 = vmatprep.subr.bf16.mxu0 0
  %1891 = vmatpush2.bf16.msra.mxu0 0
  %1892 = vmatprep.subr.bf16.mxu0 0
  %1893 = vmatpush2.bf16.msra.mxu0 0
  %1894 = vmatprep.subr.bf16.mxu0 0
  %1895 = vmatpush2.bf16.msra.mxu0 0
  %1896 = vmatprep.subr.bf16.mxu0 0
  %1897 = vmatpush2.bf16.msra.mxu0 0
  %1898 = vmatprep.subr.bf16.mxu0 0
  %1899 = vmatpush2.bf16.msra.mxu0 0
  %1900 = vmatprep.subr.bf16.mxu0 0
  %1901 = vmatpush2.bf16.msra.mxu0 0
  %1902 = vmatprep.subr.bf16.mxu0 0
  %1903 = vmatpush2.bf16.msra.mxu0 0
  %1904 = vmatprep.mubr.bf16.mxu0 0
  %1905 = vmatmul.mubr.bf16.gmra.mxu0 %v1173
  %v1906 = vpop.f32.mrf.mxu0
  %v1907 = vadd.f32 0.0, %v1906
  %v1908 = vpop.f32.mrf.mxu0
  %v1909 = vadd.f32 0.0, %v1908
  %v1910 = vpop.f32.mrf.mxu0
  %v1911 = vpop.f32.mrf.mxu0
  %1912 = vdwg.mxu0
  %1913 = vmatprep.subr.bf16.mxu0 0
  %1914 = vmatpush1.bf16.msra.mxu0 0
  %1915 = vmatprep.subr.bf16.mxu0 0
  %1916 = vmatpush1.bf16.msra.mxu0 0
  %1917 = vmatprep.subr.bf16.mxu0 0
  %1918 = vmatpush1.bf16.msra.mxu0 0
  %1919 = vmatprep.subr.bf16.mxu0 0
  %1920 = vmatpush1.bf16.msra.mxu0 0
  %1921 = vmatprep.subr.bf16.mxu0 0
  %1922 = vmatpush1.bf16.msra.mxu0 0
  %1923 = vmatprep.subr.bf16.mxu0 %v952
  %1924 = vmatpush1.bf16.msra.mxu0 %v951
  %1925 = vmatprep.subr.bf16.mxu0 %v888
  %1926 = vmatpush1.bf16.msra.mxu0 %v887
  %1927 = vmatprep.subr.bf16.mxu0 %v824
  %1928 = vmatpush1.bf16.msra.mxu0 %v823
  %1929 = vmatprep.subr.bf16.mxu0 0
  %1930 = vmatpush2.bf16.msra.mxu0 0
  %1931 = vmatprep.subr.bf16.mxu0 0
  %1932 = vmatpush2.bf16.msra.mxu0 0
  %1933 = vmatprep.subr.bf16.mxu0 0
  %1934 = vmatpush2.bf16.msra.mxu0 0
  %1935 = vmatprep.subr.bf16.mxu0 0
  %1936 = vmatpush2.bf16.msra.mxu0 0
  %1937 = vmatprep.subr.bf16.mxu0 0
  %1938 = vmatpush2.bf16.msra.mxu0 0
  %1939 = vmatprep.subr.bf16.mxu0 0
  %1940 = vmatpush2.bf16.msra.mxu0 0
  %1941 = vmatprep.subr.bf16.mxu0 0
  %1942 = vmatpush2.bf16.msra.mxu0 0
  %1943 = vmatprep.subr.bf16.mxu0 0
  %1944 = vmatpush2.bf16.msra.mxu0 0
  %1945 = vmatprep.mubr.bf16.mxu0 0
  %1946 = vmatmul.mubr.bf16.gmra.mxu0 %v1173
  %v1947 = vpop.f32.mrf.mxu0
  %v1948 = vadd.f32 0.0, %v1947
  %v1949 = vpop.f32.mrf.mxu0
  %v1950 = vadd.f32 0.0, %v1949
  %v1951 = vpop.f32.mrf.mxu0
  %v1952 = vpop.f32.mrf.mxu0
  %1953 = vdwg.mxu0
  %1954 = vmatprep.subr.bf16.mxu0 0
  %1955 = vmatpush1.bf16.msra.mxu0 0
  %1956 = vmatprep.subr.bf16.mxu0 0
  %1957 = vmatpush1.bf16.msra.mxu0 0
  %1958 = vmatprep.subr.bf16.mxu0 0
  %1959 = vmatpush1.bf16.msra.mxu0 0
  %1960 = vmatprep.subr.bf16.mxu0 0
  %1961 = vmatpush1.bf16.msra.mxu0 0
  %1962 = vmatprep.subr.bf16.mxu0 0
  %1963 = vmatpush1.bf16.msra.mxu0 0
  %1964 = vmatprep.subr.bf16.mxu0 %v954
  %1965 = vmatpush1.bf16.msra.mxu0 %v953
  %1966 = vmatprep.subr.bf16.mxu0 %v890
  %1967 = vmatpush1.bf16.msra.mxu0 %v889
  %1968 = vmatprep.subr.bf16.mxu0 %v826
  %1969 = vmatpush1.bf16.msra.mxu0 %v825
  %1970 = vmatprep.subr.bf16.mxu0 0
  %1971 = vmatpush2.bf16.msra.mxu0 0
  %1972 = vmatprep.subr.bf16.mxu0 0
  %1973 = vmatpush2.bf16.msra.mxu0 0
  %1974 = vmatprep.subr.bf16.mxu0 0
  %1975 = vmatpush2.bf16.msra.mxu0 0
  %1976 = vmatprep.subr.bf16.mxu0 0
  %1977 = vmatpush2.bf16.msra.mxu0 0
  %1978 = vmatprep.subr.bf16.mxu0 0
  %1979 = vmatpush2.bf16.msra.mxu0 0
  %1980 = vmatprep.subr.bf16.mxu0 0
  %1981 = vmatpush2.bf16.msra.mxu0 0
  %1982 = vmatprep.subr.bf16.mxu0 0
  %1983 = vmatpush2.bf16.msra.mxu0 0
  %1984 = vmatprep.subr.bf16.mxu0 0
  %1985 = vmatpush2.bf16.msra.mxu0 0
  %1986 = vmatprep.mubr.bf16.mxu0 0
  %1987 = vmatmul.mubr.bf16.gmra.mxu0 %v1173
  %v1988 = vpop.f32.mrf.mxu0
  %v1989 = vadd.f32 0.0, %v1988
  %v1990 = vpop.f32.mrf.mxu0
  %v1991 = vadd.f32 0.0, %v1990
  %v1992 = vpop.f32.mrf.mxu0
  %v1993 = vpop.f32.mrf.mxu0
  %1994 = vdwg.mxu0
  %1995 = vmatprep.subr.bf16.mxu0 0
  %1996 = vmatpush1.bf16.msra.mxu0 0
  %1997 = vmatprep.subr.bf16.mxu0 0
  %1998 = vmatpush1.bf16.msra.mxu0 0
  %1999 = vmatprep.subr.bf16.mxu0 0
  %2000 = vmatpush1.bf16.msra.mxu0 0
  %2001 = vmatprep.subr.bf16.mxu0 0
  %2002 = vmatpush1.bf16.msra.mxu0 0
  %2003 = vmatprep.subr.bf16.mxu0 0
  %2004 = vmatpush1.bf16.msra.mxu0 0
  %2005 = vmatprep.subr.bf16.mxu0 %v956
  %2006 = vmatpush1.bf16.msra.mxu0 %v955
  %2007 = vmatprep.subr.bf16.mxu0 %v892
  %2008 = vmatpush1.bf16.msra.mxu0 %v891
  %2009 = vmatprep.subr.bf16.mxu0 %v828
  %2010 = vmatpush1.bf16.msra.mxu0 %v827
  %2011 = vmatprep.subr.bf16.mxu0 0
  %2012 = vmatpush2.bf16.msra.mxu0 0
  %2013 = vmatprep.subr.bf16.mxu0 0
  %2014 = vmatpush2.bf16.msra.mxu0 0
  %2015 = vmatprep.subr.bf16.mxu0 0
  %2016 = vmatpush2.bf16.msra.mxu0 0
  %2017 = vmatprep.subr.bf16.mxu0 0
  %2018 = vmatpush2.bf16.msra.mxu0 0
  %2019 = vmatprep.subr.bf16.mxu0 0
  %2020 = vmatpush2.bf16.msra.mxu0 0
  %2021 = vmatprep.subr.bf16.mxu0 0
  %2022 = vmatpush2.bf16.msra.mxu0 0
  %2023 = vmatprep.subr.bf16.mxu0 0
  %2024 = vmatpush2.bf16.msra.mxu0 0
  %2025 = vmatprep.subr.bf16.mxu0 0
  %2026 = vmatpush2.bf16.msra.mxu0 0
  %2027 = vmatprep.mubr.bf16.mxu0 0
  %2028 = vmatmul.mubr.bf16.gmra.mxu0 %v1173
  %v2029 = vpop.f32.mrf.mxu0
  %v2030 = vadd.f32 0.0, %v2029
  %v2031 = vpop.f32.mrf.mxu0
  %v2032 = vadd.f32 0.0, %v2031
  %v2033 = vpop.f32.mrf.mxu0
  %v2034 = vpop.f32.mrf.mxu0
  %2035 = vdwg.mxu0
  %2036 = vmatprep.subr.bf16.mxu0 0
  %2037 = vmatpush1.bf16.msra.mxu0 0
  %2038 = vmatprep.subr.bf16.mxu0 0
  %2039 = vmatpush1.bf16.msra.mxu0 0
  %2040 = vmatprep.subr.bf16.mxu0 0
  %2041 = vmatpush1.bf16.msra.mxu0 0
  %2042 = vmatprep.subr.bf16.mxu0 0
  %2043 = vmatpush1.bf16.msra.mxu0 0
  %2044 = vmatprep.subr.bf16.mxu0 0
  %2045 = vmatpush1.bf16.msra.mxu0 0
  %2046 = vmatprep.subr.bf16.mxu0 %v958
  %2047 = vmatpush1.bf16.msra.mxu0 %v957
  %2048 = vmatprep.subr.bf16.mxu0 %v894
  %2049 = vmatpush1.bf16.msra.mxu0 %v893
  %2050 = vmatprep.subr.bf16.mxu0 %v830
  %2051 = vmatpush1.bf16.msra.mxu0 %v829
  %2052 = vmatprep.subr.bf16.mxu0 0
  %2053 = vmatpush2.bf16.msra.mxu0 0
  %2054 = vmatprep.subr.bf16.mxu0 0
  %2055 = vmatpush2.bf16.msra.mxu0 0
  %2056 = vmatprep.subr.bf16.mxu0 0
  %2057 = vmatpush2.bf16.msra.mxu0 0
  %2058 = vmatprep.subr.bf16.mxu0 0
  %2059 = vmatpush2.bf16.msra.mxu0 0
  %2060 = vmatprep.subr.bf16.mxu0 0
  %2061 = vmatpush2.bf16.msra.mxu0 0
  %2062 = vmatprep.subr.bf16.mxu0 0
  %2063 = vmatpush2.bf16.msra.mxu0 0
  %2064 = vmatprep.subr.bf16.mxu0 0
  %2065 = vmatpush2.bf16.msra.mxu0 0
  %2066 = vmatprep.subr.bf16.mxu0 0
  %2067 = vmatpush2.bf16.msra.mxu0 0
  %2068 = vmatprep.mubr.bf16.mxu0 0
  %2069 = vmatmul.mubr.bf16.gmra.mxu0 %v1173
  %v2070 = vpop.f32.mrf.mxu0
  %v2071 = vadd.f32 0.0, %v2070
  %v2072 = vpop.f32.mrf.mxu0
  %v2073 = vadd.f32 0.0, %v2072
  %v2074 = vpop.f32.mrf.mxu0
  %v2075 = vpop.f32.mrf.mxu0
  %2076 = vdwg.mxu0
  %2077 = vmatprep.subr.bf16.mxu0 0
  %2078 = vmatpush1.bf16.msra.mxu0 0
  %2079 = vmatprep.subr.bf16.mxu0 0
  %2080 = vmatpush1.bf16.msra.mxu0 0
  %2081 = vmatprep.subr.bf16.mxu0 0
  %2082 = vmatpush1.bf16.msra.mxu0 0
  %2083 = vmatprep.subr.bf16.mxu0 0
  %2084 = vmatpush1.bf16.msra.mxu0 0
  %2085 = vmatprep.subr.bf16.mxu0 0
  %2086 = vmatpush1.bf16.msra.mxu0 0
  %2087 = vmatprep.subr.bf16.mxu0 %v960
  %2088 = vmatpush1.bf16.msra.mxu0 %v959
  %2089 = vmatprep.subr.bf16.mxu0 %v896
  %2090 = vmatpush1.bf16.msra.mxu0 %v895
  %2091 = vmatprep.subr.bf16.mxu0 %v832
  %2092 = vmatpush1.bf16.msra.mxu0 %v831
  %2093 = vmatprep.subr.bf16.mxu0 0
  %2094 = vmatpush2.bf16.msra.mxu0 0
  %2095 = vmatprep.subr.bf16.mxu0 0
  %2096 = vmatpush2.bf16.msra.mxu0 0
  %2097 = vmatprep.subr.bf16.mxu0 0
  %2098 = vmatpush2.bf16.msra.mxu0 0
  %2099 = vmatprep.subr.bf16.mxu0 0
  %2100 = vmatpush2.bf16.msra.mxu0 0
  %2101 = vmatprep.subr.bf16.mxu0 0
  %2102 = vmatpush2.bf16.msra.mxu0 0
  %2103 = vmatprep.subr.bf16.mxu0 0
  %2104 = vmatpush2.bf16.msra.mxu0 0
  %2105 = vmatprep.subr.bf16.mxu0 0
  %2106 = vmatpush2.bf16.msra.mxu0 0
  %2107 = vmatprep.subr.bf16.mxu0 0
  %2108 = vmatpush2.bf16.msra.mxu0 0
  %2109 = vmatprep.mubr.bf16.mxu0 0
  %2110 = vmatmul.mubr.bf16.gmra.mxu0 %v1173
  %v2111 = vpop.f32.mrf.mxu0
  %v2112 = vadd.f32 0.0, %v2111
  %v2113 = vpop.f32.mrf.mxu0
  %v2114 = vadd.f32 0.0, %v2113
  %v2115 = vpop.f32.mrf.mxu0
  %v2116 = vpop.f32.mrf.mxu0
  %2117 = vdwg.mxu0
  %2118 = vmatprep.subr.bf16.mxu0 0
  %2119 = vmatpush1.bf16.msra.mxu0 0
  %2120 = vmatprep.subr.bf16.mxu0 0
  %2121 = vmatpush1.bf16.msra.mxu0 0
  %2122 = vmatprep.subr.bf16.mxu0 0
  %2123 = vmatpush1.bf16.msra.mxu0 0
  %2124 = vmatprep.subr.bf16.mxu0 0
  %2125 = vmatpush1.bf16.msra.mxu0 0
  %2126 = vmatprep.subr.bf16.mxu0 0
  %2127 = vmatpush1.bf16.msra.mxu0 0
  %2128 = vmatprep.subr.bf16.mxu0 %v962
  %2129 = vmatpush1.bf16.msra.mxu0 %v961
  %2130 = vmatprep.subr.bf16.mxu0 %v898
  %2131 = vmatpush1.bf16.msra.mxu0 %v897
  %2132 = vmatprep.subr.bf16.mxu0 %v834
  %2133 = vmatpush1.bf16.msra.mxu0 %v833
  %2134 = vmatprep.subr.bf16.mxu0 0
  %2135 = vmatpush2.bf16.msra.mxu0 0
  %2136 = vmatprep.subr.bf16.mxu0 0
  %2137 = vmatpush2.bf16.msra.mxu0 0
  %2138 = vmatprep.subr.bf16.mxu0 0
  %2139 = vmatpush2.bf16.msra.mxu0 0
  %2140 = vmatprep.subr.bf16.mxu0 0
  %2141 = vmatpush2.bf16.msra.mxu0 0
  %2142 = vmatprep.subr.bf16.mxu0 0
  %2143 = vmatpush2.bf16.msra.mxu0 0
  %2144 = vmatprep.subr.bf16.mxu0 0
  %2145 = vmatpush2.bf16.msra.mxu0 0
  %2146 = vmatprep.subr.bf16.mxu0 0
  %2147 = vmatpush2.bf16.msra.mxu0 0
  %2148 = vmatprep.subr.bf16.mxu0 0
  %2149 = vmatpush2.bf16.msra.mxu0 0
  %2150 = vmatprep.mubr.bf16.mxu0 0
  %2151 = vmatmul.mubr.bf16.gmra.mxu0 %v1173
  %v2152 = vpop.f32.mrf.mxu0
  %v2153 = vadd.f32 0.0, %v2152
  %v2154 = vpop.f32.mrf.mxu0
  %v2155 = vadd.f32 0.0, %v2154
  %v2156 = vpop.f32.mrf.mxu0
  %v2157 = vpop.f32.mrf.mxu0
  %2158 = vdwg.mxu0
  %2159 = vmatprep.subr.bf16.mxu0 0
  %2160 = vmatpush1.bf16.msra.mxu0 0
  %2161 = vmatprep.subr.bf16.mxu0 0
  %2162 = vmatpush1.bf16.msra.mxu0 0
  %2163 = vmatprep.subr.bf16.mxu0 0
  %2164 = vmatpush1.bf16.msra.mxu0 0
  %2165 = vmatprep.subr.bf16.mxu0 0
  %2166 = vmatpush1.bf16.msra.mxu0 0
  %2167 = vmatprep.subr.bf16.mxu0 0
  %2168 = vmatpush1.bf16.msra.mxu0 0
  %2169 = vmatprep.subr.bf16.mxu0 %v964
  %2170 = vmatpush1.bf16.msra.mxu0 %v963
  %2171 = vmatprep.subr.bf16.mxu0 %v900
  %2172 = vmatpush1.bf16.msra.mxu0 %v899
  %2173 = vmatprep.subr.bf16.mxu0 %v836
  %2174 = vmatpush1.bf16.msra.mxu0 %v835
  %2175 = vmatprep.subr.bf16.mxu0 0
  %2176 = vmatpush2.bf16.msra.mxu0 0
  %2177 = vmatprep.subr.bf16.mxu0 0
  %2178 = vmatpush2.bf16.msra.mxu0 0
  %2179 = vmatprep.subr.bf16.mxu0 0
  %2180 = vmatpush2.bf16.msra.mxu0 0
  %2181 = vmatprep.subr.bf16.mxu0 0
  %2182 = vmatpush2.bf16.msra.mxu0 0
  %2183 = vmatprep.subr.bf16.mxu0 0
  %2184 = vmatpush2.bf16.msra.mxu0 0
  %2185 = vmatprep.subr.bf16.mxu0 0
  %2186 = vmatpush2.bf16.msra.mxu0 0
  %2187 = vmatprep.subr.bf16.mxu0 0
  %2188 = vmatpush2.bf16.msra.mxu0 0
  %2189 = vmatprep.subr.bf16.mxu0 0
  %2190 = vmatpush2.bf16.msra.mxu0 0
  %2191 = vmatprep.mubr.bf16.mxu0 0
  %2192 = vmatmul.mubr.bf16.gmra.mxu0 %v1173
  %v2193 = vpop.f32.mrf.mxu0
  %v2194 = vadd.f32 0.0, %v2193
  %v2195 = vpop.f32.mrf.mxu0
  %v2196 = vadd.f32 0.0, %v2195
  %v2197 = vpop.f32.mrf.mxu0
  %v2198 = vpop.f32.mrf.mxu0
  %2199 = vdwg.mxu0
  %2200 = vmatprep.subr.bf16.mxu0 0
  %2201 = vmatpush1.bf16.msra.mxu0 0
  %2202 = vmatprep.subr.bf16.mxu0 0
  %2203 = vmatpush1.bf16.msra.mxu0 0
  %2204 = vmatprep.subr.bf16.mxu0 0
  %2205 = vmatpush1.bf16.msra.mxu0 0
  %2206 = vmatprep.subr.bf16.mxu0 0
  %2207 = vmatpush1.bf16.msra.mxu0 0
  %2208 = vmatprep.subr.bf16.mxu0 0
  %2209 = vmatpush1.bf16.msra.mxu0 0
  %2210 = vmatprep.subr.bf16.mxu0 %v966
  %2211 = vmatpush1.bf16.msra.mxu0 %v965
  %2212 = vmatprep.subr.bf16.mxu0 %v902
  %2213 = vmatpush1.bf16.msra.mxu0 %v901
  %2214 = vmatprep.subr.bf16.mxu0 %v838
  %2215 = vmatpush1.bf16.msra.mxu0 %v837
  %2216 = vmatprep.subr.bf16.mxu0 0
  %2217 = vmatpush2.bf16.msra.mxu0 0
  %2218 = vmatprep.subr.bf16.mxu0 0
  %2219 = vmatpush2.bf16.msra.mxu0 0
  %2220 = vmatprep.subr.bf16.mxu0 0
  %2221 = vmatpush2.bf16.msra.mxu0 0
  %2222 = vmatprep.subr.bf16.mxu0 0
  %2223 = vmatpush2.bf16.msra.mxu0 0
  %2224 = vmatprep.subr.bf16.mxu0 0
  %2225 = vmatpush2.bf16.msra.mxu0 0
  %2226 = vmatprep.subr.bf16.mxu0 0
  %2227 = vmatpush2.bf16.msra.mxu0 0
  %2228 = vmatprep.subr.bf16.mxu0 0
  %2229 = vmatpush2.bf16.msra.mxu0 0
  %2230 = vmatprep.subr.bf16.mxu0 0
  %2231 = vmatpush2.bf16.msra.mxu0 0
  %2232 = vmatprep.mubr.bf16.mxu0 0
  %2233 = vmatmul.mubr.bf16.gmra.mxu0 %v1173
  %v2234 = vpop.f32.mrf.mxu0
  %v2235 = vadd.f32 0.0, %v2234
  %v2236 = vpop.f32.mrf.mxu0
  %v2237 = vadd.f32 0.0, %v2236
  %v2238 = vpop.f32.mrf.mxu0
  %v2239 = vpop.f32.mrf.mxu0
  %2240 = vdwg.mxu0
  %2241 = vmatprep.subr.bf16.mxu0 0
  %2242 = vmatpush1.bf16.msra.mxu0 0
  %2243 = vmatprep.subr.bf16.mxu0 0
  %2244 = vmatpush1.bf16.msra.mxu0 0
  %2245 = vmatprep.subr.bf16.mxu0 0
  %2246 = vmatpush1.bf16.msra.mxu0 0
  %2247 = vmatprep.subr.bf16.mxu0 0
  %2248 = vmatpush1.bf16.msra.mxu0 0
  %2249 = vmatprep.subr.bf16.mxu0 0
  %2250 = vmatpush1.bf16.msra.mxu0 0
  %2251 = vmatprep.subr.bf16.mxu0 %v968
  %2252 = vmatpush1.bf16.msra.mxu0 %v967
  %2253 = vmatprep.subr.bf16.mxu0 %v904
  %2254 = vmatpush1.bf16.msra.mxu0 %v903
  %2255 = vmatprep.subr.bf16.mxu0 %v840
  %2256 = vmatpush1.bf16.msra.mxu0 %v839
  %2257 = vmatprep.subr.bf16.mxu0 0
  %2258 = vmatpush2.bf16.msra.mxu0 0
  %2259 = vmatprep.subr.bf16.mxu0 0
  %2260 = vmatpush2.bf16.msra.mxu0 0
  %2261 = vmatprep.subr.bf16.mxu0 0
  %2262 = vmatpush2.bf16.msra.mxu0 0
  %2263 = vmatprep.subr.bf16.mxu0 0
  %2264 = vmatpush2.bf16.msra.mxu0 0
  %2265 = vmatprep.subr.bf16.mxu0 0
  %2266 = vmatpush2.bf16.msra.mxu0 0
  %2267 = vmatprep.subr.bf16.mxu0 0
  %2268 = vmatpush2.bf16.msra.mxu0 0
  %2269 = vmatprep.subr.bf16.mxu0 0
  %2270 = vmatpush2.bf16.msra.mxu0 0
  %2271 = vmatprep.subr.bf16.mxu0 0
  %2272 = vmatpush2.bf16.msra.mxu0 0
  %2273 = vmatprep.mubr.bf16.mxu0 0
  %2274 = vmatmul.mubr.bf16.gmra.mxu0 %v1173
  %v2275 = vpop.f32.mrf.mxu0
  %v2276 = vadd.f32 0.0, %v2275
  %v2277 = vpop.f32.mrf.mxu0
  %v2278 = vadd.f32 0.0, %v2277
  %v2279 = vpop.f32.mrf.mxu0
  %v2280 = vpop.f32.mrf.mxu0
  %2281 = vdwg.mxu0
  %2282 = vmatprep.subr.bf16.mxu0 0
  %2283 = vmatpush1.bf16.msra.mxu0 0
  %2284 = vmatprep.subr.bf16.mxu0 0
  %2285 = vmatpush1.bf16.msra.mxu0 0
  %2286 = vmatprep.subr.bf16.mxu0 0
  %2287 = vmatpush1.bf16.msra.mxu0 0
  %2288 = vmatprep.subr.bf16.mxu0 0
  %2289 = vmatpush1.bf16.msra.mxu0 0
  %2290 = vmatprep.subr.bf16.mxu0 0
  %2291 = vmatpush1.bf16.msra.mxu0 0
  %2292 = vmatprep.subr.bf16.mxu0 %v970
  %2293 = vmatpush1.bf16.msra.mxu0 %v969
  %2294 = vmatprep.subr.bf16.mxu0 %v906
  %2295 = vmatpush1.bf16.msra.mxu0 %v905
  %2296 = vmatprep.subr.bf16.mxu0 %v842
  %2297 = vmatpush1.bf16.msra.mxu0 %v841
  %2298 = vmatprep.subr.bf16.mxu0 0
  %2299 = vmatpush2.bf16.msra.mxu0 0
  %2300 = vmatprep.subr.bf16.mxu0 0
  %2301 = vmatpush2.bf16.msra.mxu0 0
  %2302 = vmatprep.subr.bf16.mxu0 0
  %2303 = vmatpush2.bf16.msra.mxu0 0
  %2304 = vmatprep.subr.bf16.mxu0 0
  %2305 = vmatpush2.bf16.msra.mxu0 0
  %2306 = vmatprep.subr.bf16.mxu0 0
  %2307 = vmatpush2.bf16.msra.mxu0 0
  %2308 = vmatprep.subr.bf16.mxu0 0
  %2309 = vmatpush2.bf16.msra.mxu0 0
  %2310 = vmatprep.subr.bf16.mxu0 0
  %2311 = vmatpush2.bf16.msra.mxu0 0
  %2312 = vmatprep.subr.bf16.mxu0 0
  %2313 = vmatpush2.bf16.msra.mxu0 0
  %2314 = vmatprep.mubr.bf16.mxu0 0
  %2315 = vmatmul.mubr.bf16.gmra.mxu0 %v1173
  %v2316 = vpop.f32.mrf.mxu0
  %v2317 = vadd.f32 0.0, %v2316
  %v2318 = vpop.f32.mrf.mxu0
  %v2319 = vadd.f32 0.0, %v2318
  %v2320 = vpop.f32.mrf.mxu0
  %v2321 = vpop.f32.mrf.mxu0
  %2322 = vdwg.mxu0
  %2323 = vmatprep.subr.bf16.mxu0 0
  %2324 = vmatpush1.bf16.msra.mxu0 0
  %2325 = vmatprep.subr.bf16.mxu0 0
  %2326 = vmatpush1.bf16.msra.mxu0 0
  %2327 = vmatprep.subr.bf16.mxu0 0
  %2328 = vmatpush1.bf16.msra.mxu0 0
  %2329 = vmatprep.subr.bf16.mxu0 0
  %2330 = vmatpush1.bf16.msra.mxu0 0
  %2331 = vmatprep.subr.bf16.mxu0 0
  %2332 = vmatpush1.bf16.msra.mxu0 0
  %2333 = vmatprep.subr.bf16.mxu0 %v972
  %2334 = vmatpush1.bf16.msra.mxu0 %v971
  %2335 = vmatprep.subr.bf16.mxu0 %v908
  %2336 = vmatpush1.bf16.msra.mxu0 %v907
  %2337 = vmatprep.subr.bf16.mxu0 %v844
  %2338 = vmatpush1.bf16.msra.mxu0 %v843
  %2339 = vmatprep.subr.bf16.mxu0 0
  %2340 = vmatpush2.bf16.msra.mxu0 0
  %2341 = vmatprep.subr.bf16.mxu0 0
  %2342 = vmatpush2.bf16.msra.mxu0 0
  %2343 = vmatprep.subr.bf16.mxu0 0
  %2344 = vmatpush2.bf16.msra.mxu0 0
  %2345 = vmatprep.subr.bf16.mxu0 0
  %2346 = vmatpush2.bf16.msra.mxu0 0
  %2347 = vmatprep.subr.bf16.mxu0 0
  %2348 = vmatpush2.bf16.msra.mxu0 0
  %2349 = vmatprep.subr.bf16.mxu0 0
  %2350 = vmatpush2.bf16.msra.mxu0 0
  %2351 = vmatprep.subr.bf16.mxu0 0
  %2352 = vmatpush2.bf16.msra.mxu0 0
  %2353 = vmatprep.subr.bf16.mxu0 0
  %2354 = vmatpush2.bf16.msra.mxu0 0
  %2355 = vmatprep.mubr.bf16.mxu0 0
  %2356 = vmatmul.mubr.bf16.gmra.mxu0 %v1173
  %v2357 = vpop.f32.mrf.mxu0
  %v2358 = vadd.f32 0.0, %v2357
  %v2359 = vpop.f32.mrf.mxu0
  %v2360 = vadd.f32 0.0, %v2359
  %v2361 = vpop.f32.mrf.mxu0
  %v2362 = vpop.f32.mrf.mxu0
  %2363 = vdwg.mxu0
  %2364 = vmatprep.subr.bf16.mxu0 0
  %2365 = vmatpush1.bf16.msra.mxu0 0
  %2366 = vmatprep.subr.bf16.mxu0 0
  %2367 = vmatpush1.bf16.msra.mxu0 0
  %2368 = vmatprep.subr.bf16.mxu0 0
  %2369 = vmatpush1.bf16.msra.mxu0 0
  %2370 = vmatprep.subr.bf16.mxu0 0
  %2371 = vmatpush1.bf16.msra.mxu0 0
  %2372 = vmatprep.subr.bf16.mxu0 0
  %2373 = vmatpush1.bf16.msra.mxu0 0
  %2374 = vmatprep.subr.bf16.mxu0 %v974
  %2375 = vmatpush1.bf16.msra.mxu0 %v973
  %2376 = vmatprep.subr.bf16.mxu0 %v910
  %2377 = vmatpush1.bf16.msra.mxu0 %v909
  %2378 = vmatprep.subr.bf16.mxu0 %v846
  %2379 = vmatpush1.bf16.msra.mxu0 %v845
  %2380 = vmatprep.subr.bf16.mxu0 0
  %2381 = vmatpush2.bf16.msra.mxu0 0
  %2382 = vmatprep.subr.bf16.mxu0 0
  %2383 = vmatpush2.bf16.msra.mxu0 0
  %2384 = vmatprep.subr.bf16.mxu0 0
  %2385 = vmatpush2.bf16.msra.mxu0 0
  %2386 = vmatprep.subr.bf16.mxu0 0
  %2387 = vmatpush2.bf16.msra.mxu0 0
  %2388 = vmatprep.subr.bf16.mxu0 0
  %2389 = vmatpush2.bf16.msra.mxu0 0
  %2390 = vmatprep.subr.bf16.mxu0 0
  %2391 = vmatpush2.bf16.msra.mxu0 0
  %2392 = vmatprep.subr.bf16.mxu0 0
  %2393 = vmatpush2.bf16.msra.mxu0 0
  %2394 = vmatprep.subr.bf16.mxu0 0
  %2395 = vmatpush2.bf16.msra.mxu0 0
  %2396 = vmatprep.mubr.bf16.mxu0 0
  %2397 = vmatmul.mubr.bf16.gmra.mxu0 %v1173
  %v2398 = vpop.f32.mrf.mxu0
  %v2399 = vadd.f32 0.0, %v2398
  %v2400 = vpop.f32.mrf.mxu0
  %v2401 = vadd.f32 0.0, %v2400
  %v2402 = vpop.f32.mrf.mxu0
  %v2403 = vpop.f32.mrf.mxu0
  %2404 = vdwg.mxu0
  %2405 = vmatprep.subr.bf16.mxu0 0
  %2406 = vmatpush1.bf16.msra.mxu0 0
  %2407 = vmatprep.subr.bf16.mxu0 0
  %2408 = vmatpush1.bf16.msra.mxu0 0
  %2409 = vmatprep.subr.bf16.mxu0 0
  %2410 = vmatpush1.bf16.msra.mxu0 0
  %2411 = vmatprep.subr.bf16.mxu0 0
  %2412 = vmatpush1.bf16.msra.mxu0 0
  %2413 = vmatprep.subr.bf16.mxu0 0
  %2414 = vmatpush1.bf16.msra.mxu0 0
  %2415 = vmatprep.subr.bf16.mxu0 %v976
  %2416 = vmatpush1.bf16.msra.mxu0 %v975
  %2417 = vmatprep.subr.bf16.mxu0 %v912
  %2418 = vmatpush1.bf16.msra.mxu0 %v911
  %2419 = vmatprep.subr.bf16.mxu0 %v848
  %2420 = vmatpush1.bf16.msra.mxu0 %v847
  %2421 = vmatprep.subr.bf16.mxu0 0
  %2422 = vmatpush2.bf16.msra.mxu0 0
  %2423 = vmatprep.subr.bf16.mxu0 0
  %2424 = vmatpush2.bf16.msra.mxu0 0
  %2425 = vmatprep.subr.bf16.mxu0 0
  %2426 = vmatpush2.bf16.msra.mxu0 0
  %2427 = vmatprep.subr.bf16.mxu0 0
  %2428 = vmatpush2.bf16.msra.mxu0 0
  %2429 = vmatprep.subr.bf16.mxu0 0
  %2430 = vmatpush2.bf16.msra.mxu0 0
  %2431 = vmatprep.subr.bf16.mxu0 0
  %2432 = vmatpush2.bf16.msra.mxu0 0
  %2433 = vmatprep.subr.bf16.mxu0 0
  %2434 = vmatpush2.bf16.msra.mxu0 0
  %2435 = vmatprep.subr.bf16.mxu0 0
  %2436 = vmatpush2.bf16.msra.mxu0 0
  %2437 = vmatprep.mubr.bf16.mxu0 0
  %2438 = vmatmul.mubr.bf16.gmra.mxu0 %v1173
  %v2439 = vpop.f32.mrf.mxu0
  %v2440 = vadd.f32 0.0, %v2439
  %v2441 = vpop.f32.mrf.mxu0
  %v2442 = vadd.f32 0.0, %v2441
  %v2443 = vpop.f32.mrf.mxu0
  %v2444 = vpop.f32.mrf.mxu0
  %2445 = vdwg.mxu0
  %2446 = vmatprep.subr.bf16.mxu0 0
  %2447 = vmatpush1.bf16.msra.mxu0 0
  %2448 = vmatprep.subr.bf16.mxu0 0
  %2449 = vmatpush1.bf16.msra.mxu0 0
  %2450 = vmatprep.subr.bf16.mxu0 0
  %2451 = vmatpush1.bf16.msra.mxu0 0
  %2452 = vmatprep.subr.bf16.mxu0 0
  %2453 = vmatpush1.bf16.msra.mxu0 0
  %2454 = vmatprep.subr.bf16.mxu0 0
  %2455 = vmatpush1.bf16.msra.mxu0 0
  %2456 = vmatprep.subr.bf16.mxu0 %v978
  %2457 = vmatpush1.bf16.msra.mxu0 %v977
  %2458 = vmatprep.subr.bf16.mxu0 %v914
  %2459 = vmatpush1.bf16.msra.mxu0 %v913
  %2460 = vmatprep.subr.bf16.mxu0 %v850
  %2461 = vmatpush1.bf16.msra.mxu0 %v849
  %2462 = vmatprep.subr.bf16.mxu0 0
  %2463 = vmatpush2.bf16.msra.mxu0 0
  %2464 = vmatprep.subr.bf16.mxu0 0
  %2465 = vmatpush2.bf16.msra.mxu0 0
  %2466 = vmatprep.subr.bf16.mxu0 0
  %2467 = vmatpush2.bf16.msra.mxu0 0
  %2468 = vmatprep.subr.bf16.mxu0 0
  %2469 = vmatpush2.bf16.msra.mxu0 0
  %2470 = vmatprep.subr.bf16.mxu0 0
  %2471 = vmatpush2.bf16.msra.mxu0 0
  %2472 = vmatprep.subr.bf16.mxu0 0
  %2473 = vmatpush2.bf16.msra.mxu0 0
  %2474 = vmatprep.subr.bf16.mxu0 0
  %2475 = vmatpush2.bf16.msra.mxu0 0
  %2476 = vmatprep.subr.bf16.mxu0 0
  %2477 = vmatpush2.bf16.msra.mxu0 0
  %2478 = vmatprep.mubr.bf16.mxu0 0
  %2479 = vmatmul.mubr.bf16.gmra.mxu0 %v1173
  %v2480 = vpop.f32.mrf.mxu0
  %v2481 = vadd.f32 0.0, %v2480
  %v2482 = vpop.f32.mrf.mxu0
  %v2483 = vadd.f32 0.0, %v2482
  %v2484 = vpop.f32.mrf.mxu0
  %v2485 = vpop.f32.mrf.mxu0
  %2486 = vdwg.mxu0
  %v2487 = vadd.f32 %v1210, %v1212
  %v2488 = vadd.f32 %v2487, %v1251
  %v2489 = vadd.f32 %v2488, %v1253
  %v2490 = vadd.f32 %v2489, %v1292
  %v2491 = vadd.f32 %v2490, %v1294
  %v2492 = vadd.f32 %v2491, %v1333
  %v2493 = vadd.f32 %v2492, %v1335
  %v2494 = vadd.f32 %v2493, %v1374
  %v2495 = vadd.f32 %v2494, %v1376
  %v2496 = vadd.f32 %v2495, %v1415
  %v2497 = vadd.f32 %v2496, %v1417
  %v2498 = vadd.f32 %v2497, %v1456
  %v2499 = vadd.f32 %v2498, %v1458
  %v2500 = vadd.f32 %v2499, %v1497
  %v2501 = vadd.f32 %v2500, %v1499
  %v2502 = vadd.f32 %v2501, %v1538
  %v2503 = vadd.f32 %v2502, %v1540
  %v2504 = vadd.f32 %v2503, %v1579
  %v2505 = vadd.f32 %v2504, %v1581
  %v2506 = vadd.f32 %v2505, %v1620
  %v2507 = vadd.f32 %v2506, %v1622
  %v2508 = vadd.f32 %v2507, %v1661
  %v2509 = vadd.f32 %v2508, %v1663
  %v2510 = vadd.f32 %v2509, %v1702
  %v2511 = vadd.f32 %v2510, %v1704
  %v2512 = vadd.f32 %v2511, %v1743
  %v2513 = vadd.f32 %v2512, %v1745
  %v2514 = vadd.f32 %v2513, %v1784
  %v2515 = vadd.f32 %v2514, %v1786
  %v2516 = vadd.f32 %v2515, %v1825
  %v2517 = vadd.f32 %v2516, %v1827
  %v2518 = vadd.f32 %v2517, %v1866
  %v2519 = vadd.f32 %v2518, %v1868
  %v2520 = vadd.f32 %v2519, %v1907
  %v2521 = vadd.f32 %v2520, %v1909
  %v2522 = vadd.f32 %v2521, %v1948
  %v2523 = vadd.f32 %v2522, %v1950
  %v2524 = vadd.f32 %v2523, %v1989
  %v2525 = vadd.f32 %v2524, %v1991
  %v2526 = vadd.f32 %v2525, %v2030
  %v2527 = vadd.f32 %v2526, %v2032
  %v2528 = vadd.f32 %v2527, %v2071
  %v2529 = vadd.f32 %v2528, %v2073
  %v2530 = vadd.f32 %v2529, %v2112
  %v2531 = vadd.f32 %v2530, %v2114
  %v2532 = vadd.f32 %v2531, %v2153
  %v2533 = vadd.f32 %v2532, %v2155
  %v2534 = vadd.f32 %v2533, %v2194
  %v2535 = vadd.f32 %v2534, %v2196
  %v2536 = vadd.f32 %v2535, %v2235
  %v2537 = vadd.f32 %v2536, %v2237
  %v2538 = vadd.f32 %v2537, %v2276
  %v2539 = vadd.f32 %v2538, %v2278
  %v2540 = vadd.f32 %v2539, %v2317
  %v2541 = vadd.f32 %v2540, %v2319
  %v2542 = vadd.f32 %v2541, %v2358
  %v2543 = vadd.f32 %v2542, %v2360
  %v2544 = vadd.f32 %v2543, %v2399
  %v2545 = vadd.f32 %v2544, %v2401
  %v2546 = vadd.f32 %v2545, %v2440
  %v2547 = vadd.f32 %v2546, %v2442
  %v2548 = vadd.f32 %v2547, %v2481
  %v2549 = vadd.f32 %v2548, %v2483
  %2550 = vadd.xlane.f32.xlu0 %v2549
  %v2551 = vpop.xlane.xlu0 %2550
  %v2552 = vmul.f32 %v1210, %v1210
  %v2553 = vmul.f32 %v1212, %v1212
  %v2554 = vmul.f32 %v1251, %v1251
  %v2555 = vmul.f32 %v1253, %v1253
  %v2556 = vmul.f32 %v1292, %v1292
  %v2557 = vmul.f32 %v1294, %v1294
  %v2558 = vmul.f32 %v1333, %v1333
  %v2559 = vmul.f32 %v1335, %v1335
  %v2560 = vmul.f32 %v1374, %v1374
  %v2561 = vmul.f32 %v1376, %v1376
  %v2562 = vmul.f32 %v1415, %v1415
  %v2563 = vmul.f32 %v1417, %v1417
  %v2564 = vmul.f32 %v1456, %v1456
  %v2565 = vmul.f32 %v1458, %v1458
  %v2566 = vmul.f32 %v1497, %v1497
  %v2567 = vmul.f32 %v1499, %v1499
  %v2568 = vmul.f32 %v1538, %v1538
  %v2569 = vmul.f32 %v1540, %v1540
  %v2570 = vmul.f32 %v1579, %v1579
  %v2571 = vmul.f32 %v1581, %v1581
  %v2572 = vmul.f32 %v1620, %v1620
  %v2573 = vmul.f32 %v1622, %v1622
  %v2574 = vmul.f32 %v1661, %v1661
  %v2575 = vmul.f32 %v1663, %v1663
  %v2576 = vmul.f32 %v1702, %v1702
  %v2577 = vmul.f32 %v1704, %v1704
  %v2578 = vmul.f32 %v1743, %v1743
  %v2579 = vmul.f32 %v1745, %v1745
  %v2580 = vmul.f32 %v1784, %v1784
  %v2581 = vmul.f32 %v1786, %v1786
  %v2582 = vmul.f32 %v1825, %v1825
  %v2583 = vmul.f32 %v1827, %v1827
  %v2584 = vmul.f32 %v1866, %v1866
  %v2585 = vmul.f32 %v1868, %v1868
  %v2586 = vmul.f32 %v1907, %v1907
  %v2587 = vmul.f32 %v1909, %v1909
  %v2588 = vmul.f32 %v1948, %v1948
  %v2589 = vmul.f32 %v1950, %v1950
  %v2590 = vmul.f32 %v1989, %v1989
  %v2591 = vmul.f32 %v1991, %v1991
  %v2592 = vmul.f32 %v2030, %v2030
  %v2593 = vmul.f32 %v2032, %v2032
  %v2594 = vmul.f32 %v2071, %v2071
  %v2595 = vmul.f32 %v2073, %v2073
  %v2596 = vmul.f32 %v2112, %v2112
  %v2597 = vmul.f32 %v2114, %v2114
  %v2598 = vmul.f32 %v2153, %v2153
  %v2599 = vmul.f32 %v2155, %v2155
  %v2600 = vmul.f32 %v2194, %v2194
  %v2601 = vmul.f32 %v2196, %v2196
  %v2602 = vmul.f32 %v2235, %v2235
  %v2603 = vmul.f32 %v2237, %v2237
  %v2604 = vmul.f32 %v2276, %v2276
  %v2605 = vmul.f32 %v2278, %v2278
  %v2606 = vmul.f32 %v2317, %v2317
  %v2607 = vmul.f32 %v2319, %v2319
  %v2608 = vmul.f32 %v2358, %v2358
  %v2609 = vmul.f32 %v2360, %v2360
  %v2610 = vmul.f32 %v2399, %v2399
  %v2611 = vmul.f32 %v2401, %v2401
  %v2612 = vmul.f32 %v2440, %v2440
  %v2613 = vmul.f32 %v2442, %v2442
  %v2614 = vmul.f32 %v2481, %v2481
  %v2615 = vmul.f32 %v2483, %v2483
  %v2616 = vadd.f32 %v2552, %v2553
  %v2617 = vadd.f32 %v2616, %v2554
  %v2618 = vadd.f32 %v2617, %v2555
  %v2619 = vadd.f32 %v2618, %v2556
  %v2620 = vadd.f32 %v2619, %v2557
  %v2621 = vadd.f32 %v2620, %v2558
  %v2622 = vadd.f32 %v2621, %v2559
  %v2623 = vadd.f32 %v2622, %v2560
  %v2624 = vadd.f32 %v2623, %v2561
  %v2625 = vadd.f32 %v2624, %v2562
  %v2626 = vadd.f32 %v2625, %v2563
  %v2627 = vadd.f32 %v2626, %v2564
  %v2628 = vadd.f32 %v2627, %v2565
  %v2629 = vadd.f32 %v2628, %v2566
  %v2630 = vadd.f32 %v2629, %v2567
  %v2631 = vadd.f32 %v2630, %v2568
  %v2632 = vadd.f32 %v2631, %v2569
  %v2633 = vadd.f32 %v2632, %v2570
  %v2634 = vadd.f32 %v2633, %v2571
  %v2635 = vadd.f32 %v2634, %v2572
  %v2636 = vadd.f32 %v2635, %v2573
  %v2637 = vadd.f32 %v2636, %v2574
  %v2638 = vadd.f32 %v2637, %v2575
  %v2639 = vadd.f32 %v2638, %v2576
  %v2640 = vadd.f32 %v2639, %v2577
  %v2641 = vadd.f32 %v2640, %v2578
  %v2642 = vadd.f32 %v2641, %v2579
  %v2643 = vadd.f32 %v2642, %v2580
  %v2644 = vadd.f32 %v2643, %v2581
  %v2645 = vadd.f32 %v2644, %v2582
  %v2646 = vadd.f32 %v2645, %v2583
  %v2647 = vadd.f32 %v2646, %v2584
  %v2648 = vadd.f32 %v2647, %v2585
  %v2649 = vadd.f32 %v2648, %v2586
  %v2650 = vadd.f32 %v2649, %v2587
  %v2651 = vadd.f32 %v2650, %v2588
  %v2652 = vadd.f32 %v2651, %v2589
  %v2653 = vadd.f32 %v2652, %v2590
  %v2654 = vadd.f32 %v2653, %v2591
  %v2655 = vadd.f32 %v2654, %v2592
  %v2656 = vadd.f32 %v2655, %v2593
  %v2657 = vadd.f32 %v2656, %v2594
  %v2658 = vadd.f32 %v2657, %v2595
  %v2659 = vadd.f32 %v2658, %v2596
  %v2660 = vadd.f32 %v2659, %v2597
  %v2661 = vadd.f32 %v2660, %v2598
  %v2662 = vadd.f32 %v2661, %v2599
  %v2663 = vadd.f32 %v2662, %v2600
  %v2664 = vadd.f32 %v2663, %v2601
  %v2665 = vadd.f32 %v2664, %v2602
  %v2666 = vadd.f32 %v2665, %v2603
  %v2667 = vadd.f32 %v2666, %v2604
  %v2668 = vadd.f32 %v2667, %v2605
  %v2669 = vadd.f32 %v2668, %v2606
  %v2670 = vadd.f32 %v2669, %v2607
  %v2671 = vadd.f32 %v2670, %v2608
  %v2672 = vadd.f32 %v2671, %v2609
  %v2673 = vadd.f32 %v2672, %v2610
  %v2674 = vadd.f32 %v2673, %v2611
  %v2675 = vadd.f32 %v2674, %v2612
  %v2676 = vadd.f32 %v2675, %v2613
  %v2677 = vadd.f32 %v2676, %v2614
  %v2678 = vadd.f32 %v2677, %v2615
  %2679 = vadd.xlane.f32.xlu0 %v2678
  %v2680 = vpop.xlane.xlu0 %2679
  %v2681 = vlaneseq
  %v2682 = vshrl.u32 %v2681, 7
  %vm2683 = vcmp.lt.s32.totalorder %v2682, 0
  %v2684 = vsub.s32 0, %v2682
  %v2685 = vsel %vm2683, %v2684, %v2682
  %v2686 = vshrl.u32 %v2685, 1
  %v2687 = vand.u32 %v2685, 1
  %v2688 = vsub.s32 0, %v2687
  %v2689 = vsel %vm2683, %v2688, %v2687
  %vm2690 = vcmp.ne.s32.totalorder %v2689, 0
  %vm2691 = vcmp.lt.s32.totalorder %v2689, 0
  %vm2692 = vmand %vm2691, %vm2690
  %v2693 = vadd.s32 %v2689, 2
  %v2694 = vsel %vm2692, %v2693, %v2689
  %v2695 = vlaneseq
  %v2696 = vand.u32 %v2695, 127
  %vm2697 = vcmp.eq.s32.totalorder %v2694, %v2696
  %v2698 = vsel %vm2697, 1, 0
  %v2699 = vcvt.s32.f32 %v2698
  %v2700 = vmul.f32 %v2699, %v2551
  %vm2701 = vcmask 15360
  %v2702 = vsel %vm2701, %v2700, 0.0
  %v2703 = vrot.slane %v2702, 4
  %v2704 = vadd.f32 %v2702, %v2703
  %v2705 = vrot.slane %v2704, 2
  %v2706 = vadd.f32 %v2704, %v2705
  %v2707 = vrot.slane %v2706, 1
  %v2708 = vadd.f32 %v2706, %v2707
  %v2709 = vmul.f32 %v2699, %v2680
  %v2710 = vsel %vm2701, %v2709, 0.0
  %v2711 = vrot.slane %v2710, 4
  %v2712 = vadd.f32 %v2710, %v2711
  %v2713 = vrot.slane %v2712, 2
  %v2714 = vadd.f32 %v2712, %v2713
  %v2715 = vrot.slane %v2714, 1
  %v2716 = vadd.f32 %v2714, %v2715
  %v2717 = vmul.f32 %v2708, 3.0517578e-05
  %v2718 = vmul.f32 %v2716, 3.0517578e-05
  %v2719 = vmul.f32 %v2717, %v2717
  %v2720 = vsub.f32 %v2718, %v2719
  %v2721 = vmax.f32 %v2720, 0.0
  %v2722 = vld [vmem:[%s2] sm:$0x1]
  %v2723 = vadd.f32 %v2721, 1e-05
  %v2724 = vrsqrt.pop %v2723
  %v2725 = vmul.f32 %v2722, %v2724
  %v2726 = vld [vmem:[%s3] sm:$0x1]
  %v2727 = vmul.f32 %v2717, %v2725
  %v2728 = vsub.f32 %v2726, %v2727
  %v2730 = vlaneseq
  %v2731 = vshrl.u32 %v2730, 7
  %v2732 = vsub.s32 0, %v2731
  %v2733 = vrot.slane %v2725, %v2732
  %v2735 = vmul.f32 %v2699, %v2733
  %v2736 = vsel %vm2701, %v2735, 0.0
  %2737 = vadd.xlane.f32.xlu0 %v2736
  %v2738 = vpop.xlane.xlu0 %2737
  %v2740 = vlaneseq
  %v2741 = vshrl.u32 %v2740, 7
  %v2742 = vsub.s32 0, %v2741
  %v2743 = vrot.slane %v2728, %v2742
  %v2745 = vmul.f32 %v2699, %v2743
  %v2746 = vsel %vm2701, %v2745, 0.0
  %2747 = vadd.xlane.f32.xlu0 %v2746
  %v2748 = vpop.xlane.xlu0 %2747
  %v2749 = vmul.f32 %v1210, %v2738
  %v2750 = vmul.f32 %v1212, %v2738
  %v2751 = vmul.f32 %v1251, %v2738
  %v2752 = vmul.f32 %v1253, %v2738
  %v2753 = vmul.f32 %v1292, %v2738
  %v2754 = vmul.f32 %v1294, %v2738
  %v2755 = vmul.f32 %v1333, %v2738
  %v2756 = vmul.f32 %v1335, %v2738
  %v2757 = vmul.f32 %v1374, %v2738
  %v2758 = vmul.f32 %v1376, %v2738
  %v2759 = vmul.f32 %v1415, %v2738
  %v2760 = vmul.f32 %v1417, %v2738
  %v2761 = vmul.f32 %v1456, %v2738
  %v2762 = vmul.f32 %v1458, %v2738
  %v2763 = vmul.f32 %v1497, %v2738
  %v2764 = vmul.f32 %v1499, %v2738
  %v2765 = vmul.f32 %v1538, %v2738
  %v2766 = vmul.f32 %v1540, %v2738
  %v2767 = vmul.f32 %v1579, %v2738
  %v2768 = vmul.f32 %v1581, %v2738
  %v2769 = vmul.f32 %v1620, %v2738
  %v2770 = vmul.f32 %v1622, %v2738
  %v2771 = vmul.f32 %v1661, %v2738
  %v2772 = vmul.f32 %v1663, %v2738
  %v2773 = vmul.f32 %v1702, %v2738
  %v2774 = vmul.f32 %v1704, %v2738
  %v2775 = vmul.f32 %v1743, %v2738
  %v2776 = vmul.f32 %v1745, %v2738
  %v2777 = vmul.f32 %v1784, %v2738
  %v2778 = vmul.f32 %v1786, %v2738
  %v2779 = vmul.f32 %v1825, %v2738
  %v2780 = vmul.f32 %v1827, %v2738
  %v2781 = vmul.f32 %v1866, %v2738
  %v2782 = vmul.f32 %v1868, %v2738
  %v2783 = vmul.f32 %v1907, %v2738
  %v2784 = vmul.f32 %v1909, %v2738
  %v2785 = vmul.f32 %v1948, %v2738
  %v2786 = vmul.f32 %v1950, %v2738
  %v2787 = vmul.f32 %v1989, %v2738
  %v2788 = vmul.f32 %v1991, %v2738
  %v2789 = vmul.f32 %v2030, %v2738
  %v2790 = vmul.f32 %v2032, %v2738
  %v2791 = vmul.f32 %v2071, %v2738
  %v2792 = vmul.f32 %v2073, %v2738
  %v2793 = vmul.f32 %v2112, %v2738
  %v2794 = vmul.f32 %v2114, %v2738
  %v2795 = vmul.f32 %v2153, %v2738
  %v2796 = vmul.f32 %v2155, %v2738
  %v2797 = vmul.f32 %v2194, %v2738
  %v2798 = vmul.f32 %v2196, %v2738
  %v2799 = vmul.f32 %v2235, %v2738
  %v2800 = vmul.f32 %v2237, %v2738
  %v2801 = vmul.f32 %v2276, %v2738
  %v2802 = vmul.f32 %v2278, %v2738
  %v2803 = vmul.f32 %v2317, %v2738
  %v2804 = vmul.f32 %v2319, %v2738
  %v2805 = vmul.f32 %v2358, %v2738
  %v2806 = vmul.f32 %v2360, %v2738
  %v2807 = vmul.f32 %v2399, %v2738
  %v2808 = vmul.f32 %v2401, %v2738
  %v2809 = vmul.f32 %v2440, %v2738
  %v2810 = vmul.f32 %v2442, %v2738
  %v2811 = vmul.f32 %v2481, %v2738
  %v2812 = vmul.f32 %v2483, %v2738
  %v2813 = vadd.f32 %v2749, %v2748
  %v2814 = vadd.f32 %v2750, %v2748
  %v2815 = vadd.f32 %v2751, %v2748
  %v2816 = vadd.f32 %v2752, %v2748
  %v2817 = vadd.f32 %v2753, %v2748
  %v2818 = vadd.f32 %v2754, %v2748
  %v2819 = vadd.f32 %v2755, %v2748
  %v2820 = vadd.f32 %v2756, %v2748
  %v2821 = vadd.f32 %v2757, %v2748
  %v2822 = vadd.f32 %v2758, %v2748
  %v2823 = vadd.f32 %v2759, %v2748
  %v2824 = vadd.f32 %v2760, %v2748
  %v2825 = vadd.f32 %v2761, %v2748
  %v2826 = vadd.f32 %v2762, %v2748
  %v2827 = vadd.f32 %v2763, %v2748
  %v2828 = vadd.f32 %v2764, %v2748
  %v2829 = vadd.f32 %v2765, %v2748
  %v2830 = vadd.f32 %v2766, %v2748
  %v2831 = vadd.f32 %v2767, %v2748
  %v2832 = vadd.f32 %v2768, %v2748
  %v2833 = vadd.f32 %v2769, %v2748
  %v2834 = vadd.f32 %v2770, %v2748
  %v2835 = vadd.f32 %v2771, %v2748
  %v2836 = vadd.f32 %v2772, %v2748
  %v2837 = vadd.f32 %v2773, %v2748
  %v2838 = vadd.f32 %v2774, %v2748
  %v2839 = vadd.f32 %v2775, %v2748
  %v2840 = vadd.f32 %v2776, %v2748
  %v2841 = vadd.f32 %v2777, %v2748
  %v2842 = vadd.f32 %v2778, %v2748
  %v2843 = vadd.f32 %v2779, %v2748
  %v2844 = vadd.f32 %v2780, %v2748
  %v2845 = vadd.f32 %v2781, %v2748
  %v2846 = vadd.f32 %v2782, %v2748
  %v2847 = vadd.f32 %v2783, %v2748
  %v2848 = vadd.f32 %v2784, %v2748
  %v2849 = vadd.f32 %v2785, %v2748
  %v2850 = vadd.f32 %v2786, %v2748
  %v2851 = vadd.f32 %v2787, %v2748
  %v2852 = vadd.f32 %v2788, %v2748
  %v2853 = vadd.f32 %v2789, %v2748
  %v2854 = vadd.f32 %v2790, %v2748
  %v2855 = vadd.f32 %v2791, %v2748
  %v2856 = vadd.f32 %v2792, %v2748
  %v2857 = vadd.f32 %v2793, %v2748
  %v2858 = vadd.f32 %v2794, %v2748
  %v2859 = vadd.f32 %v2795, %v2748
  %v2860 = vadd.f32 %v2796, %v2748
  %v2861 = vadd.f32 %v2797, %v2748
  %v2862 = vadd.f32 %v2798, %v2748
  %v2863 = vadd.f32 %v2799, %v2748
  %v2864 = vadd.f32 %v2800, %v2748
  %v2865 = vadd.f32 %v2801, %v2748
  %v2866 = vadd.f32 %v2802, %v2748
  %v2867 = vadd.f32 %v2803, %v2748
  %v2868 = vadd.f32 %v2804, %v2748
  %v2869 = vadd.f32 %v2805, %v2748
  %v2870 = vadd.f32 %v2806, %v2748
  %v2871 = vadd.f32 %v2807, %v2748
  %v2872 = vadd.f32 %v2808, %v2748
  %v2873 = vadd.f32 %v2809, %v2748
  %v2874 = vadd.f32 %v2810, %v2748
  %v2875 = vadd.f32 %v2811, %v2748
  %v2876 = vadd.f32 %v2812, %v2748
  %v2877 = vmax.f32 %v2813, 0.0
  %v2878 = vmax.f32 %v2814, 0.0
  %v2879 = vmax.f32 %v2815, 0.0
  %v2880 = vmax.f32 %v2816, 0.0
  %v2881 = vmax.f32 %v2817, 0.0
  %v2882 = vmax.f32 %v2818, 0.0
  %v2883 = vmax.f32 %v2819, 0.0
  %v2884 = vmax.f32 %v2820, 0.0
  %v2885 = vmax.f32 %v2821, 0.0
  %v2886 = vmax.f32 %v2822, 0.0
  %v2887 = vmax.f32 %v2823, 0.0
  %v2888 = vmax.f32 %v2824, 0.0
  %v2889 = vmax.f32 %v2825, 0.0
  %v2890 = vmax.f32 %v2826, 0.0
  %v2891 = vmax.f32 %v2827, 0.0
  %v2892 = vmax.f32 %v2828, 0.0
  %v2893 = vmax.f32 %v2829, 0.0
  %v2894 = vmax.f32 %v2830, 0.0
  %v2895 = vmax.f32 %v2831, 0.0
  %v2896 = vmax.f32 %v2832, 0.0
  %v2897 = vmax.f32 %v2833, 0.0
  %v2898 = vmax.f32 %v2834, 0.0
  %v2899 = vmax.f32 %v2835, 0.0
  %v2900 = vmax.f32 %v2836, 0.0
  %v2901 = vmax.f32 %v2837, 0.0
  %v2902 = vmax.f32 %v2838, 0.0
  %v2903 = vmax.f32 %v2839, 0.0
  %v2904 = vmax.f32 %v2840, 0.0
  %v2905 = vmax.f32 %v2841, 0.0
  %v2906 = vmax.f32 %v2842, 0.0
  %v2907 = vmax.f32 %v2843, 0.0
  %v2908 = vmax.f32 %v2844, 0.0
  %v2909 = vmax.f32 %v2845, 0.0
  %v2910 = vmax.f32 %v2846, 0.0
  %v2911 = vmax.f32 %v2847, 0.0
  %v2912 = vmax.f32 %v2848, 0.0
  %v2913 = vmax.f32 %v2849, 0.0
  %v2914 = vmax.f32 %v2850, 0.0
  %v2915 = vmax.f32 %v2851, 0.0
  %v2916 = vmax.f32 %v2852, 0.0
  %v2917 = vmax.f32 %v2853, 0.0
  %v2918 = vmax.f32 %v2854, 0.0
  %v2919 = vmax.f32 %v2855, 0.0
  %v2920 = vmax.f32 %v2856, 0.0
  %v2921 = vmax.f32 %v2857, 0.0
  %v2922 = vmax.f32 %v2858, 0.0
  %v2923 = vmax.f32 %v2859, 0.0
  %v2924 = vmax.f32 %v2860, 0.0
  %v2925 = vmax.f32 %v2861, 0.0
  %v2926 = vmax.f32 %v2862, 0.0
  %v2927 = vmax.f32 %v2863, 0.0
  %v2928 = vmax.f32 %v2864, 0.0
  %v2929 = vmax.f32 %v2865, 0.0
  %v2930 = vmax.f32 %v2866, 0.0
  %v2931 = vmax.f32 %v2867, 0.0
  %v2932 = vmax.f32 %v2868, 0.0
  %v2933 = vmax.f32 %v2869, 0.0
  %v2934 = vmax.f32 %v2870, 0.0
  %v2935 = vmax.f32 %v2871, 0.0
  %v2936 = vmax.f32 %v2872, 0.0
  %v2937 = vmax.f32 %v2873, 0.0
  %v2938 = vmax.f32 %v2874, 0.0
  %v2939 = vmax.f32 %v2875, 0.0
  %v2940 = vmax.f32 %v2876, 0.0
  %2941 = vst [vmem:[%s4] sm:$0xff] %v2877
  %2942 = vst [vmem:[%s4 + $0x8] sm:$0xff] %v2878
  %2943 = vst [vmem:[%s4 + $0x10] sm:$0xff] %v2879
  %2944 = vst [vmem:[%s4 + $0x18] sm:$0xff] %v2880
  %2945 = vst [vmem:[%s4 + $0x20] sm:$0xff] %v2881
  %2946 = vst [vmem:[%s4 + $0x28] sm:$0xff] %v2882
  %2947 = vst [vmem:[%s4 + $0x30] sm:$0xff] %v2883
  %2948 = vst [vmem:[%s4 + $0x38] sm:$0xff] %v2884
  %2949 = vst [vmem:[%s4 + $0x40] sm:$0xff] %v2885
  %2950 = vst [vmem:[%s4 + $0x48] sm:$0xff] %v2886
  %2951 = vst [vmem:[%s4 + $0x50] sm:$0xff] %v2887
  %2952 = vst [vmem:[%s4 + $0x58] sm:$0xff] %v2888
  %2953 = vst [vmem:[%s4 + $0x60] sm:$0xff] %v2889
  %2954 = vst [vmem:[%s4 + $0x68] sm:$0xff] %v2890
  %2955 = vst [vmem:[%s4 + $0x70] sm:$0xff] %v2891
  %2956 = vst [vmem:[%s4 + $0x78] sm:$0xff] %v2892
  %2957 = vst [vmem:[%s4 + $0x80] sm:$0xff] %v2893
  %2958 = vst [vmem:[%s4 + $0x88] sm:$0xff] %v2894
  %2959 = vst [vmem:[%s4 + $0x90] sm:$0xff] %v2895
  %2960 = vst [vmem:[%s4 + $0x98] sm:$0xff] %v2896
  %2961 = vst [vmem:[%s4 + $0xa0] sm:$0xff] %v2897
  %2962 = vst [vmem:[%s4 + $0xa8] sm:$0xff] %v2898
  %2963 = vst [vmem:[%s4 + $0xb0] sm:$0xff] %v2899
  %2964 = vst [vmem:[%s4 + $0xb8] sm:$0xff] %v2900
  %2965 = vst [vmem:[%s4 + $0xc0] sm:$0xff] %v2901
  %2966 = vst [vmem:[%s4 + $0xc8] sm:$0xff] %v2902
  %2967 = vst [vmem:[%s4 + $0xd0] sm:$0xff] %v2903
  %2968 = vst [vmem:[%s4 + $0xd8] sm:$0xff] %v2904
  %2969 = vst [vmem:[%s4 + $0xe0] sm:$0xff] %v2905
  %2970 = vst [vmem:[%s4 + $0xe8] sm:$0xff] %v2906
  %2971 = vst [vmem:[%s4 + $0xf0] sm:$0xff] %v2907
  %2972 = vst [vmem:[%s4 + $0xf8] sm:$0xff] %v2908
  %2973 = vst [vmem:[%s4 + $0x100] sm:$0xff] %v2909
  %2974 = vst [vmem:[%s4 + $0x108] sm:$0xff] %v2910
  %2975 = vst [vmem:[%s4 + $0x110] sm:$0xff] %v2911
  %2976 = vst [vmem:[%s4 + $0x118] sm:$0xff] %v2912
  %2977 = vst [vmem:[%s4 + $0x120] sm:$0xff] %v2913
  %2978 = vst [vmem:[%s4 + $0x128] sm:$0xff] %v2914
  %2979 = vst [vmem:[%s4 + $0x130] sm:$0xff] %v2915
  %2980 = vst [vmem:[%s4 + $0x138] sm:$0xff] %v2916
  %2981 = vst [vmem:[%s4 + $0x140] sm:$0xff] %v2917
  %2982 = vst [vmem:[%s4 + $0x148] sm:$0xff] %v2918
  %2983 = vst [vmem:[%s4 + $0x150] sm:$0xff] %v2919
  %2984 = vst [vmem:[%s4 + $0x158] sm:$0xff] %v2920
  %2985 = vst [vmem:[%s4 + $0x160] sm:$0xff] %v2921
  %2986 = vst [vmem:[%s4 + $0x168] sm:$0xff] %v2922
  %2987 = vst [vmem:[%s4 + $0x170] sm:$0xff] %v2923
  %2988 = vst [vmem:[%s4 + $0x178] sm:$0xff] %v2924
  %2989 = vst [vmem:[%s4 + $0x180] sm:$0xff] %v2925
  %2990 = vst [vmem:[%s4 + $0x188] sm:$0xff] %v2926
  %2991 = vst [vmem:[%s4 + $0x190] sm:$0xff] %v2927
  %2992 = vst [vmem:[%s4 + $0x198] sm:$0xff] %v2928
  %2993 = vst [vmem:[%s4 + $0x1a0] sm:$0xff] %v2929
  %2994 = vst [vmem:[%s4 + $0x1a8] sm:$0xff] %v2930
  %2995 = vst [vmem:[%s4 + $0x1b0] sm:$0xff] %v2931
  %2996 = vst [vmem:[%s4 + $0x1b8] sm:$0xff] %v2932
  %2997 = vst [vmem:[%s4 + $0x1c0] sm:$0xff] %v2933
  %2998 = vst [vmem:[%s4 + $0x1c8] sm:$0xff] %v2934
  %2999 = vst [vmem:[%s4 + $0x1d0] sm:$0xff] %v2935
  %3000 = vst [vmem:[%s4 + $0x1d8] sm:$0xff] %v2936
  %3001 = vst [vmem:[%s4 + $0x1e0] sm:$0xff] %v2937
  %3002 = vst [vmem:[%s4 + $0x1e8] sm:$0xff] %v2938
  %3003 = vst [vmem:[%s4 + $0x1f0] sm:$0xff] %v2939
  %3004 = vst [vmem:[%s4 + $0x1f8] sm:$0xff] %v2940
  // Predicated region
  $region18: #{generator_forward.12} parent=0 // pred_check
    _
  $region19: #{generator_forward.12} parent=0 // pred_check_branch
    %3006 = sbr.rel (0) target = $region21
  $region20: #{generator_forward.12} parent=0 // pred_region
    _
  $region21: #{generator_forward.12} parent=0 // pred_fallthru
    _
  // Predicated region
  $region22: #{generator_forward.12} parent=0 // pred_check
    _
  $region23: #{generator_forward.12} parent=0 // pred_check_branch
    %3008 = sbr.rel (0) target = $region25
  $region24: #{generator_forward.12} parent=0 // pred_region
    _
  $region25: #{generator_forward.12} parent=0 // pred_fallthru
    _

// kernel: generator_forward.13
$region0: #{generator_forward.13}
  #allocation0 [shape = 'u32[]', space=smem, size = 0x4, offset = 0x4, fixed_abs, tag = 'smem constant byte address 0x4 - core index']
  #allocation1 [shape = 'u32[144,128]{1,0:T(1,128)}', space=vmem, size = 0x12000, scoped, tag = 'internal scratch']
  %s0 = inlined_call_operand.vmem [shape: bf16[4,32], index: 0, kind: input, shape index: {}]
  %s1 = inlined_call_operand.vmem [shape: bf16[32,32768], index: 1, kind: input, shape index: {}]
  %s2 = inlined_call_operand.vmem [shape: f32[4,32768], index: 2, kind: output, shape index: {}]
  %s3 = sld [smem:[#allocation0]]
  $region64: #{generator_forward.13} parent=0
    _
  %s5 = ssub.s32 1, %s3
  %s6 = scalar_select 0, %s5, %s3
  $region1: #{generator_forward.13} parent=0
    #allocation2 [shape = 'u8[1048576]{0}', space=vmem, size = 0x100000, scoped, tag = 'input window, operand 1']
    loop: start=0, step=1, limit=6
    $region2: #{generator_forward.13} parent=1 // loop_pre_header
      _
    $region3: #{generator_forward.13} parent=1 // loop_header
      %s8 = sphi 0, %s12
      %p9 = scmp.ge.s32.totalorder %s8, 6
      %s16 = sphi 0, %s16
      %s18 = sphi 0, %s16
      %s19 = sphi 0, %s18
      %s33 = sphi 0, %s19
      %s39 = sphi 0, %s41
      %s42 = sphi 0, %s39
      %s43 = sphi 0, %s42
      %s59 = sphi 0, %s43
      %s65 = sphi 0, %s67
      %s68 = sphi 0, %s65
      %s69 = sphi 0, %s68
      %s85 = sphi 0, %s69
    $region4: #{generator_forward.13} parent=1 // loop_header_branch
      %11 = sbr.rel (%p9) target = $region8
    $region5: #{generator_forward.13} parent=1 // loop_body
      %s13 = ssub.s32 %s8, 1
      %s14 = ssub.s32 %s8, 2
      %s15 = sadd.s32 %s8, 1
      %s17 = sadd.s32 %s16, 1
      %p20 = scmp.eq.s32.totalorder %s8, 3
      %p21 = scmp.ne.s32.totalorder %s16, %s18
      %p22 = scmp.eq.s32.totalorder %s8, 0
      %p23 = por %p21, %p22
      %p24 = scmp.ne.s32.totalorder %s16, %s18
      %p25 = scmp.eq.s32.totalorder %s13, 3
      %p26 = por %p24, %p25
      %p27 = scmp.ne.s32.totalorder %s18, %s19
      %p28 = scmp.eq.s32.totalorder %s13, 0
      %p29 = por %p27, %p28
      %p30 = scmp.ne.s32.totalorder %s18, %s19
      %p31 = scmp.eq.s32.totalorder %s14, 3
      %p32 = por %p30, %p31
      %p34 = scmp.ne.s32.totalorder %s19, %s33
      %p35 = scmp.eq.s32.totalorder %s14, 0
      %p36 = por %p34, %p35
      %s37 = ssub.s32 %s8, %s15
      %p38 = scmp.eq.s32.totalorder %s37, 0
      %s40 = sadd.s32 %s39, 1
      %s41 = scalar_select %p38, %s39, %s40
      %p44 = pneg %p38
      %p45 = scmp.eq.s32.totalorder %s8, 3
      %p46 = por %p44, %p45
      %p47 = scmp.ne.s32.totalorder %s39, %s42
      %p48 = scmp.eq.s32.totalorder %s8, 0
      %p49 = por %p47, %p48
      %p50 = scmp.ne.s32.totalorder %s39, %s42
      %p51 = scmp.eq.s32.totalorder %s13, 3
      %p52 = por %p50, %p51
      %p53 = scmp.ne.s32.totalorder %s42, %s43
      %p54 = scmp.eq.s32.totalorder %s13, 0
      %p55 = por %p53, %p54
      %p56 = scmp.ne.s32.totalorder %s42, %s43
      %p57 = scmp.eq.s32.totalorder %s14, 3
      %p58 = por %p56, %p57
      %p60 = scmp.ne.s32.totalorder %s43, %s59
      %p61 = scmp.eq.s32.totalorder %s14, 0
      %p62 = por %p60, %p61
      %s63 = ssub.s32 %s8, %s15
      %p64 = scmp.eq.s32.totalorder %s63, 0
      %s66 = sadd.s32 %s65, 1
      %s67 = scalar_select %p64, %s65, %s66
      %p70 = pneg %p64
      %p71 = scmp.eq.s32.totalorder %s8, 3
      %p72 = por %p70, %p71
      %p73 = scmp.ne.s32.totalorder %s65, %s68
      %p74 = scmp.eq.s32.totalorder %s8, 0
      %p75 = por %p73, %p74
      %p76 = scmp.ne.s32.totalorder %s65, %s68
      %p77 = scmp.eq.s32.totalorder %s13, 3
      %p78 = por %p76, %p77
      %p79 = scmp.ne.s32.totalorder %s68, %s69
      %p80 = scmp.eq.s32.totalorder %s13, 0
      %p81 = por %p79, %p80
      %p82 = scmp.ne.s32.totalorder %s68, %s69
      %p83 = scmp.eq.s32.totalorder %s14, 3
      %p84 = por %p82, %p83
      %p86 = scmp.ne.s32.totalorder %s69, %s85
      %p87 = scmp.eq.s32.totalorder %s14, 0
      %p88 = por %p86, %p87
      %p89 = scmp.le.s32.totalorder 1, %s8
      %p90 = scmp.lt.s32.totalorder %s8, 5
      %p91 = pnand %p89, %p90
      %p92 = pneg %p91
      // Predicated region
      $region9: #{generator_forward.13} parent=5 // pred_check
        _
      $region10: #{generator_forward.13} parent=5 // pred_check_branch
        %94 = sbr.rel (%p91) target = $region12
      $region11: #{generator_forward.13} parent=5 // pred_region
        %s95 = ssub.s32 %s8, 1
        // Predicated region
        $region13: #{generator_forward.13} parent=11 // pred_check
          %p96 = pneg %p29
        $region14: #{generator_forward.13} parent=11 // pred_check_branch
          %98 = sbr.rel (%p96) target = $region16
        $region15: #{generator_forward.13} parent=11 // pred_region
          _
        $region16: #{generator_forward.13} parent=11 // pred_fallthru
          _
      $region12: #{generator_forward.13} parent=5 // pred_fallthru
        _
      %p99 = scmp.lt.s32.totalorder %s8, 4
      // Predicated region
      $region17: #{generator_forward.13} parent=5 // pred_check
        %p100 = pneg %p99
      $region18: #{generator_forward.13} parent=5 // pred_check_branch
        %102 = sbr.rel (%p100) target = $region20
      $region19: #{generator_forward.13} parent=5 // pred_region
        // Predicated region
        $region21: #{generator_forward.13} parent=19 // pred_check
          %p103 = pneg %p49
        $region22: #{generator_forward.13} parent=19 // pred_check_branch
          %105 = sbr.rel (%p103) target = $region24
        $region23: #{generator_forward.13} parent=19 // pred_region
          %s106 = sand.u32 %s39, 1
          %s107 = sand.u32 %s39, 1
          %s108 = smul.addr %s107, 1024
          %s109 = scalar_lea.vmem [#allocation2], %s108
          %s110 = smul.u32 64, %s8
          %s111 = smul.addr %s110, 4
          %s112 = scalar_lea.vmem %s1, %s111
          // Predicated region
          $region25: #{generator_forward.13} parent=23 // pred_check
            _
          $region26: #{generator_forward.13} parent=23 // pred_check_branch
            %114 = sbr.rel (0) target = $region28
          $region27: #{generator_forward.13} parent=23 // pred_region
            // Predicated region
            $region29: #{generator_forward.13} parent=27 // pred_check
              _
            $region30: #{generator_forward.13} parent=27 // pred_check_branch
              %116 = sbr.rel (0) target = $region32
            $region31: #{generator_forward.13} parent=27 // pred_region
              loop: start=0, step=1, limit=1
              $region33: #{generator_forward.13} parent=31 // loop_pre_header
                _
              $region34: #{generator_forward.13} parent=31 // loop_header
                %s118 = sphi 0, %s122
                %p119 = scmp.ge.s32.totalorder %s118, 1
                %s123 = sphi %s112, %s112
                %s124 = sphi %s109, %s109
              $region35: #{generator_forward.13} parent=31 // loop_header_branch
                %121 = sbr.rel (%p119) target = $region39
              $region36: #{generator_forward.13} parent=31 // loop_body
                %v125 = vld [vmem:[%s123] sm:$0xff]
                %126 = vst [vmem:[%s124] sm:$0xff] %v125
                %v127 = vld [vmem:[%s123 + $0x8] sm:$0xff]
                %128 = vst [vmem:[%s124 + $0x8] sm:$0xff] %v127
                %v129 = vld [vmem:[%s123 + $0x10] sm:$0xff]
                %130 = vst [vmem:[%s124 + $0x10] sm:$0xff] %v129
                %v131 = vld [vmem:[%s123 + $0x18] sm:$0xff]
                %132 = vst [vmem:[%s124 + $0x18] sm:$0xff] %v131
                %v133 = vld [vmem:[%s123 + $0x20] sm:$0xff]
                %134 = vst [vmem:[%s124 + $0x20] sm:$0xff] %v133
                %v135 = vld [vmem:[%s123 + $0x28] sm:$0xff]
                %136 = vst [vmem:[%s124 + $0x28] sm:$0xff] %v135
                %v137 = vld [vmem:[%s123 + $0x30] sm:$0xff]
                %138 = vst [vmem:[%s124 + $0x30] sm:$0xff] %v137
                %v139 = vld [vmem:[%s123 + $0x38] sm:$0xff]
                %140 = vst [vmem:[%s124 + $0x38] sm:$0xff] %v139
                %v141 = vld [vmem:[%s123 + $0x40] sm:$0xff]
                %142 = vst [vmem:[%s124 + $0x40] sm:$0xff] %v141
                %v143 = vld [vmem:[%s123 + $0x48] sm:$0xff]
                %144 = vst [vmem:[%s124 + $0x48] sm:$0xff] %v143
                %v145 = vld [vmem:[%s123 + $0x50] sm:$0xff]
                %146 = vst [vmem:[%s124 + $0x50] sm:$0xff] %v145
                %v147 = vld [vmem:[%s123 + $0x58] sm:$0xff]
                %148 = vst [vmem:[%s124 + $0x58] sm:$0xff] %v147
                %v149 = vld [vmem:[%s123 + $0x60] sm:$0xff]
                %150 = vst [vmem:[%s124 + $0x60] sm:$0xff] %v149
                %v151 = vld [vmem:[%s123 + $0x68] sm:$0xff]
                %152 = vst [vmem:[%s124 + $0x68] sm:$0xff] %v151
                %v153 = vld [vmem:[%s123 + $0x70] sm:$0xff]
                %154 = vst [vmem:[%s124 + $0x70] sm:$0xff] %v153
                %v155 = vld [vmem:[%s123 + $0x78] sm:$0xff]
                %156 = vst [vmem:[%s124 + $0x78] sm:$0xff] %v155
                %v157 = vld [vmem:[%s123 + $0x80] sm:$0xff]
                %158 = vst [vmem:[%s124 + $0x80] sm:$0xff] %v157
                %v159 = vld [vmem:[%s123 + $0x88] sm:$0xff]
                %160 = vst [vmem:[%s124 + $0x88] sm:$0xff] %v159
                %v161 = vld [vmem:[%s123 + $0x90] sm:$0xff]
                %162 = vst [vmem:[%s124 + $0x90] sm:$0xff] %v161
                %v163 = vld [vmem:[%s123 + $0x98] sm:$0xff]
                %164 = vst [vmem:[%s124 + $0x98] sm:$0xff] %v163
                %v165 = vld [vmem:[%s123 + $0xa0] sm:$0xff]
                %166 = vst [vmem:[%s124 + $0xa0] sm:$0xff] %v165
                %v167 = vld [vmem:[%s123 + $0xa8] sm:$0xff]
                %168 = vst [vmem:[%s124 + $0xa8] sm:$0xff] %v167
                %v169 = vld [vmem:[%s123 + $0xb0] sm:$0xff]
                %170 = vst [vmem:[%s124 + $0xb0] sm:$0xff] %v169
                %v171 = vld [vmem:[%s123 + $0xb8] sm:$0xff]
                %172 = vst [vmem:[%s124 + $0xb8] sm:$0xff] %v171
                %v173 = vld [vmem:[%s123 + $0xc0] sm:$0xff]
                %174 = vst [vmem:[%s124 + $0xc0] sm:$0xff] %v173
                %v175 = vld [vmem:[%s123 + $0xc8] sm:$0xff]
                %176 = vst [vmem:[%s124 + $0xc8] sm:$0xff] %v175
                %v177 = vld [vmem:[%s123 + $0xd0] sm:$0xff]
                %178 = vst [vmem:[%s124 + $0xd0] sm:$0xff] %v177
                %v179 = vld [vmem:[%s123 + $0xd8] sm:$0xff]
                %180 = vst [vmem:[%s124 + $0xd8] sm:$0xff] %v179
                %v181 = vld [vmem:[%s123 + $0xe0] sm:$0xff]
                %182 = vst [vmem:[%s124 + $0xe0] sm:$0xff] %v181
                %v183 = vld [vmem:[%s123 + $0xe8] sm:$0xff]
                %184 = vst [vmem:[%s124 + $0xe8] sm:$0xff] %v183
                %v185 = vld [vmem:[%s123 + $0xf0] sm:$0xff]
                %186 = vst [vmem:[%s124 + $0xf0] sm:$0xff] %v185
                %v187 = vld [vmem:[%s123 + $0xf8] sm:$0xff]
                %188 = vst [vmem:[%s124 + $0xf8] sm:$0xff] %v187
                %v189 = vld [vmem:[%s123 + $0x400] sm:$0xff]
                %190 = vst [vmem:[%s124 + $0x100] sm:$0xff] %v189
                %v191 = vld [vmem:[%s123 + $0x408] sm:$0xff]
                %192 = vst [vmem:[%s124 + $0x108] sm:$0xff] %v191
                %v193 = vld [vmem:[%s123 + $0x410] sm:$0xff]
                %194 = vst [vmem:[%s124 + $0x110] sm:$0xff] %v193
                %v195 = vld [vmem:[%s123 + $0x418] sm:$0xff]
                %196 = vst [vmem:[%s124 + $0x118] sm:$0xff] %v195
                %v197 = vld [vmem:[%s123 + $0x420] sm:$0xff]
                %198 = vst [vmem:[%s124 + $0x120] sm:$0xff] %v197
                %v199 = vld [vmem:[%s123 + $0x428] sm:$0xff]
                %200 = vst [vmem:[%s124 + $0x128] sm:$0xff] %v199
                %v201 = vld [vmem:[%s123 + $0x430] sm:$0xff]
                %202 = vst [vmem:[%s124 + $0x130] sm:$0xff] %v201
                %v203 = vld [vmem:[%s123 + $0x438] sm:$0xff]
                %204 = vst [vmem:[%s124 + $0x138] sm:$0xff] %v203
                %v205 = vld [vmem:[%s123 + $0x440] sm:$0xff]
                %206 = vst [vmem:[%s124 + $0x140] sm:$0xff] %v205
                %v207 = vld [vmem:[%s123 + $0x448] sm:$0xff]
                %208 = vst [vmem:[%s124 + $0x148] sm:$0xff] %v207
                %v209 = vld [vmem:[%s123 + $0x450] sm:$0xff]
                %210 = vst [vmem:[%s124 + $0x150] sm:$0xff] %v209
                %v211 = vld [vmem:[%s123 + $0x458] sm:$0xff]
                %212 = vst [vmem:[%s124 + $0x158] sm:$0xff] %v211
                %v213 = vld [vmem:[%s123 + $0x460] sm:$0xff]
                %214 = vst [vmem:[%s124 + $0x160] sm:$0xff] %v213
                %v215 = vld [vmem:[%s123 + $0x468] sm:$0xff]
                %216 = vst [vmem:[%s124 + $0x168] sm:$0xff] %v215
                %v217 = vld [vmem:[%s123 + $0x470] sm:$0xff]
                %218 = vst [vmem:[%s124 + $0x170] sm:$0xff] %v217
                %v219 = vld [vmem:[%s123 + $0x478] sm:$0xff]
                %220 = vst [vmem:[%s124 + $0x178] sm:$0xff] %v219
                %v221 = vld [vmem:[%s123 + $0x480] sm:$0xff]
                %222 = vst [vmem:[%s124 + $0x180] sm:$0xff] %v221
                %v223 = vld [vmem:[%s123 + $0x488] sm:$0xff]
                %224 = vst [vmem:[%s124 + $0x188] sm:$0xff] %v223
                %v225 = vld [vmem:[%s123 + $0x490] sm:$0xff]
                %226 = vst [vmem:[%s124 + $0x190] sm:$0xff] %v225
                %v227 = vld [vmem:[%s123 + $0x498] sm:$0xff]
                %228 = vst [vmem:[%s124 + $0x198] sm:$0xff] %v227
                %v229 = vld [vmem:[%s123 + $0x4a0] sm:$0xff]
                %230 = vst [vmem:[%s124 + $0x1a0] sm:$0xff] %v229
                %v231 = vld [vmem:[%s123 + $0x4a8] sm:$0xff]
                %232 = vst [vmem:[%s124 + $0x1a8] sm:$0xff] %v231
                %v233 = vld [vmem:[%s123 + $0x4b0] sm:$0xff]
                %234 = vst [vmem:[%s124 + $0x1b0] sm:$0xff] %v233
                %v235 = vld [vmem:[%s123 + $0x4b8] sm:$0xff]
                %236 = vst [vmem:[%s124 + $0x1b8] sm:$0xff] %v235
                %v237 = vld [vmem:[%s123 + $0x4c0] sm:$0xff]
                %238 = vst [vmem:[%s124 + $0x1c0] sm:$0xff] %v237
                %v239 = vld [vmem:[%s123 + $0x4c8] sm:$0xff]
                %240 = vst [vmem:[%s124 + $0x1c8] sm:$0xff] %v239
                %v241 = vld [vmem:[%s123 + $0x4d0] sm:$0xff]
                %242 = vst [vmem:[%s124 + $0x1d0] sm:$0xff] %v241
                %v243 = vld [vmem:[%s123 + $0x4d8] sm:$0xff]
                %244 = vst [vmem:[%s124 + $0x1d8] sm:$0xff] %v243
                %v245 = vld [vmem:[%s123 + $0x4e0] sm:$0xff]
                %246 = vst [vmem:[%s124 + $0x1e0] sm:$0xff] %v245
                %v247 = vld [vmem:[%s123 + $0x4e8] sm:$0xff]
                %248 = vst [vmem:[%s124 + $0x1e8] sm:$0xff] %v247
                %v249 = vld [vmem:[%s123 + $0x4f0] sm:$0xff]
                %250 = vst [vmem:[%s124 + $0x1f0] sm:$0xff] %v249
                %v251 = vld [vmem:[%s123 + $0x4f8] sm:$0xff]
                %252 = vst [vmem:[%s124 + $0x1f8] sm:$0xff] %v251
                %v253 = vld [vmem:[%s123 + $0x800] sm:$0xff]
                %254 = vst [vmem:[%s124 + $0x200] sm:$0xff] %v253
                %v255 = vld [vmem:[%s123 + $0x808] sm:$0xff]
                %256 = vst [vmem:[%s124 + $0x208] sm:$0xff] %v255
                %v257 = vld [vmem:[%s123 + $0x810] sm:$0xff]
                %258 = vst [vmem:[%s124 + $0x210] sm:$0xff] %v257
                %v259 = vld [vmem:[%s123 + $0x818] sm:$0xff]
                %260 = vst [vmem:[%s124 + $0x218] sm:$0xff] %v259
                %v261 = vld [vmem:[%s123 + $0x820] sm:$0xff]
                %262 = vst [vmem:[%s124 + $0x220] sm:$0xff] %v261
                %v263 = vld [vmem:[%s123 + $0x828] sm:$0xff]
                %264 = vst [vmem:[%s124 + $0x228] sm:$0xff] %v263
                %v265 = vld [vmem:[%s123 + $0x830] sm:$0xff]
                %266 = vst [vmem:[%s124 + $0x230] sm:$0xff] %v265
                %v267 = vld [vmem:[%s123 + $0x838] sm:$0xff]
                %268 = vst [vmem:[%s124 + $0x238] sm:$0xff] %v267
                %v269 = vld [vmem:[%s123 + $0x840] sm:$0xff]
                %270 = vst [vmem:[%s124 + $0x240] sm:$0xff] %v269
                %v271 = vld [vmem:[%s123 + $0x848] sm:$0xff]
                %272 = vst [vmem:[%s124 + $0x248] sm:$0xff] %v271
                %v273 = vld [vmem:[%s123 + $0x850] sm:$0xff]
                %274 = vst [vmem:[%s124 + $0x250] sm:$0xff] %v273
                %v275 = vld [vmem:[%s123 + $0x858] sm:$0xff]
                %276 = vst [vmem:[%s124 + $0x258] sm:$0xff] %v275
                %v277 = vld [vmem:[%s123 + $0x860] sm:$0xff]
                %278 = vst [vmem:[%s124 + $0x260] sm:$0xff] %v277
                %v279 = vld [vmem:[%s123 + $0x868] sm:$0xff]
                %280 = vst [vmem:[%s124 + $0x268] sm:$0xff] %v279
                %v281 = vld [vmem:[%s123 + $0x870] sm:$0xff]
                %282 = vst [vmem:[%s124 + $0x270] sm:$0xff] %v281
                %v283 = vld [vmem:[%s123 + $0x878] sm:$0xff]
                %284 = vst [vmem:[%s124 + $0x278] sm:$0xff] %v283
                %v285 = vld [vmem:[%s123 + $0x880] sm:$0xff]
                %286 = vst [vmem:[%s124 + $0x280] sm:$0xff] %v285
                %v287 = vld [vmem:[%s123 + $0x888] sm:$0xff]
                %288 = vst [vmem:[%s124 + $0x288] sm:$0xff] %v287
                %v289 = vld [vmem:[%s123 + $0x890] sm:$0xff]
                %290 = vst [vmem:[%s124 + $0x290] sm:$0xff] %v289
                %v291 = vld [vmem:[%s123 + $0x898] sm:$0xff]
                %292 = vst [vmem:[%s124 + $0x298] sm:$0xff] %v291
                %v293 = vld [vmem:[%s123 + $0x8a0] sm:$0xff]
                %294 = vst [vmem:[%s124 + $0x2a0] sm:$0xff] %v293
                %v295 = vld [vmem:[%s123 + $0x8a8] sm:$0xff]
                %296 = vst [vmem:[%s124 + $0x2a8] sm:$0xff] %v295
                %v297 = vld [vmem:[%s123 + $0x8b0] sm:$0xff]
                %298 = vst [vmem:[%s124 + $0x2b0] sm:$0xff] %v297
                %v299 = vld [vmem:[%s123 + $0x8b8] sm:$0xff]
                %300 = vst [vmem:[%s124 + $0x2b8] sm:$0xff] %v299
                %v301 = vld [vmem:[%s123 + $0x8c0] sm:$0xff]
                %302 = vst [vmem:[%s124 + $0x2c0] sm:$0xff] %v301
                %v303 = vld [vmem:[%s123 + $0x8c8] sm:$0xff]
                %304 = vst [vmem:[%s124 + $0x2c8] sm:$0xff] %v303
                %v305 = vld [vmem:[%s123 + $0x8d0] sm:$0xff]
                %306 = vst [vmem:[%s124 + $0x2d0] sm:$0xff] %v305
                %v307 = vld [vmem:[%s123 + $0x8d8] sm:$0xff]
                %308 = vst [vmem:[%s124 + $0x2d8] sm:$0xff] %v307
                %v309 = vld [vmem:[%s123 + $0x8e0] sm:$0xff]
                %310 = vst [vmem:[%s124 + $0x2e0] sm:$0xff] %v309
                %v311 = vld [vmem:[%s123 + $0x8e8] sm:$0xff]
                %312 = vst [vmem:[%s124 + $0x2e8] sm:$0xff] %v311
                %v313 = vld [vmem:[%s123 + $0x8f0] sm:$0xff]
                %314 = vst [vmem:[%s124 + $0x2f0] sm:$0xff] %v313
                %v315 = vld [vmem:[%s123 + $0x8f8] sm:$0xff]
                %316 = vst [vmem:[%s124 + $0x2f8] sm:$0xff] %v315
                %v317 = vld [vmem:[%s123 + $0xc00] sm:$0xff]
                %318 = vst [vmem:[%s124 + $0x300] sm:$0xff] %v317
                %v319 = vld [vmem:[%s123 + $0xc08] sm:$0xff]
                %320 = vst [vmem:[%s124 + $0x308] sm:$0xff] %v319
                %v321 = vld [vmem:[%s123 + $0xc10] sm:$0xff]
                %322 = vst [vmem:[%s124 + $0x310] sm:$0xff] %v321
                %v323 = vld [vmem:[%s123 + $0xc18] sm:$0xff]
                %324 = vst [vmem:[%s124 + $0x318] sm:$0xff] %v323
                %v325 = vld [vmem:[%s123 + $0xc20] sm:$0xff]
                %326 = vst [vmem:[%s124 + $0x320] sm:$0xff] %v325
                %v327 = vld [vmem:[%s123 + $0xc28] sm:$0xff]
                %328 = vst [vmem:[%s124 + $0x328] sm:$0xff] %v327
                %v329 = vld [vmem:[%s123 + $0xc30] sm:$0xff]
                %330 = vst [vmem:[%s124 + $0x330] sm:$0xff] %v329
                %v331 = vld [vmem:[%s123 + $0xc38] sm:$0xff]
                %332 = vst [vmem:[%s124 + $0x338] sm:$0xff] %v331
                %v333 = vld [vmem:[%s123 + $0xc40] sm:$0xff]
                %334 = vst [vmem:[%s124 + $0x340] sm:$0xff] %v333
                %v335 = vld [vmem:[%s123 + $0xc48] sm:$0xff]
                %336 = vst [vmem:[%s124 + $0x348] sm:$0xff] %v335
                %v337 = vld [vmem:[%s123 + $0xc50] sm:$0xff]
                %338 = vst [vmem:[%s124 + $0x350] sm:$0xff] %v337
                %v339 = vld [vmem:[%s123 + $0xc58] sm:$0xff]
                %340 = vst [vmem:[%s124 + $0x358] sm:$0xff] %v339
                %v341 = vld [vmem:[%s123 + $0xc60] sm:$0xff]
                %342 = vst [vmem:[%s124 + $0x360] sm:$0xff] %v341
                %v343 = vld [vmem:[%s123 + $0xc68] sm:$0xff]
                %344 = vst [vmem:[%s124 + $0x368] sm:$0xff] %v343
                %v345 = vld [vmem:[%s123 + $0xc70] sm:$0xff]
                %346 = vst [vmem:[%s124 + $0x370] sm:$0xff] %v345
                %v347 = vld [vmem:[%s123 + $0xc78] sm:$0xff]
                %348 = vst [vmem:[%s124 + $0x378] sm:$0xff] %v347
                %v349 = vld [vmem:[%s123 + $0xc80] sm:$0xff]
                %350 = vst [vmem:[%s124 + $0x380] sm:$0xff] %v349
                %v351 = vld [vmem:[%s123 + $0xc88] sm:$0xff]
                %352 = vst [vmem:[%s124 + $0x388] sm:$0xff] %v351
                %v353 = vld [vmem:[%s123 + $0xc90] sm:$0xff]
                %354 = vst [vmem:[%s124 + $0x390] sm:$0xff] %v353
                %v355 = vld [vmem:[%s123 + $0xc98] sm:$0xff]
                %356 = vst [vmem:[%s124 + $0x398] sm:$0xff] %v355
                %v357 = vld [vmem:[%s123 + $0xca0] sm:$0xff]
                %358 = vst [vmem:[%s124 + $0x3a0] sm:$0xff] %v357
                %v359 = vld [vmem:[%s123 + $0xca8] sm:$0xff]
                %360 = vst [vmem:[%s124 + $0x3a8] sm:$0xff] %v359
                %v361 = vld [vmem:[%s123 + $0xcb0] sm:$0xff]
                %362 = vst [vmem:[%s124 + $0x3b0] sm:$0xff] %v361
                %v363 = vld [vmem:[%s123 + $0xcb8] sm:$0xff]
                %364 = vst [vmem:[%s124 + $0x3b8] sm:$0xff] %v363
                %v365 = vld [vmem:[%s123 + $0xcc0] sm:$0xff]
                %366 = vst [vmem:[%s124 + $0x3c0] sm:$0xff] %v365
                %v367 = vld [vmem:[%s123 + $0xcc8] sm:$0xff]
                %368 = vst [vmem:[%s124 + $0x3c8] sm:$0xff] %v367
                %v369 = vld [vmem:[%s123 + $0xcd0] sm:$0xff]
                %370 = vst [vmem:[%s124 + $0x3d0] sm:$0xff] %v369
                %v371 = vld [vmem:[%s123 + $0xcd8] sm:$0xff]
                %372 = vst [vmem:[%s124 + $0x3d8] sm:$0xff] %v371
                %v373 = vld [vmem:[%s123 + $0xce0] sm:$0xff]
                %374 = vst [vmem:[%s124 + $0x3e0] sm:$0xff] %v373
                %v375 = vld [vmem:[%s123 + $0xce8] sm:$0xff]
                %376 = vst [vmem:[%s124 + $0x3e8] sm:$0xff] %v375
                %v377 = vld [vmem:[%s123 + $0xcf0] sm:$0xff]
                %378 = vst [vmem:[%s124 + $0x3f0] sm:$0xff] %v377
                %v379 = vld [vmem:[%s123 + $0xcf8] sm:$0xff]
                %380 = vst [vmem:[%s124 + $0x3f8] sm:$0xff] %v379
              $region37: #{generator_forward.13} parent=31 // loop_footer
                %s122 = sadd.s32 1, %s118
              $region38: #{generator_forward.13} parent=31 // loop_footer_branch
                %117 = sbr.rel target = $region34
              $region39: #{generator_forward.13} parent=31 // loop_exit
                _
            $region32: #{generator_forward.13} parent=27 // pred_fallthru
              _
            // Predicated region
            $region40: #{generator_forward.13} parent=27 // pred_check
              _
            $region41: #{generator_forward.13} parent=27 // pred_check_branch
              %382 = sbr.rel target = $region43
            $region42: #{generator_forward.13} parent=27 // pred_region
              _
            $region43: #{generator_forward.13} parent=27 // pred_fallthru
              _
          $region28: #{generator_forward.13} parent=23 // pred_fallthru
            _
          %383 = vnop
        $region24: #{generator_forward.13} parent=19 // pred_fallthru
          _
      $region20: #{generator_forward.13} parent=5 // pred_fallthru
        _
      %p384 = scmp.le.s32.totalorder 1, %s8
      %p385 = scmp.lt.s32.totalorder %s8, 5
      %p386 = pnand %p384, %p385
      %p387 = pneg %p386
      // Predicated region
      $region44: #{generator_forward.13} parent=5 // pred_check
        _
      $region45: #{generator_forward.13} parent=5 // pred_check_branch
        %389 = sbr.rel (%p386) target = $region47
      $region46: #{generator_forward.13} parent=5 // pred_region
        %s390 = ssub.s32 %s8, 1
        %s391 = sand.u32 %s42, 1
        %s392 = sand.u32 %s42, 1
        %s393 = smul.addr %s392, 1024
        %s394 = scalar_lea.vmem [#allocation2], %s393
        // Predicated region
        $region48: #{generator_forward.13} parent=46 // pred_check
          %p395 = pneg %p55
        $region49: #{generator_forward.13} parent=46 // pred_check_branch
          %397 = sbr.rel (%p395) target = $region51
        $region50: #{generator_forward.13} parent=46 // pred_region
          _
        $region51: #{generator_forward.13} parent=46 // pred_fallthru
          _
        %p398 = pneg %p29
        %p399 = pneg %p26
        %s400 = sand.u32 %s42, 1
        %s401 = sand.u32 %s42, 1
        %s402 = smul.addr %s401, 1024
        %s403 = scalar_lea.vmem [#allocation2], %s402
        %p404 = pneg %p55
        %p405 = pneg %p52
        %p406 = pneg %p81
        %p407 = pneg %p78
        %s408 = smul.u32 64, %s13
        %p409 = scmp.lt.s32.totalorder %s408, 255
        %s410 = scalar_select %p409, %s408, 255
        %s411 = smul.addr %s410, 4
        %s412 = scalar_lea.vmem %s2, %s411
        %s413 = smul.u32 64, %s13
        %s414 = smul.u32 64, %s13
        %p415 = scmp.lt.s32.totalorder %s414, 255
        %s416 = scalar_select %p415, %s414, 255
        %s417 = smul.addr %s416, 4
        %s418 = scalar_lea.vmem %s2, %s417
        %s419 = smul.u32 64, %s13
        %v421 = vld [vmem:[%s0] sm:$0x3]
        %v422 = vld [vmem:[%s394] sm:$0xff]
        %v423 = vld [vmem:[%s394 + $0x8] sm:$0xff]
        %v424 = vld [vmem:[%s394 + $0x10] sm:$0xff]
        %v425 = vld [vmem:[%s394 + $0x18] sm:$0xff]
        %v426 = vld [vmem:[%s394 + $0x20] sm:$0xff]
        %v427 = vld [vmem:[%s394 + $0x28] sm:$0xff]
        %v428 = vld [vmem:[%s394 + $0x30] sm:$0xff]
        %v429 = vld [vmem:[%s394 + $0x38] sm:$0xff]
        %v430 = vld [vmem:[%s394 + $0x40] sm:$0xff]
        %v431 = vld [vmem:[%s394 + $0x48] sm:$0xff]
        %v432 = vld [vmem:[%s394 + $0x50] sm:$0xff]
        %v433 = vld [vmem:[%s394 + $0x58] sm:$0xff]
        %v434 = vld [vmem:[%s394 + $0x60] sm:$0xff]
        %v435 = vld [vmem:[%s394 + $0x68] sm:$0xff]
        %v436 = vld [vmem:[%s394 + $0x70] sm:$0xff]
        %v437 = vld [vmem:[%s394 + $0x78] sm:$0xff]
        %v438 = vld [vmem:[%s394 + $0x80] sm:$0xff]
        %v439 = vld [vmem:[%s394 + $0x88] sm:$0xff]
        %v440 = vld [vmem:[%s394 + $0x90] sm:$0xff]
        %v441 = vld [vmem:[%s394 + $0x98] sm:$0xff]
        %v442 = vld [vmem:[%s394 + $0xa0] sm:$0xff]
        %v443 = vld [vmem:[%s394 + $0xa8] sm:$0xff]
        %v444 = vld [vmem:[%s394 + $0xb0] sm:$0xff]
        %v445 = vld [vmem:[%s394 + $0xb8] sm:$0xff]
        %v446 = vld [vmem:[%s394 + $0xc0] sm:$0xff]
        %v447 = vld [vmem:[%s394 + $0xc8] sm:$0xff]
        %v448 = vld [vmem:[%s394 + $0xd0] sm:$0xff]
        %v449 = vld [vmem:[%s394 + $0xd8] sm:$0xff]
        %v450 = vld [vmem:[%s394 + $0xe0] sm:$0xff]
        %v451 = vld [vmem:[%s394 + $0xe8] sm:$0xff]
        %v452 = vld [vmem:[%s394 + $0xf0] sm:$0xff]
        %v453 = vld [vmem:[%s394 + $0xf8] sm:$0xff]
        %v454 = vld [vmem:[%s394 + $0x100] sm:$0xff]
        %v455 = vld [vmem:[%s394 + $0x108] sm:$0xff]
        %v456 = vld [vmem:[%s394 + $0x110] sm:$0xff]
        %v457 = vld [vmem:[%s394 + $0x118] sm:$0xff]
        %v458 = vld [vmem:[%s394 + $0x120] sm:$0xff]
        %v459 = vld [vmem:[%s394 + $0x128] sm:$0xff]
        %v460 = vld [vmem:[%s394 + $0x130] sm:$0xff]
        %v461 = vld [vmem:[%s394 + $0x138] sm:$0xff]
        %v462 = vld [vmem:[%s394 + $0x140] sm:$0xff]
        %v463 = vld [vmem:[%s394 + $0x148] sm:$0xff]
        %v464 = vld [vmem:[%s394 + $0x150] sm:$0xff]
        %v465 = vld [vmem:[%s394 + $0x158] sm:$0xff]
        %v466 = vld [vmem:[%s394 + $0x160] sm:$0xff]
        %v467 = vld [vmem:[%s394 + $0x168] sm:$0xff]
        %v468 = vld [vmem:[%s394 + $0x170] sm:$0xff]
        %v469 = vld [vmem:[%s394 + $0x178] sm:$0xff]
        %v470 = vld [vmem:[%s394 + $0x180] sm:$0xff]
        %v471 = vld [vmem:[%s394 + $0x188] sm:$0xff]
        %v472 = vld [vmem:[%s394 + $0x190] sm:$0xff]
        %v473 = vld [vmem:[%s394 + $0x198] sm:$0xff]
        %v474 = vld [vmem:[%s394 + $0x1a0] sm:$0xff]
        %v475 = vld [vmem:[%s394 + $0x1a8] sm:$0xff]
        %v476 = vld [vmem:[%s394 + $0x1b0] sm:$0xff]
        %v477 = vld [vmem:[%s394 + $0x1b8] sm:$0xff]
        %v478 = vld [vmem:[%s394 + $0x1c0] sm:$0xff]
        %v479 = vld [vmem:[%s394 + $0x1c8] sm:$0xff]
        %v480 = vld [vmem:[%s394 + $0x1d0] sm:$0xff]
        %v481 = vld [vmem:[%s394 + $0x1d8] sm:$0xff]
        %v482 = vld [vmem:[%s394 + $0x1e0] sm:$0xff]
        %v483 = vld [vmem:[%s394 + $0x1e8] sm:$0xff]
        %v484 = vld [vmem:[%s394 + $0x1f0] sm:$0xff]
        %v485 = vld [vmem:[%s394 + $0x1f8] sm:$0xff]
        %v486 = vld [vmem:[%s394 + $0x200] sm:$0xff]
        %v487 = vld [vmem:[%s394 + $0x208] sm:$0xff]
        %v488 = vld [vmem:[%s394 + $0x210] sm:$0xff]
        %v489 = vld [vmem:[%s394 + $0x218] sm:$0xff]
        %v490 = vld [vmem:[%s394 + $0x220] sm:$0xff]
        %v491 = vld [vmem:[%s394 + $0x228] sm:$0xff]
        %v492 = vld [vmem:[%s394 + $0x230] sm:$0xff]
        %v493 = vld [vmem:[%s394 + $0x238] sm:$0xff]
        %v494 = vld [vmem:[%s394 + $0x240] sm:$0xff]
        %v495 = vld [vmem:[%s394 + $0x248] sm:$0xff]
        %v496 = vld [vmem:[%s394 + $0x250] sm:$0xff]
        %v497 = vld [vmem:[%s394 + $0x258] sm:$0xff]
        %v498 = vld [vmem:[%s394 + $0x260] sm:$0xff]
        %v499 = vld [vmem:[%s394 + $0x268] sm:$0xff]
        %v500 = vld [vmem:[%s394 + $0x270] sm:$0xff]
        %v501 = vld [vmem:[%s394 + $0x278] sm:$0xff]
        %v502 = vld [vmem:[%s394 + $0x280] sm:$0xff]
        %v503 = vld [vmem:[%s394 + $0x288] sm:$0xff]
        %v504 = vld [vmem:[%s394 + $0x290] sm:$0xff]
        %v505 = vld [vmem:[%s394 + $0x298] sm:$0xff]
        %v506 = vld [vmem:[%s394 + $0x2a0] sm:$0xff]
        %v507 = vld [vmem:[%s394 + $0x2a8] sm:$0xff]
        %v508 = vld [vmem:[%s394 + $0x2b0] sm:$0xff]
        %v509 = vld [vmem:[%s394 + $0x2b8] sm:$0xff]
        %v510 = vld [vmem:[%s394 + $0x2c0] sm:$0xff]
        %v511 = vld [vmem:[%s394 + $0x2c8] sm:$0xff]
        %v512 = vld [vmem:[%s394 + $0x2d0] sm:$0xff]
        %v513 = vld [vmem:[%s394 + $0x2d8] sm:$0xff]
        %v514 = vld [vmem:[%s394 + $0x2e0] sm:$0xff]
        %v515 = vld [vmem:[%s394 + $0x2e8] sm:$0xff]
        %v516 = vld [vmem:[%s394 + $0x2f0] sm:$0xff]
        %v517 = vld [vmem:[%s394 + $0x2f8] sm:$0xff]
        %v518 = vld [vmem:[%s394 + $0x300] sm:$0xff]
        %v519 = vld [vmem:[%s394 + $0x308] sm:$0xff]
        %v520 = vld [vmem:[%s394 + $0x310] sm:$0xff]
        %v521 = vld [vmem:[%s394 + $0x318] sm:$0xff]
        %v522 = vld [vmem:[%s394 + $0x320] sm:$0xff]
        %v523 = vld [vmem:[%s394 + $0x328] sm:$0xff]
        %v524 = vld [vmem:[%s394 + $0x330] sm:$0xff]
        %v525 = vld [vmem:[%s394 + $0x338] sm:$0xff]
        %v526 = vld [vmem:[%s394 + $0x340] sm:$0xff]
        %v527 = vld [vmem:[%s394 + $0x348] sm:$0xff]
        %v528 = vld [vmem:[%s394 + $0x350] sm:$0xff]
        %v529 = vld [vmem:[%s394 + $0x358] sm:$0xff]
        %v530 = vld [vmem:[%s394 + $0x360] sm:$0xff]
        %v531 = vld [vmem:[%s394 + $0x368] sm:$0xff]
        %v532 = vld [vmem:[%s394 + $0x370] sm:$0xff]
        %v533 = vld [vmem:[%s394 + $0x378] sm:$0xff]
        %v534 = vld [vmem:[%s394 + $0x380] sm:$0xff]
        %v535 = vld [vmem:[%s394 + $0x388] sm:$0xff]
        %v536 = vld [vmem:[%s394 + $0x390] sm:$0xff]
        %v537 = vld [vmem:[%s394 + $0x398] sm:$0xff]
        %v538 = vld [vmem:[%s394 + $0x3a0] sm:$0xff]
        %v539 = vld [vmem:[%s394 + $0x3a8] sm:$0xff]
        %v540 = vld [vmem:[%s394 + $0x3b0] sm:$0xff]
        %v541 = vld [vmem:[%s394 + $0x3b8] sm:$0xff]
        %v542 = vld [vmem:[%s394 + $0x3c0] sm:$0xff]
        %v543 = vld [vmem:[%s394 + $0x3c8] sm:$0xff]
        %v544 = vld [vmem:[%s394 + $0x3d0] sm:$0xff]
        %v545 = vld [vmem:[%s394 + $0x3d8] sm:$0xff]
        %v546 = vld [vmem:[%s394 + $0x3e0] sm:$0xff]
        %v547 = vld [vmem:[%s394 + $0x3e8] sm:$0xff]
        %v548 = vld [vmem:[%s394 + $0x3f0] sm:$0xff]
        %v549 = vld [vmem:[%s394 + $0x3f8] sm:$0xff]
        %v678 = vunpack.c.l.b16 %v422
        %v679 = vunpack.c.h.b16 %v422
        %v680 = vunpack.c.l.b16 %v423
        %v681 = vunpack.c.h.b16 %v423
        %v682 = vunpack.c.l.b16 %v424
        %v683 = vunpack.c.h.b16 %v424
        %v684 = vunpack.c.l.b16 %v425
        %v685 = vunpack.c.h.b16 %v425
        %v686 = vunpack.c.l.b16 %v426
        %v687 = vunpack.c.h.b16 %v426
        %v688 = vunpack.c.l.b16 %v427
        %v689 = vunpack.c.h.b16 %v427
        %v690 = vunpack.c.l.b16 %v428
        %v691 = vunpack.c.h.b16 %v428
        %v692 = vunpack.c.l.b16 %v429
        %v693 = vunpack.c.h.b16 %v429
        %v694 = vunpack.c.l.b16 %v430
        %v695 = vunpack.c.h.b16 %v430
        %v696 = vunpack.c.l.b16 %v431
        %v697 = vunpack.c.h.b16 %v431
        %v698 = vunpack.c.l.b16 %v432
        %v699 = vunpack.c.h.b16 %v432
        %v700 = vunpack.c.l.b16 %v433
        %v701 = vunpack.c.h.b16 %v433
        %v702 = vunpack.c.l.b16 %v434
        %v703 = vunpack.c.h.b16 %v434
        %v704 = vunpack.c.l.b16 %v435
        %v705 = vunpack.c.h.b16 %v435
        %v706 = vunpack.c.l.b16 %v436
        %v707 = vunpack.c.h.b16 %v436
        %v708 = vunpack.c.l.b16 %v437
        %v709 = vunpack.c.h.b16 %v437
        %v710 = vunpack.c.l.b16 %v438
        %v711 = vunpack.c.h.b16 %v438
        %v712 = vunpack.c.l.b16 %v439
        %v713 = vunpack.c.h.b16 %v439
        %v714 = vunpack.c.l.b16 %v440
        %v715 = vunpack.c.h.b16 %v440
        %v716 = vunpack.c.l.b16 %v441
        %v717 = vunpack.c.h.b16 %v441
        %v718 = vunpack.c.l.b16 %v442
        %v719 = vunpack.c.h.b16 %v442
        %v720 = vunpack.c.l.b16 %v443
        %v721 = vunpack.c.h.b16 %v443
        %v722 = vunpack.c.l.b16 %v444
        %v723 = vunpack.c.h.b16 %v444
        %v724 = vunpack.c.l.b16 %v445
        %v725 = vunpack.c.h.b16 %v445
        %v726 = vunpack.c.l.b16 %v446
        %v727 = vunpack.c.h.b16 %v446
        %v728 = vunpack.c.l.b16 %v447
        %v729 = vunpack.c.h.b16 %v447
        %v730 = vunpack.c.l.b16 %v448
        %v731 = vunpack.c.h.b16 %v448
        %v732 = vunpack.c.l.b16 %v449
        %v733 = vunpack.c.h.b16 %v449
        %v734 = vunpack.c.l.b16 %v450
        %v735 = vunpack.c.h.b16 %v450
        %v736 = vunpack.c.l.b16 %v451
        %v737 = vunpack.c.h.b16 %v451
        %v738 = vunpack.c.l.b16 %v452
        %v739 = vunpack.c.h.b16 %v452
        %v740 = vunpack.c.l.b16 %v453
        %v741 = vunpack.c.h.b16 %v453
        %v742 = vunpack.c.l.b16 %v454
        %v743 = vunpack.c.h.b16 %v454
        %v744 = vunpack.c.l.b16 %v455
        %v745 = vunpack.c.h.b16 %v455
        %v746 = vunpack.c.l.b16 %v456
        %v747 = vunpack.c.h.b16 %v456
        %v748 = vunpack.c.l.b16 %v457
        %v749 = vunpack.c.h.b16 %v457
        %v750 = vunpack.c.l.b16 %v458
        %v751 = vunpack.c.h.b16 %v458
        %v752 = vunpack.c.l.b16 %v459
        %v753 = vunpack.c.h.b16 %v459
        %v754 = vunpack.c.l.b16 %v460
        %v755 = vunpack.c.h.b16 %v460
        %v756 = vunpack.c.l.b16 %v461
        %v757 = vunpack.c.h.b16 %v461
        %v758 = vunpack.c.l.b16 %v462
        %v759 = vunpack.c.h.b16 %v462
        %v760 = vunpack.c.l.b16 %v463
        %v761 = vunpack.c.h.b16 %v463
        %v762 = vunpack.c.l.b16 %v464
        %v763 = vunpack.c.h.b16 %v464
        %v764 = vunpack.c.l.b16 %v465
        %v765 = vunpack.c.h.b16 %v465
        %v766 = vunpack.c.l.b16 %v466
        %v767 = vunpack.c.h.b16 %v466
        %v768 = vunpack.c.l.b16 %v467
        %v769 = vunpack.c.h.b16 %v467
        %v770 = vunpack.c.l.b16 %v468
        %v771 = vunpack.c.h.b16 %v468
        %v772 = vunpack.c.l.b16 %v469
        %v773 = vunpack.c.h.b16 %v469
        %v774 = vunpack.c.l.b16 %v470
        %v775 = vunpack.c.h.b16 %v470
        %v776 = vunpack.c.l.b16 %v471
        %v777 = vunpack.c.h.b16 %v471
        %v778 = vunpack.c.l.b16 %v472
        %v779 = vunpack.c.h.b16 %v472
        %v780 = vunpack.c.l.b16 %v473
        %v781 = vunpack.c.h.b16 %v473
        %v782 = vunpack.c.l.b16 %v474
        %v783 = vunpack.c.h.b16 %v474
        %v784 = vunpack.c.l.b16 %v475
        %v785 = vunpack.c.h.b16 %v475
        %v786 = vunpack.c.l.b16 %v476
        %v787 = vunpack.c.h.b16 %v476
        %v788 = vunpack.c.l.b16 %v477
        %v789 = vunpack.c.h.b16 %v477
        %v790 = vunpack.c.l.b16 %v478
        %v791 = vunpack.c.h.b16 %v478
        %v792 = vunpack.c.l.b16 %v479
        %v793 = vunpack.c.h.b16 %v479
        %v794 = vunpack.c.l.b16 %v480
        %v795 = vunpack.c.h.b16 %v480
        %v796 = vunpack.c.l.b16 %v481
        %v797 = vunpack.c.h.b16 %v481
        %v798 = vunpack.c.l.b16 %v482
        %v799 = vunpack.c.h.b16 %v482
        %v800 = vunpack.c.l.b16 %v483
        %v801 = vunpack.c.h.b16 %v483
        %v802 = vunpack.c.l.b16 %v484
        %v803 = vunpack.c.h.b16 %v484
        %v804 = vunpack.c.l.b16 %v485
        %v805 = vunpack.c.h.b16 %v485
        %v806 = vunpack.c.l.b16 %v486
        %v807 = vunpack.c.h.b16 %v486
        %v808 = vunpack.c.l.b16 %v487
        %v809 = vunpack.c.h.b16 %v487
        %v810 = vunpack.c.l.b16 %v488
        %v811 = vunpack.c.h.b16 %v488
        %v812 = vunpack.c.l.b16 %v489
        %v813 = vunpack.c.h.b16 %v489
        %v814 = vunpack.c.l.b16 %v490
        %v815 = vunpack.c.h.b16 %v490
        %v816 = vunpack.c.l.b16 %v491
        %v817 = vunpack.c.h.b16 %v491
        %v818 = vunpack.c.l.b16 %v492
        %v819 = vunpack.c.h.b16 %v492
        %v820 = vunpack.c.l.b16 %v493
        %v821 = vunpack.c.h.b16 %v493
        %v822 = vunpack.c.l.b16 %v494
        %v823 = vunpack.c.h.b16 %v494
        %v824 = vunpack.c.l.b16 %v495
        %v825 = vunpack.c.h.b16 %v495
        %v826 = vunpack.c.l.b16 %v496
        %v827 = vunpack.c.h.b16 %v496
        %v828 = vunpack.c.l.b16 %v497
        %v829 = vunpack.c.h.b16 %v497
        %v830 = vunpack.c.l.b16 %v498
        %v831 = vunpack.c.h.b16 %v498
        %v832 = vunpack.c.l.b16 %v499
        %v833 = vunpack.c.h.b16 %v499
        %v834 = vunpack.c.l.b16 %v500
        %v835 = vunpack.c.h.b16 %v500
        %v836 = vunpack.c.l.b16 %v501
        %v837 = vunpack.c.h.b16 %v501
        %v838 = vunpack.c.l.b16 %v502
        %v839 = vunpack.c.h.b16 %v502
        %v840 = vunpack.c.l.b16 %v503
        %v841 = vunpack.c.h.b16 %v503
        %v842 = vunpack.c.l.b16 %v504
        %v843 = vunpack.c.h.b16 %v504
        %v844 = vunpack.c.l.b16 %v505
        %v845 = vunpack.c.h.b16 %v505
        %v846 = vunpack.c.l.b16 %v506
        %v847 = vunpack.c.h.b16 %v506
        %v848 = vunpack.c.l.b16 %v507
        %v849 = vunpack.c.h.b16 %v507
        %v850 = vunpack.c.l.b16 %v508
        %v851 = vunpack.c.h.b16 %v508
        %v852 = vunpack.c.l.b16 %v509
        %v853 = vunpack.c.h.b16 %v509
        %v854 = vunpack.c.l.b16 %v510
        %v855 = vunpack.c.h.b16 %v510
        %v856 = vunpack.c.l.b16 %v511
        %v857 = vunpack.c.h.b16 %v511
        %v858 = vunpack.c.l.b16 %v512
        %v859 = vunpack.c.h.b16 %v512
        %v860 = vunpack.c.l.b16 %v513
        %v861 = vunpack.c.h.b16 %v513
        %v862 = vunpack.c.l.b16 %v514
        %v863 = vunpack.c.h.b16 %v514
        %v864 = vunpack.c.l.b16 %v515
        %v865 = vunpack.c.h.b16 %v515
        %v866 = vunpack.c.l.b16 %v516
        %v867 = vunpack.c.h.b16 %v516
        %v868 = vunpack.c.l.b16 %v517
        %v869 = vunpack.c.h.b16 %v517
        %v870 = vunpack.c.l.b16 %v518
        %v871 = vunpack.c.h.b16 %v518
        %v872 = vunpack.c.l.b16 %v519
        %v873 = vunpack.c.h.b16 %v519
        %v874 = vunpack.c.l.b16 %v520
        %v875 = vunpack.c.h.b16 %v520
        %v876 = vunpack.c.l.b16 %v521
        %v877 = vunpack.c.h.b16 %v521
        %v878 = vunpack.c.l.b16 %v522
        %v879 = vunpack.c.h.b16 %v522
        %v880 = vunpack.c.l.b16 %v523
        %v881 = vunpack.c.h.b16 %v523
        %v882 = vunpack.c.l.b16 %v524
        %v883 = vunpack.c.h.b16 %v524
        %v884 = vunpack.c.l.b16 %v525
        %v885 = vunpack.c.h.b16 %v525
        %v886 = vunpack.c.l.b16 %v526
        %v887 = vunpack.c.h.b16 %v526
        %v888 = vunpack.c.l.b16 %v527
        %v889 = vunpack.c.h.b16 %v527
        %v890 = vunpack.c.l.b16 %v528
        %v891 = vunpack.c.h.b16 %v528
        %v892 = vunpack.c.l.b16 %v529
        %v893 = vunpack.c.h.b16 %v529
        %v894 = vunpack.c.l.b16 %v530
        %v895 = vunpack.c.h.b16 %v530
        %v896 = vunpack.c.l.b16 %v531
        %v897 = vunpack.c.h.b16 %v531
        %v898 = vunpack.c.l.b16 %v532
        %v899 = vunpack.c.h.b16 %v532
        %v900 = vunpack.c.l.b16 %v533
        %v901 = vunpack.c.h.b16 %v533
        %v902 = vunpack.c.l.b16 %v534
        %v903 = vunpack.c.h.b16 %v534
        %v904 = vunpack.c.l.b16 %v535
        %v905 = vunpack.c.h.b16 %v535
        %v906 = vunpack.c.l.b16 %v536
        %v907 = vunpack.c.h.b16 %v536
        %v908 = vunpack.c.l.b16 %v537
        %v909 = vunpack.c.h.b16 %v537
        %v910 = vunpack.c.l.b16 %v538
        %v911 = vunpack.c.h.b16 %v538
        %v912 = vunpack.c.l.b16 %v539
        %v913 = vunpack.c.h.b16 %v539
        %v914 = vunpack.c.l.b16 %v540
        %v915 = vunpack.c.h.b16 %v540
        %v916 = vunpack.c.l.b16 %v541
        %v917 = vunpack.c.h.b16 %v541
        %v918 = vunpack.c.l.b16 %v542
        %v919 = vunpack.c.h.b16 %v542
        %v920 = vunpack.c.l.b16 %v543
        %v921 = vunpack.c.h.b16 %v543
        %v922 = vunpack.c.l.b16 %v544
        %v923 = vunpack.c.h.b16 %v544
        %v924 = vunpack.c.l.b16 %v545
        %v925 = vunpack.c.h.b16 %v545
        %v926 = vunpack.c.l.b16 %v546
        %v927 = vunpack.c.h.b16 %v546
        %v928 = vunpack.c.l.b16 %v547
        %v929 = vunpack.c.h.b16 %v547
        %v930 = vunpack.c.l.b16 %v548
        %v931 = vunpack.c.h.b16 %v548
        %v932 = vunpack.c.l.b16 %v549
        %v933 = vunpack.c.h.b16 %v549
        %v934 = vpack.c.b16 %v742, %v678
        %v935 = vpack.c.b16 %v743, %v679
        %v936 = vpack.c.b16 %v744, %v680
        %v937 = vpack.c.b16 %v745, %v681
        %v938 = vpack.c.b16 %v746, %v682
        %v939 = vpack.c.b16 %v747, %v683
        %v940 = vpack.c.b16 %v748, %v684
        %v941 = vpack.c.b16 %v749, %v685
        %v942 = vpack.c.b16 %v750, %v686
        %v943 = vpack.c.b16 %v751, %v687
        %v944 = vpack.c.b16 %v752, %v688
        %v945 = vpack.c.b16 %v753, %v689
        %v946 = vpack.c.b16 %v754, %v690
        %v947 = vpack.c.b16 %v755, %v691
        %v948 = vpack.c.b16 %v756, %v692
        %v949 = vpack.c.b16 %v757, %v693
        %v950 = vpack.c.b16 %v758, %v694
        %v951 = vpack.c.b16 %v759, %v695
        %v952 = vpack.c.b16 %v760, %v696
        %v953 = vpack.c.b16 %v761, %v697
        %v954 = vpack.c.b16 %v762, %v698
        %v955 = vpack.c.b16 %v763, %v699
        %v956 = vpack.c.b16 %v764, %v700
        %v957 = vpack.c.b16 %v765, %v701
        %v958 = vpack.c.b16 %v766, %v702
        %v959 = vpack.c.b16 %v767, %v703
        %v960 = vpack.c.b16 %v768, %v704
        %v961 = vpack.c.b16 %v769, %v705
        %v962 = vpack.c.b16 %v770, %v706
        %v963 = vpack.c.b16 %v771, %v707
        %v964 = vpack.c.b16 %v772, %v708
        %v965 = vpack.c.b16 %v773, %v709
        %v966 = vpack.c.b16 %v774, %v710
        %v967 = vpack.c.b16 %v775, %v711
        %v968 = vpack.c.b16 %v776, %v712
        %v969 = vpack.c.b16 %v777, %v713
        %v970 = vpack.c.b16 %v778, %v714
        %v971 = vpack.c.b16 %v779, %v715
        %v972 = vpack.c.b16 %v780, %v716
        %v973 = vpack.c.b16 %v781, %v717
        %v974 = vpack.c.b16 %v782, %v718
        %v975 = vpack.c.b16 %v783, %v719
        %v976 = vpack.c.b16 %v784, %v720
        %v977 = vpack.c.b16 %v785, %v721
        %v978 = vpack.c.b16 %v786, %v722
        %v979 = vpack.c.b16 %v787, %v723
        %v980 = vpack.c.b16 %v788, %v724
        %v981 = vpack.c.b16 %v789, %v725
        %v982 = vpack.c.b16 %v790, %v726
        %v983 = vpack.c.b16 %v791, %v727
        %v984 = vpack.c.b16 %v792, %v728
        %v985 = vpack.c.b16 %v793, %v729
        %v986 = vpack.c.b16 %v794, %v730
        %v987 = vpack.c.b16 %v795, %v731
        %v988 = vpack.c.b16 %v796, %v732
        %v989 = vpack.c.b16 %v797, %v733
        %v990 = vpack.c.b16 %v798, %v734
        %v991 = vpack.c.b16 %v799, %v735
        %v992 = vpack.c.b16 %v800, %v736
        %v993 = vpack.c.b16 %v801, %v737
        %v994 = vpack.c.b16 %v802, %v738
        %v995 = vpack.c.b16 %v803, %v739
        %v996 = vpack.c.b16 %v804, %v740
        %v997 = vpack.c.b16 %v805, %v741
        %v998 = vpack.c.b16 %v870, %v806
        %v999 = vpack.c.b16 %v871, %v807
        %v1000 = vpack.c.b16 %v872, %v808
        %v1001 = vpack.c.b16 %v873, %v809
        %v1002 = vpack.c.b16 %v874, %v810
        %v1003 = vpack.c.b16 %v875, %v811
        %v1004 = vpack.c.b16 %v876, %v812
        %v1005 = vpack.c.b16 %v877, %v813
        %v1006 = vpack.c.b16 %v878, %v814
        %v1007 = vpack.c.b16 %v879, %v815
        %v1008 = vpack.c.b16 %v880, %v816
        %v1009 = vpack.c.b16 %v881, %v817
        %v1010 = vpack.c.b16 %v882, %v818
        %v1011 = vpack.c.b16 %v883, %v819
        %v1012 = vpack.c.b16 %v884, %v820
        %v1013 = vpack.c.b16 %v885, %v821
        %v1014 = vpack.c.b16 %v886, %v822
        %v1015 = vpack.c.b16 %v887, %v823
        %v1016 = vpack.c.b16 %v888, %v824
        %v1017 = vpack.c.b16 %v889, %v825
        %v1018 = vpack.c.b16 %v890, %v826
        %v1019 = vpack.c.b16 %v891, %v827
        %v1020 = vpack.c.b16 %v892, %v828
        %v1021 = vpack.c.b16 %v893, %v829
        %v1022 = vpack.c.b16 %v894, %v830
        %v1023 = vpack.c.b16 %v895, %v831
        %v1024 = vpack.c.b16 %v896, %v832
        %v1025 = vpack.c.b16 %v897, %v833
        %v1026 = vpack.c.b16 %v898, %v834
        %v1027 = vpack.c.b16 %v899, %v835
        %v1028 = vpack.c.b16 %v900, %v836
        %v1029 = vpack.c.b16 %v901, %v837
        %v1030 = vpack.c.b16 %v902, %v838
        %v1031 = vpack.c.b16 %v903, %v839
        %v1032 = vpack.c.b16 %v904, %v840
        %v1033 = vpack.c.b16 %v905, %v841
        %v1034 = vpack.c.b16 %v906, %v842
        %v1035 = vpack.c.b16 %v907, %v843
        %v1036 = vpack.c.b16 %v908, %v844
        %v1037 = vpack.c.b16 %v909, %v845
        %v1038 = vpack.c.b16 %v910, %v846
        %v1039 = vpack.c.b16 %v911, %v847
        %v1040 = vpack.c.b16 %v912, %v848
        %v1041 = vpack.c.b16 %v913, %v849
        %v1042 = vpack.c.b16 %v914, %v850
        %v1043 = vpack.c.b16 %v915, %v851
        %v1044 = vpack.c.b16 %v916, %v852
        %v1045 = vpack.c.b16 %v917, %v853
        %v1046 = vpack.c.b16 %v918, %v854
        %v1047 = vpack.c.b16 %v919, %v855
        %v1048 = vpack.c.b16 %v920, %v856
        %v1049 = vpack.c.b16 %v921, %v857
        %v1050 = vpack.c.b16 %v922, %v858
        %v1051 = vpack.c.b16 %v923, %v859
        %v1052 = vpack.c.b16 %v924, %v860
        %v1053 = vpack.c.b16 %v925, %v861
        %v1054 = vpack.c.b16 %v926, %v862
        %v1055 = vpack.c.b16 %v927, %v863
        %v1056 = vpack.c.b16 %v928, %v864
        %v1057 = vpack.c.b16 %v929, %v865
        %v1058 = vpack.c.b16 %v930, %v866
        %v1059 = vpack.c.b16 %v931, %v867
        %v1060 = vpack.c.b16 %v932, %v868
        %v1061 = vpack.c.b16 %v933, %v869
        %vm1190 = vcmask 261120
        %v1192 = vsel %vm1190, %v421, 0
        %1194 = vmatprep.subr.bf16.mxu0 0
        %1195 = vmatpush1.bf16.msra.mxu0 0
        %1196 = vmatprep.subr.bf16.mxu0 0
        %1197 = vmatpush1.bf16.msra.mxu0 0
        %1198 = vmatprep.subr.bf16.mxu0 0
        %1199 = vmatpush1.bf16.msra.mxu0 0
        %1200 = vmatprep.subr.bf16.mxu0 0
        %1201 = vmatpush1.bf16.msra.mxu0 0
        %1202 = vmatprep.subr.bf16.mxu0 0
        %1203 = vmatpush1.bf16.msra.mxu0 0
        %1204 = vmatprep.subr.bf16.mxu0 0
        %1205 = vmatpush1.bf16.msra.mxu0 0
        %1206 = vmatprep.subr.bf16.mxu0 %v999
        %1207 = vmatpush1.bf16.msra.mxu0 %v998
        %1208 = vmatprep.subr.bf16.mxu0 %v935
        %1209 = vmatpush1.bf16.msra.mxu0 %v934
        %1210 = vmatprep.subr.bf16.mxu0 0
        %1211 = vmatpush2.bf16.msra.mxu0 0
        %1212 = vmatprep.subr.bf16.mxu0 0
        %1213 = vmatpush2.bf16.msra.mxu0 0
        %1214 = vmatprep.subr.bf16.mxu0 0
        %1215 = vmatpush2.bf16.msra.mxu0 0
        %1216 = vmatprep.subr.bf16.mxu0 0
        %1217 = vmatpush2.bf16.msra.mxu0 0
        %1218 = vmatprep.subr.bf16.mxu0 0
        %1219 = vmatpush2.bf16.msra.mxu0 0
        %1220 = vmatprep.subr.bf16.mxu0 0
        %1221 = vmatpush2.bf16.msra.mxu0 0
        %1222 = vmatprep.subr.bf16.mxu0 0
        %1223 = vmatpush2.bf16.msra.mxu0 0
        %1224 = vmatprep.subr.bf16.mxu0 0
        %1225 = vmatpush2.bf16.msra.mxu0 0
        %1226 = vmatprep.mubr.bf16.mxu0 0
        %1227 = vmatmul.mubr.bf16.gmra.mxu0 %v1192
        %v1228 = vpop.f32.mrf.mxu0
        %v1229 = vadd.f32 0.0, %v1228
        %v1230 = vpop.f32.mrf.mxu0
        %v1231 = vadd.f32 0.0, %v1230
        %v1232 = vpop.f32.mrf.mxu0
        %v1233 = vpop.f32.mrf.mxu0
        %1234 = vdwg.mxu0
        %1235 = vmatprep.subr.bf16.mxu0 0
        %1236 = vmatpush1.bf16.msra.mxu0 0
        %1237 = vmatprep.subr.bf16.mxu0 0
        %1238 = vmatpush1.bf16.msra.mxu0 0
        %1239 = vmatprep.subr.bf16.mxu0 0
        %1240 = vmatpush1.bf16.msra.mxu0 0
        %1241 = vmatprep.subr.bf16.mxu0 0
        %1242 = vmatpush1.bf16.msra.mxu0 0
        %1243 = vmatprep.subr.bf16.mxu0 0
        %1244 = vmatpush1.bf16.msra.mxu0 0
        %1245 = vmatprep.subr.bf16.mxu0 0
        %1246 = vmatpush1.bf16.msra.mxu0 0
        %1247 = vmatprep.subr.bf16.mxu0 %v1001
        %1248 = vmatpush1.bf16.msra.mxu0 %v1000
        %1249 = vmatprep.subr.bf16.mxu0 %v937
        %1250 = vmatpush1.bf16.msra.mxu0 %v936
        %1251 = vmatprep.subr.bf16.mxu0 0
        %1252 = vmatpush2.bf16.msra.mxu0 0
        %1253 = vmatprep.subr.bf16.mxu0 0
        %1254 = vmatpush2.bf16.msra.mxu0 0
        %1255 = vmatprep.subr.bf16.mxu0 0
        %1256 = vmatpush2.bf16.msra.mxu0 0
        %1257 = vmatprep.subr.bf16.mxu0 0
        %1258 = vmatpush2.bf16.msra.mxu0 0
        %1259 = vmatprep.subr.bf16.mxu0 0
        %1260 = vmatpush2.bf16.msra.mxu0 0
        %1261 = vmatprep.subr.bf16.mxu0 0
        %1262 = vmatpush2.bf16.msra.mxu0 0
        %1263 = vmatprep.subr.bf16.mxu0 0
        %1264 = vmatpush2.bf16.msra.mxu0 0
        %1265 = vmatprep.subr.bf16.mxu0 0
        %1266 = vmatpush2.bf16.msra.mxu0 0
        %1267 = vmatprep.mubr.bf16.mxu0 0
        %1268 = vmatmul.mubr.bf16.gmra.mxu0 %v1192
        %v1269 = vpop.f32.mrf.mxu0
        %v1270 = vadd.f32 0.0, %v1269
        %v1271 = vpop.f32.mrf.mxu0
        %v1272 = vadd.f32 0.0, %v1271
        %v1273 = vpop.f32.mrf.mxu0
        %v1274 = vpop.f32.mrf.mxu0
        %1275 = vdwg.mxu0
        %1276 = vmatprep.subr.bf16.mxu0 0
        %1277 = vmatpush1.bf16.msra.mxu0 0
        %1278 = vmatprep.subr.bf16.mxu0 0
        %1279 = vmatpush1.bf16.msra.mxu0 0
        %1280 = vmatprep.subr.bf16.mxu0 0
        %1281 = vmatpush1.bf16.msra.mxu0 0
        %1282 = vmatprep.subr.bf16.mxu0 0
        %1283 = vmatpush1.bf16.msra.mxu0 0
        %1284 = vmatprep.subr.bf16.mxu0 0
        %1285 = vmatpush1.bf16.msra.mxu0 0
        %1286 = vmatprep.subr.bf16.mxu0 0
        %1287 = vmatpush1.bf16.msra.mxu0 0
        %1288 = vmatprep.subr.bf16.mxu0 %v1003
        %1289 = vmatpush1.bf16.msra.mxu0 %v1002
        %1290 = vmatprep.subr.bf16.mxu0 %v939
        %1291 = vmatpush1.bf16.msra.mxu0 %v938
        %1292 = vmatprep.subr.bf16.mxu0 0
        %1293 = vmatpush2.bf16.msra.mxu0 0
        %1294 = vmatprep.subr.bf16.mxu0 0
        %1295 = vmatpush2.bf16.msra.mxu0 0
        %1296 = vmatprep.subr.bf16.mxu0 0
        %1297 = vmatpush2.bf16.msra.mxu0 0
        %1298 = vmatprep.subr.bf16.mxu0 0
        %1299 = vmatpush2.bf16.msra.mxu0 0
        %1300 = vmatprep.subr.bf16.mxu0 0
        %1301 = vmatpush2.bf16.msra.mxu0 0
        %1302 = vmatprep.subr.bf16.mxu0 0
        %1303 = vmatpush2.bf16.msra.mxu0 0
        %1304 = vmatprep.subr.bf16.mxu0 0
        %1305 = vmatpush2.bf16.msra.mxu0 0
        %1306 = vmatprep.subr.bf16.mxu0 0
        %1307 = vmatpush2.bf16.msra.mxu0 0
        %1308 = vmatprep.mubr.bf16.mxu0 0
        %1309 = vmatmul.mubr.bf16.gmra.mxu0 %v1192
        %v1310 = vpop.f32.mrf.mxu0
        %v1311 = vadd.f32 0.0, %v1310
        %v1312 = vpop.f32.mrf.mxu0
        %v1313 = vadd.f32 0.0, %v1312
        %v1314 = vpop.f32.mrf.mxu0
        %v1315 = vpop.f32.mrf.mxu0
        %1316 = vdwg.mxu0
        %1317 = vmatprep.subr.bf16.mxu0 0
        %1318 = vmatpush1.bf16.msra.mxu0 0
        %1319 = vmatprep.subr.bf16.mxu0 0
        %1320 = vmatpush1.bf16.msra.mxu0 0
        %1321 = vmatprep.subr.bf16.mxu0 0
        %1322 = vmatpush1.bf16.msra.mxu0 0
        %1323 = vmatprep.subr.bf16.mxu0 0
        %1324 = vmatpush1.bf16.msra.mxu0 0
        %1325 = vmatprep.subr.bf16.mxu0 0
        %1326 = vmatpush1.bf16.msra.mxu0 0
        %1327 = vmatprep.subr.bf16.mxu0 0
        %1328 = vmatpush1.bf16.msra.mxu0 0
        %1329 = vmatprep.subr.bf16.mxu0 %v1005
        %1330 = vmatpush1.bf16.msra.mxu0 %v1004
        %1331 = vmatprep.subr.bf16.mxu0 %v941
        %1332 = vmatpush1.bf16.msra.mxu0 %v940
        %1333 = vmatprep.subr.bf16.mxu0 0
        %1334 = vmatpush2.bf16.msra.mxu0 0
        %1335 = vmatprep.subr.bf16.mxu0 0
        %1336 = vmatpush2.bf16.msra.mxu0 0
        %1337 = vmatprep.subr.bf16.mxu0 0
        %1338 = vmatpush2.bf16.msra.mxu0 0
        %1339 = vmatprep.subr.bf16.mxu0 0
        %1340 = vmatpush2.bf16.msra.mxu0 0
        %1341 = vmatprep.subr.bf16.mxu0 0
        %1342 = vmatpush2.bf16.msra.mxu0 0
        %1343 = vmatprep.subr.bf16.mxu0 0
        %1344 = vmatpush2.bf16.msra.mxu0 0
        %1345 = vmatprep.subr.bf16.mxu0 0
        %1346 = vmatpush2.bf16.msra.mxu0 0
        %1347 = vmatprep.subr.bf16.mxu0 0
        %1348 = vmatpush2.bf16.msra.mxu0 0
        %1349 = vmatprep.mubr.bf16.mxu0 0
        %1350 = vmatmul.mubr.bf16.gmra.mxu0 %v1192
        %v1351 = vpop.f32.mrf.mxu0
        %v1352 = vadd.f32 0.0, %v1351
        %v1353 = vpop.f32.mrf.mxu0
        %v1354 = vadd.f32 0.0, %v1353
        %v1355 = vpop.f32.mrf.mxu0
        %v1356 = vpop.f32.mrf.mxu0
        %1357 = vdwg.mxu0
        %1358 = vmatprep.subr.bf16.mxu0 0
        %1359 = vmatpush1.bf16.msra.mxu0 0
        %1360 = vmatprep.subr.bf16.mxu0 0
        %1361 = vmatpush1.bf16.msra.mxu0 0
        %1362 = vmatprep.subr.bf16.mxu0 0
        %1363 = vmatpush1.bf16.msra.mxu0 0
        %1364 = vmatprep.subr.bf16.mxu0 0
        %1365 = vmatpush1.bf16.msra.mxu0 0
        %1366 = vmatprep.subr.bf16.mxu0 0
        %1367 = vmatpush1.bf16.msra.mxu0 0
        %1368 = vmatprep.subr.bf16.mxu0 0
        %1369 = vmatpush1.bf16.msra.mxu0 0
        %1370 = vmatprep.subr.bf16.mxu0 %v1007
        %1371 = vmatpush1.bf16.msra.mxu0 %v1006
        %1372 = vmatprep.subr.bf16.mxu0 %v943
        %1373 = vmatpush1.bf16.msra.mxu0 %v942
        %1374 = vmatprep.subr.bf16.mxu0 0
        %1375 = vmatpush2.bf16.msra.mxu0 0
        %1376 = vmatprep.subr.bf16.mxu0 0
        %1377 = vmatpush2.bf16.msra.mxu0 0
        %1378 = vmatprep.subr.bf16.mxu0 0
        %1379 = vmatpush2.bf16.msra.mxu0 0
        %1380 = vmatprep.subr.bf16.mxu0 0
        %1381 = vmatpush2.bf16.msra.mxu0 0
        %1382 = vmatprep.subr.bf16.mxu0 0
        %1383 = vmatpush2.bf16.msra.mxu0 0
        %1384 = vmatprep.subr.bf16.mxu0 0
        %1385 = vmatpush2.bf16.msra.mxu0 0
        %1386 = vmatprep.subr.bf16.mxu0 0
        %1387 = vmatpush2.bf16.msra.mxu0 0
        %1388 = vmatprep.subr.bf16.mxu0 0
        %1389 = vmatpush2.bf16.msra.mxu0 0
        %1390 = vmatprep.mubr.bf16.mxu0 0
        %1391 = vmatmul.mubr.bf16.gmra.mxu0 %v1192
        %v1392 = vpop.f32.mrf.mxu0
        %v1393 = vadd.f32 0.0, %v1392
        %v1394 = vpop.f32.mrf.mxu0
        %v1395 = vadd.f32 0.0, %v1394
        %v1396 = vpop.f32.mrf.mxu0
        %v1397 = vpop.f32.mrf.mxu0
        %1398 = vdwg.mxu0
        %1399 = vmatprep.subr.bf16.mxu0 0
        %1400 = vmatpush1.bf16.msra.mxu0 0
        %1401 = vmatprep.subr.bf16.mxu0 0
        %1402 = vmatpush1.bf16.msra.mxu0 0
        %1403 = vmatprep.subr.bf16.mxu0 0
        %1404 = vmatpush1.bf16.msra.mxu0 0
        %1405 = vmatprep.subr.bf16.mxu0 0
        %1406 = vmatpush1.bf16.msra.mxu0 0
        %1407 = vmatprep.subr.bf16.mxu0 0
        %1408 = vmatpush1.bf16.msra.mxu0 0
        %1409 = vmatprep.subr.bf16.mxu0 0
        %1410 = vmatpush1.bf16.msra.mxu0 0
        %1411 = vmatprep.subr.bf16.mxu0 %v1009
        %1412 = vmatpush1.bf16.msra.mxu0 %v1008
        %1413 = vmatprep.subr.bf16.mxu0 %v945
        %1414 = vmatpush1.bf16.msra.mxu0 %v944
        %1415 = vmatprep.subr.bf16.mxu0 0
        %1416 = vmatpush2.bf16.msra.mxu0 0
        %1417 = vmatprep.subr.bf16.mxu0 0
        %1418 = vmatpush2.bf16.msra.mxu0 0
        %1419 = vmatprep.subr.bf16.mxu0 0
        %1420 = vmatpush2.bf16.msra.mxu0 0
        %1421 = vmatprep.subr.bf16.mxu0 0
        %1422 = vmatpush2.bf16.msra.mxu0 0
        %1423 = vmatprep.subr.bf16.mxu0 0
        %1424 = vmatpush2.bf16.msra.mxu0 0
        %1425 = vmatprep.subr.bf16.mxu0 0
        %1426 = vmatpush2.bf16.msra.mxu0 0
        %1427 = vmatprep.subr.bf16.mxu0 0
        %1428 = vmatpush2.bf16.msra.mxu0 0
        %1429 = vmatprep.subr.bf16.mxu0 0
        %1430 = vmatpush2.bf16.msra.mxu0 0
        %1431 = vmatprep.mubr.bf16.mxu0 0
        %1432 = vmatmul.mubr.bf16.gmra.mxu0 %v1192
        %v1433 = vpop.f32.mrf.mxu0
        %v1434 = vadd.f32 0.0, %v1433
        %v1435 = vpop.f32.mrf.mxu0
        %v1436 = vadd.f32 0.0, %v1435
        %v1437 = vpop.f32.mrf.mxu0
        %v1438 = vpop.f32.mrf.mxu0
        %1439 = vdwg.mxu0
        %1440 = vmatprep.subr.bf16.mxu0 0
        %1441 = vmatpush1.bf16.msra.mxu0 0
        %1442 = vmatprep.subr.bf16.mxu0 0
        %1443 = vmatpush1.bf16.msra.mxu0 0
        %1444 = vmatprep.subr.bf16.mxu0 0
        %1445 = vmatpush1.bf16.msra.mxu0 0
        %1446 = vmatprep.subr.bf16.mxu0 0
        %1447 = vmatpush1.bf16.msra.mxu0 0
        %1448 = vmatprep.subr.bf16.mxu0 0
        %1449 = vmatpush1.bf16.msra.mxu0 0
        %1450 = vmatprep.subr.bf16.mxu0 0
        %1451 = vmatpush1.bf16.msra.mxu0 0
        %1452 = vmatprep.subr.bf16.mxu0 %v1011
        %1453 = vmatpush1.bf16.msra.mxu0 %v1010
        %1454 = vmatprep.subr.bf16.mxu0 %v947
        %1455 = vmatpush1.bf16.msra.mxu0 %v946
        %1456 = vmatprep.subr.bf16.mxu0 0
        %1457 = vmatpush2.bf16.msra.mxu0 0
        %1458 = vmatprep.subr.bf16.mxu0 0
        %1459 = vmatpush2.bf16.msra.mxu0 0
        %1460 = vmatprep.subr.bf16.mxu0 0
        %1461 = vmatpush2.bf16.msra.mxu0 0
        %1462 = vmatprep.subr.bf16.mxu0 0
        %1463 = vmatpush2.bf16.msra.mxu0 0
        %1464 = vmatprep.subr.bf16.mxu0 0
        %1465 = vmatpush2.bf16.msra.mxu0 0
        %1466 = vmatprep.subr.bf16.mxu0 0
        %1467 = vmatpush2.bf16.msra.mxu0 0
        %1468 = vmatprep.subr.bf16.mxu0 0
        %1469 = vmatpush2.bf16.msra.mxu0 0
        %1470 = vmatprep.subr.bf16.mxu0 0
        %1471 = vmatpush2.bf16.msra.mxu0 0
        %1472 = vmatprep.mubr.bf16.mxu0 0
        %1473 = vmatmul.mubr.bf16.gmra.mxu0 %v1192
        %v1474 = vpop.f32.mrf.mxu0
        %v1475 = vadd.f32 0.0, %v1474
        %v1476 = vpop.f32.mrf.mxu0
        %v1477 = vadd.f32 0.0, %v1476
        %v1478 = vpop.f32.mrf.mxu0
        %v1479 = vpop.f32.mrf.mxu0
        %1480 = vdwg.mxu0
        %1481 = vmatprep.subr.bf16.mxu0 0
        %1482 = vmatpush1.bf16.msra.mxu0 0
        %1483 = vmatprep.subr.bf16.mxu0 0
        %1484 = vmatpush1.bf16.msra.mxu0 0
        %1485 = vmatprep.subr.bf16.mxu0 0
        %1486 = vmatpush1.bf16.msra.mxu0 0
        %1487 = vmatprep.subr.bf16.mxu0 0
        %1488 = vmatpush1.bf16.msra.mxu0 0
        %1489 = vmatprep.subr.bf16.mxu0 0
        %1490 = vmatpush1.bf16.msra.mxu0 0
        %1491 = vmatprep.subr.bf16.mxu0 0
        %1492 = vmatpush1.bf16.msra.mxu0 0
        %1493 = vmatprep.subr.bf16.mxu0 %v1013
        %1494 = vmatpush1.bf16.msra.mxu0 %v1012
        %1495 = vmatprep.subr.bf16.mxu0 %v949
        %1496 = vmatpush1.bf16.msra.mxu0 %v948
        %1497 = vmatprep.subr.bf16.mxu0 0
        %1498 = vmatpush2.bf16.msra.mxu0 0
        %1499 = vmatprep.subr.bf16.mxu0 0
        %1500 = vmatpush2.bf16.msra.mxu0 0
        %1501 = vmatprep.subr.bf16.mxu0 0
        %1502 = vmatpush2.bf16.msra.mxu0 0
        %1503 = vmatprep.subr.bf16.mxu0 0
        %1504 = vmatpush2.bf16.msra.mxu0 0
        %1505 = vmatprep.subr.bf16.mxu0 0
        %1506 = vmatpush2.bf16.msra.mxu0 0
        %1507 = vmatprep.subr.bf16.mxu0 0
        %1508 = vmatpush2.bf16.msra.mxu0 0
        %1509 = vmatprep.subr.bf16.mxu0 0
        %1510 = vmatpush2.bf16.msra.mxu0 0
        %1511 = vmatprep.subr.bf16.mxu0 0
        %1512 = vmatpush2.bf16.msra.mxu0 0
        %1513 = vmatprep.mubr.bf16.mxu0 0
        %1514 = vmatmul.mubr.bf16.gmra.mxu0 %v1192
        %v1515 = vpop.f32.mrf.mxu0
        %v1516 = vadd.f32 0.0, %v1515
        %v1517 = vpop.f32.mrf.mxu0
        %v1518 = vadd.f32 0.0, %v1517
        %v1519 = vpop.f32.mrf.mxu0
        %v1520 = vpop.f32.mrf.mxu0
        %1521 = vdwg.mxu0
        %1522 = vmatprep.subr.bf16.mxu0 0
        %1523 = vmatpush1.bf16.msra.mxu0 0
        %1524 = vmatprep.subr.bf16.mxu0 0
        %1525 = vmatpush1.bf16.msra.mxu0 0
        %1526 = vmatprep.subr.bf16.mxu0 0
        %1527 = vmatpush1.bf16.msra.mxu0 0
        %1528 = vmatprep.subr.bf16.mxu0 0
        %1529 = vmatpush1.bf16.msra.mxu0 0
        %1530 = vmatprep.subr.bf16.mxu0 0
        %1531 = vmatpush1.bf16.msra.mxu0 0
        %1532 = vmatprep.subr.bf16.mxu0 0
        %1533 = vmatpush1.bf16.msra.mxu0 0
        %1534 = vmatprep.subr.bf16.mxu0 %v1015
        %1535 = vmatpush1.bf16.msra.mxu0 %v1014
        %1536 = vmatprep.subr.bf16.mxu0 %v951
        %1537 = vmatpush1.bf16.msra.mxu0 %v950
        %1538 = vmatprep.subr.bf16.mxu0 0
        %1539 = vmatpush2.bf16.msra.mxu0 0
        %1540 = vmatprep.subr.bf16.mxu0 0
        %1541 = vmatpush2.bf16.msra.mxu0 0
        %1542 = vmatprep.subr.bf16.mxu0 0
        %1543 = vmatpush2.bf16.msra.mxu0 0
        %1544 = vmatprep.subr.bf16.mxu0 0
        %1545 = vmatpush2.bf16.msra.mxu0 0
        %1546 = vmatprep.subr.bf16.mxu0 0
        %1547 = vmatpush2.bf16.msra.mxu0 0
        %1548 = vmatprep.subr.bf16.mxu0 0
        %1549 = vmatpush2.bf16.msra.mxu0 0
        %1550 = vmatprep.subr.bf16.mxu0 0
        %1551 = vmatpush2.bf16.msra.mxu0 0
        %1552 = vmatprep.subr.bf16.mxu0 0
        %1553 = vmatpush2.bf16.msra.mxu0 0
        %1554 = vmatprep.mubr.bf16.mxu0 0
        %1555 = vmatmul.mubr.bf16.gmra.mxu0 %v1192
        %v1556 = vpop.f32.mrf.mxu0
        %v1557 = vadd.f32 0.0, %v1556
        %v1558 = vpop.f32.mrf.mxu0
        %v1559 = vadd.f32 0.0, %v1558
        %v1560 = vpop.f32.mrf.mxu0
        %v1561 = vpop.f32.mrf.mxu0
        %1562 = vdwg.mxu0
        %1563 = vmatprep.subr.bf16.mxu0 0
        %1564 = vmatpush1.bf16.msra.mxu0 0
        %1565 = vmatprep.subr.bf16.mxu0 0
        %1566 = vmatpush1.bf16.msra.mxu0 0
        %1567 = vmatprep.subr.bf16.mxu0 0
        %1568 = vmatpush1.bf16.msra.mxu0 0
        %1569 = vmatprep.subr.bf16.mxu0 0
        %1570 = vmatpush1.bf16.msra.mxu0 0
        %1571 = vmatprep.subr.bf16.mxu0 0
        %1572 = vmatpush1.bf16.msra.mxu0 0
        %1573 = vmatprep.subr.bf16.mxu0 0
        %1574 = vmatpush1.bf16.msra.mxu0 0
        %1575 = vmatprep.subr.bf16.mxu0 %v1017
        %1576 = vmatpush1.bf16.msra.mxu0 %v1016
        %1577 = vmatprep.subr.bf16.mxu0 %v953
        %1578 = vmatpush1.bf16.msra.mxu0 %v952
        %1579 = vmatprep.subr.bf16.mxu0 0
        %1580 = vmatpush2.bf16.msra.mxu0 0
        %1581 = vmatprep.subr.bf16.mxu0 0
        %1582 = vmatpush2.bf16.msra.mxu0 0
        %1583 = vmatprep.subr.bf16.mxu0 0
        %1584 = vmatpush2.bf16.msra.mxu0 0
        %1585 = vmatprep.subr.bf16.mxu0 0
        %1586 = vmatpush2.bf16.msra.mxu0 0
        %1587 = vmatprep.subr.bf16.mxu0 0
        %1588 = vmatpush2.bf16.msra.mxu0 0
        %1589 = vmatprep.subr.bf16.mxu0 0
        %1590 = vmatpush2.bf16.msra.mxu0 0
        %1591 = vmatprep.subr.bf16.mxu0 0
        %1592 = vmatpush2.bf16.msra.mxu0 0
        %1593 = vmatprep.subr.bf16.mxu0 0
        %1594 = vmatpush2.bf16.msra.mxu0 0
        %1595 = vmatprep.mubr.bf16.mxu0 0
        %1596 = vmatmul.mubr.bf16.gmra.mxu0 %v1192
        %v1597 = vpop.f32.mrf.mxu0
        %v1598 = vadd.f32 0.0, %v1597
        %v1599 = vpop.f32.mrf.mxu0
        %v1600 = vadd.f32 0.0, %v1599
        %v1601 = vpop.f32.mrf.mxu0
        %v1602 = vpop.f32.mrf.mxu0
        %1603 = vdwg.mxu0
        %1604 = vmatprep.subr.bf16.mxu0 0
        %1605 = vmatpush1.bf16.msra.mxu0 0
        %1606 = vmatprep.subr.bf16.mxu0 0
        %1607 = vmatpush1.bf16.msra.mxu0 0
        %1608 = vmatprep.subr.bf16.mxu0 0
        %1609 = vmatpush1.bf16.msra.mxu0 0
        %1610 = vmatprep.subr.bf16.mxu0 0
        %1611 = vmatpush1.bf16.msra.mxu0 0
        %1612 = vmatprep.subr.bf16.mxu0 0
        %1613 = vmatpush1.bf16.msra.mxu0 0
        %1614 = vmatprep.subr.bf16.mxu0 0
        %1615 = vmatpush1.bf16.msra.mxu0 0
        %1616 = vmatprep.subr.bf16.mxu0 %v1019
        %1617 = vmatpush1.bf16.msra.mxu0 %v1018
        %1618 = vmatprep.subr.bf16.mxu0 %v955
        %1619 = vmatpush1.bf16.msra.mxu0 %v954
        %1620 = vmatprep.subr.bf16.mxu0 0
        %1621 = vmatpush2.bf16.msra.mxu0 0
        %1622 = vmatprep.subr.bf16.mxu0 0
        %1623 = vmatpush2.bf16.msra.mxu0 0
        %1624 = vmatprep.subr.bf16.mxu0 0
        %1625 = vmatpush2.bf16.msra.mxu0 0
        %1626 = vmatprep.subr.bf16.mxu0 0
        %1627 = vmatpush2.bf16.msra.mxu0 0
        %1628 = vmatprep.subr.bf16.mxu0 0
        %1629 = vmatpush2.bf16.msra.mxu0 0
        %1630 = vmatprep.subr.bf16.mxu0 0
        %1631 = vmatpush2.bf16.msra.mxu0 0
        %1632 = vmatprep.subr.bf16.mxu0 0
        %1633 = vmatpush2.bf16.msra.mxu0 0
        %1634 = vmatprep.subr.bf16.mxu0 0
        %1635 = vmatpush2.bf16.msra.mxu0 0
        %1636 = vmatprep.mubr.bf16.mxu0 0
        %1637 = vmatmul.mubr.bf16.gmra.mxu0 %v1192
        %v1638 = vpop.f32.mrf.mxu0
        %v1639 = vadd.f32 0.0, %v1638
        %v1640 = vpop.f32.mrf.mxu0
        %v1641 = vadd.f32 0.0, %v1640
        %v1642 = vpop.f32.mrf.mxu0
        %v1643 = vpop.f32.mrf.mxu0
        %1644 = vdwg.mxu0
        %1645 = vmatprep.subr.bf16.mxu0 0
        %1646 = vmatpush1.bf16.msra.mxu0 0
        %1647 = vmatprep.subr.bf16.mxu0 0
        %1648 = vmatpush1.bf16.msra.mxu0 0
        %1649 = vmatprep.subr.bf16.mxu0 0
        %1650 = vmatpush1.bf16.msra.mxu0 0
        %1651 = vmatprep.subr.bf16.mxu0 0
        %1652 = vmatpush1.bf16.msra.mxu0 0
        %1653 = vmatprep.subr.bf16.mxu0 0
        %1654 = vmatpush1.bf16.msra.mxu0 0
        %1655 = vmatprep.subr.bf16.mxu0 0
        %1656 = vmatpush1.bf16.msra.mxu0 0
        %1657 = vmatprep.subr.bf16.mxu0 %v1021
        %1658 = vmatpush1.bf16.msra.mxu0 %v1020
        %1659 = vmatprep.subr.bf16.mxu0 %v957
        %1660 = vmatpush1.bf16.msra.mxu0 %v956
        %1661 = vmatprep.subr.bf16.mxu0 0
        %1662 = vmatpush2.bf16.msra.mxu0 0
        %1663 = vmatprep.subr.bf16.mxu0 0
        %1664 = vmatpush2.bf16.msra.mxu0 0
        %1665 = vmatprep.subr.bf16.mxu0 0
        %1666 = vmatpush2.bf16.msra.mxu0 0
        %1667 = vmatprep.subr.bf16.mxu0 0
        %1668 = vmatpush2.bf16.msra.mxu0 0
        %1669 = vmatprep.subr.bf16.mxu0 0
        %1670 = vmatpush2.bf16.msra.mxu0 0
        %1671 = vmatprep.subr.bf16.mxu0 0
        %1672 = vmatpush2.bf16.msra.mxu0 0
        %1673 = vmatprep.subr.bf16.mxu0 0
        %1674 = vmatpush2.bf16.msra.mxu0 0
        %1675 = vmatprep.subr.bf16.mxu0 0
        %1676 = vmatpush2.bf16.msra.mxu0 0
        %1677 = vmatprep.mubr.bf16.mxu0 0
        %1678 = vmatmul.mubr.bf16.gmra.mxu0 %v1192
        %v1679 = vpop.f32.mrf.mxu0
        %v1680 = vadd.f32 0.0, %v1679
        %v1681 = vpop.f32.mrf.mxu0
        %v1682 = vadd.f32 0.0, %v1681
        %v1683 = vpop.f32.mrf.mxu0
        %v1684 = vpop.f32.mrf.mxu0
        %1685 = vdwg.mxu0
        %1686 = vmatprep.subr.bf16.mxu0 0
        %1687 = vmatpush1.bf16.msra.mxu0 0
        %1688 = vmatprep.subr.bf16.mxu0 0
        %1689 = vmatpush1.bf16.msra.mxu0 0
        %1690 = vmatprep.subr.bf16.mxu0 0
        %1691 = vmatpush1.bf16.msra.mxu0 0
        %1692 = vmatprep.subr.bf16.mxu0 0
        %1693 = vmatpush1.bf16.msra.mxu0 0
        %1694 = vmatprep.subr.bf16.mxu0 0
        %1695 = vmatpush1.bf16.msra.mxu0 0
        %1696 = vmatprep.subr.bf16.mxu0 0
        %1697 = vmatpush1.bf16.msra.mxu0 0
        %1698 = vmatprep.subr.bf16.mxu0 %v1023
        %1699 = vmatpush1.bf16.msra.mxu0 %v1022
        %1700 = vmatprep.subr.bf16.mxu0 %v959
        %1701 = vmatpush1.bf16.msra.mxu0 %v958
        %1702 = vmatprep.subr.bf16.mxu0 0
        %1703 = vmatpush2.bf16.msra.mxu0 0
        %1704 = vmatprep.subr.bf16.mxu0 0
        %1705 = vmatpush2.bf16.msra.mxu0 0
        %1706 = vmatprep.subr.bf16.mxu0 0
        %1707 = vmatpush2.bf16.msra.mxu0 0
        %1708 = vmatprep.subr.bf16.mxu0 0
        %1709 = vmatpush2.bf16.msra.mxu0 0
        %1710 = vmatprep.subr.bf16.mxu0 0
        %1711 = vmatpush2.bf16.msra.mxu0 0
        %1712 = vmatprep.subr.bf16.mxu0 0
        %1713 = vmatpush2.bf16.msra.mxu0 0
        %1714 = vmatprep.subr.bf16.mxu0 0
        %1715 = vmatpush2.bf16.msra.mxu0 0
        %1716 = vmatprep.subr.bf16.mxu0 0
        %1717 = vmatpush2.bf16.msra.mxu0 0
        %1718 = vmatprep.mubr.bf16.mxu0 0
        %1719 = vmatmul.mubr.bf16.gmra.mxu0 %v1192
        %v1720 = vpop.f32.mrf.mxu0
        %v1721 = vadd.f32 0.0, %v1720
        %v1722 = vpop.f32.mrf.mxu0
        %v1723 = vadd.f32 0.0, %v1722
        %v1724 = vpop.f32.mrf.mxu0
        %v1725 = vpop.f32.mrf.mxu0
        %1726 = vdwg.mxu0
        %1727 = vmatprep.subr.bf16.mxu0 0
        %1728 = vmatpush1.bf16.msra.mxu0 0
        %1729 = vmatprep.subr.bf16.mxu0 0
        %1730 = vmatpush1.bf16.msra.mxu0 0
        %1731 = vmatprep.subr.bf16.mxu0 0
        %1732 = vmatpush1.bf16.msra.mxu0 0
        %1733 = vmatprep.subr.bf16.mxu0 0
        %1734 = vmatpush1.bf16.msra.mxu0 0
        %1735 = vmatprep.subr.bf16.mxu0 0
        %1736 = vmatpush1.bf16.msra.mxu0 0
        %1737 = vmatprep.subr.bf16.mxu0 0
        %1738 = vmatpush1.bf16.msra.mxu0 0
        %1739 = vmatprep.subr.bf16.mxu0 %v1025
        %1740 = vmatpush1.bf16.msra.mxu0 %v1024
        %1741 = vmatprep.subr.bf16.mxu0 %v961
        %1742 = vmatpush1.bf16.msra.mxu0 %v960
        %1743 = vmatprep.subr.bf16.mxu0 0
        %1744 = vmatpush2.bf16.msra.mxu0 0
        %1745 = vmatprep.subr.bf16.mxu0 0
        %1746 = vmatpush2.bf16.msra.mxu0 0
        %1747 = vmatprep.subr.bf16.mxu0 0
        %1748 = vmatpush2.bf16.msra.mxu0 0
        %1749 = vmatprep.subr.bf16.mxu0 0
        %1750 = vmatpush2.bf16.msra.mxu0 0
        %1751 = vmatprep.subr.bf16.mxu0 0
        %1752 = vmatpush2.bf16.msra.mxu0 0
        %1753 = vmatprep.subr.bf16.mxu0 0
        %1754 = vmatpush2.bf16.msra.mxu0 0
        %1755 = vmatprep.subr.bf16.mxu0 0
        %1756 = vmatpush2.bf16.msra.mxu0 0
        %1757 = vmatprep.subr.bf16.mxu0 0
        %1758 = vmatpush2.bf16.msra.mxu0 0
        %1759 = vmatprep.mubr.bf16.mxu0 0
        %1760 = vmatmul.mubr.bf16.gmra.mxu0 %v1192
        %v1761 = vpop.f32.mrf.mxu0
        %v1762 = vadd.f32 0.0, %v1761
        %v1763 = vpop.f32.mrf.mxu0
        %v1764 = vadd.f32 0.0, %v1763
        %v1765 = vpop.f32.mrf.mxu0
        %v1766 = vpop.f32.mrf.mxu0
        %1767 = vdwg.mxu0
        %1768 = vmatprep.subr.bf16.mxu0 0
        %1769 = vmatpush1.bf16.msra.mxu0 0
        %1770 = vmatprep.subr.bf16.mxu0 0
        %1771 = vmatpush1.bf16.msra.mxu0 0
        %1772 = vmatprep.subr.bf16.mxu0 0
        %1773 = vmatpush1.bf16.msra.mxu0 0
        %1774 = vmatprep.subr.bf16.mxu0 0
        %1775 = vmatpush1.bf16.msra.mxu0 0
        %1776 = vmatprep.subr.bf16.mxu0 0
        %1777 = vmatpush1.bf16.msra.mxu0 0
        %1778 = vmatprep.subr.bf16.mxu0 0
        %1779 = vmatpush1.bf16.msra.mxu0 0
        %1780 = vmatprep.subr.bf16.mxu0 %v1027
        %1781 = vmatpush1.bf16.msra.mxu0 %v1026
        %1782 = vmatprep.subr.bf16.mxu0 %v963
        %1783 = vmatpush1.bf16.msra.mxu0 %v962
        %1784 = vmatprep.subr.bf16.mxu0 0
        %1785 = vmatpush2.bf16.msra.mxu0 0
        %1786 = vmatprep.subr.bf16.mxu0 0
        %1787 = vmatpush2.bf16.msra.mxu0 0
        %1788 = vmatprep.subr.bf16.mxu0 0
        %1789 = vmatpush2.bf16.msra.mxu0 0
        %1790 = vmatprep.subr.bf16.mxu0 0
        %1791 = vmatpush2.bf16.msra.mxu0 0
        %1792 = vmatprep.subr.bf16.mxu0 0
        %1793 = vmatpush2.bf16.msra.mxu0 0
        %1794 = vmatprep.subr.bf16.mxu0 0
        %1795 = vmatpush2.bf16.msra.mxu0 0
        %1796 = vmatprep.subr.bf16.mxu0 0
        %1797 = vmatpush2.bf16.msra.mxu0 0
        %1798 = vmatprep.subr.bf16.mxu0 0
        %1799 = vmatpush2.bf16.msra.mxu0 0
        %1800 = vmatprep.mubr.bf16.mxu0 0
        %1801 = vmatmul.mubr.bf16.gmra.mxu0 %v1192
        %v1802 = vpop.f32.mrf.mxu0
        %v1803 = vadd.f32 0.0, %v1802
        %v1804 = vpop.f32.mrf.mxu0
        %v1805 = vadd.f32 0.0, %v1804
        %v1806 = vpop.f32.mrf.mxu0
        %v1807 = vpop.f32.mrf.mxu0
        %1808 = vdwg.mxu0
        %1809 = vmatprep.subr.bf16.mxu0 0
        %1810 = vmatpush1.bf16.msra.mxu0 0
        %1811 = vmatprep.subr.bf16.mxu0 0
        %1812 = vmatpush1.bf16.msra.mxu0 0
        %1813 = vmatprep.subr.bf16.mxu0 0
        %1814 = vmatpush1.bf16.msra.mxu0 0
        %1815 = vmatprep.subr.bf16.mxu0 0
        %1816 = vmatpush1.bf16.msra.mxu0 0
        %1817 = vmatprep.subr.bf16.mxu0 0
        %1818 = vmatpush1.bf16.msra.mxu0 0
        %1819 = vmatprep.subr.bf16.mxu0 0
        %1820 = vmatpush1.bf16.msra.mxu0 0
        %1821 = vmatprep.subr.bf16.mxu0 %v1029
        %1822 = vmatpush1.bf16.msra.mxu0 %v1028
        %1823 = vmatprep.subr.bf16.mxu0 %v965
        %1824 = vmatpush1.bf16.msra.mxu0 %v964
        %1825 = vmatprep.subr.bf16.mxu0 0
        %1826 = vmatpush2.bf16.msra.mxu0 0
        %1827 = vmatprep.subr.bf16.mxu0 0
        %1828 = vmatpush2.bf16.msra.mxu0 0
        %1829 = vmatprep.subr.bf16.mxu0 0
        %1830 = vmatpush2.bf16.msra.mxu0 0
        %1831 = vmatprep.subr.bf16.mxu0 0
        %1832 = vmatpush2.bf16.msra.mxu0 0
        %1833 = vmatprep.subr.bf16.mxu0 0
        %1834 = vmatpush2.bf16.msra.mxu0 0
        %1835 = vmatprep.subr.bf16.mxu0 0
        %1836 = vmatpush2.bf16.msra.mxu0 0
        %1837 = vmatprep.subr.bf16.mxu0 0
        %1838 = vmatpush2.bf16.msra.mxu0 0
        %1839 = vmatprep.subr.bf16.mxu0 0
        %1840 = vmatpush2.bf16.msra.mxu0 0
        %1841 = vmatprep.mubr.bf16.mxu0 0
        %1842 = vmatmul.mubr.bf16.gmra.mxu0 %v1192
        %v1843 = vpop.f32.mrf.mxu0
        %v1844 = vadd.f32 0.0, %v1843
        %v1845 = vpop.f32.mrf.mxu0
        %v1846 = vadd.f32 0.0, %v1845
        %v1847 = vpop.f32.mrf.mxu0
        %v1848 = vpop.f32.mrf.mxu0
        %1849 = vdwg.mxu0
        %1850 = vmatprep.subr.bf16.mxu0 0
        %1851 = vmatpush1.bf16.msra.mxu0 0
        %1852 = vmatprep.subr.bf16.mxu0 0
        %1853 = vmatpush1.bf16.msra.mxu0 0
        %1854 = vmatprep.subr.bf16.mxu0 0
        %1855 = vmatpush1.bf16.msra.mxu0 0
        %1856 = vmatprep.subr.bf16.mxu0 0
        %1857 = vmatpush1.bf16.msra.mxu0 0
        %1858 = vmatprep.subr.bf16.mxu0 0
        %1859 = vmatpush1.bf16.msra.mxu0 0
        %1860 = vmatprep.subr.bf16.mxu0 0
        %1861 = vmatpush1.bf16.msra.mxu0 0
        %1862 = vmatprep.subr.bf16.mxu0 %v1031
        %1863 = vmatpush1.bf16.msra.mxu0 %v1030
        %1864 = vmatprep.subr.bf16.mxu0 %v967
        %1865 = vmatpush1.bf16.msra.mxu0 %v966
        %1866 = vmatprep.subr.bf16.mxu0 0
        %1867 = vmatpush2.bf16.msra.mxu0 0
        %1868 = vmatprep.subr.bf16.mxu0 0
        %1869 = vmatpush2.bf16.msra.mxu0 0
        %1870 = vmatprep.subr.bf16.mxu0 0
        %1871 = vmatpush2.bf16.msra.mxu0 0
        %1872 = vmatprep.subr.bf16.mxu0 0
        %1873 = vmatpush2.bf16.msra.mxu0 0
        %1874 = vmatprep.subr.bf16.mxu0 0
        %1875 = vmatpush2.bf16.msra.mxu0 0
        %1876 = vmatprep.subr.bf16.mxu0 0
        %1877 = vmatpush2.bf16.msra.mxu0 0
        %1878 = vmatprep.subr.bf16.mxu0 0
        %1879 = vmatpush2.bf16.msra.mxu0 0
        %1880 = vmatprep.subr.bf16.mxu0 0
        %1881 = vmatpush2.bf16.msra.mxu0 0
        %1882 = vmatprep.mubr.bf16.mxu0 0
        %1883 = vmatmul.mubr.bf16.gmra.mxu0 %v1192
        %v1884 = vpop.f32.mrf.mxu0
        %v1885 = vadd.f32 0.0, %v1884
        %v1886 = vpop.f32.mrf.mxu0
        %v1887 = vadd.f32 0.0, %v1886
        %v1888 = vpop.f32.mrf.mxu0
        %v1889 = vpop.f32.mrf.mxu0
        %1890 = vdwg.mxu0
        %1891 = vmatprep.subr.bf16.mxu0 0
        %1892 = vmatpush1.bf16.msra.mxu0 0
        %1893 = vmatprep.subr.bf16.mxu0 0
        %1894 = vmatpush1.bf16.msra.mxu0 0
        %1895 = vmatprep.subr.bf16.mxu0 0
        %1896 = vmatpush1.bf16.msra.mxu0 0
        %1897 = vmatprep.subr.bf16.mxu0 0
        %1898 = vmatpush1.bf16.msra.mxu0 0
        %1899 = vmatprep.subr.bf16.mxu0 0
        %1900 = vmatpush1.bf16.msra.mxu0 0
        %1901 = vmatprep.subr.bf16.mxu0 0
        %1902 = vmatpush1.bf16.msra.mxu0 0
        %1903 = vmatprep.subr.bf16.mxu0 %v1033
        %1904 = vmatpush1.bf16.msra.mxu0 %v1032
        %1905 = vmatprep.subr.bf16.mxu0 %v969
        %1906 = vmatpush1.bf16.msra.mxu0 %v968
        %1907 = vmatprep.subr.bf16.mxu0 0
        %1908 = vmatpush2.bf16.msra.mxu0 0
        %1909 = vmatprep.subr.bf16.mxu0 0
        %1910 = vmatpush2.bf16.msra.mxu0 0
        %1911 = vmatprep.subr.bf16.mxu0 0
        %1912 = vmatpush2.bf16.msra.mxu0 0
        %1913 = vmatprep.subr.bf16.mxu0 0
        %1914 = vmatpush2.bf16.msra.mxu0 0
        %1915 = vmatprep.subr.bf16.mxu0 0
        %1916 = vmatpush2.bf16.msra.mxu0 0
        %1917 = vmatprep.subr.bf16.mxu0 0
        %1918 = vmatpush2.bf16.msra.mxu0 0
        %1919 = vmatprep.subr.bf16.mxu0 0
        %1920 = vmatpush2.bf16.msra.mxu0 0
        %1921 = vmatprep.subr.bf16.mxu0 0
        %1922 = vmatpush2.bf16.msra.mxu0 0
        %1923 = vmatprep.mubr.bf16.mxu0 0
        %1924 = vmatmul.mubr.bf16.gmra.mxu0 %v1192
        %v1925 = vpop.f32.mrf.mxu0
        %v1926 = vadd.f32 0.0, %v1925
        %v1927 = vpop.f32.mrf.mxu0
        %v1928 = vadd.f32 0.0, %v1927
        %v1929 = vpop.f32.mrf.mxu0
        %v1930 = vpop.f32.mrf.mxu0
        %1931 = vdwg.mxu0
        %1932 = vmatprep.subr.bf16.mxu0 0
        %1933 = vmatpush1.bf16.msra.mxu0 0
        %1934 = vmatprep.subr.bf16.mxu0 0
        %1935 = vmatpush1.bf16.msra.mxu0 0
        %1936 = vmatprep.subr.bf16.mxu0 0
        %1937 = vmatpush1.bf16.msra.mxu0 0
        %1938 = vmatprep.subr.bf16.mxu0 0
        %1939 = vmatpush1.bf16.msra.mxu0 0
        %1940 = vmatprep.subr.bf16.mxu0 0
        %1941 = vmatpush1.bf16.msra.mxu0 0
        %1942 = vmatprep.subr.bf16.mxu0 0
        %1943 = vmatpush1.bf16.msra.mxu0 0
        %1944 = vmatprep.subr.bf16.mxu0 %v1035
        %1945 = vmatpush1.bf16.msra.mxu0 %v1034
        %1946 = vmatprep.subr.bf16.mxu0 %v971
        %1947 = vmatpush1.bf16.msra.mxu0 %v970
        %1948 = vmatprep.subr.bf16.mxu0 0
        %1949 = vmatpush2.bf16.msra.mxu0 0
        %1950 = vmatprep.subr.bf16.mxu0 0
        %1951 = vmatpush2.bf16.msra.mxu0 0
        %1952 = vmatprep.subr.bf16.mxu0 0
        %1953 = vmatpush2.bf16.msra.mxu0 0
        %1954 = vmatprep.subr.bf16.mxu0 0
        %1955 = vmatpush2.bf16.msra.mxu0 0
        %1956 = vmatprep.subr.bf16.mxu0 0
        %1957 = vmatpush2.bf16.msra.mxu0 0
        %1958 = vmatprep.subr.bf16.mxu0 0
        %1959 = vmatpush2.bf16.msra.mxu0 0
        %1960 = vmatprep.subr.bf16.mxu0 0
        %1961 = vmatpush2.bf16.msra.mxu0 0
        %1962 = vmatprep.subr.bf16.mxu0 0
        %1963 = vmatpush2.bf16.msra.mxu0 0
        %1964 = vmatprep.mubr.bf16.mxu0 0
        %1965 = vmatmul.mubr.bf16.gmra.mxu0 %v1192
        %v1966 = vpop.f32.mrf.mxu0
        %v1967 = vadd.f32 0.0, %v1966
        %v1968 = vpop.f32.mrf.mxu0
        %v1969 = vadd.f32 0.0, %v1968
        %v1970 = vpop.f32.mrf.mxu0
        %v1971 = vpop.f32.mrf.mxu0
        %1972 = vdwg.mxu0
        %1973 = vmatprep.subr.bf16.mxu0 0
        %1974 = vmatpush1.bf16.msra.mxu0 0
        %1975 = vmatprep.subr.bf16.mxu0 0
        %1976 = vmatpush1.bf16.msra.mxu0 0
        %1977 = vmatprep.subr.bf16.mxu0 0
        %1978 = vmatpush1.bf16.msra.mxu0 0
        %1979 = vmatprep.subr.bf16.mxu0 0
        %1980 = vmatpush1.bf16.msra.mxu0 0
        %1981 = vmatprep.subr.bf16.mxu0 0
        %1982 = vmatpush1.bf16.msra.mxu0 0
        %1983 = vmatprep.subr.bf16.mxu0 0
        %1984 = vmatpush1.bf16.msra.mxu0 0
        %1985 = vmatprep.subr.bf16.mxu0 %v1037
        %1986 = vmatpush1.bf16.msra.mxu0 %v1036
        %1987 = vmatprep.subr.bf16.mxu0 %v973
        %1988 = vmatpush1.bf16.msra.mxu0 %v972
        %1989 = vmatprep.subr.bf16.mxu0 0
        %1990 = vmatpush2.bf16.msra.mxu0 0
        %1991 = vmatprep.subr.bf16.mxu0 0
        %1992 = vmatpush2.bf16.msra.mxu0 0
        %1993 = vmatprep.subr.bf16.mxu0 0
        %1994 = vmatpush2.bf16.msra.mxu0 0
        %1995 = vmatprep.subr.bf16.mxu0 0
        %1996 = vmatpush2.bf16.msra.mxu0 0
        %1997 = vmatprep.subr.bf16.mxu0 0
        %1998 = vmatpush2.bf16.msra.mxu0 0
        %1999 = vmatprep.subr.bf16.mxu0 0
        %2000 = vmatpush2.bf16.msra.mxu0 0
        %2001 = vmatprep.subr.bf16.mxu0 0
        %2002 = vmatpush2.bf16.msra.mxu0 0
        %2003 = vmatprep.subr.bf16.mxu0 0
        %2004 = vmatpush2.bf16.msra.mxu0 0
        %2005 = vmatprep.mubr.bf16.mxu0 0
        %2006 = vmatmul.mubr.bf16.gmra.mxu0 %v1192
        %v2007 = vpop.f32.mrf.mxu0
        %v2008 = vadd.f32 0.0, %v2007
        %v2009 = vpop.f32.mrf.mxu0
        %v2010 = vadd.f32 0.0, %v2009
        %v2011 = vpop.f32.mrf.mxu0
        %v2012 = vpop.f32.mrf.mxu0
        %2013 = vdwg.mxu0
        %2014 = vmatprep.subr.bf16.mxu0 0
        %2015 = vmatpush1.bf16.msra.mxu0 0
        %2016 = vmatprep.subr.bf16.mxu0 0
        %2017 = vmatpush1.bf16.msra.mxu0 0
        %2018 = vmatprep.subr.bf16.mxu0 0
        %2019 = vmatpush1.bf16.msra.mxu0 0
        %2020 = vmatprep.subr.bf16.mxu0 0
        %2021 = vmatpush1.bf16.msra.mxu0 0
        %2022 = vmatprep.subr.bf16.mxu0 0
        %2023 = vmatpush1.bf16.msra.mxu0 0
        %2024 = vmatprep.subr.bf16.mxu0 0
        %2025 = vmatpush1.bf16.msra.mxu0 0
        %2026 = vmatprep.subr.bf16.mxu0 %v1039
        %2027 = vmatpush1.bf16.msra.mxu0 %v1038
        %2028 = vmatprep.subr.bf16.mxu0 %v975
        %2029 = vmatpush1.bf16.msra.mxu0 %v974
        %2030 = vmatprep.subr.bf16.mxu0 0
        %2031 = vmatpush2.bf16.msra.mxu0 0
        %2032 = vmatprep.subr.bf16.mxu0 0
        %2033 = vmatpush2.bf16.msra.mxu0 0
        %2034 = vmatprep.subr.bf16.mxu0 0
        %2035 = vmatpush2.bf16.msra.mxu0 0
        %2036 = vmatprep.subr.bf16.mxu0 0
        %2037 = vmatpush2.bf16.msra.mxu0 0
        %2038 = vmatprep.subr.bf16.mxu0 0
        %2039 = vmatpush2.bf16.msra.mxu0 0
        %2040 = vmatprep.subr.bf16.mxu0 0
        %2041 = vmatpush2.bf16.msra.mxu0 0
        %2042 = vmatprep.subr.bf16.mxu0 0
        %2043 = vmatpush2.bf16.msra.mxu0 0
        %2044 = vmatprep.subr.bf16.mxu0 0
        %2045 = vmatpush2.bf16.msra.mxu0 0
        %2046 = vmatprep.mubr.bf16.mxu0 0
        %2047 = vmatmul.mubr.bf16.gmra.mxu0 %v1192
        %v2048 = vpop.f32.mrf.mxu0
        %v2049 = vadd.f32 0.0, %v2048
        %v2050 = vpop.f32.mrf.mxu0
        %v2051 = vadd.f32 0.0, %v2050
        %v2052 = vpop.f32.mrf.mxu0
        %v2053 = vpop.f32.mrf.mxu0
        %2054 = vdwg.mxu0
        %2055 = vmatprep.subr.bf16.mxu0 0
        %2056 = vmatpush1.bf16.msra.mxu0 0
        %2057 = vmatprep.subr.bf16.mxu0 0
        %2058 = vmatpush1.bf16.msra.mxu0 0
        %2059 = vmatprep.subr.bf16.mxu0 0
        %2060 = vmatpush1.bf16.msra.mxu0 0
        %2061 = vmatprep.subr.bf16.mxu0 0
        %2062 = vmatpush1.bf16.msra.mxu0 0
        %2063 = vmatprep.subr.bf16.mxu0 0
        %2064 = vmatpush1.bf16.msra.mxu0 0
        %2065 = vmatprep.subr.bf16.mxu0 0
        %2066 = vmatpush1.bf16.msra.mxu0 0
        %2067 = vmatprep.subr.bf16.mxu0 %v1041
        %2068 = vmatpush1.bf16.msra.mxu0 %v1040
        %2069 = vmatprep.subr.bf16.mxu0 %v977
        %2070 = vmatpush1.bf16.msra.mxu0 %v976
        %2071 = vmatprep.subr.bf16.mxu0 0
        %2072 = vmatpush2.bf16.msra.mxu0 0
        %2073 = vmatprep.subr.bf16.mxu0 0
        %2074 = vmatpush2.bf16.msra.mxu0 0
        %2075 = vmatprep.subr.bf16.mxu0 0
        %2076 = vmatpush2.bf16.msra.mxu0 0
        %2077 = vmatprep.subr.bf16.mxu0 0
        %2078 = vmatpush2.bf16.msra.mxu0 0
        %2079 = vmatprep.subr.bf16.mxu0 0
        %2080 = vmatpush2.bf16.msra.mxu0 0
        %2081 = vmatprep.subr.bf16.mxu0 0
        %2082 = vmatpush2.bf16.msra.mxu0 0
        %2083 = vmatprep.subr.bf16.mxu0 0
        %2084 = vmatpush2.bf16.msra.mxu0 0
        %2085 = vmatprep.subr.bf16.mxu0 0
        %2086 = vmatpush2.bf16.msra.mxu0 0
        %2087 = vmatprep.mubr.bf16.mxu0 0
        %2088 = vmatmul.mubr.bf16.gmra.mxu0 %v1192
        %v2089 = vpop.f32.mrf.mxu0
        %v2090 = vadd.f32 0.0, %v2089
        %v2091 = vpop.f32.mrf.mxu0
        %v2092 = vadd.f32 0.0, %v2091
        %v2093 = vpop.f32.mrf.mxu0
        %v2094 = vpop.f32.mrf.mxu0
        %2095 = vdwg.mxu0
        %2096 = vmatprep.subr.bf16.mxu0 0
        %2097 = vmatpush1.bf16.msra.mxu0 0
        %2098 = vmatprep.subr.bf16.mxu0 0
        %2099 = vmatpush1.bf16.msra.mxu0 0
        %2100 = vmatprep.subr.bf16.mxu0 0
        %2101 = vmatpush1.bf16.msra.mxu0 0
        %2102 = vmatprep.subr.bf16.mxu0 0
        %2103 = vmatpush1.bf16.msra.mxu0 0
        %2104 = vmatprep.subr.bf16.mxu0 0
        %2105 = vmatpush1.bf16.msra.mxu0 0
        %2106 = vmatprep.subr.bf16.mxu0 0
        %2107 = vmatpush1.bf16.msra.mxu0 0
        %2108 = vmatprep.subr.bf16.mxu0 %v1043
        %2109 = vmatpush1.bf16.msra.mxu0 %v1042
        %2110 = vmatprep.subr.bf16.mxu0 %v979
        %2111 = vmatpush1.bf16.msra.mxu0 %v978
        %2112 = vmatprep.subr.bf16.mxu0 0
        %2113 = vmatpush2.bf16.msra.mxu0 0
        %2114 = vmatprep.subr.bf16.mxu0 0
        %2115 = vmatpush2.bf16.msra.mxu0 0
        %2116 = vmatprep.subr.bf16.mxu0 0
        %2117 = vmatpush2.bf16.msra.mxu0 0
        %2118 = vmatprep.subr.bf16.mxu0 0
        %2119 = vmatpush2.bf16.msra.mxu0 0
        %2120 = vmatprep.subr.bf16.mxu0 0
        %2121 = vmatpush2.bf16.msra.mxu0 0
        %2122 = vmatprep.subr.bf16.mxu0 0
        %2123 = vmatpush2.bf16.msra.mxu0 0
        %2124 = vmatprep.subr.bf16.mxu0 0
        %2125 = vmatpush2.bf16.msra.mxu0 0
        %2126 = vmatprep.subr.bf16.mxu0 0
        %2127 = vmatpush2.bf16.msra.mxu0 0
        %2128 = vmatprep.mubr.bf16.mxu0 0
        %2129 = vmatmul.mubr.bf16.gmra.mxu0 %v1192
        %v2130 = vpop.f32.mrf.mxu0
        %v2131 = vadd.f32 0.0, %v2130
        %v2132 = vpop.f32.mrf.mxu0
        %v2133 = vadd.f32 0.0, %v2132
        %v2134 = vpop.f32.mrf.mxu0
        %v2135 = vpop.f32.mrf.mxu0
        %2136 = vdwg.mxu0
        %2137 = vmatprep.subr.bf16.mxu0 0
        %2138 = vmatpush1.bf16.msra.mxu0 0
        %2139 = vmatprep.subr.bf16.mxu0 0
        %2140 = vmatpush1.bf16.msra.mxu0 0
        %2141 = vmatprep.subr.bf16.mxu0 0
        %2142 = vmatpush1.bf16.msra.mxu0 0
        %2143 = vmatprep.subr.bf16.mxu0 0
        %2144 = vmatpush1.bf16.msra.mxu0 0
        %2145 = vmatprep.subr.bf16.mxu0 0
        %2146 = vmatpush1.bf16.msra.mxu0 0
        %2147 = vmatprep.subr.bf16.mxu0 0
        %2148 = vmatpush1.bf16.msra.mxu0 0
        %2149 = vmatprep.subr.bf16.mxu0 %v1045
        %2150 = vmatpush1.bf16.msra.mxu0 %v1044
        %2151 = vmatprep.subr.bf16.mxu0 %v981
        %2152 = vmatpush1.bf16.msra.mxu0 %v980
        %2153 = vmatprep.subr.bf16.mxu0 0
        %2154 = vmatpush2.bf16.msra.mxu0 0
        %2155 = vmatprep.subr.bf16.mxu0 0
        %2156 = vmatpush2.bf16.msra.mxu0 0
        %2157 = vmatprep.subr.bf16.mxu0 0
        %2158 = vmatpush2.bf16.msra.mxu0 0
        %2159 = vmatprep.subr.bf16.mxu0 0
        %2160 = vmatpush2.bf16.msra.mxu0 0
        %2161 = vmatprep.subr.bf16.mxu0 0
        %2162 = vmatpush2.bf16.msra.mxu0 0
        %2163 = vmatprep.subr.bf16.mxu0 0
        %2164 = vmatpush2.bf16.msra.mxu0 0
        %2165 = vmatprep.subr.bf16.mxu0 0
        %2166 = vmatpush2.bf16.msra.mxu0 0
        %2167 = vmatprep.subr.bf16.mxu0 0
        %2168 = vmatpush2.bf16.msra.mxu0 0
        %2169 = vmatprep.mubr.bf16.mxu0 0
        %2170 = vmatmul.mubr.bf16.gmra.mxu0 %v1192
        %v2171 = vpop.f32.mrf.mxu0
        %v2172 = vadd.f32 0.0, %v2171
        %v2173 = vpop.f32.mrf.mxu0
        %v2174 = vadd.f32 0.0, %v2173
        %v2175 = vpop.f32.mrf.mxu0
        %v2176 = vpop.f32.mrf.mxu0
        %2177 = vdwg.mxu0
        %2178 = vmatprep.subr.bf16.mxu0 0
        %2179 = vmatpush1.bf16.msra.mxu0 0
        %2180 = vmatprep.subr.bf16.mxu0 0
        %2181 = vmatpush1.bf16.msra.mxu0 0
        %2182 = vmatprep.subr.bf16.mxu0 0
        %2183 = vmatpush1.bf16.msra.mxu0 0
        %2184 = vmatprep.subr.bf16.mxu0 0
        %2185 = vmatpush1.bf16.msra.mxu0 0
        %2186 = vmatprep.subr.bf16.mxu0 0
        %2187 = vmatpush1.bf16.msra.mxu0 0
        %2188 = vmatprep.subr.bf16.mxu0 0
        %2189 = vmatpush1.bf16.msra.mxu0 0
        %2190 = vmatprep.subr.bf16.mxu0 %v1047
        %2191 = vmatpush1.bf16.msra.mxu0 %v1046
        %2192 = vmatprep.subr.bf16.mxu0 %v983
        %2193 = vmatpush1.bf16.msra.mxu0 %v982
        %2194 = vmatprep.subr.bf16.mxu0 0
        %2195 = vmatpush2.bf16.msra.mxu0 0
        %2196 = vmatprep.subr.bf16.mxu0 0
        %2197 = vmatpush2.bf16.msra.mxu0 0
        %2198 = vmatprep.subr.bf16.mxu0 0
        %2199 = vmatpush2.bf16.msra.mxu0 0
        %2200 = vmatprep.subr.bf16.mxu0 0
        %2201 = vmatpush2.bf16.msra.mxu0 0
        %2202 = vmatprep.subr.bf16.mxu0 0
        %2203 = vmatpush2.bf16.msra.mxu0 0
        %2204 = vmatprep.subr.bf16.mxu0 0
        %2205 = vmatpush2.bf16.msra.mxu0 0
        %2206 = vmatprep.subr.bf16.mxu0 0
        %2207 = vmatpush2.bf16.msra.mxu0 0
        %2208 = vmatprep.subr.bf16.mxu0 0
        %2209 = vmatpush2.bf16.msra.mxu0 0
        %2210 = vmatprep.mubr.bf16.mxu0 0
        %2211 = vmatmul.mubr.bf16.gmra.mxu0 %v1192
        %v2212 = vpop.f32.mrf.mxu0
        %v2213 = vadd.f32 0.0, %v2212
        %v2214 = vpop.f32.mrf.mxu0
        %v2215 = vadd.f32 0.0, %v2214
        %v2216 = vpop.f32.mrf.mxu0
        %v2217 = vpop.f32.mrf.mxu0
        %2218 = vdwg.mxu0
        %2219 = vmatprep.subr.bf16.mxu0 0
        %2220 = vmatpush1.bf16.msra.mxu0 0
        %2221 = vmatprep.subr.bf16.mxu0 0
        %2222 = vmatpush1.bf16.msra.mxu0 0
        %2223 = vmatprep.subr.bf16.mxu0 0
        %2224 = vmatpush1.bf16.msra.mxu0 0
        %2225 = vmatprep.subr.bf16.mxu0 0
        %2226 = vmatpush1.bf16.msra.mxu0 0
        %2227 = vmatprep.subr.bf16.mxu0 0
        %2228 = vmatpush1.bf16.msra.mxu0 0
        %2229 = vmatprep.subr.bf16.mxu0 0
        %2230 = vmatpush1.bf16.msra.mxu0 0
        %2231 = vmatprep.subr.bf16.mxu0 %v1049
        %2232 = vmatpush1.bf16.msra.mxu0 %v1048
        %2233 = vmatprep.subr.bf16.mxu0 %v985
        %2234 = vmatpush1.bf16.msra.mxu0 %v984
        %2235 = vmatprep.subr.bf16.mxu0 0
        %2236 = vmatpush2.bf16.msra.mxu0 0
        %2237 = vmatprep.subr.bf16.mxu0 0
        %2238 = vmatpush2.bf16.msra.mxu0 0
        %2239 = vmatprep.subr.bf16.mxu0 0
        %2240 = vmatpush2.bf16.msra.mxu0 0
        %2241 = vmatprep.subr.bf16.mxu0 0
        %2242 = vmatpush2.bf16.msra.mxu0 0
        %2243 = vmatprep.subr.bf16.mxu0 0
        %2244 = vmatpush2.bf16.msra.mxu0 0
        %2245 = vmatprep.subr.bf16.mxu0 0
        %2246 = vmatpush2.bf16.msra.mxu0 0
        %2247 = vmatprep.subr.bf16.mxu0 0
        %2248 = vmatpush2.bf16.msra.mxu0 0
        %2249 = vmatprep.subr.bf16.mxu0 0
        %2250 = vmatpush2.bf16.msra.mxu0 0
        %2251 = vmatprep.mubr.bf16.mxu0 0
        %2252 = vmatmul.mubr.bf16.gmra.mxu0 %v1192
        %v2253 = vpop.f32.mrf.mxu0
        %v2254 = vadd.f32 0.0, %v2253
        %v2255 = vpop.f32.mrf.mxu0
        %v2256 = vadd.f32 0.0, %v2255
        %v2257 = vpop.f32.mrf.mxu0
        %v2258 = vpop.f32.mrf.mxu0
        %2259 = vdwg.mxu0
        %2260 = vmatprep.subr.bf16.mxu0 0
        %2261 = vmatpush1.bf16.msra.mxu0 0
        %2262 = vmatprep.subr.bf16.mxu0 0
        %2263 = vmatpush1.bf16.msra.mxu0 0
        %2264 = vmatprep.subr.bf16.mxu0 0
        %2265 = vmatpush1.bf16.msra.mxu0 0
        %2266 = vmatprep.subr.bf16.mxu0 0
        %2267 = vmatpush1.bf16.msra.mxu0 0
        %2268 = vmatprep.subr.bf16.mxu0 0
        %2269 = vmatpush1.bf16.msra.mxu0 0
        %2270 = vmatprep.subr.bf16.mxu0 0
        %2271 = vmatpush1.bf16.msra.mxu0 0
        %2272 = vmatprep.subr.bf16.mxu0 %v1051
        %2273 = vmatpush1.bf16.msra.mxu0 %v1050
        %2274 = vmatprep.subr.bf16.mxu0 %v987
        %2275 = vmatpush1.bf16.msra.mxu0 %v986
        %2276 = vmatprep.subr.bf16.mxu0 0
        %2277 = vmatpush2.bf16.msra.mxu0 0
        %2278 = vmatprep.subr.bf16.mxu0 0
        %2279 = vmatpush2.bf16.msra.mxu0 0
        %2280 = vmatprep.subr.bf16.mxu0 0
        %2281 = vmatpush2.bf16.msra.mxu0 0
        %2282 = vmatprep.subr.bf16.mxu0 0
        %2283 = vmatpush2.bf16.msra.mxu0 0
        %2284 = vmatprep.subr.bf16.mxu0 0
        %2285 = vmatpush2.bf16.msra.mxu0 0
        %2286 = vmatprep.subr.bf16.mxu0 0
        %2287 = vmatpush2.bf16.msra.mxu0 0
        %2288 = vmatprep.subr.bf16.mxu0 0
        %2289 = vmatpush2.bf16.msra.mxu0 0
        %2290 = vmatprep.subr.bf16.mxu0 0
        %2291 = vmatpush2.bf16.msra.mxu0 0
        %2292 = vmatprep.mubr.bf16.mxu0 0
        %2293 = vmatmul.mubr.bf16.gmra.mxu0 %v1192
        %v2294 = vpop.f32.mrf.mxu0
        %v2295 = vadd.f32 0.0, %v2294
        %v2296 = vpop.f32.mrf.mxu0
        %v2297 = vadd.f32 0.0, %v2296
        %v2298 = vpop.f32.mrf.mxu0
        %v2299 = vpop.f32.mrf.mxu0
        %2300 = vdwg.mxu0
        %2301 = vmatprep.subr.bf16.mxu0 0
        %2302 = vmatpush1.bf16.msra.mxu0 0
        %2303 = vmatprep.subr.bf16.mxu0 0
        %2304 = vmatpush1.bf16.msra.mxu0 0
        %2305 = vmatprep.subr.bf16.mxu0 0
        %2306 = vmatpush1.bf16.msra.mxu0 0
        %2307 = vmatprep.subr.bf16.mxu0 0
        %2308 = vmatpush1.bf16.msra.mxu0 0
        %2309 = vmatprep.subr.bf16.mxu0 0
        %2310 = vmatpush1.bf16.msra.mxu0 0
        %2311 = vmatprep.subr.bf16.mxu0 0
        %2312 = vmatpush1.bf16.msra.mxu0 0
        %2313 = vmatprep.subr.bf16.mxu0 %v1053
        %2314 = vmatpush1.bf16.msra.mxu0 %v1052
        %2315 = vmatprep.subr.bf16.mxu0 %v989
        %2316 = vmatpush1.bf16.msra.mxu0 %v988
        %2317 = vmatprep.subr.bf16.mxu0 0
        %2318 = vmatpush2.bf16.msra.mxu0 0
        %2319 = vmatprep.subr.bf16.mxu0 0
        %2320 = vmatpush2.bf16.msra.mxu0 0
        %2321 = vmatprep.subr.bf16.mxu0 0
        %2322 = vmatpush2.bf16.msra.mxu0 0
        %2323 = vmatprep.subr.bf16.mxu0 0
        %2324 = vmatpush2.bf16.msra.mxu0 0
        %2325 = vmatprep.subr.bf16.mxu0 0
        %2326 = vmatpush2.bf16.msra.mxu0 0
        %2327 = vmatprep.subr.bf16.mxu0 0
        %2328 = vmatpush2.bf16.msra.mxu0 0
        %2329 = vmatprep.subr.bf16.mxu0 0
        %2330 = vmatpush2.bf16.msra.mxu0 0
        %2331 = vmatprep.subr.bf16.mxu0 0
        %2332 = vmatpush2.bf16.msra.mxu0 0
        %2333 = vmatprep.mubr.bf16.mxu0 0
        %2334 = vmatmul.mubr.bf16.gmra.mxu0 %v1192
        %v2335 = vpop.f32.mrf.mxu0
        %v2336 = vadd.f32 0.0, %v2335
        %v2337 = vpop.f32.mrf.mxu0
        %v2338 = vadd.f32 0.0, %v2337
        %v2339 = vpop.f32.mrf.mxu0
        %v2340 = vpop.f32.mrf.mxu0
        %2341 = vdwg.mxu0
        %2342 = vmatprep.subr.bf16.mxu0 0
        %2343 = vmatpush1.bf16.msra.mxu0 0
        %2344 = vmatprep.subr.bf16.mxu0 0
        %2345 = vmatpush1.bf16.msra.mxu0 0
        %2346 = vmatprep.subr.bf16.mxu0 0
        %2347 = vmatpush1.bf16.msra.mxu0 0
        %2348 = vmatprep.subr.bf16.mxu0 0
        %2349 = vmatpush1.bf16.msra.mxu0 0
        %2350 = vmatprep.subr.bf16.mxu0 0
        %2351 = vmatpush1.bf16.msra.mxu0 0
        %2352 = vmatprep.subr.bf16.mxu0 0
        %2353 = vmatpush1.bf16.msra.mxu0 0
        %2354 = vmatprep.subr.bf16.mxu0 %v1055
        %2355 = vmatpush1.bf16.msra.mxu0 %v1054
        %2356 = vmatprep.subr.bf16.mxu0 %v991
        %2357 = vmatpush1.bf16.msra.mxu0 %v990
        %2358 = vmatprep.subr.bf16.mxu0 0
        %2359 = vmatpush2.bf16.msra.mxu0 0
        %2360 = vmatprep.subr.bf16.mxu0 0
        %2361 = vmatpush2.bf16.msra.mxu0 0
        %2362 = vmatprep.subr.bf16.mxu0 0
        %2363 = vmatpush2.bf16.msra.mxu0 0
        %2364 = vmatprep.subr.bf16.mxu0 0
        %2365 = vmatpush2.bf16.msra.mxu0 0
        %2366 = vmatprep.subr.bf16.mxu0 0
        %2367 = vmatpush2.bf16.msra.mxu0 0
        %2368 = vmatprep.subr.bf16.mxu0 0
        %2369 = vmatpush2.bf16.msra.mxu0 0
        %2370 = vmatprep.subr.bf16.mxu0 0
        %2371 = vmatpush2.bf16.msra.mxu0 0
        %2372 = vmatprep.subr.bf16.mxu0 0
        %2373 = vmatpush2.bf16.msra.mxu0 0
        %2374 = vmatprep.mubr.bf16.mxu0 0
        %2375 = vmatmul.mubr.bf16.gmra.mxu0 %v1192
        %v2376 = vpop.f32.mrf.mxu0
        %v2377 = vadd.f32 0.0, %v2376
        %v2378 = vpop.f32.mrf.mxu0
        %v2379 = vadd.f32 0.0, %v2378
        %v2380 = vpop.f32.mrf.mxu0
        %v2381 = vpop.f32.mrf.mxu0
        %2382 = vdwg.mxu0
        %2383 = vmatprep.subr.bf16.mxu0 0
        %2384 = vmatpush1.bf16.msra.mxu0 0
        %2385 = vmatprep.subr.bf16.mxu0 0
        %2386 = vmatpush1.bf16.msra.mxu0 0
        %2387 = vmatprep.subr.bf16.mxu0 0
        %2388 = vmatpush1.bf16.msra.mxu0 0
        %2389 = vmatprep.subr.bf16.mxu0 0
        %2390 = vmatpush1.bf16.msra.mxu0 0
        %2391 = vmatprep.subr.bf16.mxu0 0
        %2392 = vmatpush1.bf16.msra.mxu0 0
        %2393 = vmatprep.subr.bf16.mxu0 0
        %2394 = vmatpush1.bf16.msra.mxu0 0
        %2395 = vmatprep.subr.bf16.mxu0 %v1057
        %2396 = vmatpush1.bf16.msra.mxu0 %v1056
        %2397 = vmatprep.subr.bf16.mxu0 %v993
        %2398 = vmatpush1.bf16.msra.mxu0 %v992
        %2399 = vmatprep.subr.bf16.mxu0 0
        %2400 = vmatpush2.bf16.msra.mxu0 0
        %2401 = vmatprep.subr.bf16.mxu0 0
        %2402 = vmatpush2.bf16.msra.mxu0 0
        %2403 = vmatprep.subr.bf16.mxu0 0
        %2404 = vmatpush2.bf16.msra.mxu0 0
        %2405 = vmatprep.subr.bf16.mxu0 0
        %2406 = vmatpush2.bf16.msra.mxu0 0
        %2407 = vmatprep.subr.bf16.mxu0 0
        %2408 = vmatpush2.bf16.msra.mxu0 0
        %2409 = vmatprep.subr.bf16.mxu0 0
        %2410 = vmatpush2.bf16.msra.mxu0 0
        %2411 = vmatprep.subr.bf16.mxu0 0
        %2412 = vmatpush2.bf16.msra.mxu0 0
        %2413 = vmatprep.subr.bf16.mxu0 0
        %2414 = vmatpush2.bf16.msra.mxu0 0
        %2415 = vmatprep.mubr.bf16.mxu0 0
        %2416 = vmatmul.mubr.bf16.gmra.mxu0 %v1192
        %v2417 = vpop.f32.mrf.mxu0
        %v2418 = vadd.f32 0.0, %v2417
        %v2419 = vpop.f32.mrf.mxu0
        %v2420 = vadd.f32 0.0, %v2419
        %v2421 = vpop.f32.mrf.mxu0
        %v2422 = vpop.f32.mrf.mxu0
        %2423 = vdwg.mxu0
        %2424 = vmatprep.subr.bf16.mxu0 0
        %2425 = vmatpush1.bf16.msra.mxu0 0
        %2426 = vmatprep.subr.bf16.mxu0 0
        %2427 = vmatpush1.bf16.msra.mxu0 0
        %2428 = vmatprep.subr.bf16.mxu0 0
        %2429 = vmatpush1.bf16.msra.mxu0 0
        %2430 = vmatprep.subr.bf16.mxu0 0
        %2431 = vmatpush1.bf16.msra.mxu0 0
        %2432 = vmatprep.subr.bf16.mxu0 0
        %2433 = vmatpush1.bf16.msra.mxu0 0
        %2434 = vmatprep.subr.bf16.mxu0 0
        %2435 = vmatpush1.bf16.msra.mxu0 0
        %2436 = vmatprep.subr.bf16.mxu0 %v1059
        %2437 = vmatpush1.bf16.msra.mxu0 %v1058
        %2438 = vmatprep.subr.bf16.mxu0 %v995
        %2439 = vmatpush1.bf16.msra.mxu0 %v994
        %2440 = vmatprep.subr.bf16.mxu0 0
        %2441 = vmatpush2.bf16.msra.mxu0 0
        %2442 = vmatprep.subr.bf16.mxu0 0
        %2443 = vmatpush2.bf16.msra.mxu0 0
        %2444 = vmatprep.subr.bf16.mxu0 0
        %2445 = vmatpush2.bf16.msra.mxu0 0
        %2446 = vmatprep.subr.bf16.mxu0 0
        %2447 = vmatpush2.bf16.msra.mxu0 0
        %2448 = vmatprep.subr.bf16.mxu0 0
        %2449 = vmatpush2.bf16.msra.mxu0 0
        %2450 = vmatprep.subr.bf16.mxu0 0
        %2451 = vmatpush2.bf16.msra.mxu0 0
        %2452 = vmatprep.subr.bf16.mxu0 0
        %2453 = vmatpush2.bf16.msra.mxu0 0
        %2454 = vmatprep.subr.bf16.mxu0 0
        %2455 = vmatpush2.bf16.msra.mxu0 0
        %2456 = vmatprep.mubr.bf16.mxu0 0
        %2457 = vmatmul.mubr.bf16.gmra.mxu0 %v1192
        %v2458 = vpop.f32.mrf.mxu0
        %v2459 = vadd.f32 0.0, %v2458
        %v2460 = vpop.f32.mrf.mxu0
        %v2461 = vadd.f32 0.0, %v2460
        %v2462 = vpop.f32.mrf.mxu0
        %v2463 = vpop.f32.mrf.mxu0
        %2464 = vdwg.mxu0
        %2465 = vmatprep.subr.bf16.mxu0 0
        %2466 = vmatpush1.bf16.msra.mxu0 0
        %2467 = vmatprep.subr.bf16.mxu0 0
        %2468 = vmatpush1.bf16.msra.mxu0 0
        %2469 = vmatprep.subr.bf16.mxu0 0
        %2470 = vmatpush1.bf16.msra.mxu0 0
        %2471 = vmatprep.subr.bf16.mxu0 0
        %2472 = vmatpush1.bf16.msra.mxu0 0
        %2473 = vmatprep.subr.bf16.mxu0 0
        %2474 = vmatpush1.bf16.msra.mxu0 0
        %2475 = vmatprep.subr.bf16.mxu0 0
        %2476 = vmatpush1.bf16.msra.mxu0 0
        %2477 = vmatprep.subr.bf16.mxu0 %v1061
        %2478 = vmatpush1.bf16.msra.mxu0 %v1060
        %2479 = vmatprep.subr.bf16.mxu0 %v997
        %2480 = vmatpush1.bf16.msra.mxu0 %v996
        %2481 = vmatprep.subr.bf16.mxu0 0
        %2482 = vmatpush2.bf16.msra.mxu0 0
        %2483 = vmatprep.subr.bf16.mxu0 0
        %2484 = vmatpush2.bf16.msra.mxu0 0
        %2485 = vmatprep.subr.bf16.mxu0 0
        %2486 = vmatpush2.bf16.msra.mxu0 0
        %2487 = vmatprep.subr.bf16.mxu0 0
        %2488 = vmatpush2.bf16.msra.mxu0 0
        %2489 = vmatprep.subr.bf16.mxu0 0
        %2490 = vmatpush2.bf16.msra.mxu0 0
        %2491 = vmatprep.subr.bf16.mxu0 0
        %2492 = vmatpush2.bf16.msra.mxu0 0
        %2493 = vmatprep.subr.bf16.mxu0 0
        %2494 = vmatpush2.bf16.msra.mxu0 0
        %2495 = vmatprep.subr.bf16.mxu0 0
        %2496 = vmatpush2.bf16.msra.mxu0 0
        %2497 = vmatprep.mubr.bf16.mxu0 0
        %2498 = vmatmul.mubr.bf16.gmra.mxu0 %v1192
        %v2499 = vpop.f32.mrf.mxu0
        %v2500 = vadd.f32 0.0, %v2499
        %v2501 = vpop.f32.mrf.mxu0
        %v2502 = vadd.f32 0.0, %v2501
        %v2503 = vpop.f32.mrf.mxu0
        %v2504 = vpop.f32.mrf.mxu0
        %2505 = vdwg.mxu0
        %v2506 = vtanh.pop %v1229
        %v2507 = vtanh.pop %v1231
        %v2508 = vtanh.pop %v1270
        %v2509 = vtanh.pop %v1272
        %v2510 = vtanh.pop %v1311
        %v2511 = vtanh.pop %v1313
        %v2512 = vtanh.pop %v1352
        %v2513 = vtanh.pop %v1354
        %v2514 = vtanh.pop %v1393
        %v2515 = vtanh.pop %v1395
        %v2516 = vtanh.pop %v1434
        %v2517 = vtanh.pop %v1436
        %v2518 = vtanh.pop %v1475
        %v2519 = vtanh.pop %v1477
        %v2520 = vtanh.pop %v1516
        %v2521 = vtanh.pop %v1518
        %v2522 = vtanh.pop %v1557
        %v2523 = vtanh.pop %v1559
        %v2524 = vtanh.pop %v1598
        %v2525 = vtanh.pop %v1600
        %v2526 = vtanh.pop %v1639
        %v2527 = vtanh.pop %v1641
        %v2528 = vtanh.pop %v1680
        %v2529 = vtanh.pop %v1682
        %v2530 = vtanh.pop %v1721
        %v2531 = vtanh.pop %v1723
        %v2532 = vtanh.pop %v1762
        %v2533 = vtanh.pop %v1764
        %v2534 = vtanh.pop %v1803
        %v2535 = vtanh.pop %v1805
        %v2536 = vtanh.pop %v1844
        %v2537 = vtanh.pop %v1846
        %v2538 = vtanh.pop %v1885
        %v2539 = vtanh.pop %v1887
        %v2540 = vtanh.pop %v1926
        %v2541 = vtanh.pop %v1928
        %v2542 = vtanh.pop %v1967
        %v2543 = vtanh.pop %v1969
        %v2544 = vtanh.pop %v2008
        %v2545 = vtanh.pop %v2010
        %v2546 = vtanh.pop %v2049
        %v2547 = vtanh.pop %v2051
        %v2548 = vtanh.pop %v2090
        %v2549 = vtanh.pop %v2092
        %v2550 = vtanh.pop %v2131
        %v2551 = vtanh.pop %v2133
        %v2552 = vtanh.pop %v2172
        %v2553 = vtanh.pop %v2174
        %v2554 = vtanh.pop %v2213
        %v2555 = vtanh.pop %v2215
        %v2556 = vtanh.pop %v2254
        %v2557 = vtanh.pop %v2256
        %v2558 = vtanh.pop %v2295
        %v2559 = vtanh.pop %v2297
        %v2560 = vtanh.pop %v2336
        %v2561 = vtanh.pop %v2338
        %v2562 = vtanh.pop %v2377
        %v2563 = vtanh.pop %v2379
        %v2564 = vtanh.pop %v2418
        %v2565 = vtanh.pop %v2420
        %v2566 = vtanh.pop %v2459
        %v2567 = vtanh.pop %v2461
        %v2568 = vtanh.pop %v2500
        %v2569 = vtanh.pop %v2502
        %v2634 = vcombine.low %v2506, %v2507
        %v2635 = vcombine.low %v2508, %v2509
        %v2636 = vcombine.low %v2510, %v2511
        %v2637 = vcombine.low %v2512, %v2513
        %v2638 = vcombine.low %v2514, %v2515
        %v2639 = vcombine.low %v2516, %v2517
        %v2640 = vcombine.low %v2518, %v2519
        %v2641 = vcombine.low %v2520, %v2521
        %v2642 = vcombine.low %v2522, %v2523
        %v2643 = vcombine.low %v2524, %v2525
        %v2644 = vcombine.low %v2526, %v2527
        %v2645 = vcombine.low %v2528, %v2529
        %v2646 = vcombine.low %v2530, %v2531
        %v2647 = vcombine.low %v2532, %v2533
        %v2648 = vcombine.low %v2534, %v2535
        %v2649 = vcombine.low %v2536, %v2537
        %v2650 = vcombine.low %v2538, %v2539
        %v2651 = vcombine.low %v2540, %v2541
        %v2652 = vcombine.low %v2542, %v2543
        %v2653 = vcombine.low %v2544, %v2545
        %v2654 = vcombine.low %v2546, %v2547
        %v2655 = vcombine.low %v2548, %v2549
        %v2656 = vcombine.low %v2550, %v2551
        %v2657 = vcombine.low %v2552, %v2553
        %v2658 = vcombine.low %v2554, %v2555
        %v2659 = vcombine.low %v2556, %v2557
        %v2660 = vcombine.low %v2558, %v2559
        %v2661 = vcombine.low %v2560, %v2561
        %v2662 = vcombine.low %v2562, %v2563
        %v2663 = vcombine.low %v2564, %v2565
        %v2664 = vcombine.low %v2566, %v2567
        %v2665 = vcombine.low %v2568, %v2569
        %2698 = vst [vmem:[%s418] sm:$0xff] %v2634
        %2699 = vst [vmem:[%s418 + $0x8] sm:$0xff] %v2635
        %2700 = vst [vmem:[%s418 + $0x10] sm:$0xff] %v2636
        %2701 = vst [vmem:[%s418 + $0x18] sm:$0xff] %v2637
        %2702 = vst [vmem:[%s418 + $0x20] sm:$0xff] %v2638
        %2703 = vst [vmem:[%s418 + $0x28] sm:$0xff] %v2639
        %2704 = vst [vmem:[%s418 + $0x30] sm:$0xff] %v2640
        %2705 = vst [vmem:[%s418 + $0x38] sm:$0xff] %v2641
        %2706 = vst [vmem:[%s418 + $0x40] sm:$0xff] %v2642
        %2707 = vst [vmem:[%s418 + $0x48] sm:$0xff] %v2643
        %2708 = vst [vmem:[%s418 + $0x50] sm:$0xff] %v2644
        %2709 = vst [vmem:[%s418 + $0x58] sm:$0xff] %v2645
        %2710 = vst [vmem:[%s418 + $0x60] sm:$0xff] %v2646
        %2711 = vst [vmem:[%s418 + $0x68] sm:$0xff] %v2647
        %2712 = vst [vmem:[%s418 + $0x70] sm:$0xff] %v2648
        %2713 = vst [vmem:[%s418 + $0x78] sm:$0xff] %v2649
        %2714 = vst [vmem:[%s418 + $0x80] sm:$0xff] %v2650
        %2715 = vst [vmem:[%s418 + $0x88] sm:$0xff] %v2651
        %2716 = vst [vmem:[%s418 + $0x90] sm:$0xff] %v2652
        %2717 = vst [vmem:[%s418 + $0x98] sm:$0xff] %v2653
        %2718 = vst [vmem:[%s418 + $0xa0] sm:$0xff] %v2654
        %2719 = vst [vmem:[%s418 + $0xa8] sm:$0xff] %v2655
        %2720 = vst [vmem:[%s418 + $0xb0] sm:$0xff] %v2656
        %2721 = vst [vmem:[%s418 + $0xb8] sm:$0xff] %v2657
        %2722 = vst [vmem:[%s418 + $0xc0] sm:$0xff] %v2658
        %2723 = vst [vmem:[%s418 + $0xc8] sm:$0xff] %v2659
        %2724 = vst [vmem:[%s418 + $0xd0] sm:$0xff] %v2660
        %2725 = vst [vmem:[%s418 + $0xd8] sm:$0xff] %v2661
        %2726 = vst [vmem:[%s418 + $0xe0] sm:$0xff] %v2662
        %2727 = vst [vmem:[%s418 + $0xe8] sm:$0xff] %v2663
        %2728 = vst [vmem:[%s418 + $0xf0] sm:$0xff] %v2664
        %2729 = vst [vmem:[%s418 + $0xf8] sm:$0xff] %v2665
        %s2730 = smul.u32 64, %s13
        %p2731 = scmp.lt.s32.totalorder %s2730, 255
        %s2732 = scalar_select %p2731, %s2730, 255
        %s2733 = smul.addr %s2732, 4
        %s2734 = scalar_lea.vmem %s2, %s2733
        // Predicated region
        $region52: #{generator_forward.13} parent=46 // pred_check
          %p2735 = pneg %p78
        $region53: #{generator_forward.13} parent=46 // pred_check_branch
          %2737 = sbr.rel (%p2735) target = $region55
        $region54: #{generator_forward.13} parent=46 // pred_region
          %s2738 = smul.u32 64, %s13
        $region55: #{generator_forward.13} parent=46 // pred_fallthru
          _
      $region47: #{generator_forward.13} parent=5 // pred_fallthru
        _
      %p2739 = scmp.le.s32.totalorder 2, %s8
      // Predicated region
      $region56: #{generator_forward.13} parent=5 // pred_check
        %p2740 = pneg %p2739
      $region57: #{generator_forward.13} parent=5 // pred_check_branch
        %2742 = sbr.rel (%p2740) target = $region59
      $region58: #{generator_forward.13} parent=5 // pred_region
        %s2743 = ssub.s32 %s8, 2
        // Predicated region
        $region60: #{generator_forward.13} parent=58 // pred_check
          %p2744 = pneg %p84
        $region61: #{generator_forward.13} parent=58 // pred_check_branch
          %2746 = sbr.rel (%p2744) target = $region63
        $region62: #{generator_forward.13} parent=58 // pred_region
          %s2747 = smul.u32 64, %s14
          %p2748 = scmp.lt.s32.totalorder %s2747, 255
          %s2749 = scalar_select %p2748, %s2747, 255
          %s2750 = smul.addr %s2749, 4
          %s2751 = scalar_lea.vmem %s2, %s2750
        $region63: #{generator_forward.13} parent=58 // pred_fallthru
          _
      $region59: #{generator_forward.13} parent=5 // pred_fallthru
        _
    $region6: #{generator_forward.13} parent=1 // loop_footer
      %s12 = sadd.s32 1, %s8
    $region7: #{generator_forward.13} parent=1 // loop_footer_branch
      %7 = sbr.rel target = $region3
    $region8: #{generator_forward.13} parent=1 // loop_exit
      _

</llo_original>
